<compile_context>
chip_gen: v7x
topology: tpu7x:2x2x1
jax: 0.10.0
libtpu: 0.0.40
codegen_flags: <defaults>
</compile_context>

<pallas_src>
import functools
import math

import jax
import jax.numpy as jnp
import numpy as np
from jax.experimental import pallas as pl
from jax.experimental.pallas import tpu as pltpu

D = 128            # width of rgb_global / pts_global / time_cond / pose embeddings
COND = 3 * D       # concat(time_cond, rgb_global, pts_global) width
NUM_TRAIN_TIMESTEPS = 1000
PAD_IN = 16        # pose mlp input dim padded (3 / 3 / 9 -> 16)
PAD_OUT = 16       # pose decoder output dim padded (3 / 3 / 9 -> 16)

# DDPM linear-beta schedule tables, computed once on the host (constants).
_BETAS = np.linspace(1e-4, 0.02, NUM_TRAIN_TIMESTEPS, dtype=np.float64)
_ACP = np.cumprod(1.0 - _BETAS)
SQRT_ACP = jnp.asarray(np.sqrt(_ACP), dtype=jnp.float32)
SQRT_1M_ACP = jnp.asarray(np.sqrt(1.0 - _ACP), dtype=jnp.float32)


# ----------------------------------------------------------------------------
# The single fused Pallas kernel
# ----------------------------------------------------------------------------
def _mega_kernel(
    # data
    pix_ref,        # (B*P, 3)  f32   flattened pixels (channels-last)
    ptsc_ref,       # (B*N, 3)  f32   centered points
    temb_ref,       # (Bp, D)   f32   sinusoidal timestep embedding (padded rows)
    xinit_ref,      # (3*Bp, PAD_IN) f32  stacked diffused pose inputs
    # rgb feature extractor
    rw1_ref, rb1_ref, rw2_ref, rb2_ref,
    # point feature extractor
    pw1_ref, pb1_ref, pw2_ref, pb2_ref, pw3_ref, pb3_ref,
    # time conditioning
    tw_ref, tb_ref,
    # fusion (8 stacked D->D linears)
    fu_w_ref, fu_b_ref,
    # pose U-stacks, stacked over the 3 branches
    mlp_w_ref, mlp_b_ref,
    f1_wt_ref, f1_wr_ref, f1_wp_ref, f1_we_ref, f1_b_ref,
    fd_w_ref, fd_b_ref,          # (18, D, D) / (18, 1, D): FCAM2..7 x 3 branches
    cat_wa_ref, cat_wb_ref, cat_b_ref,   # (9, D, D) x2 / (9, 1, D): concat2/1/0
    dec_w_ref, dec_b_ref,
    # output
    out_ref,        # (3*Bp, PAD_OUT) f32
    # scratch
    rgbf_ref, ptsf_ref,          # (Bp, D) f32 each
    *, batch,
):
    f32 = jnp.float32

    def mm(x, w):
        # f32 activations x bf16 weights -> f32 accumulate on the MXU.
        return jnp.dot(x, w.astype(f32), preferred_element_type=f32)

    def relu(x):
        return jnp.maximum(x, 0.0)

    n_pix = pix_ref.shape[0] // batch
    n_pts = ptsc_ref.shape[0] // batch
    bp = rgbf_ref.shape[0]

    # ---- shared per-pixel / per-point MLPs over the whole batch at once -----
    hp = relu(mm(pix_ref[...], rw1_ref[...]) + rb1_ref[...])     # (B*P, 64)
    h1 = relu(mm(ptsc_ref[...], pw1_ref[...]) + pb1_ref[...])    # (B*N, 64)
    h2 = relu(mm(h1, pw2_ref[...]) + pb2_ref[...])               # (B*N, 128)
    h3 = mm(h2, pw3_ref[...]) + pb3_ref[...]                     # (B*N, D)

    # per-sample pooling -> (Bp, D) feature matrices (pad rows stay zero)
    rgbf_ref[...] = jnp.zeros(rgbf_ref.shape, f32)
    ptsf_ref[...] = jnp.zeros(ptsf_ref.shape, f32)
    for b in range(batch):
        g = jnp.mean(hp[b * n_pix:(b + 1) * n_pix, :], axis=0, keepdims=True)  # (1, 64)
        rgbf_ref[pl.ds(b, 1), :] = mm(g, rw2_ref[...]) + rb2_ref[...]           # (1, D)
        ptsf_ref[pl.ds(b, 1), :] = jnp.max(
            h3[b * n_pts:(b + 1) * n_pts, :], axis=0, keepdims=True)            # (1, D)

    rgb0 = rgbf_ref[...]          # (Bp, D)
    pts0 = ptsf_ref[...]

    # ---- FSAM / cross-FCAM fusion (value-proj + out-proj residual) ----------
    def fuse(x, i):
        return mm(x, fu_w_ref[i]) + fu_b_ref[i]

    rgb1 = rgb0 + fuse(fuse(rgb0, 0), 1)
    pts1 = pts0 + fuse(fuse(pts0, 2), 3)
    rgb2 = rgb1 + fuse(fuse(pts1, 4), 5)
    pts2 = pts1 + fuse(fuse(rgb1, 6), 7)

    # ---- time conditioning ---------------------------------------------------
    tc = relu(mm(temb_ref[...], tw_ref[...]) + tb_ref[...])      # (Bp, D)

    # ---- three denoise U-stacks (concat layers done as split-weight sums) ----
    for g in range(3):
        g6 = 6 * g
        g3 = 3 * g
        x0 = xinit_ref[pl.ds(g * bp, bp), :]                      # (Bp, PAD_IN)
        e0 = relu(mm(x0, mlp_w_ref[g]) + mlp_b_ref[g])
        e1 = relu(mm(tc, f1_wt_ref[g]) + mm(rgb2, f1_wr_ref[g]) +
                  mm(pts2, f1_wp_ref[g]) + mm(e0, f1_we_ref[g]) + f1_b_ref[g])
        e2 = relu(mm(e1, fd_w_ref[g6 + 0]) + fd_b_ref[g6 + 0])
        e3 = relu(mm(e2, fd_w_ref[g6 + 1]) + fd_b_ref[g6 + 1])
        e4 = relu(mm(e3, fd_w_ref[g6 + 2]) + fd_b_ref[g6 + 2])
        c34 = relu(mm(e3, cat_wa_ref[g3 + 0]) + mm(e4, cat_wb_ref[g3 + 0]) + cat_b_ref[g3 + 0])
        e5 = relu(mm(c34, fd_w_ref[g6 + 3]) + fd_b_ref[g6 + 3])
        c25 = relu(mm(e2, cat_wa_ref[g3 + 1]) + mm(e5, cat_wb_ref[g3 + 1]) + cat_b_ref[g3 + 1])
        e6 = relu(mm(c25, fd_w_ref[g6 + 4]) + fd_b_ref[g6 + 4])
        c16 = relu(mm(e1, cat_wa_ref[g3 + 2]) + mm(e6, cat_wb_ref[g3 + 2]) + cat_b_ref[g3 + 2])
        e7 = relu(mm(c16, fd_w_ref[g6 + 5]) + fd_b_ref[g6 + 5])
        out_ref[pl.ds(g * bp, bp), :] = mm(e7, dec_w_ref[g]) + dec_b_ref[g]   # (Bp, PAD_OUT)


# ----------------------------------------------------------------------------
# Parameter construction (deterministic, PyTorch Linear-style init)
# ----------------------------------------------------------------------------
class _KeyGen:
    def __init__(self, key):
        self._key = key

    def __call__(self):
        self._key, sub = jax.random.split(self._key)
        return sub


def _init_linear(kg, fan_in, fan_out):
    s = 1.0 / math.sqrt(fan_in)
    w = jax.random.uniform(kg(), (fan_in, fan_out), jnp.float32, -s, s)
    b = jax.random.uniform(kg(), (fan_out,), jnp.float32, -s, s)
    return w, b


_PARAM_ORDER = (
    'rw1', 'rb1', 'rw2', 'rb2',
    'pw1', 'pb1', 'pw2', 'pb2', 'pw3', 'pb3',
    'tw', 'tb',
    'fu_w', 'fu_b',
    'mlp_w', 'mlp_b',
    'f1_wt', 'f1_wr', 'f1_wp', 'f1_we', 'f1_b',
    'fd_w', 'fd_b',
    'cat_wa', 'cat_wb', 'cat_b',
    'dec_w', 'dec_b',
)


def init_params(key):
    kg = _KeyGen(key)
    bf16 = jnp.bfloat16

    rw1, rb1 = _init_linear(kg, 3, 64)          # rgb 1x1 conv
    rw2, rb2 = _init_linear(kg, 64, D)          # rgb post-GAP fc
    pw1, pb1 = _init_linear(kg, 3, 64)          # PointNetfeat shared MLP
    pw2, pb2 = _init_linear(kg, 64, 128)
    pw3, pb3 = _init_linear(kg, 128, D)
    tw, tb = _init_linear(kg, D, D)             # time_cond

    # fusion: rgb_fsam_v/o, pts_fsam_v/o, p2r_v/o, r2p_v/o
    fu = [_init_linear(kg, D, D) for _ in range(8)]
    fu_w = jnp.stack([w for w, _ in fu])
    fu_b = jnp.stack([b for _, b in fu]).reshape(8, 1, D)

    mlp_w, mlp_b = [], []
    f1_wt, f1_wr, f1_wp, f1_we, f1_b = [], [], [], [], []
    fd_w, fd_b = [], []
    cat_wa, cat_wb, cat_b = [], [], []
    dec_w, dec_b = [], []
    for in_dim, out_dim in ((3, 3), (3, 3), (9, 9)):       # pose_s, pose_t, pose_R
        w, b = _init_linear(kg, in_dim, D)                  # pose_*_mlp
        mlp_w.append(jnp.zeros((PAD_IN, D), jnp.float32).at[:in_dim].set(w))
        mlp_b.append(b)
        w, b = _init_linear(kg, COND + D, D)                # FCAM1, weight split 4-way
        f1_wt.append(w[0:D]); f1_wr.append(w[D:2 * D])
        f1_wp.append(w[2 * D:3 * D]); f1_we.append(w[3 * D:4 * D])
        f1_b.append(b)
        layers = [_init_linear(kg, D, D) for _ in range(6)]  # FCAM2..FCAM7
        fd_w.append(jnp.stack([lw for lw, _ in layers]))
        fd_b.append(jnp.stack([lb for _, lb in layers]))
        cats = [_init_linear(kg, 2 * D, D) for _ in range(3)]  # concat2/1/0 split 2-way
        cat_wa.append(jnp.stack([cw[:D] for cw, _ in cats]))
        cat_wb.append(jnp.stack([cw[D:] for cw, _ in cats]))
        cat_b.append(jnp.stack([cb for _, cb in cats]))
        w, b = _init_linear(kg, D, out_dim)                 # pose_*_decoder (padded out)
        dec_w.append(jnp.zeros((D, PAD_OUT), jnp.float32).at[:, :out_dim].set(w))
        dec_b.append(jnp.zeros((PAD_OUT,), jnp.float32).at[:out_dim].set(b))

    params = dict(
        rw1=rw1.astype(bf16), rb1=rb1.reshape(1, 64),
        rw2=rw2.astype(bf16), rb2=rb2.reshape(1, D),
        pw1=pw1.astype(bf16), pb1=pb1.reshape(1, 64),
        pw2=pw2.astype(bf16), pb2=pb2.reshape(1, 128),
        pw3=pw3.astype(bf16), pb3=pb3.reshape(1, D),
        tw=tw.astype(bf16), tb=tb.reshape(1, D),
        fu_w=fu_w.astype(bf16), fu_b=fu_b,
        mlp_w=jnp.stack(mlp_w).astype(bf16),                        # (3, PAD_IN, D)
        mlp_b=jnp.stack(mlp_b).reshape(3, 1, D),
        f1_wt=jnp.stack(f1_wt).astype(bf16),                        # (3, D, D)
        f1_wr=jnp.stack(f1_wr).astype(bf16),
        f1_wp=jnp.stack(f1_wp).astype(bf16),
        f1_we=jnp.stack(f1_we).astype(bf16),
        f1_b=jnp.stack(f1_b).reshape(3, 1, D),
        fd_w=jnp.stack(fd_w).reshape(18, D, D).astype(bf16),        # (18, D, D)
        fd_b=jnp.stack(fd_b).reshape(18, 1, D),
        cat_wa=jnp.stack(cat_wa).reshape(9, D, D).astype(bf16),     # (9, D, D)
        cat_wb=jnp.stack(cat_wb).reshape(9, D, D).astype(bf16),
        cat_b=jnp.stack(cat_b).reshape(9, 1, D),
        dec_w=jnp.stack(dec_w).astype(bf16),                        # (3, D, PAD_OUT)
        dec_b=jnp.stack(dec_b).reshape(3, 1, PAD_OUT),
    )
    return params


# ----------------------------------------------------------------------------
# Forward pass (training branch of DIFFUSION.forward)
# ----------------------------------------------------------------------------
def _timestep_embedding(t, dim=D):
    half = dim // 2
    freqs = jnp.exp(-jnp.log(10000.0) * jnp.arange(half, dtype=jnp.float32) / half)
    args = t[:, None] * freqs[None, :]
    return jnp.concatenate([jnp.sin(args), jnp.cos(args)], axis=-1)


def _full_spec(x):
    nd = x.ndim
    return pl.BlockSpec(x.shape, lambda *_: (0,) * nd)


def diffusion_forward(params, inputs, key):
    rgb = inputs['rgb']          # [B, 3, H, W]  (NCHW, as in PyTorch)
    pts = inputs['pts']          # [B, N, 3]
    gt_s = inputs['gt_s']        # [B, 3]
    gt_t = inputs['gt_t']        # [B, 3]
    gt_R = inputs['gt_R']        # [B, 3, 3]

    B = rgb.shape[0]
    Bp = max(8, ((B + 7) // 8) * 8)          # pad dense-stack rows to a sublane group
    P = rgb.shape[2] * rgb.shape[3]
    N = pts.shape[1]

    # ---- cheap JAX glue: layout, RNG, DDPM scaling, timestep embedding ------
    pix = jnp.transpose(rgb, (0, 2, 3, 1)).reshape(B * P, 3)
    c = jnp.mean(pts, axis=1, keepdims=True)                     # [B, 1, 3]
    ptsc = (pts - c).reshape(B * N, 3)

    kn_s, kn_t, kn_R, k_step = jax.random.split(key, 4)
    delta_s = jax.random.normal(kn_s, (B, 3), jnp.float32)
    delta_t = jax.random.normal(kn_t, (B, 3), jnp.float32)
    delta_R = jax.random.normal(kn_R, (B, 3, 3), jnp.float32)
    steps = jax.random.randint(k_step, (B,), 0, NUM_TRAIN_TIMESTEPS)

    sqrt_a = SQRT_ACP[steps]                                     # [B]
    sqrt_1ma = SQRT_1M_ACP[steps]                                # [B]
    gt_t_centered = gt_t - c[:, 0, :]
    diff_s = sqrt_a[:, None] * gt_s + sqrt_1ma[:, None] * delta_s
    diff_t = sqrt_a[:, None] * gt_t_centered + sqrt_1ma[:, None] * delta_t
    diff_R = sqrt_a[:, None, None] * gt_R + sqrt_1ma[:, None, None] * delta_R

    temb = _timestep_embedding(steps.astype(jnp.float32))        # [B, D]
    temb = jnp.zeros((Bp, D), jnp.float32).at[:B].set(temb)

    xinit = jnp.zeros((3, Bp, PAD_IN), jnp.float32)
    xinit = xinit.at[0, :B, :3].set(diff_s)
    xinit = xinit.at[1, :B, :3].set(diff_t)
    xinit = xinit.at[2, :B, :9].set(diff_R.reshape(B, 9))
    xinit = xinit.reshape(3 * Bp, PAD_IN)

    flat_args = [pix, ptsc, temb, xinit] + [params[k] for k in _PARAM_ORDER]

    out = pl.pallas_call(
        functools.partial(_mega_kernel, batch=B),
        out_shape=jax.ShapeDtypeStruct((3 * Bp, PAD_OUT), jnp.float32),
        in_specs=[_full_spec(a) for a in flat_args],
        out_specs=pl.BlockSpec((3 * Bp, PAD_OUT), lambda *_: (0, 0)),
        scratch_shapes=[pltpu.VMEM((Bp, D), jnp.float32),
                        pltpu.VMEM((Bp, D), jnp.float32)],
    )(*flat_args)

    out = out.reshape(3, Bp, PAD_OUT)
    pred_delta_s = out[0, :B, :3]
    pred_delta_t = out[1, :B, :3]
    pred_delta_R = out[2, :B, :9].reshape(B, 3, 3)

    return {
        'pred_size1': pred_delta_s,
        'pred_translation1': pred_delta_t,
        'pred_rotation1': pred_delta_R,
        'delta_size0': delta_s,
        'delta_translation0': delta_t,
        'delta_rotation0': delta_R,
    }


# ----------------------------------------------------------------------------
# Main
# ----------------------------------------------------------------------------
if __name__ == "__main__":
    master = jax.random.PRNGKey(0)
    k_param, k_rgb, k_pts, k_s, k_t, k_R, k_fwd = jax.random.split(master, 7)

    B, H, W, N = 2, 16, 16, 128
    inputs = {
        'rgb': jax.random.normal(k_rgb, (B, 3, H, W), jnp.float32),
        'pts': jax.random.normal(k_pts, (B, N, 3), jnp.float32),
        'gt_s': jax.random.normal(k_s, (B, 3), jnp.float32),
        'gt_t': jax.random.normal(k_t, (B, 3), jnp.float32),
        'gt_R': jax.random.normal(k_R, (B, 3, 3), jnp.float32),
    }

    params = init_params(k_param)

    fwd = jax.jit(diffusion_forward)
    out = jax.block_until_ready(fwd(params, inputs, k_fwd))

    assert out['pred_size1'].shape == (B, 3)
    assert out['pred_translation1'].shape == (B, 3)
    assert out['pred_rotation1'].shape == (B, 3, 3)
    assert all(bool(jnp.all(jnp.isfinite(v))) for v in jax.tree_util.tree_leaves(out))
    print("KERNEL_OK")
</pallas_src>

<mosaic_0001>
module attributes {stable_mosaic.version = 11 : i64} {
  func.func @_mega_kernel(%arg0: memref<512x3xf32, #tpu.memory_space<vmem>>, %arg1: memref<256x3xf32, #tpu.memory_space<vmem>>, %arg2: memref<8x128xf32, #tpu.memory_space<vmem>>, %arg3: memref<24x16xf32, #tpu.memory_space<vmem>>, %arg4: memref<3x64xbf16, #tpu.memory_space<vmem>>, %arg5: memref<1x64xf32, #tpu.memory_space<vmem>>, %arg6: memref<64x128xbf16, #tpu.memory_space<vmem>>, %arg7: memref<1x128xf32, #tpu.memory_space<vmem>>, %arg8: memref<3x64xbf16, #tpu.memory_space<vmem>>, %arg9: memref<1x64xf32, #tpu.memory_space<vmem>>, %arg10: memref<64x128xbf16, #tpu.memory_space<vmem>>, %arg11: memref<1x128xf32, #tpu.memory_space<vmem>>, %arg12: memref<128x128xbf16, #tpu.memory_space<vmem>>, %arg13: memref<1x128xf32, #tpu.memory_space<vmem>>, %arg14: memref<128x128xbf16, #tpu.memory_space<vmem>>, %arg15: memref<1x128xf32, #tpu.memory_space<vmem>>, %arg16: memref<8x128x128xbf16, #tpu.memory_space<vmem>>, %arg17: memref<8x1x128xf32, #tpu.memory_space<vmem>>, %arg18: memref<3x16x128xbf16, #tpu.memory_space<vmem>>, %arg19: memref<3x1x128xf32, #tpu.memory_space<vmem>>, %arg20: memref<3x128x128xbf16, #tpu.memory_space<vmem>>, %arg21: memref<3x128x128xbf16, #tpu.memory_space<vmem>>, %arg22: memref<3x128x128xbf16, #tpu.memory_space<vmem>>, %arg23: memref<3x128x128xbf16, #tpu.memory_space<vmem>>, %arg24: memref<3x1x128xf32, #tpu.memory_space<vmem>>, %arg25: memref<18x128x128xbf16, #tpu.memory_space<vmem>>, %arg26: memref<18x1x128xf32, #tpu.memory_space<vmem>>, %arg27: memref<9x128x128xbf16, #tpu.memory_space<vmem>>, %arg28: memref<9x128x128xbf16, #tpu.memory_space<vmem>>, %arg29: memref<9x1x128xf32, #tpu.memory_space<vmem>>, %arg30: memref<3x128x16xbf16, #tpu.memory_space<vmem>>, %arg31: memref<3x1x16xf32, #tpu.memory_space<vmem>>, %arg32: memref<24x16xf32, #tpu.memory_space<vmem>>, %arg33: memref<8x128xf32, #tpu.memory_space<vmem>>, %arg34: memref<8x128xf32, #tpu.memory_space<vmem>>) attributes {dimension_semantics = [], scalar_prefetch = 0 : i64, scratch_operands = 2 : i64, tpu.core_type = #tpu.core_type<tc>} {
    %c0 = arith.constant 0 : index
    %c0_0 = arith.constant 0 : index
    %0 = vector.load %arg0[%c0, %c0_0] : memref<512x3xf32, #tpu.memory_space<vmem>>, vector<512x3xf32>
    %c0_1 = arith.constant 0 : index
    %c0_2 = arith.constant 0 : index
    %1 = vector.load %arg4[%c0_1, %c0_2] : memref<3x64xbf16, #tpu.memory_space<vmem>>, vector<3x64xbf16>
    %2 = arith.extf %1 : vector<3x64xbf16> to vector<3x64xf32>
    %cst = arith.constant dense<0.000000e+00> : vector<512x64xf32>
    %3 = tpu.matmul %0, %2, %cst {dimension_numbers = #tpu.dot_dimension_numbers<[1], [0], [0], [1], [0, 0, 1, 1], [], []>} : vector<512x3xf32>, vector<3x64xf32>, vector<512x64xf32> -> vector<512x64xf32>
    %c0_3 = arith.constant 0 : index
    %c0_4 = arith.constant 0 : index
    %4 = vector.load %arg5[%c0_3, %c0_4] : memref<1x64xf32, #tpu.memory_space<vmem>>, vector<1x64xf32>
    %5 = vector.broadcast %4 : vector<1x64xf32> to vector<512x64xf32>
    %6 = arith.addf %3, %5 : vector<512x64xf32>
    %cst_5 = arith.constant 0.000000e+00 : f32
    %7 = vector.broadcast %cst_5 : f32 to vector<512x64xf32>
    %8 = arith.maximumf %6, %7 : vector<512x64xf32>
    %c0_6 = arith.constant 0 : index
    %c0_7 = arith.constant 0 : index
    %9 = vector.load %arg1[%c0_6, %c0_7] : memref<256x3xf32, #tpu.memory_space<vmem>>, vector<256x3xf32>
    %c0_8 = arith.constant 0 : index
    %c0_9 = arith.constant 0 : index
    %10 = vector.load %arg8[%c0_8, %c0_9] : memref<3x64xbf16, #tpu.memory_space<vmem>>, vector<3x64xbf16>
    %11 = arith.extf %10 : vector<3x64xbf16> to vector<3x64xf32>
    %cst_10 = arith.constant dense<0.000000e+00> : vector<256x64xf32>
    %12 = tpu.matmul %9, %11, %cst_10 {dimension_numbers = #tpu.dot_dimension_numbers<[1], [0], [0], [1], [0, 0, 1, 1], [], []>} : vector<256x3xf32>, vector<3x64xf32>, vector<256x64xf32> -> vector<256x64xf32>
    %c0_11 = arith.constant 0 : index
    %c0_12 = arith.constant 0 : index
    %13 = vector.load %arg9[%c0_11, %c0_12] : memref<1x64xf32, #tpu.memory_space<vmem>>, vector<1x64xf32>
    %14 = vector.broadcast %13 : vector<1x64xf32> to vector<256x64xf32>
    %15 = arith.addf %12, %14 : vector<256x64xf32>
    %cst_13 = arith.constant 0.000000e+00 : f32
    %16 = vector.broadcast %cst_13 : f32 to vector<256x64xf32>
    %17 = arith.maximumf %15, %16 : vector<256x64xf32>
    %c0_14 = arith.constant 0 : index
    %c0_15 = arith.constant 0 : index
    %18 = vector.load %arg10[%c0_14, %c0_15] : memref<64x128xbf16, #tpu.memory_space<vmem>>, vector<64x128xbf16>
    %19 = arith.extf %18 : vector<64x128xbf16> to vector<64x128xf32>
    %cst_16 = arith.constant dense<0.000000e+00> : vector<256x128xf32>
    %20 = tpu.matmul %17, %19, %cst_16 {dimension_numbers = #tpu.dot_dimension_numbers<[1], [0], [0], [1], [0, 0, 1, 1], [], []>} : vector<256x64xf32>, vector<64x128xf32>, vector<256x128xf32> -> vector<256x128xf32>
    %c0_17 = arith.constant 0 : index
    %c0_18 = arith.constant 0 : index
    %21 = vector.load %arg11[%c0_17, %c0_18] : memref<1x128xf32, #tpu.memory_space<vmem>>, vector<1x128xf32>
    %22 = vector.broadcast %21 : vector<1x128xf32> to vector<256x128xf32>
    %23 = arith.addf %20, %22 : vector<256x128xf32>
    %cst_19 = arith.constant 0.000000e+00 : f32
    %24 = vector.broadcast %cst_19 : f32 to vector<256x128xf32>
    %25 = arith.maximumf %23, %24 : vector<256x128xf32>
    %c0_20 = arith.constant 0 : index
    %c0_21 = arith.constant 0 : index
    %26 = vector.load %arg12[%c0_20, %c0_21] : memref<128x128xbf16, #tpu.memory_space<vmem>>, vector<128x128xbf16>
    %27 = arith.extf %26 : vector<128x128xbf16> to vector<128x128xf32>
    %cst_22 = arith.constant dense<0.000000e+00> : vector<256x128xf32>
    %28 = tpu.matmul %25, %27, %cst_22 {dimension_numbers = #tpu.dot_dimension_numbers<[1], [0], [0], [1], [0, 0, 1, 1], [], []>} : vector<256x128xf32>, vector<128x128xf32>, vector<256x128xf32> -> vector<256x128xf32>
    %c0_23 = arith.constant 0 : index
    %c0_24 = arith.constant 0 : index
    %29 = vector.load %arg13[%c0_23, %c0_24] : memref<1x128xf32, #tpu.memory_space<vmem>>, vector<1x128xf32>
    %30 = vector.broadcast %29 : vector<1x128xf32> to vector<256x128xf32>
    %31 = arith.addf %28, %30 : vector<256x128xf32>
    %cst_25 = arith.constant 0.000000e+00 : f32
    %32 = vector.broadcast %cst_25 : f32 to vector<8x128xf32>
    %c0_26 = arith.constant 0 : index
    %c0_27 = arith.constant 0 : index
    %33 = vector.load %arg33[%c0_26, %c0_27] : memref<8x128xf32, #tpu.memory_space<vmem>>, vector<8x128xf32>
    tpu.vector_store %arg33[%c0_26, %c0_27], %32 {strides = array<i32>} : memref<8x128xf32, #tpu.memory_space<vmem>>, vector<8x128xf32>,
    %cst_28 = arith.constant 0.000000e+00 : f32
    %34 = vector.broadcast %cst_28 : f32 to vector<8x128xf32>
    %c0_29 = arith.constant 0 : index
    %c0_30 = arith.constant 0 : index
    %35 = vector.load %arg34[%c0_29, %c0_30] : memref<8x128xf32, #tpu.memory_space<vmem>>, vector<8x128xf32>
    tpu.vector_store %arg34[%c0_29, %c0_30], %34 {strides = array<i32>} : memref<8x128xf32, #tpu.memory_space<vmem>>, vector<8x128xf32>,
    %36 = vector.extract_strided_slice %8 {offsets = [0, 0], sizes = [256, 64], strides = [1, 1]} : vector<512x64xf32> to vector<256x64xf32>
    %cst_31 = arith.constant dense<0.000000e+00> : vector<64xf32>
    %37 = vector.multi_reduction <add>, %36, %cst_31 [0] : vector<256x64xf32> to vector<64xf32>
    %38 = vector.shape_cast %37 : vector<64xf32> to vector<1x64xf32>
    %cst_32 = arith.constant 2.560000e+02 : f32
    %39 = vector.broadcast %cst_32 : f32 to vector<1x64xf32>
    %40 = arith.divf %38, %39 : vector<1x64xf32>
    %c0_33 = arith.constant 0 : index
    %c0_34 = arith.constant 0 : index
    %41 = vector.load %arg6[%c0_33, %c0_34] : memref<64x128xbf16, #tpu.memory_space<vmem>>, vector<64x128xbf16>
    %42 = arith.extf %41 : vector<64x128xbf16> to vector<64x128xf32>
    %cst_35 = arith.constant dense<0.000000e+00> : vector<1x128xf32>
    %43 = tpu.matmul %40, %42, %cst_35 {dimension_numbers = #tpu.dot_dimension_numbers<[1], [0], [0], [1], [0, 0, 1, 1], [], []>} : vector<1x64xf32>, vector<64x128xf32>, vector<1x128xf32> -> vector<1x128xf32>
    %c0_36 = arith.constant 0 : index
    %c0_37 = arith.constant 0 : index
    %44 = vector.load %arg7[%c0_36, %c0_37] : memref<1x128xf32, #tpu.memory_space<vmem>>, vector<1x128xf32>
    %45 = arith.addf %43, %44 : vector<1x128xf32>
    %c0_38 = arith.constant 0 : index
    %c0_39 = arith.constant 0 : index
    %46 = vector.load %arg33[%c0_38, %c0_39] : memref<8x128xf32, #tpu.memory_space<vmem>>, vector<1x128xf32>
    tpu.vector_store %arg33[%c0_38, %c0_39], %45 {strides = array<i32>} : memref<8x128xf32, #tpu.memory_space<vmem>>, vector<1x128xf32>,
    %47 = vector.extract_strided_slice %31 {offsets = [0, 0], sizes = [128, 128], strides = [1, 1]} : vector<256x128xf32> to vector<128x128xf32>
    %cst_40 = arith.constant dense<0xFF800000> : vector<128xf32>
    %48 = vector.multi_reduction <maximumf>, %47, %cst_40 [0] : vector<128x128xf32> to vector<128xf32>
    %49 = vector.shape_cast %48 : vector<128xf32> to vector<1x128xf32>
    %c0_41 = arith.constant 0 : index
    %c0_42 = arith.constant 0 : index
    %50 = vector.load %arg34[%c0_41, %c0_42] : memref<8x128xf32, #tpu.memory_space<vmem>>, vector<1x128xf32>
    tpu.vector_store %arg34[%c0_41, %c0_42], %49 {strides = array<i32>} : memref<8x128xf32, #tpu.memory_space<vmem>>, vector<1x128xf32>,
    %51 = vector.extract_strided_slice %8 {offsets = [256, 0], sizes = [256, 64], strides = [1, 1]} : vector<512x64xf32> to vector<256x64xf32>
    %cst_43 = arith.constant dense<0.000000e+00> : vector<64xf32>
    %52 = vector.multi_reduction <add>, %51, %cst_43 [0] : vector<256x64xf32> to vector<64xf32>
    %53 = vector.shape_cast %52 : vector<64xf32> to vector<1x64xf32>
    %cst_44 = arith.constant 2.560000e+02 : f32
    %54 = vector.broadcast %cst_44 : f32 to vector<1x64xf32>
    %55 = arith.divf %53, %54 : vector<1x64xf32>
    %c0_45 = arith.constant 0 : index
    %c0_46 = arith.constant 0 : index
    %56 = vector.load %arg6[%c0_45, %c0_46] : memref<64x128xbf16, #tpu.memory_space<vmem>>, vector<64x128xbf16>
    %57 = arith.extf %56 : vector<64x128xbf16> to vector<64x128xf32>
    %cst_47 = arith.constant dense<0.000000e+00> : vector<1x128xf32>
    %58 = tpu.matmul %55, %57, %cst_47 {dimension_numbers = #tpu.dot_dimension_numbers<[1], [0], [0], [1], [0, 0, 1, 1], [], []>} : vector<1x64xf32>, vector<64x128xf32>, vector<1x128xf32> -> vector<1x128xf32>
    %c0_48 = arith.constant 0 : index
    %c0_49 = arith.constant 0 : index
    %59 = vector.load %arg7[%c0_48, %c0_49] : memref<1x128xf32, #tpu.memory_space<vmem>>, vector<1x128xf32>
    %60 = arith.addf %58, %59 : vector<1x128xf32>
    %c1 = arith.constant 1 : index
    %c0_50 = arith.constant 0 : index
    %61 = vector.load %arg33[%c1, %c0_50] : memref<8x128xf32, #tpu.memory_space<vmem>>, vector<1x128xf32>
    tpu.vector_store %arg33[%c1, %c0_50], %60 {strides = array<i32>} : memref<8x128xf32, #tpu.memory_space<vmem>>, vector<1x128xf32>,
    %62 = vector.extract_strided_slice %31 {offsets = [128, 0], sizes = [128, 128], strides = [1, 1]} : vector<256x128xf32> to vector<128x128xf32>
    %cst_51 = arith.constant dense<0xFF800000> : vector<128xf32>
    %63 = vector.multi_reduction <maximumf>, %62, %cst_51 [0] : vector<128x128xf32> to vector<128xf32>
    %64 = vector.shape_cast %63 : vector<128xf32> to vector<1x128xf32>
    %c1_52 = arith.constant 1 : index
    %c0_53 = arith.constant 0 : index
    %65 = vector.load %arg34[%c1_52, %c0_53] : memref<8x128xf32, #tpu.memory_space<vmem>>, vector<1x128xf32>
    tpu.vector_store %arg34[%c1_52, %c0_53], %64 {strides = array<i32>} : memref<8x128xf32, #tpu.memory_space<vmem>>, vector<1x128xf32>,
    %c0_54 = arith.constant 0 : index
    %c0_55 = arith.constant 0 : index
    %66 = vector.load %arg33[%c0_54, %c0_55] : memref<8x128xf32, #tpu.memory_space<vmem>>, vector<8x128xf32>
    %c0_56 = arith.constant 0 : index
    %c0_57 = arith.constant 0 : index
    %67 = vector.load %arg34[%c0_56, %c0_57] : memref<8x128xf32, #tpu.memory_space<vmem>>, vector<8x128xf32>
    %c0_58 = arith.constant 0 : index
    %c0_59 = arith.constant 0 : index
    %c0_60 = arith.constant 0 : index
    %68 = vector.load %arg16[%c0_58, %c0_59, %c0_60] : memref<8x128x128xbf16, #tpu.memory_space<vmem>>, vector<1x128x128xbf16>
    %69 = vector.shape_cast %68 : vector<1x128x128xbf16> to vector<128x128xbf16>
    %70 = arith.extf %69 : vector<128x128xbf16> to vector<128x128xf32>
    %cst_61 = arith.constant dense<0.000000e+00> : vector<8x128xf32>
    %71 = tpu.matmul %66, %70, %cst_61 {dimension_numbers = #tpu.dot_dimension_numbers<[1], [0], [0], [1], [0, 0, 1, 1], [], []>} : vector<8x128xf32>, vector<128x128xf32>, vector<8x128xf32> -> vector<8x128xf32>
    %c0_62 = arith.constant 0 : index
    %c0_63 = arith.constant 0 : index
    %c0_64 = arith.constant 0 : index
    %72 = vector.load %arg17[%c0_62, %c0_63, %c0_64] : memref<8x1x128xf32, #tpu.memory_space<vmem>>, vector<1x1x128xf32>
    %73 = vector.shape_cast %72 : vector<1x1x128xf32> to vector<1x128xf32>
    %74 = vector.broadcast %73 : vector<1x128xf32> to vector<8x128xf32>
    %75 = arith.addf %71, %74 : vector<8x128xf32>
    %c1_65 = arith.constant 1 : index
    %c0_66 = arith.constant 0 : index
    %c0_67 = arith.constant 0 : index
    %76 = vector.load %arg16[%c1_65, %c0_66, %c0_67] : memref<8x128x128xbf16, #tpu.memory_space<vmem>>, vector<1x128x128xbf16>
    %77 = vector.shape_cast %76 : vector<1x128x128xbf16> to vector<128x128xbf16>
    %78 = arith.extf %77 : vector<128x128xbf16> to vector<128x128xf32>
    %cst_68 = arith.constant dense<0.000000e+00> : vector<8x128xf32>
    %79 = tpu.matmul %75, %78, %cst_68 {dimension_numbers = #tpu.dot_dimension_numbers<[1], [0], [0], [1], [0, 0, 1, 1], [], []>} : vector<8x128xf32>, vector<128x128xf32>, vector<8x128xf32> -> vector<8x128xf32>
    %c1_69 = arith.constant 1 : index
    %c0_70 = arith.constant 0 : index
    %c0_71 = arith.constant 0 : index
    %80 = vector.load %arg17[%c1_69, %c0_70, %c0_71] : memref<8x1x128xf32, #tpu.memory_space<vmem>>, vector<1x1x128xf32>
    %81 = vector.shape_cast %80 : vector<1x1x128xf32> to vector<1x128xf32>
    %82 = vector.broadcast %81 : vector<1x128xf32> to vector<8x128xf32>
    %83 = arith.addf %79, %82 : vector<8x128xf32>
    %84 = arith.addf %66, %83 : vector<8x128xf32>
    %c2 = arith.constant 2 : index
    %c0_72 = arith.constant 0 : index
    %c0_73 = arith.constant 0 : index
    %85 = vector.load %arg16[%c2, %c0_72, %c0_73] : memref<8x128x128xbf16, #tpu.memory_space<vmem>>, vector<1x128x128xbf16>
    %86 = vector.shape_cast %85 : vector<1x128x128xbf16> to vector<128x128xbf16>
    %87 = arith.extf %86 : vector<128x128xbf16> to vector<128x128xf32>
    %cst_74 = arith.constant dense<0.000000e+00> : vector<8x128xf32>
    %88 = tpu.matmul %67, %87, %cst_74 {dimension_numbers = #tpu.dot_dimension_numbers<[1], [0], [0], [1], [0, 0, 1, 1], [], []>} : vector<8x128xf32>, vector<128x128xf32>, vector<8x128xf32> -> vector<8x128xf32>
    %c2_75 = arith.constant 2 : index
    %c0_76 = arith.constant 0 : index
    %c0_77 = arith.constant 0 : index
    %89 = vector.load %arg17[%c2_75, %c0_76, %c0_77] : memref<8x1x128xf32, #tpu.memory_space<vmem>>, vector<1x1x128xf32>
    %90 = vector.shape_cast %89 : vector<1x1x128xf32> to vector<1x128xf32>
    %91 = vector.broadcast %90 : vector<1x128xf32> to vector<8x128xf32>
    %92 = arith.addf %88, %91 : vector<8x128xf32>
    %c3 = arith.constant 3 : index
    %c0_78 = arith.constant 0 : index
    %c0_79 = arith.constant 0 : index
    %93 = vector.load %arg16[%c3, %c0_78, %c0_79] : memref<8x128x128xbf16, #tpu.memory_space<vmem>>, vector<1x128x128xbf16>
    %94 = vector.shape_cast %93 : vector<1x128x128xbf16> to vector<128x128xbf16>
    %95 = arith.extf %94 : vector<128x128xbf16> to vector<128x128xf32>
    %cst_80 = arith.constant dense<0.000000e+00> : vector<8x128xf32>
    %96 = tpu.matmul %92, %95, %cst_80 {dimension_numbers = #tpu.dot_dimension_numbers<[1], [0], [0], [1], [0, 0, 1, 1], [], []>} : vector<8x128xf32>, vector<128x128xf32>, vector<8x128xf32> -> vector<8x128xf32>
    %c3_81 = arith.constant 3 : index
    %c0_82 = arith.constant 0 : index
    %c0_83 = arith.constant 0 : index
    %97 = vector.load %arg17[%c3_81, %c0_82, %c0_83] : memref<8x1x128xf32, #tpu.memory_space<vmem>>, vector<1x1x128xf32>
    %98 = vector.shape_cast %97 : vector<1x1x128xf32> to vector<1x128xf32>
    %99 = vector.broadcast %98 : vector<1x128xf32> to vector<8x128xf32>
    %100 = arith.addf %96, %99 : vector<8x128xf32>
    %101 = arith.addf %67, %100 : vector<8x128xf32>
    %c4 = arith.constant 4 : index
    %c0_84 = arith.constant 0 : index
    %c0_85 = arith.constant 0 : index
    %102 = vector.load %arg16[%c4, %c0_84, %c0_85] : memref<8x128x128xbf16, #tpu.memory_space<vmem>>, vector<1x128x128xbf16>
    %103 = vector.shape_cast %102 : vector<1x128x128xbf16> to vector<128x128xbf16>
    %104 = arith.extf %103 : vector<128x128xbf16> to vector<128x128xf32>
    %cst_86 = arith.constant dense<0.000000e+00> : vector<8x128xf32>
    %105 = tpu.matmul %101, %104, %cst_86 {dimension_numbers = #tpu.dot_dimension_numbers<[1], [0], [0], [1], [0, 0, 1, 1], [], []>} : vector<8x128xf32>, vector<128x128xf32>, vector<8x128xf32> -> vector<8x128xf32>
    %c4_87 = arith.constant 4 : index
    %c0_88 = arith.constant 0 : index
    %c0_89 = arith.constant 0 : index
    %106 = vector.load %arg17[%c4_87, %c0_88, %c0_89] : memref<8x1x128xf32, #tpu.memory_space<vmem>>, vector<1x1x128xf32>
    %107 = vector.shape_cast %106 : vector<1x1x128xf32> to vector<1x128xf32>
    %108 = vector.broadcast %107 : vector<1x128xf32> to vector<8x128xf32>
    %109 = arith.addf %105, %108 : vector<8x128xf32>
    %c5 = arith.constant 5 : index
    %c0_90 = arith.constant 0 : index
    %c0_91 = arith.constant 0 : index
    %110 = vector.load %arg16[%c5, %c0_90, %c0_91] : memref<8x128x128xbf16, #tpu.memory_space<vmem>>, vector<1x128x128xbf16>
    %111 = vector.shape_cast %110 : vector<1x128x128xbf16> to vector<128x128xbf16>
    %112 = arith.extf %111 : vector<128x128xbf16> to vector<128x128xf32>
    %cst_92 = arith.constant dense<0.000000e+00> : vector<8x128xf32>
    %113 = tpu.matmul %109, %112, %cst_92 {dimension_numbers = #tpu.dot_dimension_numbers<[1], [0], [0], [1], [0, 0, 1, 1], [], []>} : vector<8x128xf32>, vector<128x128xf32>, vector<8x128xf32> -> vector<8x128xf32>
    %c5_93 = arith.constant 5 : index
    %c0_94 = arith.constant 0 : index
    %c0_95 = arith.constant 0 : index
    %114 = vector.load %arg17[%c5_93, %c0_94, %c0_95] : memref<8x1x128xf32, #tpu.memory_space<vmem>>, vector<1x1x128xf32>
    %115 = vector.shape_cast %114 : vector<1x1x128xf32> to vector<1x128xf32>
    %116 = vector.broadcast %115 : vector<1x128xf32> to vector<8x128xf32>
    %117 = arith.addf %113, %116 : vector<8x128xf32>
    %118 = arith.addf %84, %117 : vector<8x128xf32>
    %c6 = arith.constant 6 : index
    %c0_96 = arith.constant 0 : index
    %c0_97 = arith.constant 0 : index
    %119 = vector.load %arg16[%c6, %c0_96, %c0_97] : memref<8x128x128xbf16, #tpu.memory_space<vmem>>, vector<1x128x128xbf16>
    %120 = vector.shape_cast %119 : vector<1x128x128xbf16> to vector<128x128xbf16>
    %121 = arith.extf %120 : vector<128x128xbf16> to vector<128x128xf32>
    %cst_98 = arith.constant dense<0.000000e+00> : vector<8x128xf32>
    %122 = tpu.matmul %84, %121, %cst_98 {dimension_numbers = #tpu.dot_dimension_numbers<[1], [0], [0], [1], [0, 0, 1, 1], [], []>} : vector<8x128xf32>, vector<128x128xf32>, vector<8x128xf32> -> vector<8x128xf32>
    %c6_99 = arith.constant 6 : index
    %c0_100 = arith.constant 0 : index
    %c0_101 = arith.constant 0 : index
    %123 = vector.load %arg17[%c6_99, %c0_100, %c0_101] : memref<8x1x128xf32, #tpu.memory_space<vmem>>, vector<1x1x128xf32>
    %124 = vector.shape_cast %123 : vector<1x1x128xf32> to vector<1x128xf32>
    %125 = vector.broadcast %124 : vector<1x128xf32> to vector<8x128xf32>
    %126 = arith.addf %122, %125 : vector<8x128xf32>
    %c7 = arith.constant 7 : index
    %c0_102 = arith.constant 0 : index
    %c0_103 = arith.constant 0 : index
    %127 = vector.load %arg16[%c7, %c0_102, %c0_103] : memref<8x128x128xbf16, #tpu.memory_space<vmem>>, vector<1x128x128xbf16>
    %128 = vector.shape_cast %127 : vector<1x128x128xbf16> to vector<128x128xbf16>
    %129 = arith.extf %128 : vector<128x128xbf16> to vector<128x128xf32>
    %cst_104 = arith.constant dense<0.000000e+00> : vector<8x128xf32>
    %130 = tpu.matmul %126, %129, %cst_104 {dimension_numbers = #tpu.dot_dimension_numbers<[1], [0], [0], [1], [0, 0, 1, 1], [], []>} : vector<8x128xf32>, vector<128x128xf32>, vector<8x128xf32> -> vector<8x128xf32>
    %c7_105 = arith.constant 7 : index
    %c0_106 = arith.constant 0 : index
    %c0_107 = arith.constant 0 : index
    %131 = vector.load %arg17[%c7_105, %c0_106, %c0_107] : memref<8x1x128xf32, #tpu.memory_space<vmem>>, vector<1x1x128xf32>
    %132 = vector.shape_cast %131 : vector<1x1x128xf32> to vector<1x128xf32>
    %133 = vector.broadcast %132 : vector<1x128xf32> to vector<8x128xf32>
    %134 = arith.addf %130, %133 : vector<8x128xf32>
    %135 = arith.addf %101, %134 : vector<8x128xf32>
    %c0_108 = arith.constant 0 : index
    %c0_109 = arith.constant 0 : index
    %136 = vector.load %arg2[%c0_108, %c0_109] : memref<8x128xf32, #tpu.memory_space<vmem>>, vector<8x128xf32>
    %c0_110 = arith.constant 0 : index
    %c0_111 = arith.constant 0 : index
    %137 = vector.load %arg14[%c0_110, %c0_111] : memref<128x128xbf16, #tpu.memory_space<vmem>>, vector<128x128xbf16>
    %138 = arith.extf %137 : vector<128x128xbf16> to vector<128x128xf32>
    %cst_112 = arith.constant dense<0.000000e+00> : vector<8x128xf32>
    %139 = tpu.matmul %136, %138, %cst_112 {dimension_numbers = #tpu.dot_dimension_numbers<[1], [0], [0], [1], [0, 0, 1, 1], [], []>} : vector<8x128xf32>, vector<128x128xf32>, vector<8x128xf32> -> vector<8x128xf32>
    %c0_113 = arith.constant 0 : index
    %c0_114 = arith.constant 0 : index
    %140 = vector.load %arg15[%c0_113, %c0_114] : memref<1x128xf32, #tpu.memory_space<vmem>>, vector<1x128xf32>
    %141 = vector.broadcast %140 : vector<1x128xf32> to vector<8x128xf32>
    %142 = arith.addf %139, %141 : vector<8x128xf32>
    %cst_115 = arith.constant 0.000000e+00 : f32
    %143 = vector.broadcast %cst_115 : f32 to vector<8x128xf32>
    %144 = arith.maximumf %142, %143 : vector<8x128xf32>
    %c0_116 = arith.constant 0 : index
    %c0_117 = arith.constant 0 : index
    %145 = vector.load %arg3[%c0_116, %c0_117] : memref<24x16xf32, #tpu.memory_space<vmem>>, vector<8x16xf32>
    %c0_118 = arith.constant 0 : index
    %c0_119 = arith.constant 0 : index
    %c0_120 = arith.constant 0 : index
    %146 = vector.load %arg18[%c0_118, %c0_119, %c0_120] : memref<3x16x128xbf16, #tpu.memory_space<vmem>>, vector<1x16x128xbf16>
    %147 = vector.shape_cast %146 : vector<1x16x128xbf16> to vector<16x128xbf16>
    %148 = arith.extf %147 : vector<16x128xbf16> to vector<16x128xf32>
    %cst_121 = arith.constant dense<0.000000e+00> : vector<8x128xf32>
    %149 = tpu.matmul %145, %148, %cst_121 {dimension_numbers = #tpu.dot_dimension_numbers<[1], [0], [0], [1], [0, 0, 1, 1], [], []>} : vector<8x16xf32>, vector<16x128xf32>, vector<8x128xf32> -> vector<8x128xf32>
    %c0_122 = arith.constant 0 : index
    %c0_123 = arith.constant 0 : index
    %c0_124 = arith.constant 0 : index
    %150 = vector.load %arg19[%c0_122, %c0_123, %c0_124] : memref<3x1x128xf32, #tpu.memory_space<vmem>>, vector<1x1x128xf32>
    %151 = vector.shape_cast %150 : vector<1x1x128xf32> to vector<1x128xf32>
    %152 = vector.broadcast %151 : vector<1x128xf32> to vector<8x128xf32>
    %153 = arith.addf %149, %152 : vector<8x128xf32>
    %cst_125 = arith.constant 0.000000e+00 : f32
    %154 = vector.broadcast %cst_125 : f32 to vector<8x128xf32>
    %155 = arith.maximumf %153, %154 : vector<8x128xf32>
    %c0_126 = arith.constant 0 : index
    %c0_127 = arith.constant 0 : index
    %c0_128 = arith.constant 0 : index
    %156 = vector.load %arg20[%c0_126, %c0_127, %c0_128] : memref<3x128x128xbf16, #tpu.memory_space<vmem>>, vector<1x128x128xbf16>
    %157 = vector.shape_cast %156 : vector<1x128x128xbf16> to vector<128x128xbf16>
    %158 = arith.extf %157 : vector<128x128xbf16> to vector<128x128xf32>
    %cst_129 = arith.constant dense<0.000000e+00> : vector<8x128xf32>
    %159 = tpu.matmul %144, %158, %cst_129 {dimension_numbers = #tpu.dot_dimension_numbers<[1], [0], [0], [1], [0, 0, 1, 1], [], []>} : vector<8x128xf32>, vector<128x128xf32>, vector<8x128xf32> -> vector<8x128xf32>
    %c0_130 = arith.constant 0 : index
    %c0_131 = arith.constant 0 : index
    %c0_132 = arith.constant 0 : index
    %160 = vector.load %arg21[%c0_130, %c0_131, %c0_132] : memref<3x128x128xbf16, #tpu.memory_space<vmem>>, vector<1x128x128xbf16>
    %161 = vector.shape_cast %160 : vector<1x128x128xbf16> to vector<128x128xbf16>
    %162 = arith.extf %161 : vector<128x128xbf16> to vector<128x128xf32>
    %cst_133 = arith.constant dense<0.000000e+00> : vector<8x128xf32>
    %163 = tpu.matmul %118, %162, %cst_133 {dimension_numbers = #tpu.dot_dimension_numbers<[1], [0], [0], [1], [0, 0, 1, 1], [], []>} : vector<8x128xf32>, vector<128x128xf32>, vector<8x128xf32> -> vector<8x128xf32>
    %164 = arith.addf %159, %163 : vector<8x128xf32>
    %c0_134 = arith.constant 0 : index
    %c0_135 = arith.constant 0 : index
    %c0_136 = arith.constant 0 : index
    %165 = vector.load %arg22[%c0_134, %c0_135, %c0_136] : memref<3x128x128xbf16, #tpu.memory_space<vmem>>, vector<1x128x128xbf16>
    %166 = vector.shape_cast %165 : vector<1x128x128xbf16> to vector<128x128xbf16>
    %167 = arith.extf %166 : vector<128x128xbf16> to vector<128x128xf32>
    %cst_137 = arith.constant dense<0.000000e+00> : vector<8x128xf32>
    %168 = tpu.matmul %135, %167, %cst_137 {dimension_numbers = #tpu.dot_dimension_numbers<[1], [0], [0], [1], [0, 0, 1, 1], [], []>} : vector<8x128xf32>, vector<128x128xf32>, vector<8x128xf32> -> vector<8x128xf32>
    %169 = arith.addf %164, %168 : vector<8x128xf32>
    %c0_138 = arith.constant 0 : index
    %c0_139 = arith.constant 0 : index
    %c0_140 = arith.constant 0 : index
    %170 = vector.load %arg23[%c0_138, %c0_139, %c0_140] : memref<3x128x128xbf16, #tpu.memory_space<vmem>>, vector<1x128x128xbf16>
    %171 = vector.shape_cast %170 : vector<1x128x128xbf16> to vector<128x128xbf16>
    %172 = arith.extf %171 : vector<128x128xbf16> to vector<128x128xf32>
    %cst_141 = arith.constant dense<0.000000e+00> : vector<8x128xf32>
    %173 = tpu.matmul %155, %172, %cst_141 {dimension_numbers = #tpu.dot_dimension_numbers<[1], [0], [0], [1], [0, 0, 1, 1], [], []>} : vector<8x128xf32>, vector<128x128xf32>, vector<8x128xf32> -> vector<8x128xf32>
    %174 = arith.addf %169, %173 : vector<8x128xf32>
    %c0_142 = arith.constant 0 : index
    %c0_143 = arith.constant 0 : index
    %c0_144 = arith.constant 0 : index
    %175 = vector.load %arg24[%c0_142, %c0_143, %c0_144] : memref<3x1x128xf32, #tpu.memory_space<vmem>>, vector<1x1x128xf32>
    %176 = vector.shape_cast %175 : vector<1x1x128xf32> to vector<1x128xf32>
    %177 = vector.broadcast %176 : vector<1x128xf32> to vector<8x128xf32>
    %178 = arith.addf %174, %177 : vector<8x128xf32>
    %cst_145 = arith.constant 0.000000e+00 : f32
    %179 = vector.broadcast %cst_145 : f32 to vector<8x128xf32>
    %180 = arith.maximumf %178, %179 : vector<8x128xf32>
    %c0_146 = arith.constant 0 : index
    %c0_147 = arith.constant 0 : index
    %c0_148 = arith.constant 0 : index
    %181 = vector.load %arg25[%c0_146, %c0_147, %c0_148] : memref<18x128x128xbf16, #tpu.memory_space<vmem>>, vector<1x128x128xbf16>
    %182 = vector.shape_cast %181 : vector<1x128x128xbf16> to vector<128x128xbf16>
    %183 = arith.extf %182 : vector<128x128xbf16> to vector<128x128xf32>
    %cst_149 = arith.constant dense<0.000000e+00> : vector<8x128xf32>
    %184 = tpu.matmul %180, %183, %cst_149 {dimension_numbers = #tpu.dot_dimension_numbers<[1], [0], [0], [1], [0, 0, 1, 1], [], []>} : vector<8x128xf32>, vector<128x128xf32>, vector<8x128xf32> -> vector<8x128xf32>
    %c0_150 = arith.constant 0 : index
    %c0_151 = arith.constant 0 : index
    %c0_152 = arith.constant 0 : index
    %185 = vector.load %arg26[%c0_150, %c0_151, %c0_152] : memref<18x1x128xf32, #tpu.memory_space<vmem>>, vector<1x1x128xf32>
    %186 = vector.shape_cast %185 : vector<1x1x128xf32> to vector<1x128xf32>
    %187 = vector.broadcast %186 : vector<1x128xf32> to vector<8x128xf32>
    %188 = arith.addf %184, %187 : vector<8x128xf32>
    %cst_153 = arith.constant 0.000000e+00 : f32
    %189 = vector.broadcast %cst_153 : f32 to vector<8x128xf32>
    %190 = arith.maximumf %188, %189 : vector<8x128xf32>
    %c1_154 = arith.constant 1 : index
    %c0_155 = arith.constant 0 : index
    %c0_156 = arith.constant 0 : index
    %191 = vector.load %arg25[%c1_154, %c0_155, %c0_156] : memref<18x128x128xbf16, #tpu.memory_space<vmem>>, vector<1x128x128xbf16>
    %192 = vector.shape_cast %191 : vector<1x128x128xbf16> to vector<128x128xbf16>
    %193 = arith.extf %192 : vector<128x128xbf16> to vector<128x128xf32>
    %cst_157 = arith.constant dense<0.000000e+00> : vector<8x128xf32>
    %194 = tpu.matmul %190, %193, %cst_157 {dimension_numbers = #tpu.dot_dimension_numbers<[1], [0], [0], [1], [0, 0, 1, 1], [], []>} : vector<8x128xf32>, vector<128x128xf32>, vector<8x128xf32> -> vector<8x128xf32>
    %c1_158 = arith.constant 1 : index
    %c0_159 = arith.constant 0 : index
    %c0_160 = arith.constant 0 : index
    %195 = vector.load %arg26[%c1_158, %c0_159, %c0_160] : memref<18x1x128xf32, #tpu.memory_space<vmem>>, vector<1x1x128xf32>
    %196 = vector.shape_cast %195 : vector<1x1x128xf32> to vector<1x128xf32>
    %197 = vector.broadcast %196 : vector<1x128xf32> to vector<8x128xf32>
    %198 = arith.addf %194, %197 : vector<8x128xf32>
    %cst_161 = arith.constant 0.000000e+00 : f32
    %199 = vector.broadcast %cst_161 : f32 to vector<8x128xf32>
    %200 = arith.maximumf %198, %199 : vector<8x128xf32>
    %c2_162 = arith.constant 2 : index
    %c0_163 = arith.constant 0 : index
    %c0_164 = arith.constant 0 : index
    %201 = vector.load %arg25[%c2_162, %c0_163, %c0_164] : memref<18x128x128xbf16, #tpu.memory_space<vmem>>, vector<1x128x128xbf16>
    %202 = vector.shape_cast %201 : vector<1x128x128xbf16> to vector<128x128xbf16>
    %203 = arith.extf %202 : vector<128x128xbf16> to vector<128x128xf32>
    %cst_165 = arith.constant dense<0.000000e+00> : vector<8x128xf32>
    %204 = tpu.matmul %200, %203, %cst_165 {dimension_numbers = #tpu.dot_dimension_numbers<[1], [0], [0], [1], [0, 0, 1, 1], [], []>} : vector<8x128xf32>, vector<128x128xf32>, vector<8x128xf32> -> vector<8x128xf32>
    %c2_166 = arith.constant 2 : index
    %c0_167 = arith.constant 0 : index
    %c0_168 = arith.constant 0 : index
    %205 = vector.load %arg26[%c2_166, %c0_167, %c0_168] : memref<18x1x128xf32, #tpu.memory_space<vmem>>, vector<1x1x128xf32>
    %206 = vector.shape_cast %205 : vector<1x1x128xf32> to vector<1x128xf32>
    %207 = vector.broadcast %206 : vector<1x128xf32> to vector<8x128xf32>
    %208 = arith.addf %204, %207 : vector<8x128xf32>
    %cst_169 = arith.constant 0.000000e+00 : f32
    %209 = vector.broadcast %cst_169 : f32 to vector<8x128xf32>
    %210 = arith.maximumf %208, %209 : vector<8x128xf32>
    %c0_170 = arith.constant 0 : index
    %c0_171 = arith.constant 0 : index
    %c0_172 = arith.constant 0 : index
    %211 = vector.load %arg27[%c0_170, %c0_171, %c0_172] : memref<9x128x128xbf16, #tpu.memory_space<vmem>>, vector<1x128x128xbf16>
    %212 = vector.shape_cast %211 : vector<1x128x128xbf16> to vector<128x128xbf16>
    %213 = arith.extf %212 : vector<128x128xbf16> to vector<128x128xf32>
    %cst_173 = arith.constant dense<0.000000e+00> : vector<8x128xf32>
    %214 = tpu.matmul %200, %213, %cst_173 {dimension_numbers = #tpu.dot_dimension_numbers<[1], [0], [0], [1], [0, 0, 1, 1], [], []>} : vector<8x128xf32>, vector<128x128xf32>, vector<8x128xf32> -> vector<8x128xf32>
    %c0_174 = arith.constant 0 : index
    %c0_175 = arith.constant 0 : index
    %c0_176 = arith.constant 0 : index
    %215 = vector.load %arg28[%c0_174, %c0_175, %c0_176] : memref<9x128x128xbf16, #tpu.memory_space<vmem>>, vector<1x128x128xbf16>
    %216 = vector.shape_cast %215 : vector<1x128x128xbf16> to vector<128x128xbf16>
    %217 = arith.extf %216 : vector<128x128xbf16> to vector<128x128xf32>
    %cst_177 = arith.constant dense<0.000000e+00> : vector<8x128xf32>
    %218 = tpu.matmul %210, %217, %cst_177 {dimension_numbers = #tpu.dot_dimension_numbers<[1], [0], [0], [1], [0, 0, 1, 1], [], []>} : vector<8x128xf32>, vector<128x128xf32>, vector<8x128xf32> -> vector<8x128xf32>
    %219 = arith.addf %214, %218 : vector<8x128xf32>
    %c0_178 = arith.constant 0 : index
    %c0_179 = arith.constant 0 : index
    %c0_180 = arith.constant 0 : index
    %220 = vector.load %arg29[%c0_178, %c0_179, %c0_180] : memref<9x1x128xf32, #tpu.memory_space<vmem>>, vector<1x1x128xf32>
    %221 = vector.shape_cast %220 : vector<1x1x128xf32> to vector<1x128xf32>
    %222 = vector.broadcast %221 : vector<1x128xf32> to vector<8x128xf32>
    %223 = arith.addf %219, %222 : vector<8x128xf32>
    %cst_181 = arith.constant 0.000000e+00 : f32
    %224 = vector.broadcast %cst_181 : f32 to vector<8x128xf32>
    %225 = arith.maximumf %223, %224 : vector<8x128xf32>
    %c3_182 = arith.constant 3 : index
    %c0_183 = arith.constant 0 : index
    %c0_184 = arith.constant 0 : index
    %226 = vector.load %arg25[%c3_182, %c0_183, %c0_184] : memref<18x128x128xbf16, #tpu.memory_space<vmem>>, vector<1x128x128xbf16>
    %227 = vector.shape_cast %226 : vector<1x128x128xbf16> to vector<128x128xbf16>
    %228 = arith.extf %227 : vector<128x128xbf16> to vector<128x128xf32>
    %cst_185 = arith.constant dense<0.000000e+00> : vector<8x128xf32>
    %229 = tpu.matmul %225, %228, %cst_185 {dimension_numbers = #tpu.dot_dimension_numbers<[1], [0], [0], [1], [0, 0, 1, 1], [], []>} : vector<8x128xf32>, vector<128x128xf32>, vector<8x128xf32> -> vector<8x128xf32>
    %c3_186 = arith.constant 3 : index
    %c0_187 = arith.constant 0 : index
    %c0_188 = arith.constant 0 : index
    %230 = vector.load %arg26[%c3_186, %c0_187, %c0_188] : memref<18x1x128xf32, #tpu.memory_space<vmem>>, vector<1x1x128xf32>
    %231 = vector.shape_cast %230 : vector<1x1x128xf32> to vector<1x128xf32>
    %232 = vector.broadcast %231 : vector<1x128xf32> to vector<8x128xf32>
    %233 = arith.addf %229, %232 : vector<8x128xf32>
    %cst_189 = arith.constant 0.000000e+00 : f32
    %234 = vector.broadcast %cst_189 : f32 to vector<8x128xf32>
    %235 = arith.maximumf %233, %234 : vector<8x128xf32>
    %c1_190 = arith.constant 1 : index
    %c0_191 = arith.constant 0 : index
    %c0_192 = arith.constant 0 : index
    %236 = vector.load %arg27[%c1_190, %c0_191, %c0_192] : memref<9x128x128xbf16, #tpu.memory_space<vmem>>, vector<1x128x128xbf16>
    %237 = vector.shape_cast %236 : vector<1x128x128xbf16> to vector<128x128xbf16>
    %238 = arith.extf %237 : vector<128x128xbf16> to vector<128x128xf32>
    %cst_193 = arith.constant dense<0.000000e+00> : vector<8x128xf32>
    %239 = tpu.matmul %190, %238, %cst_193 {dimension_numbers = #tpu.dot_dimension_numbers<[1], [0], [0], [1], [0, 0, 1, 1], [], []>} : vector<8x128xf32>, vector<128x128xf32>, vector<8x128xf32> -> vector<8x128xf32>
    %c1_194 = arith.constant 1 : index
    %c0_195 = arith.constant 0 : index
    %c0_196 = arith.constant 0 : index
    %240 = vector.load %arg28[%c1_194, %c0_195, %c0_196] : memref<9x128x128xbf16, #tpu.memory_space<vmem>>, vector<1x128x128xbf16>
    %241 = vector.shape_cast %240 : vector<1x128x128xbf16> to vector<128x128xbf16>
    %242 = arith.extf %241 : vector<128x128xbf16> to vector<128x128xf32>
    %cst_197 = arith.constant dense<0.000000e+00> : vector<8x128xf32>
    %243 = tpu.matmul %235, %242, %cst_197 {dimension_numbers = #tpu.dot_dimension_numbers<[1], [0], [0], [1], [0, 0, 1, 1], [], []>} : vector<8x128xf32>, vector<128x128xf32>, vector<8x128xf32> -> vector<8x128xf32>
    %244 = arith.addf %239, %243 : vector<8x128xf32>
    %c1_198 = arith.constant 1 : index
    %c0_199 = arith.constant 0 : index
    %c0_200 = arith.constant 0 : index
    %245 = vector.load %arg29[%c1_198, %c0_199, %c0_200] : memref<9x1x128xf32, #tpu.memory_space<vmem>>, vector<1x1x128xf32>
    %246 = vector.shape_cast %245 : vector<1x1x128xf32> to vector<1x128xf32>
    %247 = vector.broadcast %246 : vector<1x128xf32> to vector<8x128xf32>
    %248 = arith.addf %244, %247 : vector<8x128xf32>
    %cst_201 = arith.constant 0.000000e+00 : f32
    %249 = vector.broadcast %cst_201 : f32 to vector<8x128xf32>
    %250 = arith.maximumf %248, %249 : vector<8x128xf32>
    %c4_202 = arith.constant 4 : index
    %c0_203 = arith.constant 0 : index
    %c0_204 = arith.constant 0 : index
    %251 = vector.load %arg25[%c4_202, %c0_203, %c0_204] : memref<18x128x128xbf16, #tpu.memory_space<vmem>>, vector<1x128x128xbf16>
    %252 = vector.shape_cast %251 : vector<1x128x128xbf16> to vector<128x128xbf16>
    %253 = arith.extf %252 : vector<128x128xbf16> to vector<128x128xf32>
    %cst_205 = arith.constant dense<0.000000e+00> : vector<8x128xf32>
    %254 = tpu.matmul %250, %253, %cst_205 {dimension_numbers = #tpu.dot_dimension_numbers<[1], [0], [0], [1], [0, 0, 1, 1], [], []>} : vector<8x128xf32>, vector<128x128xf32>, vector<8x128xf32> -> vector<8x128xf32>
    %c4_206 = arith.constant 4 : index
    %c0_207 = arith.constant 0 : index
    %c0_208 = arith.constant 0 : index
    %255 = vector.load %arg26[%c4_206, %c0_207, %c0_208] : memref<18x1x128xf32, #tpu.memory_space<vmem>>, vector<1x1x128xf32>
    %256 = vector.shape_cast %255 : vector<1x1x128xf32> to vector<1x128xf32>
    %257 = vector.broadcast %256 : vector<1x128xf32> to vector<8x128xf32>
    %258 = arith.addf %254, %257 : vector<8x128xf32>
    %cst_209 = arith.constant 0.000000e+00 : f32
    %259 = vector.broadcast %cst_209 : f32 to vector<8x128xf32>
    %260 = arith.maximumf %258, %259 : vector<8x128xf32>
    %c2_210 = arith.constant 2 : index
    %c0_211 = arith.constant 0 : index
    %c0_212 = arith.constant 0 : index
    %261 = vector.load %arg27[%c2_210, %c0_211, %c0_212] : memref<9x128x128xbf16, #tpu.memory_space<vmem>>, vector<1x128x128xbf16>
    %262 = vector.shape_cast %261 : vector<1x128x128xbf16> to vector<128x128xbf16>
    %263 = arith.extf %262 : vector<128x128xbf16> to vector<128x128xf32>
    %cst_213 = arith.constant dense<0.000000e+00> : vector<8x128xf32>
    %264 = tpu.matmul %180, %263, %cst_213 {dimension_numbers = #tpu.dot_dimension_numbers<[1], [0], [0], [1], [0, 0, 1, 1], [], []>} : vector<8x128xf32>, vector<128x128xf32>, vector<8x128xf32> -> vector<8x128xf32>
    %c2_214 = arith.constant 2 : index
    %c0_215 = arith.constant 0 : index
    %c0_216 = arith.constant 0 : index
    %265 = vector.load %arg28[%c2_214, %c0_215, %c0_216] : memref<9x128x128xbf16, #tpu.memory_space<vmem>>, vector<1x128x128xbf16>
    %266 = vector.shape_cast %265 : vector<1x128x128xbf16> to vector<128x128xbf16>
    %267 = arith.extf %266 : vector<128x128xbf16> to vector<128x128xf32>
    %cst_217 = arith.constant dense<0.000000e+00> : vector<8x128xf32>
    %268 = tpu.matmul %260, %267, %cst_217 {dimension_numbers = #tpu.dot_dimension_numbers<[1], [0], [0], [1], [0, 0, 1, 1], [], []>} : vector<8x128xf32>, vector<128x128xf32>, vector<8x128xf32> -> vector<8x128xf32>
    %269 = arith.addf %264, %268 : vector<8x128xf32>
    %c2_218 = arith.constant 2 : index
    %c0_219 = arith.constant 0 : index
    %c0_220 = arith.constant 0 : index
    %270 = vector.load %arg29[%c2_218, %c0_219, %c0_220] : memref<9x1x128xf32, #tpu.memory_space<vmem>>, vector<1x1x128xf32>
    %271 = vector.shape_cast %270 : vector<1x1x128xf32> to vector<1x128xf32>
    %272 = vector.broadcast %271 : vector<1x128xf32> to vector<8x128xf32>
    %273 = arith.addf %269, %272 : vector<8x128xf32>
    %cst_221 = arith.constant 0.000000e+00 : f32
    %274 = vector.broadcast %cst_221 : f32 to vector<8x128xf32>
    %275 = arith.maximumf %273, %274 : vector<8x128xf32>
    %c5_222 = arith.constant 5 : index
    %c0_223 = arith.constant 0 : index
    %c0_224 = arith.constant 0 : index
    %276 = vector.load %arg25[%c5_222, %c0_223, %c0_224] : memref<18x128x128xbf16, #tpu.memory_space<vmem>>, vector<1x128x128xbf16>
    %277 = vector.shape_cast %276 : vector<1x128x128xbf16> to vector<128x128xbf16>
    %278 = arith.extf %277 : vector<128x128xbf16> to vector<128x128xf32>
    %cst_225 = arith.constant dense<0.000000e+00> : vector<8x128xf32>
    %279 = tpu.matmul %275, %278, %cst_225 {dimension_numbers = #tpu.dot_dimension_numbers<[1], [0], [0], [1], [0, 0, 1, 1], [], []>} : vector<8x128xf32>, vector<128x128xf32>, vector<8x128xf32> -> vector<8x128xf32>
    %c5_226 = arith.constant 5 : index
    %c0_227 = arith.constant 0 : index
    %c0_228 = arith.constant 0 : index
    %280 = vector.load %arg26[%c5_226, %c0_227, %c0_228] : memref<18x1x128xf32, #tpu.memory_space<vmem>>, vector<1x1x128xf32>
    %281 = vector.shape_cast %280 : vector<1x1x128xf32> to vector<1x128xf32>
    %282 = vector.broadcast %281 : vector<1x128xf32> to vector<8x128xf32>
    %283 = arith.addf %279, %282 : vector<8x128xf32>
    %cst_229 = arith.constant 0.000000e+00 : f32
    %284 = vector.broadcast %cst_229 : f32 to vector<8x128xf32>
    %285 = arith.maximumf %283, %284 : vector<8x128xf32>
    %c0_230 = arith.constant 0 : index
    %c0_231 = arith.constant 0 : index
    %c0_232 = arith.constant 0 : index
    %286 = vector.load %arg30[%c0_230, %c0_231, %c0_232] : memref<3x128x16xbf16, #tpu.memory_space<vmem>>, vector<1x128x16xbf16>
    %287 = vector.shape_cast %286 : vector<1x128x16xbf16> to vector<128x16xbf16>
    %288 = arith.extf %287 : vector<128x16xbf16> to vector<128x16xf32>
    %cst_233 = arith.constant dense<0.000000e+00> : vector<8x16xf32>
    %289 = tpu.matmul %285, %288, %cst_233 {dimension_numbers = #tpu.dot_dimension_numbers<[1], [0], [0], [1], [0, 0, 1, 1], [], []>} : vector<8x128xf32>, vector<128x16xf32>, vector<8x16xf32> -> vector<8x16xf32>
    %c0_234 = arith.constant 0 : index
    %c0_235 = arith.constant 0 : index
    %c0_236 = arith.constant 0 : index
    %290 = vector.load %arg31[%c0_234, %c0_235, %c0_236] : memref<3x1x16xf32, #tpu.memory_space<vmem>>, vector<1x1x16xf32>
    %291 = vector.shape_cast %290 : vector<1x1x16xf32> to vector<1x16xf32>
    %292 = vector.broadcast %291 : vector<1x16xf32> to vector<8x16xf32>
    %293 = arith.addf %289, %292 : vector<8x16xf32>
    %c0_237 = arith.constant 0 : index
    %c0_238 = arith.constant 0 : index
    %294 = vector.load %arg32[%c0_237, %c0_238] : memref<24x16xf32, #tpu.memory_space<vmem>>, vector<8x16xf32>
    tpu.vector_store %arg32[%c0_237, %c0_238], %293 {strides = array<i32>} : memref<24x16xf32, #tpu.memory_space<vmem>>, vector<8x16xf32>,
    %c8 = arith.constant 8 : index
    %c0_239 = arith.constant 0 : index
    %295 = vector.load %arg3[%c8, %c0_239] : memref<24x16xf32, #tpu.memory_space<vmem>>, vector<8x16xf32>
    %c1_240 = arith.constant 1 : index
    %c0_241 = arith.constant 0 : index
    %c0_242 = arith.constant 0 : index
    %296 = vector.load %arg18[%c1_240, %c0_241, %c0_242] : memref<3x16x128xbf16, #tpu.memory_space<vmem>>, vector<1x16x128xbf16>
    %297 = vector.shape_cast %296 : vector<1x16x128xbf16> to vector<16x128xbf16>
    %298 = arith.extf %297 : vector<16x128xbf16> to vector<16x128xf32>
    %cst_243 = arith.constant dense<0.000000e+00> : vector<8x128xf32>
    %299 = tpu.matmul %295, %298, %cst_243 {dimension_numbers = #tpu.dot_dimension_numbers<[1], [0], [0], [1], [0, 0, 1, 1], [], []>} : vector<8x16xf32>, vector<16x128xf32>, vector<8x128xf32> -> vector<8x128xf32>
    %c1_244 = arith.constant 1 : index
    %c0_245 = arith.constant 0 : index
    %c0_246 = arith.constant 0 : index
    %300 = vector.load %arg19[%c1_244, %c0_245, %c0_246] : memref<3x1x128xf32, #tpu.memory_space<vmem>>, vector<1x1x128xf32>
    %301 = vector.shape_cast %300 : vector<1x1x128xf32> to vector<1x128xf32>
    %302 = vector.broadcast %301 : vector<1x128xf32> to vector<8x128xf32>
    %303 = arith.addf %299, %302 : vector<8x128xf32>
    %cst_247 = arith.constant 0.000000e+00 : f32
    %304 = vector.broadcast %cst_247 : f32 to vector<8x128xf32>
    %305 = arith.maximumf %303, %304 : vector<8x128xf32>
    %c1_248 = arith.constant 1 : index
    %c0_249 = arith.constant 0 : index
    %c0_250 = arith.constant 0 : index
    %306 = vector.load %arg20[%c1_248, %c0_249, %c0_250] : memref<3x128x128xbf16, #tpu.memory_space<vmem>>, vector<1x128x128xbf16>
    %307 = vector.shape_cast %306 : vector<1x128x128xbf16> to vector<128x128xbf16>
    %308 = arith.extf %307 : vector<128x128xbf16> to vector<128x128xf32>
    %cst_251 = arith.constant dense<0.000000e+00> : vector<8x128xf32>
    %309 = tpu.matmul %144, %308, %cst_251 {dimension_numbers = #tpu.dot_dimension_numbers<[1], [0], [0], [1], [0, 0, 1, 1], [], []>} : vector<8x128xf32>, vector<128x128xf32>, vector<8x128xf32> -> vector<8x128xf32>
    %c1_252 = arith.constant 1 : index
    %c0_253 = arith.constant 0 : index
    %c0_254 = arith.constant 0 : index
    %310 = vector.load %arg21[%c1_252, %c0_253, %c0_254] : memref<3x128x128xbf16, #tpu.memory_space<vmem>>, vector<1x128x128xbf16>
    %311 = vector.shape_cast %310 : vector<1x128x128xbf16> to vector<128x128xbf16>
    %312 = arith.extf %311 : vector<128x128xbf16> to vector<128x128xf32>
    %cst_255 = arith.constant dense<0.000000e+00> : vector<8x128xf32>
    %313 = tpu.matmul %118, %312, %cst_255 {dimension_numbers = #tpu.dot_dimension_numbers<[1], [0], [0], [1], [0, 0, 1, 1], [], []>} : vector<8x128xf32>, vector<128x128xf32>, vector<8x128xf32> -> vector<8x128xf32>
    %314 = arith.addf %309, %313 : vector<8x128xf32>
    %c1_256 = arith.constant 1 : index
    %c0_257 = arith.constant 0 : index
    %c0_258 = arith.constant 0 : index
    %315 = vector.load %arg22[%c1_256, %c0_257, %c0_258] : memref<3x128x128xbf16, #tpu.memory_space<vmem>>, vector<1x128x128xbf16>
    %316 = vector.shape_cast %315 : vector<1x128x128xbf16> to vector<128x128xbf16>
    %317 = arith.extf %316 : vector<128x128xbf16> to vector<128x128xf32>
    %cst_259 = arith.constant dense<0.000000e+00> : vector<8x128xf32>
    %318 = tpu.matmul %135, %317, %cst_259 {dimension_numbers = #tpu.dot_dimension_numbers<[1], [0], [0], [1], [0, 0, 1, 1], [], []>} : vector<8x128xf32>, vector<128x128xf32>, vector<8x128xf32> -> vector<8x128xf32>
    %319 = arith.addf %314, %318 : vector<8x128xf32>
    %c1_260 = arith.constant 1 : index
    %c0_261 = arith.constant 0 : index
    %c0_262 = arith.constant 0 : index
    %320 = vector.load %arg23[%c1_260, %c0_261, %c0_262] : memref<3x128x128xbf16, #tpu.memory_space<vmem>>, vector<1x128x128xbf16>
    %321 = vector.shape_cast %320 : vector<1x128x128xbf16> to vector<128x128xbf16>
    %322 = arith.extf %321 : vector<128x128xbf16> to vector<128x128xf32>
    %cst_263 = arith.constant dense<0.000000e+00> : vector<8x128xf32>
    %323 = tpu.matmul %305, %322, %cst_263 {dimension_numbers = #tpu.dot_dimension_numbers<[1], [0], [0], [1], [0, 0, 1, 1], [], []>} : vector<8x128xf32>, vector<128x128xf32>, vector<8x128xf32> -> vector<8x128xf32>
    %324 = arith.addf %319, %323 : vector<8x128xf32>
    %c1_264 = arith.constant 1 : index
    %c0_265 = arith.constant 0 : index
    %c0_266 = arith.constant 0 : index
    %325 = vector.load %arg24[%c1_264, %c0_265, %c0_266] : memref<3x1x128xf32, #tpu.memory_space<vmem>>, vector<1x1x128xf32>
    %326 = vector.shape_cast %325 : vector<1x1x128xf32> to vector<1x128xf32>
    %327 = vector.broadcast %326 : vector<1x128xf32> to vector<8x128xf32>
    %328 = arith.addf %324, %327 : vector<8x128xf32>
    %cst_267 = arith.constant 0.000000e+00 : f32
    %329 = vector.broadcast %cst_267 : f32 to vector<8x128xf32>
    %330 = arith.maximumf %328, %329 : vector<8x128xf32>
    %c6_268 = arith.constant 6 : index
    %c0_269 = arith.constant 0 : index
    %c0_270 = arith.constant 0 : index
    %331 = vector.load %arg25[%c6_268, %c0_269, %c0_270] : memref<18x128x128xbf16, #tpu.memory_space<vmem>>, vector<1x128x128xbf16>
    %332 = vector.shape_cast %331 : vector<1x128x128xbf16> to vector<128x128xbf16>
    %333 = arith.extf %332 : vector<128x128xbf16> to vector<128x128xf32>
    %cst_271 = arith.constant dense<0.000000e+00> : vector<8x128xf32>
    %334 = tpu.matmul %330, %333, %cst_271 {dimension_numbers = #tpu.dot_dimension_numbers<[1], [0], [0], [1], [0, 0, 1, 1], [], []>} : vector<8x128xf32>, vector<128x128xf32>, vector<8x128xf32> -> vector<8x128xf32>
    %c6_272 = arith.constant 6 : index
    %c0_273 = arith.constant 0 : index
    %c0_274 = arith.constant 0 : index
    %335 = vector.load %arg26[%c6_272, %c0_273, %c0_274] : memref<18x1x128xf32, #tpu.memory_space<vmem>>, vector<1x1x128xf32>
    %336 = vector.shape_cast %335 : vector<1x1x128xf32> to vector<1x128xf32>
    %337 = vector.broadcast %336 : vector<1x128xf32> to vector<8x128xf32>
    %338 = arith.addf %334, %337 : vector<8x128xf32>
    %cst_275 = arith.constant 0.000000e+00 : f32
    %339 = vector.broadcast %cst_275 : f32 to vector<8x128xf32>
    %340 = arith.maximumf %338, %339 : vector<8x128xf32>
    %c7_276 = arith.constant 7 : index
    %c0_277 = arith.constant 0 : index
    %c0_278 = arith.constant 0 : index
    %341 = vector.load %arg25[%c7_276, %c0_277, %c0_278] : memref<18x128x128xbf16, #tpu.memory_space<vmem>>, vector<1x128x128xbf16>
    %342 = vector.shape_cast %341 : vector<1x128x128xbf16> to vector<128x128xbf16>
    %343 = arith.extf %342 : vector<128x128xbf16> to vector<128x128xf32>
    %cst_279 = arith.constant dense<0.000000e+00> : vector<8x128xf32>
    %344 = tpu.matmul %340, %343, %cst_279 {dimension_numbers = #tpu.dot_dimension_numbers<[1], [0], [0], [1], [0, 0, 1, 1], [], []>} : vector<8x128xf32>, vector<128x128xf32>, vector<8x128xf32> -> vector<8x128xf32>
    %c7_280 = arith.constant 7 : index
    %c0_281 = arith.constant 0 : index
    %c0_282 = arith.constant 0 : index
    %345 = vector.load %arg26[%c7_280, %c0_281, %c0_282] : memref<18x1x128xf32, #tpu.memory_space<vmem>>, vector<1x1x128xf32>
    %346 = vector.shape_cast %345 : vector<1x1x128xf32> to vector<1x128xf32>
    %347 = vector.broadcast %346 : vector<1x128xf32> to vector<8x128xf32>
    %348 = arith.addf %344, %347 : vector<8x128xf32>
    %cst_283 = arith.constant 0.000000e+00 : f32
    %349 = vector.broadcast %cst_283 : f32 to vector<8x128xf32>
    %350 = arith.maximumf %348, %349 : vector<8x128xf32>
    %c8_284 = arith.constant 8 : index
    %c0_285 = arith.constant 0 : index
    %c0_286 = arith.constant 0 : index
    %351 = vector.load %arg25[%c8_284, %c0_285, %c0_286] : memref<18x128x128xbf16, #tpu.memory_space<vmem>>, vector<1x128x128xbf16>
    %352 = vector.shape_cast %351 : vector<1x128x128xbf16> to vector<128x128xbf16>
    %353 = arith.extf %352 : vector<128x128xbf16> to vector<128x128xf32>
    %cst_287 = arith.constant dense<0.000000e+00> : vector<8x128xf32>
    %354 = tpu.matmul %350, %353, %cst_287 {dimension_numbers = #tpu.dot_dimension_numbers<[1], [0], [0], [1], [0, 0, 1, 1], [], []>} : vector<8x128xf32>, vector<128x128xf32>, vector<8x128xf32> -> vector<8x128xf32>
    %c8_288 = arith.constant 8 : index
    %c0_289 = arith.constant 0 : index
    %c0_290 = arith.constant 0 : index
    %355 = vector.load %arg26[%c8_288, %c0_289, %c0_290] : memref<18x1x128xf32, #tpu.memory_space<vmem>>, vector<1x1x128xf32>
    %356 = vector.shape_cast %355 : vector<1x1x128xf32> to vector<1x128xf32>
    %357 = vector.broadcast %356 : vector<1x128xf32> to vector<8x128xf32>
    %358 = arith.addf %354, %357 : vector<8x128xf32>
    %cst_291 = arith.constant 0.000000e+00 : f32
    %359 = vector.broadcast %cst_291 : f32 to vector<8x128xf32>
    %360 = arith.maximumf %358, %359 : vector<8x128xf32>
    %c3_292 = arith.constant 3 : index
    %c0_293 = arith.constant 0 : index
    %c0_294 = arith.constant 0 : index
    %361 = vector.load %arg27[%c3_292, %c0_293, %c0_294] : memref<9x128x128xbf16, #tpu.memory_space<vmem>>, vector<1x128x128xbf16>
    %362 = vector.shape_cast %361 : vector<1x128x128xbf16> to vector<128x128xbf16>
    %363 = arith.extf %362 : vector<128x128xbf16> to vector<128x128xf32>
    %cst_295 = arith.constant dense<0.000000e+00> : vector<8x128xf32>
    %364 = tpu.matmul %350, %363, %cst_295 {dimension_numbers = #tpu.dot_dimension_numbers<[1], [0], [0], [1], [0, 0, 1, 1], [], []>} : vector<8x128xf32>, vector<128x128xf32>, vector<8x128xf32> -> vector<8x128xf32>
    %c3_296 = arith.constant 3 : index
    %c0_297 = arith.constant 0 : index
    %c0_298 = arith.constant 0 : index
    %365 = vector.load %arg28[%c3_296, %c0_297, %c0_298] : memref<9x128x128xbf16, #tpu.memory_space<vmem>>, vector<1x128x128xbf16>
    %366 = vector.shape_cast %365 : vector<1x128x128xbf16> to vector<128x128xbf16>
    %367 = arith.extf %366 : vector<128x128xbf16> to vector<128x128xf32>
    %cst_299 = arith.constant dense<0.000000e+00> : vector<8x128xf32>
    %368 = tpu.matmul %360, %367, %cst_299 {dimension_numbers = #tpu.dot_dimension_numbers<[1], [0], [0], [1], [0, 0, 1, 1], [], []>} : vector<8x128xf32>, vector<128x128xf32>, vector<8x128xf32> -> vector<8x128xf32>
    %369 = arith.addf %364, %368 : vector<8x128xf32>
    %c3_300 = arith.constant 3 : index
    %c0_301 = arith.constant 0 : index
    %c0_302 = arith.constant 0 : index
    %370 = vector.load %arg29[%c3_300, %c0_301, %c0_302] : memref<9x1x128xf32, #tpu.memory_space<vmem>>, vector<1x1x128xf32>
    %371 = vector.shape_cast %370 : vector<1x1x128xf32> to vector<1x128xf32>
    %372 = vector.broadcast %371 : vector<1x128xf32> to vector<8x128xf32>
    %373 = arith.addf %369, %372 : vector<8x128xf32>
    %cst_303 = arith.constant 0.000000e+00 : f32
    %374 = vector.broadcast %cst_303 : f32 to vector<8x128xf32>
    %375 = arith.maximumf %373, %374 : vector<8x128xf32>
    %c9 = arith.constant 9 : index
    %c0_304 = arith.constant 0 : index
    %c0_305 = arith.constant 0 : index
    %376 = vector.load %arg25[%c9, %c0_304, %c0_305] : memref<18x128x128xbf16, #tpu.memory_space<vmem>>, vector<1x128x128xbf16>
    %377 = vector.shape_cast %376 : vector<1x128x128xbf16> to vector<128x128xbf16>
    %378 = arith.extf %377 : vector<128x128xbf16> to vector<128x128xf32>
    %cst_306 = arith.constant dense<0.000000e+00> : vector<8x128xf32>
    %379 = tpu.matmul %375, %378, %cst_306 {dimension_numbers = #tpu.dot_dimension_numbers<[1], [0], [0], [1], [0, 0, 1, 1], [], []>} : vector<8x128xf32>, vector<128x128xf32>, vector<8x128xf32> -> vector<8x128xf32>
    %c9_307 = arith.constant 9 : index
    %c0_308 = arith.constant 0 : index
    %c0_309 = arith.constant 0 : index
    %380 = vector.load %arg26[%c9_307, %c0_308, %c0_309] : memref<18x1x128xf32, #tpu.memory_space<vmem>>, vector<1x1x128xf32>
    %381 = vector.shape_cast %380 : vector<1x1x128xf32> to vector<1x128xf32>
    %382 = vector.broadcast %381 : vector<1x128xf32> to vector<8x128xf32>
    %383 = arith.addf %379, %382 : vector<8x128xf32>
    %cst_310 = arith.constant 0.000000e+00 : f32
    %384 = vector.broadcast %cst_310 : f32 to vector<8x128xf32>
    %385 = arith.maximumf %383, %384 : vector<8x128xf32>
    %c4_311 = arith.constant 4 : index
    %c0_312 = arith.constant 0 : index
    %c0_313 = arith.constant 0 : index
    %386 = vector.load %arg27[%c4_311, %c0_312, %c0_313] : memref<9x128x128xbf16, #tpu.memory_space<vmem>>, vector<1x128x128xbf16>
    %387 = vector.shape_cast %386 : vector<1x128x128xbf16> to vector<128x128xbf16>
    %388 = arith.extf %387 : vector<128x128xbf16> to vector<128x128xf32>
    %cst_314 = arith.constant dense<0.000000e+00> : vector<8x128xf32>
    %389 = tpu.matmul %340, %388, %cst_314 {dimension_numbers = #tpu.dot_dimension_numbers<[1], [0], [0], [1], [0, 0, 1, 1], [], []>} : vector<8x128xf32>, vector<128x128xf32>, vector<8x128xf32> -> vector<8x128xf32>
    %c4_315 = arith.constant 4 : index
    %c0_316 = arith.constant 0 : index
    %c0_317 = arith.constant 0 : index
    %390 = vector.load %arg28[%c4_315, %c0_316, %c0_317] : memref<9x128x128xbf16, #tpu.memory_space<vmem>>, vector<1x128x128xbf16>
    %391 = vector.shape_cast %390 : vector<1x128x128xbf16> to vector<128x128xbf16>
    %392 = arith.extf %391 : vector<128x128xbf16> to vector<128x128xf32>
    %cst_318 = arith.constant dense<0.000000e+00> : vector<8x128xf32>
    %393 = tpu.matmul %385, %392, %cst_318 {dimension_numbers = #tpu.dot_dimension_numbers<[1], [0], [0], [1], [0, 0, 1, 1], [], []>} : vector<8x128xf32>, vector<128x128xf32>, vector<8x128xf32> -> vector<8x128xf32>
    %394 = arith.addf %389, %393 : vector<8x128xf32>
    %c4_319 = arith.constant 4 : index
    %c0_320 = arith.constant 0 : index
    %c0_321 = arith.constant 0 : index
    %395 = vector.load %arg29[%c4_319, %c0_320, %c0_321] : memref<9x1x128xf32, #tpu.memory_space<vmem>>, vector<1x1x128xf32>
    %396 = vector.shape_cast %395 : vector<1x1x128xf32> to vector<1x128xf32>
    %397 = vector.broadcast %396 : vector<1x128xf32> to vector<8x128xf32>
    %398 = arith.addf %394, %397 : vector<8x128xf32>
    %cst_322 = arith.constant 0.000000e+00 : f32
    %399 = vector.broadcast %cst_322 : f32 to vector<8x128xf32>
    %400 = arith.maximumf %398, %399 : vector<8x128xf32>
    %c10 = arith.constant 10 : index
    %c0_323 = arith.constant 0 : index
    %c0_324 = arith.constant 0 : index
    %401 = vector.load %arg25[%c10, %c0_323, %c0_324] : memref<18x128x128xbf16, #tpu.memory_space<vmem>>, vector<1x128x128xbf16>
    %402 = vector.shape_cast %401 : vector<1x128x128xbf16> to vector<128x128xbf16>
    %403 = arith.extf %402 : vector<128x128xbf16> to vector<128x128xf32>
    %cst_325 = arith.constant dense<0.000000e+00> : vector<8x128xf32>
    %404 = tpu.matmul %400, %403, %cst_325 {dimension_numbers = #tpu.dot_dimension_numbers<[1], [0], [0], [1], [0, 0, 1, 1], [], []>} : vector<8x128xf32>, vector<128x128xf32>, vector<8x128xf32> -> vector<8x128xf32>
    %c10_326 = arith.constant 10 : index
    %c0_327 = arith.constant 0 : index
    %c0_328 = arith.constant 0 : index
    %405 = vector.load %arg26[%c10_326, %c0_327, %c0_328] : memref<18x1x128xf32, #tpu.memory_space<vmem>>, vector<1x1x128xf32>
    %406 = vector.shape_cast %405 : vector<1x1x128xf32> to vector<1x128xf32>
    %407 = vector.broadcast %406 : vector<1x128xf32> to vector<8x128xf32>
    %408 = arith.addf %404, %407 : vector<8x128xf32>
    %cst_329 = arith.constant 0.000000e+00 : f32
    %409 = vector.broadcast %cst_329 : f32 to vector<8x128xf32>
    %410 = arith.maximumf %408, %409 : vector<8x128xf32>
    %c5_330 = arith.constant 5 : index
    %c0_331 = arith.constant 0 : index
    %c0_332 = arith.constant 0 : index
    %411 = vector.load %arg27[%c5_330, %c0_331, %c0_332] : memref<9x128x128xbf16, #tpu.memory_space<vmem>>, vector<1x128x128xbf16>
    %412 = vector.shape_cast %411 : vector<1x128x128xbf16> to vector<128x128xbf16>
    %413 = arith.extf %412 : vector<128x128xbf16> to vector<128x128xf32>
    %cst_333 = arith.constant dense<0.000000e+00> : vector<8x128xf32>
    %414 = tpu.matmul %330, %413, %cst_333 {dimension_numbers = #tpu.dot_dimension_numbers<[1], [0], [0], [1], [0, 0, 1, 1], [], []>} : vector<8x128xf32>, vector<128x128xf32>, vector<8x128xf32> -> vector<8x128xf32>
    %c5_334 = arith.constant 5 : index
    %c0_335 = arith.constant 0 : index
    %c0_336 = arith.constant 0 : index
    %415 = vector.load %arg28[%c5_334, %c0_335, %c0_336] : memref<9x128x128xbf16, #tpu.memory_space<vmem>>, vector<1x128x128xbf16>
    %416 = vector.shape_cast %415 : vector<1x128x128xbf16> to vector<128x128xbf16>
    %417 = arith.extf %416 : vector<128x128xbf16> to vector<128x128xf32>
    %cst_337 = arith.constant dense<0.000000e+00> : vector<8x128xf32>
    %418 = tpu.matmul %410, %417, %cst_337 {dimension_numbers = #tpu.dot_dimension_numbers<[1], [0], [0], [1], [0, 0, 1, 1], [], []>} : vector<8x128xf32>, vector<128x128xf32>, vector<8x128xf32> -> vector<8x128xf32>
    %419 = arith.addf %414, %418 : vector<8x128xf32>
    %c5_338 = arith.constant 5 : index
    %c0_339 = arith.constant 0 : index
    %c0_340 = arith.constant 0 : index
    %420 = vector.load %arg29[%c5_338, %c0_339, %c0_340] : memref<9x1x128xf32, #tpu.memory_space<vmem>>, vector<1x1x128xf32>
    %421 = vector.shape_cast %420 : vector<1x1x128xf32> to vector<1x128xf32>
    %422 = vector.broadcast %421 : vector<1x128xf32> to vector<8x128xf32>
    %423 = arith.addf %419, %422 : vector<8x128xf32>
    %cst_341 = arith.constant 0.000000e+00 : f32
    %424 = vector.broadcast %cst_341 : f32 to vector<8x128xf32>
    %425 = arith.maximumf %423, %424 : vector<8x128xf32>
    %c11 = arith.constant 11 : index
    %c0_342 = arith.constant 0 : index
    %c0_343 = arith.constant 0 : index
    %426 = vector.load %arg25[%c11, %c0_342, %c0_343] : memref<18x128x128xbf16, #tpu.memory_space<vmem>>, vector<1x128x128xbf16>
    %427 = vector.shape_cast %426 : vector<1x128x128xbf16> to vector<128x128xbf16>
    %428 = arith.extf %427 : vector<128x128xbf16> to vector<128x128xf32>
    %cst_344 = arith.constant dense<0.000000e+00> : vector<8x128xf32>
    %429 = tpu.matmul %425, %428, %cst_344 {dimension_numbers = #tpu.dot_dimension_numbers<[1], [0], [0], [1], [0, 0, 1, 1], [], []>} : vector<8x128xf32>, vector<128x128xf32>, vector<8x128xf32> -> vector<8x128xf32>
    %c11_345 = arith.constant 11 : index
    %c0_346 = arith.constant 0 : index
    %c0_347 = arith.constant 0 : index
    %430 = vector.load %arg26[%c11_345, %c0_346, %c0_347] : memref<18x1x128xf32, #tpu.memory_space<vmem>>, vector<1x1x128xf32>
    %431 = vector.shape_cast %430 : vector<1x1x128xf32> to vector<1x128xf32>
    %432 = vector.broadcast %431 : vector<1x128xf32> to vector<8x128xf32>
    %433 = arith.addf %429, %432 : vector<8x128xf32>
    %cst_348 = arith.constant 0.000000e+00 : f32
    %434 = vector.broadcast %cst_348 : f32 to vector<8x128xf32>
    %435 = arith.maximumf %433, %434 : vector<8x128xf32>
    %c1_349 = arith.constant 1 : index
    %c0_350 = arith.constant 0 : index
    %c0_351 = arith.constant 0 : index
    %436 = vector.load %arg30[%c1_349, %c0_350, %c0_351] : memref<3x128x16xbf16, #tpu.memory_space<vmem>>, vector<1x128x16xbf16>
    %437 = vector.shape_cast %436 : vector<1x128x16xbf16> to vector<128x16xbf16>
    %438 = arith.extf %437 : vector<128x16xbf16> to vector<128x16xf32>
    %cst_352 = arith.constant dense<0.000000e+00> : vector<8x16xf32>
    %439 = tpu.matmul %435, %438, %cst_352 {dimension_numbers = #tpu.dot_dimension_numbers<[1], [0], [0], [1], [0, 0, 1, 1], [], []>} : vector<8x128xf32>, vector<128x16xf32>, vector<8x16xf32> -> vector<8x16xf32>
    %c1_353 = arith.constant 1 : index
    %c0_354 = arith.constant 0 : index
    %c0_355 = arith.constant 0 : index
    %440 = vector.load %arg31[%c1_353, %c0_354, %c0_355] : memref<3x1x16xf32, #tpu.memory_space<vmem>>, vector<1x1x16xf32>
    %441 = vector.shape_cast %440 : vector<1x1x16xf32> to vector<1x16xf32>
    %442 = vector.broadcast %441 : vector<1x16xf32> to vector<8x16xf32>
    %443 = arith.addf %439, %442 : vector<8x16xf32>
    %c8_356 = arith.constant 8 : index
    %c0_357 = arith.constant 0 : index
    %444 = vector.load %arg32[%c8_356, %c0_357] : memref<24x16xf32, #tpu.memory_space<vmem>>, vector<8x16xf32>
    tpu.vector_store %arg32[%c8_356, %c0_357], %443 {strides = array<i32>} : memref<24x16xf32, #tpu.memory_space<vmem>>, vector<8x16xf32>,
    %c16 = arith.constant 16 : index
    %c0_358 = arith.constant 0 : index
    %445 = vector.load %arg3[%c16, %c0_358] : memref<24x16xf32, #tpu.memory_space<vmem>>, vector<8x16xf32>
    %c2_359 = arith.constant 2 : index
    %c0_360 = arith.constant 0 : index
    %c0_361 = arith.constant 0 : index
    %446 = vector.load %arg18[%c2_359, %c0_360, %c0_361] : memref<3x16x128xbf16, #tpu.memory_space<vmem>>, vector<1x16x128xbf16>
    %447 = vector.shape_cast %446 : vector<1x16x128xbf16> to vector<16x128xbf16>
    %448 = arith.extf %447 : vector<16x128xbf16> to vector<16x128xf32>
    %cst_362 = arith.constant dense<0.000000e+00> : vector<8x128xf32>
    %449 = tpu.matmul %445, %448, %cst_362 {dimension_numbers = #tpu.dot_dimension_numbers<[1], [0], [0], [1], [0, 0, 1, 1], [], []>} : vector<8x16xf32>, vector<16x128xf32>, vector<8x128xf32> -> vector<8x128xf32>
    %c2_363 = arith.constant 2 : index
    %c0_364 = arith.constant 0 : index
    %c0_365 = arith.constant 0 : index
    %450 = vector.load %arg19[%c2_363, %c0_364, %c0_365] : memref<3x1x128xf32, #tpu.memory_space<vmem>>, vector<1x1x128xf32>
    %451 = vector.shape_cast %450 : vector<1x1x128xf32> to vector<1x128xf32>
    %452 = vector.broadcast %451 : vector<1x128xf32> to vector<8x128xf32>
    %453 = arith.addf %449, %452 : vector<8x128xf32>
    %cst_366 = arith.constant 0.000000e+00 : f32
    %454 = vector.broadcast %cst_366 : f32 to vector<8x128xf32>
    %455 = arith.maximumf %453, %454 : vector<8x128xf32>
    %c2_367 = arith.constant 2 : index
    %c0_368 = arith.constant 0 : index
    %c0_369 = arith.constant 0 : index
    %456 = vector.load %arg20[%c2_367, %c0_368, %c0_369] : memref<3x128x128xbf16, #tpu.memory_space<vmem>>, vector<1x128x128xbf16>
    %457 = vector.shape_cast %456 : vector<1x128x128xbf16> to vector<128x128xbf16>
    %458 = arith.extf %457 : vector<128x128xbf16> to vector<128x128xf32>
    %cst_370 = arith.constant dense<0.000000e+00> : vector<8x128xf32>
    %459 = tpu.matmul %144, %458, %cst_370 {dimension_numbers = #tpu.dot_dimension_numbers<[1], [0], [0], [1], [0, 0, 1, 1], [], []>} : vector<8x128xf32>, vector<128x128xf32>, vector<8x128xf32> -> vector<8x128xf32>
    %c2_371 = arith.constant 2 : index
    %c0_372 = arith.constant 0 : index
    %c0_373 = arith.constant 0 : index
    %460 = vector.load %arg21[%c2_371, %c0_372, %c0_373] : memref<3x128x128xbf16, #tpu.memory_space<vmem>>, vector<1x128x128xbf16>
    %461 = vector.shape_cast %460 : vector<1x128x128xbf16> to vector<128x128xbf16>
    %462 = arith.extf %461 : vector<128x128xbf16> to vector<128x128xf32>
    %cst_374 = arith.constant dense<0.000000e+00> : vector<8x128xf32>
    %463 = tpu.matmul %118, %462, %cst_374 {dimension_numbers = #tpu.dot_dimension_numbers<[1], [0], [0], [1], [0, 0, 1, 1], [], []>} : vector<8x128xf32>, vector<128x128xf32>, vector<8x128xf32> -> vector<8x128xf32>
    %464 = arith.addf %459, %463 : vector<8x128xf32>
    %c2_375 = arith.constant 2 : index
    %c0_376 = arith.constant 0 : index
    %c0_377 = arith.constant 0 : index
    %465 = vector.load %arg22[%c2_375, %c0_376, %c0_377] : memref<3x128x128xbf16, #tpu.memory_space<vmem>>, vector<1x128x128xbf16>
    %466 = vector.shape_cast %465 : vector<1x128x128xbf16> to vector<128x128xbf16>
    %467 = arith.extf %466 : vector<128x128xbf16> to vector<128x128xf32>
    %cst_378 = arith.constant dense<0.000000e+00> : vector<8x128xf32>
    %468 = tpu.matmul %135, %467, %cst_378 {dimension_numbers = #tpu.dot_dimension_numbers<[1], [0], [0], [1], [0, 0, 1, 1], [], []>} : vector<8x128xf32>, vector<128x128xf32>, vector<8x128xf32> -> vector<8x128xf32>
    %469 = arith.addf %464, %468 : vector<8x128xf32>
    %c2_379 = arith.constant 2 : index
    %c0_380 = arith.constant 0 : index
    %c0_381 = arith.constant 0 : index
    %470 = vector.load %arg23[%c2_379, %c0_380, %c0_381] : memref<3x128x128xbf16, #tpu.memory_space<vmem>>, vector<1x128x128xbf16>
    %471 = vector.shape_cast %470 : vector<1x128x128xbf16> to vector<128x128xbf16>
    %472 = arith.extf %471 : vector<128x128xbf16> to vector<128x128xf32>
    %cst_382 = arith.constant dense<0.000000e+00> : vector<8x128xf32>
    %473 = tpu.matmul %455, %472, %cst_382 {dimension_numbers = #tpu.dot_dimension_numbers<[1], [0], [0], [1], [0, 0, 1, 1], [], []>} : vector<8x128xf32>, vector<128x128xf32>, vector<8x128xf32> -> vector<8x128xf32>
    %474 = arith.addf %469, %473 : vector<8x128xf32>
    %c2_383 = arith.constant 2 : index
    %c0_384 = arith.constant 0 : index
    %c0_385 = arith.constant 0 : index
    %475 = vector.load %arg24[%c2_383, %c0_384, %c0_385] : memref<3x1x128xf32, #tpu.memory_space<vmem>>, vector<1x1x128xf32>
    %476 = vector.shape_cast %475 : vector<1x1x128xf32> to vector<1x128xf32>
    %477 = vector.broadcast %476 : vector<1x128xf32> to vector<8x128xf32>
    %478 = arith.addf %474, %477 : vector<8x128xf32>
    %cst_386 = arith.constant 0.000000e+00 : f32
    %479 = vector.broadcast %cst_386 : f32 to vector<8x128xf32>
    %480 = arith.maximumf %478, %479 : vector<8x128xf32>
    %c12 = arith.constant 12 : index
    %c0_387 = arith.constant 0 : index
    %c0_388 = arith.constant 0 : index
    %481 = vector.load %arg25[%c12, %c0_387, %c0_388] : memref<18x128x128xbf16, #tpu.memory_space<vmem>>, vector<1x128x128xbf16>
    %482 = vector.shape_cast %481 : vector<1x128x128xbf16> to vector<128x128xbf16>
    %483 = arith.extf %482 : vector<128x128xbf16> to vector<128x128xf32>
    %cst_389 = arith.constant dense<0.000000e+00> : vector<8x128xf32>
    %484 = tpu.matmul %480, %483, %cst_389 {dimension_numbers = #tpu.dot_dimension_numbers<[1], [0], [0], [1], [0, 0, 1, 1], [], []>} : vector<8x128xf32>, vector<128x128xf32>, vector<8x128xf32> -> vector<8x128xf32>
    %c12_390 = arith.constant 12 : index
    %c0_391 = arith.constant 0 : index
    %c0_392 = arith.constant 0 : index
    %485 = vector.load %arg26[%c12_390, %c0_391, %c0_392] : memref<18x1x128xf32, #tpu.memory_space<vmem>>, vector<1x1x128xf32>
    %486 = vector.shape_cast %485 : vector<1x1x128xf32> to vector<1x128xf32>
    %487 = vector.broadcast %486 : vector<1x128xf32> to vector<8x128xf32>
    %488 = arith.addf %484, %487 : vector<8x128xf32>
    %cst_393 = arith.constant 0.000000e+00 : f32
    %489 = vector.broadcast %cst_393 : f32 to vector<8x128xf32>
    %490 = arith.maximumf %488, %489 : vector<8x128xf32>
    %c13 = arith.constant 13 : index
    %c0_394 = arith.constant 0 : index
    %c0_395 = arith.constant 0 : index
    %491 = vector.load %arg25[%c13, %c0_394, %c0_395] : memref<18x128x128xbf16, #tpu.memory_space<vmem>>, vector<1x128x128xbf16>
    %492 = vector.shape_cast %491 : vector<1x128x128xbf16> to vector<128x128xbf16>
    %493 = arith.extf %492 : vector<128x128xbf16> to vector<128x128xf32>
    %cst_396 = arith.constant dense<0.000000e+00> : vector<8x128xf32>
    %494 = tpu.matmul %490, %493, %cst_396 {dimension_numbers = #tpu.dot_dimension_numbers<[1], [0], [0], [1], [0, 0, 1, 1], [], []>} : vector<8x128xf32>, vector<128x128xf32>, vector<8x128xf32> -> vector<8x128xf32>
    %c13_397 = arith.constant 13 : index
    %c0_398 = arith.constant 0 : index
    %c0_399 = arith.constant 0 : index
    %495 = vector.load %arg26[%c13_397, %c0_398, %c0_399] : memref<18x1x128xf32, #tpu.memory_space<vmem>>, vector<1x1x128xf32>
    %496 = vector.shape_cast %495 : vector<1x1x128xf32> to vector<1x128xf32>
    %497 = vector.broadcast %496 : vector<1x128xf32> to vector<8x128xf32>
    %498 = arith.addf %494, %497 : vector<8x128xf32>
    %cst_400 = arith.constant 0.000000e+00 : f32
    %499 = vector.broadcast %cst_400 : f32 to vector<8x128xf32>
    %500 = arith.maximumf %498, %499 : vector<8x128xf32>
    %c14 = arith.constant 14 : index
    %c0_401 = arith.constant 0 : index
    %c0_402 = arith.constant 0 : index
    %501 = vector.load %arg25[%c14, %c0_401, %c0_402] : memref<18x128x128xbf16, #tpu.memory_space<vmem>>, vector<1x128x128xbf16>
    %502 = vector.shape_cast %501 : vector<1x128x128xbf16> to vector<128x128xbf16>
    %503 = arith.extf %502 : vector<128x128xbf16> to vector<128x128xf32>
    %cst_403 = arith.constant dense<0.000000e+00> : vector<8x128xf32>
    %504 = tpu.matmul %500, %503, %cst_403 {dimension_numbers = #tpu.dot_dimension_numbers<[1], [0], [0], [1], [0, 0, 1, 1], [], []>} : vector<8x128xf32>, vector<128x128xf32>, vector<8x128xf32> -> vector<8x128xf32>
    %c14_404 = arith.constant 14 : index
    %c0_405 = arith.constant 0 : index
    %c0_406 = arith.constant 0 : index
    %505 = vector.load %arg26[%c14_404, %c0_405, %c0_406] : memref<18x1x128xf32, #tpu.memory_space<vmem>>, vector<1x1x128xf32>
    %506 = vector.shape_cast %505 : vector<1x1x128xf32> to vector<1x128xf32>
    %507 = vector.broadcast %506 : vector<1x128xf32> to vector<8x128xf32>
    %508 = arith.addf %504, %507 : vector<8x128xf32>
    %cst_407 = arith.constant 0.000000e+00 : f32
    %509 = vector.broadcast %cst_407 : f32 to vector<8x128xf32>
    %510 = arith.maximumf %508, %509 : vector<8x128xf32>
    %c6_408 = arith.constant 6 : index
    %c0_409 = arith.constant 0 : index
    %c0_410 = arith.constant 0 : index
    %511 = vector.load %arg27[%c6_408, %c0_409, %c0_410] : memref<9x128x128xbf16, #tpu.memory_space<vmem>>, vector<1x128x128xbf16>
    %512 = vector.shape_cast %511 : vector<1x128x128xbf16> to vector<128x128xbf16>
    %513 = arith.extf %512 : vector<128x128xbf16> to vector<128x128xf32>
    %cst_411 = arith.constant dense<0.000000e+00> : vector<8x128xf32>
    %514 = tpu.matmul %500, %513, %cst_411 {dimension_numbers = #tpu.dot_dimension_numbers<[1], [0], [0], [1], [0, 0, 1, 1], [], []>} : vector<8x128xf32>, vector<128x128xf32>, vector<8x128xf32> -> vector<8x128xf32>
    %c6_412 = arith.constant 6 : index
    %c0_413 = arith.constant 0 : index
    %c0_414 = arith.constant 0 : index
    %515 = vector.load %arg28[%c6_412, %c0_413, %c0_414] : memref<9x128x128xbf16, #tpu.memory_space<vmem>>, vector<1x128x128xbf16>
    %516 = vector.shape_cast %515 : vector<1x128x128xbf16> to vector<128x128xbf16>
    %517 = arith.extf %516 : vector<128x128xbf16> to vector<128x128xf32>
    %cst_415 = arith.constant dense<0.000000e+00> : vector<8x128xf32>
    %518 = tpu.matmul %510, %517, %cst_415 {dimension_numbers = #tpu.dot_dimension_numbers<[1], [0], [0], [1], [0, 0, 1, 1], [], []>} : vector<8x128xf32>, vector<128x128xf32>, vector<8x128xf32> -> vector<8x128xf32>
    %519 = arith.addf %514, %518 : vector<8x128xf32>
    %c6_416 = arith.constant 6 : index
    %c0_417 = arith.constant 0 : index
    %c0_418 = arith.constant 0 : index
    %520 = vector.load %arg29[%c6_416, %c0_417, %c0_418] : memref<9x1x128xf32, #tpu.memory_space<vmem>>, vector<1x1x128xf32>
    %521 = vector.shape_cast %520 : vector<1x1x128xf32> to vector<1x128xf32>
    %522 = vector.broadcast %521 : vector<1x128xf32> to vector<8x128xf32>
    %523 = arith.addf %519, %522 : vector<8x128xf32>
    %cst_419 = arith.constant 0.000000e+00 : f32
    %524 = vector.broadcast %cst_419 : f32 to vector<8x128xf32>
    %525 = arith.maximumf %523, %524 : vector<8x128xf32>
    %c15 = arith.constant 15 : index
    %c0_420 = arith.constant 0 : index
    %c0_421 = arith.constant 0 : index
    %526 = vector.load %arg25[%c15, %c0_420, %c0_421] : memref<18x128x128xbf16, #tpu.memory_space<vmem>>, vector<1x128x128xbf16>
    %527 = vector.shape_cast %526 : vector<1x128x128xbf16> to vector<128x128xbf16>
    %528 = arith.extf %527 : vector<128x128xbf16> to vector<128x128xf32>
    %cst_422 = arith.constant dense<0.000000e+00> : vector<8x128xf32>
    %529 = tpu.matmul %525, %528, %cst_422 {dimension_numbers = #tpu.dot_dimension_numbers<[1], [0], [0], [1], [0, 0, 1, 1], [], []>} : vector<8x128xf32>, vector<128x128xf32>, vector<8x128xf32> -> vector<8x128xf32>
    %c15_423 = arith.constant 15 : index
    %c0_424 = arith.constant 0 : index
    %c0_425 = arith.constant 0 : index
    %530 = vector.load %arg26[%c15_423, %c0_424, %c0_425] : memref<18x1x128xf32, #tpu.memory_space<vmem>>, vector<1x1x128xf32>
    %531 = vector.shape_cast %530 : vector<1x1x128xf32> to vector<1x128xf32>
    %532 = vector.broadcast %531 : vector<1x128xf32> to vector<8x128xf32>
    %533 = arith.addf %529, %532 : vector<8x128xf32>
    %cst_426 = arith.constant 0.000000e+00 : f32
    %534 = vector.broadcast %cst_426 : f32 to vector<8x128xf32>
    %535 = arith.maximumf %533, %534 : vector<8x128xf32>
    %c7_427 = arith.constant 7 : index
    %c0_428 = arith.constant 0 : index
    %c0_429 = arith.constant 0 : index
    %536 = vector.load %arg27[%c7_427, %c0_428, %c0_429] : memref<9x128x128xbf16, #tpu.memory_space<vmem>>, vector<1x128x128xbf16>
    %537 = vector.shape_cast %536 : vector<1x128x128xbf16> to vector<128x128xbf16>
    %538 = arith.extf %537 : vector<128x128xbf16> to vector<128x128xf32>
    %cst_430 = arith.constant dense<0.000000e+00> : vector<8x128xf32>
    %539 = tpu.matmul %490, %538, %cst_430 {dimension_numbers = #tpu.dot_dimension_numbers<[1], [0], [0], [1], [0, 0, 1, 1], [], []>} : vector<8x128xf32>, vector<128x128xf32>, vector<8x128xf32> -> vector<8x128xf32>
    %c7_431 = arith.constant 7 : index
    %c0_432 = arith.constant 0 : index
    %c0_433 = arith.constant 0 : index
    %540 = vector.load %arg28[%c7_431, %c0_432, %c0_433] : memref<9x128x128xbf16, #tpu.memory_space<vmem>>, vector<1x128x128xbf16>
    %541 = vector.shape_cast %540 : vector<1x128x128xbf16> to vector<128x128xbf16>
    %542 = arith.extf %541 : vector<128x128xbf16> to vector<128x128xf32>
    %cst_434 = arith.constant dense<0.000000e+00> : vector<8x128xf32>
    %543 = tpu.matmul %535, %542, %cst_434 {dimension_numbers = #tpu.dot_dimension_numbers<[1], [0], [0], [1], [0, 0, 1, 1], [], []>} : vector<8x128xf32>, vector<128x128xf32>, vector<8x128xf32> -> vector<8x128xf32>
    %544 = arith.addf %539, %543 : vector<8x128xf32>
    %c7_435 = arith.constant 7 : index
    %c0_436 = arith.constant 0 : index
    %c0_437 = arith.constant 0 : index
    %545 = vector.load %arg29[%c7_435, %c0_436, %c0_437] : memref<9x1x128xf32, #tpu.memory_space<vmem>>, vector<1x1x128xf32>
    %546 = vector.shape_cast %545 : vector<1x1x128xf32> to vector<1x128xf32>
    %547 = vector.broadcast %546 : vector<1x128xf32> to vector<8x128xf32>
    %548 = arith.addf %544, %547 : vector<8x128xf32>
    %cst_438 = arith.constant 0.000000e+00 : f32
    %549 = vector.broadcast %cst_438 : f32 to vector<8x128xf32>
    %550 = arith.maximumf %548, %549 : vector<8x128xf32>
    %c16_439 = arith.constant 16 : index
    %c0_440 = arith.constant 0 : index
    %c0_441 = arith.constant 0 : index
    %551 = vector.load %arg25[%c16_439, %c0_440, %c0_441] : memref<18x128x128xbf16, #tpu.memory_space<vmem>>, vector<1x128x128xbf16>
    %552 = vector.shape_cast %551 : vector<1x128x128xbf16> to vector<128x128xbf16>
    %553 = arith.extf %552 : vector<128x128xbf16> to vector<128x128xf32>
    %cst_442 = arith.constant dense<0.000000e+00> : vector<8x128xf32>
    %554 = tpu.matmul %550, %553, %cst_442 {dimension_numbers = #tpu.dot_dimension_numbers<[1], [0], [0], [1], [0, 0, 1, 1], [], []>} : vector<8x128xf32>, vector<128x128xf32>, vector<8x128xf32> -> vector<8x128xf32>
    %c16_443 = arith.constant 16 : index
    %c0_444 = arith.constant 0 : index
    %c0_445 = arith.constant 0 : index
    %555 = vector.load %arg26[%c16_443, %c0_444, %c0_445] : memref<18x1x128xf32, #tpu.memory_space<vmem>>, vector<1x1x128xf32>
    %556 = vector.shape_cast %555 : vector<1x1x128xf32> to vector<1x128xf32>
    %557 = vector.broadcast %556 : vector<1x128xf32> to vector<8x128xf32>
    %558 = arith.addf %554, %557 : vector<8x128xf32>
    %cst_446 = arith.constant 0.000000e+00 : f32
    %559 = vector.broadcast %cst_446 : f32 to vector<8x128xf32>
    %560 = arith.maximumf %558, %559 : vector<8x128xf32>
    %c8_447 = arith.constant 8 : index
    %c0_448 = arith.constant 0 : index
    %c0_449 = arith.constant 0 : index
    %561 = vector.load %arg27[%c8_447, %c0_448, %c0_449] : memref<9x128x128xbf16, #tpu.memory_space<vmem>>, vector<1x128x128xbf16>
    %562 = vector.shape_cast %561 : vector<1x128x128xbf16> to vector<128x128xbf16>
    %563 = arith.extf %562 : vector<128x128xbf16> to vector<128x128xf32>
    %cst_450 = arith.constant dense<0.000000e+00> : vector<8x128xf32>
    %564 = tpu.matmul %480, %563, %cst_450 {dimension_numbers = #tpu.dot_dimension_numbers<[1], [0], [0], [1], [0, 0, 1, 1], [], []>} : vector<8x128xf32>, vector<128x128xf32>, vector<8x128xf32> -> vector<8x128xf32>
    %c8_451 = arith.constant 8 : index
    %c0_452 = arith.constant 0 : index
    %c0_453 = arith.constant 0 : index
    %565 = vector.load %arg28[%c8_451, %c0_452, %c0_453] : memref<9x128x128xbf16, #tpu.memory_space<vmem>>, vector<1x128x128xbf16>
    %566 = vector.shape_cast %565 : vector<1x128x128xbf16> to vector<128x128xbf16>
    %567 = arith.extf %566 : vector<128x128xbf16> to vector<128x128xf32>
    %cst_454 = arith.constant dense<0.000000e+00> : vector<8x128xf32>
    %568 = tpu.matmul %560, %567, %cst_454 {dimension_numbers = #tpu.dot_dimension_numbers<[1], [0], [0], [1], [0, 0, 1, 1], [], []>} : vector<8x128xf32>, vector<128x128xf32>, vector<8x128xf32> -> vector<8x128xf32>
    %569 = arith.addf %564, %568 : vector<8x128xf32>
    %c8_455 = arith.constant 8 : index
    %c0_456 = arith.constant 0 : index
    %c0_457 = arith.constant 0 : index
    %570 = vector.load %arg29[%c8_455, %c0_456, %c0_457] : memref<9x1x128xf32, #tpu.memory_space<vmem>>, vector<1x1x128xf32>
    %571 = vector.shape_cast %570 : vector<1x1x128xf32> to vector<1x128xf32>
    %572 = vector.broadcast %571 : vector<1x128xf32> to vector<8x128xf32>
    %573 = arith.addf %569, %572 : vector<8x128xf32>
    %cst_458 = arith.constant 0.000000e+00 : f32
    %574 = vector.broadcast %cst_458 : f32 to vector<8x128xf32>
    %575 = arith.maximumf %573, %574 : vector<8x128xf32>
    %c17 = arith.constant 17 : index
    %c0_459 = arith.constant 0 : index
    %c0_460 = arith.constant 0 : index
    %576 = vector.load %arg25[%c17, %c0_459, %c0_460] : memref<18x128x128xbf16, #tpu.memory_space<vmem>>, vector<1x128x128xbf16>
    %577 = vector.shape_cast %576 : vector<1x128x128xbf16> to vector<128x128xbf16>
    %578 = arith.extf %577 : vector<128x128xbf16> to vector<128x128xf32>
    %cst_461 = arith.constant dense<0.000000e+00> : vector<8x128xf32>
    %579 = tpu.matmul %575, %578, %cst_461 {dimension_numbers = #tpu.dot_dimension_numbers<[1], [0], [0], [1], [0, 0, 1, 1], [], []>} : vector<8x128xf32>, vector<128x128xf32>, vector<8x128xf32> -> vector<8x128xf32>
    %c17_462 = arith.constant 17 : index
    %c0_463 = arith.constant 0 : index
    %c0_464 = arith.constant 0 : index
    %580 = vector.load %arg26[%c17_462, %c0_463, %c0_464] : memref<18x1x128xf32, #tpu.memory_space<vmem>>, vector<1x1x128xf32>
    %581 = vector.shape_cast %580 : vector<1x1x128xf32> to vector<1x128xf32>
    %582 = vector.broadcast %581 : vector<1x128xf32> to vector<8x128xf32>
    %583 = arith.addf %579, %582 : vector<8x128xf32>
    %cst_465 = arith.constant 0.000000e+00 : f32
    %584 = vector.broadcast %cst_465 : f32 to vector<8x128xf32>
    %585 = arith.maximumf %583, %584 : vector<8x128xf32>
    %c2_466 = arith.constant 2 : index
    %c0_467 = arith.constant 0 : index
    %c0_468 = arith.constant 0 : index
    %586 = vector.load %arg30[%c2_466, %c0_467, %c0_468] : memref<3x128x16xbf16, #tpu.memory_space<vmem>>, vector<1x128x16xbf16>
    %587 = vector.shape_cast %586 : vector<1x128x16xbf16> to vector<128x16xbf16>
    %588 = arith.extf %587 : vector<128x16xbf16> to vector<128x16xf32>
    %cst_469 = arith.constant dense<0.000000e+00> : vector<8x16xf32>
    %589 = tpu.matmul %585, %588, %cst_469 {dimension_numbers = #tpu.dot_dimension_numbers<[1], [0], [0], [1], [0, 0, 1, 1], [], []>} : vector<8x128xf32>, vector<128x16xf32>, vector<8x16xf32> -> vector<8x16xf32>
    %c2_470 = arith.constant 2 : index
    %c0_471 = arith.constant 0 : index
    %c0_472 = arith.constant 0 : index
    %590 = vector.load %arg31[%c2_470, %c0_471, %c0_472] : memref<3x1x16xf32, #tpu.memory_space<vmem>>, vector<1x1x16xf32>
    %591 = vector.shape_cast %590 : vector<1x1x16xf32> to vector<1x16xf32>
    %592 = vector.broadcast %591 : vector<1x16xf32> to vector<8x16xf32>
    %593 = arith.addf %589, %592 : vector<8x16xf32>
    %c16_473 = arith.constant 16 : index
    %c0_474 = arith.constant 0 : index
    %594 = vector.load %arg32[%c16_473, %c0_474] : memref<24x16xf32, #tpu.memory_space<vmem>>, vector<8x16xf32>
    tpu.vector_store %arg32[%c16_473, %c0_474], %593 {strides = array<i32>} : memref<24x16xf32, #tpu.memory_space<vmem>>, vector<8x16xf32>,
    return
  }
}

</mosaic_0001>

<llo_original>
// kernel: squeeze.43
$region0: #{squeeze.43}
  %s0 = inlined_call_operand.vmem [shape: f32[1,2,9], index: 0, kind: input, shape index: {}]
  %s1 = inlined_call_operand.vmem [shape: f32[2,3,3], index: 1, kind: output, shape index: {}]
  $region1: #{squeeze.43} parent=0
    #allocation0 [shape = 'u8[8192]{0}', space=vmem, size = 0x2000, scoped, tag = 'scoped mem for output reshape']
    #allocation1 [shape = 'u8[4096]{0}', space=vmem, size = 0x1000, scoped, tag = 'scoped mem for input reshape']
    %s3 = sshllo.u32 0, 2
    %v4 = vld [vmem:[%s0] sm:%s3]
    %5 = vst [vmem:[#allocation1] sm:%s3] %v4
    %v6 = vld [vmem:[#allocation1] sm:$0x3]
    %vm7 = vcmask 23552
    %8 = vst.msk [vmem:[#allocation0] ss:$8 sm:$0x3] %vm7, %v6
    %v9 = vld [vmem:[#allocation1] sm:$0x3]
    %10 = vrot.lane.b32.xlu0 %v9, 125
    %v11 = vpop.permute.xlu0 %10
    %vm12 = vcmask 23552
    %s13 = scalar_lea.vmem [#allocation0], 1
    %14 = vst.msk [vmem:[%s13] ss:$8 sm:$0x3] %vm12, %v11
    %v15 = vld [vmem:[#allocation1] sm:$0x3]
    %16 = vrot.lane.b32.xlu0 %v15, 122
    %v17 = vpop.permute.xlu0 %16
    %vm18 = vcmask 23552
    %s19 = scalar_lea.vmem [#allocation0], 2
    %20 = vst.msk [vmem:[%s19] ss:$8 sm:$0x3] %vm18, %v17
    %s22 = sshllo.u32 0, 4
    %v24 = vld [vmem:[#allocation0] sm:%s22]
    %s25 = sshllo.u32 0, 4
    %26 = vst [vmem:[%s1] sm:%s25] %v24
    %s27 = scalar_lea.vmem [#allocation0], 8
    %v28 = vld [vmem:[%s27] sm:%s22]
    %s29 = sshllo.u32 0, 4
    %s30 = scalar_lea.vmem %s1, 4
    %31 = vst [vmem:[%s30] sm:%s29] %v28

// kernel: diffusion_forward.3
$region0: #{diffusion_forward.3}
  #allocation0 [shape = 'u32[]', space=smem, size = 0x4, offset = 0x4, fixed_abs, tag = 'smem constant byte address 0x4 - core index']
  #allocation1 [shape = 'u32[144,128]{1,0:T(1,128)}', space=vmem, size = 0x12000, scoped, tag = 'internal scratch']
  #allocation2 [shape = 'f32[8,128]{1,0:T(8,128)}', space=vmem, size = 0x1000, scoped, tag = 'scratch operand']
  #allocation3 [shape = 'f32[8,128]{1,0:T(8,128)}', space=vmem, size = 0x1000, scoped, tag = 'scratch operand']
  %s0 = inlined_call_operand.smem [shape: u32[33], index: -1, kind: input, shape index: {}]
  %s1 = sld [smem:[%s0]]
  %s2 = scalar_lea.smem %s0, 1
  %s3 = sld [smem:[%s2]]
  %s4 = scalar_lea.smem %s0, 2
  %s5 = sld [smem:[%s4]]
  %s6 = scalar_lea.smem %s0, 3
  %s7 = sld [smem:[%s6]]
  %s8 = scalar_lea.smem %s0, 4
  %s9 = sld [smem:[%s8]]
  %s10 = scalar_lea.smem %s0, 5
  %s11 = sld [smem:[%s10]]
  %s12 = scalar_lea.smem %s0, 6
  %s13 = sld [smem:[%s12]]
  %s14 = scalar_lea.smem %s0, 7
  %s15 = sld [smem:[%s14]]
  %s16 = scalar_lea.smem %s0, 8
  %s17 = sld [smem:[%s16]]
  %s18 = scalar_lea.smem %s0, 9
  %s19 = sld [smem:[%s18]]
  %s20 = scalar_lea.smem %s0, 10
  %s21 = sld [smem:[%s20]]
  %s22 = scalar_lea.smem %s0, 11
  %s23 = sld [smem:[%s22]]
  %s24 = scalar_lea.smem %s0, 12
  %s25 = sld [smem:[%s24]]
  %s26 = scalar_lea.smem %s0, 13
  %s27 = sld [smem:[%s26]]
  %s28 = scalar_lea.smem %s0, 14
  %s29 = sld [smem:[%s28]]
  %s30 = scalar_lea.smem %s0, 15
  %s31 = sld [smem:[%s30]]
  %s32 = scalar_lea.smem %s0, 16
  %s33 = sld [smem:[%s32]]
  %s34 = scalar_lea.smem %s0, 17
  %s35 = sld [smem:[%s34]]
  %s36 = scalar_lea.smem %s0, 18
  %s37 = sld [smem:[%s36]]
  %s38 = scalar_lea.smem %s0, 19
  %s39 = sld [smem:[%s38]]
  %s40 = scalar_lea.smem %s0, 20
  %s41 = sld [smem:[%s40]]
  %s42 = scalar_lea.smem %s0, 21
  %s43 = sld [smem:[%s42]]
  %s44 = scalar_lea.smem %s0, 22
  %s45 = sld [smem:[%s44]]
  %s46 = scalar_lea.smem %s0, 23
  %s47 = sld [smem:[%s46]]
  %s48 = scalar_lea.smem %s0, 24
  %s49 = sld [smem:[%s48]]
  %s50 = scalar_lea.smem %s0, 25
  %s51 = sld [smem:[%s50]]
  %s52 = scalar_lea.smem %s0, 26
  %s53 = sld [smem:[%s52]]
  %s54 = scalar_lea.smem %s0, 27
  %s55 = sld [smem:[%s54]]
  %s56 = scalar_lea.smem %s0, 28
  %s57 = sld [smem:[%s56]]
  %s58 = scalar_lea.smem %s0, 29
  %s59 = sld [smem:[%s58]]
  %s60 = scalar_lea.smem %s0, 30
  %s61 = sld [smem:[%s60]]
  %s62 = scalar_lea.smem %s0, 31
  %s63 = sld [smem:[%s62]]
  %s64 = scalar_lea.smem %s0, 32
  %s65 = sld [smem:[%s64]]
  %s66 = sld [smem:[#allocation0]]
  $region182: #{diffusion_forward.3} parent=0
    _
  %s68 = ssub.s32 1, %s66
  %s69 = scalar_select 0, %s68, %s66
  $region1: #{diffusion_forward.3} parent=0
    #allocation4 [shape = 'u8[1024]{0}', space=vmem, size = 0x400, scoped, tag = 'input window, operand 4, single buffered']
    #allocation5 [shape = 's32[1]{0}', space=sflag, size = 0x4, scoped, tag = 'scoped memory for diffusion_forward.3']
    #allocation6 [shape = 'u8[16384]{0}', space=vmem, size = 0x4000, scoped, tag = 'input window, operand 6, single buffered']
    #allocation7 [shape = 's32[1]{0}', space=sflag, size = 0x4, scoped, tag = 'scoped memory for diffusion_forward.3']
    #allocation8 [shape = 'u8[512]{0}', space=vmem, size = 0x400, scoped, tag = 'input window, operand 7, single buffered']
    #allocation9 [shape = 'u8[1024]{0}', space=vmem, size = 0x400, scoped, tag = 'input window, operand 8, single buffered']
    #allocation10 [shape = 's32[1]{0}', space=sflag, size = 0x4, scoped, tag = 'scoped memory for diffusion_forward.3']
    #allocation11 [shape = 'u8[512]{0}', space=vmem, size = 0x400, scoped, tag = 'input window, operand 9, single buffered']
    #allocation12 [shape = 'u8[16384]{0}', space=vmem, size = 0x4000, scoped, tag = 'input window, operand 10, single buffered']
    #allocation13 [shape = 's32[1]{0}', space=sflag, size = 0x4, scoped, tag = 'scoped memory for diffusion_forward.3']
    #allocation14 [shape = 'u8[512]{0}', space=vmem, size = 0x400, scoped, tag = 'input window, operand 11, single buffered']
    #allocation15 [shape = 'u8[512]{0}', space=vmem, size = 0x400, scoped, tag = 'input window, operand 13, single buffered']
    #allocation16 [shape = 's32[1]{0}', space=sflag, size = 0x4, scoped, tag = 'scoped memory for diffusion_forward.3']
    #allocation17 [shape = 'u8[32768]{0}', space=vmem, size = 0x8000, scoped, tag = 'input window, operand 14, single buffered']
    #allocation18 [shape = 'u8[512]{0}', space=vmem, size = 0x400, scoped, tag = 'input window, operand 15, single buffered']
    #allocation19 [shape = 's32[1]{0}', space=sflag, size = 0x4, scoped, tag = 'scoped memory for diffusion_forward.3']
    #allocation20 [shape = 'u8[4096]{0}', space=vmem, size = 0x1000, scoped, tag = 'input window, operand 17, single buffered']
    %70 = vsyncpa [#allocation5], 0
    %71 = vsyncpa [#allocation7], 0
    %72 = vsyncpa [#allocation10], 0
    %73 = vsyncpa [#allocation13], 0
    %74 = vsyncpa [#allocation16], 0
    %75 = vsyncpa [#allocation19], 0
    // Predicated region
    $region2: #{diffusion_forward.3} parent=1 // pred_check
      _
    $region3: #{diffusion_forward.3} parent=1 // pred_check_branch
      %77 = sbr.rel (0) target = $region5
    $region4: #{diffusion_forward.3} parent=1 // pred_region
      _
    $region5: #{diffusion_forward.3} parent=1 // pred_fallthru
      _
    // Predicated region
    $region6: #{diffusion_forward.3} parent=1 // pred_check
      _
    $region7: #{diffusion_forward.3} parent=1 // pred_check_branch
      %79 = sbr.rel (0) target = $region9
    $region8: #{diffusion_forward.3} parent=1 // pred_region
      _
    $region9: #{diffusion_forward.3} parent=1 // pred_fallthru
      _
    // Predicated region
    $region10: #{diffusion_forward.3} parent=1 // pred_check
      _
    $region11: #{diffusion_forward.3} parent=1 // pred_check_branch
      %81 = sbr.rel (0) target = $region13
    $region12: #{diffusion_forward.3} parent=1 // pred_region
      _
    $region13: #{diffusion_forward.3} parent=1 // pred_fallthru
      _
    // Predicated region
    $region14: #{diffusion_forward.3} parent=1 // pred_check
      _
    $region15: #{diffusion_forward.3} parent=1 // pred_check_branch
      %83 = sbr.rel (0) target = $region17
    $region16: #{diffusion_forward.3} parent=1 // pred_region
      _
    $region17: #{diffusion_forward.3} parent=1 // pred_fallthru
      _
    // Predicated region
    $region18: #{diffusion_forward.3} parent=1 // pred_check
      _
    $region19: #{diffusion_forward.3} parent=1 // pred_check_branch
      %85 = sbr.rel (0) target = $region21
    $region20: #{diffusion_forward.3} parent=1 // pred_region
      %s87 = ssub.s32 32, 32
      %88 = vsyncadd [#allocation5], %s87
      %s90 = sshll.u32 [#allocation4], 4
      %s91 = int_to_ptr.vmem [resolvable:$true] %s90
      %93 = dma.hbm_to_vmem [thread:$0]  %s9, 32, %s91, [#allocation5]
    $region21: #{diffusion_forward.3} parent=1 // pred_fallthru
      _
    // Predicated region
    $region22: #{diffusion_forward.3} parent=1 // pred_check
      _
    $region23: #{diffusion_forward.3} parent=1 // pred_check_branch
      %95 = sbr.rel (0) target = $region25
    $region24: #{diffusion_forward.3} parent=1 // pred_region
      _
    $region25: #{diffusion_forward.3} parent=1 // pred_fallthru
      _
    // Predicated region
    $region26: #{diffusion_forward.3} parent=1 // pred_check
      _
    $region27: #{diffusion_forward.3} parent=1 // pred_check_branch
      %97 = sbr.rel (0) target = $region29
    $region28: #{diffusion_forward.3} parent=1 // pred_region
      %s99 = ssub.s32 512, 512
      %100 = vsyncadd [#allocation7], %s99
      %s101 = sshll.u32 [#allocation6], 4
      %s102 = int_to_ptr.vmem [resolvable:$true] %s101
      %107 = dma.hbm_to_vmem [thread:$0]  %s13, 512, %s102, [#allocation7], 64, 64, 4
    $region29: #{diffusion_forward.3} parent=1 // pred_fallthru
      _
    // Predicated region
    $region30: #{diffusion_forward.3} parent=1 // pred_check
      _
    $region31: #{diffusion_forward.3} parent=1 // pred_check_branch
      %109 = sbr.rel (0) target = $region33
    $region32: #{diffusion_forward.3} parent=1 // pred_region
      %s111 = ssub.s32 16, 16
      %112 = vsyncadd [#allocation7], %s111
      %s114 = sshll.u32 [#allocation8], 4
      %s115 = int_to_ptr.vmem [resolvable:$true] %s114
      %117 = dma.hbm_to_vmem [thread:$0]  %s15, 16, %s115, [#allocation7]
    $region33: #{diffusion_forward.3} parent=1 // pred_fallthru
      _
    // Predicated region
    $region34: #{diffusion_forward.3} parent=1 // pred_check
      _
    $region35: #{diffusion_forward.3} parent=1 // pred_check_branch
      %119 = sbr.rel (0) target = $region37
    $region36: #{diffusion_forward.3} parent=1 // pred_region
      %s121 = ssub.s32 32, 32
      %122 = vsyncadd [#allocation10], %s121
      %s124 = sshll.u32 [#allocation9], 4
      %s125 = int_to_ptr.vmem [resolvable:$true] %s124
      %127 = dma.hbm_to_vmem [thread:$0]  %s17, 32, %s125, [#allocation10]
    $region37: #{diffusion_forward.3} parent=1 // pred_fallthru
      _
    // Predicated region
    $region38: #{diffusion_forward.3} parent=1 // pred_check
      _
    $region39: #{diffusion_forward.3} parent=1 // pred_check_branch
      %129 = sbr.rel (0) target = $region41
    $region40: #{diffusion_forward.3} parent=1 // pred_region
      %s131 = ssub.s32 16, 16
      %132 = vsyncadd [#allocation10], %s131
      %s134 = sshll.u32 [#allocation11], 4
      %s135 = int_to_ptr.vmem [resolvable:$true] %s134
      %137 = dma.hbm_to_vmem [thread:$0]  %s19, 16, %s135, [#allocation10]
    $region41: #{diffusion_forward.3} parent=1 // pred_fallthru
      _
    // Predicated region
    $region42: #{diffusion_forward.3} parent=1 // pred_check
      _
    $region43: #{diffusion_forward.3} parent=1 // pred_check_branch
      %139 = sbr.rel (0) target = $region45
    $region44: #{diffusion_forward.3} parent=1 // pred_region
      %s141 = ssub.s32 512, 512
      %142 = vsyncadd [#allocation13], %s141
      %s143 = sshll.u32 [#allocation12], 4
      %s144 = int_to_ptr.vmem [resolvable:$true] %s143
      %149 = dma.hbm_to_vmem [thread:$0]  %s21, 512, %s144, [#allocation13], 64, 64, 4
    $region45: #{diffusion_forward.3} parent=1 // pred_fallthru
      _
    // Predicated region
    $region46: #{diffusion_forward.3} parent=1 // pred_check
      _
    $region47: #{diffusion_forward.3} parent=1 // pred_check_branch
      %151 = sbr.rel (0) target = $region49
    $region48: #{diffusion_forward.3} parent=1 // pred_region
      %s153 = ssub.s32 16, 16
      %154 = vsyncadd [#allocation13], %s153
      %s156 = sshll.u32 [#allocation14], 4
      %s157 = int_to_ptr.vmem [resolvable:$true] %s156
      %159 = dma.hbm_to_vmem [thread:$0]  %s23, 16, %s157, [#allocation13]
    $region49: #{diffusion_forward.3} parent=1 // pred_fallthru
      _
    // Predicated region
    $region50: #{diffusion_forward.3} parent=1 // pred_check
      _
    $region51: #{diffusion_forward.3} parent=1 // pred_check_branch
      %161 = sbr.rel (0) target = $region53
    $region52: #{diffusion_forward.3} parent=1 // pred_region
      _
    $region53: #{diffusion_forward.3} parent=1 // pred_fallthru
      _
    // Predicated region
    $region54: #{diffusion_forward.3} parent=1 // pred_check
      _
    $region55: #{diffusion_forward.3} parent=1 // pred_check_branch
      %163 = sbr.rel (0) target = $region57
    $region56: #{diffusion_forward.3} parent=1 // pred_region
      %s165 = ssub.s32 16, 16
      %166 = vsyncadd [#allocation16], %s165
      %s168 = sshll.u32 [#allocation15], 4
      %s169 = int_to_ptr.vmem [resolvable:$true] %s168
      %171 = dma.hbm_to_vmem [thread:$0]  %s27, 16, %s169, [#allocation16]
    $region57: #{diffusion_forward.3} parent=1 // pred_fallthru
      _
    // Predicated region
    $region58: #{diffusion_forward.3} parent=1 // pred_check
      _
    $region59: #{diffusion_forward.3} parent=1 // pred_check_branch
      %173 = sbr.rel (0) target = $region61
    $region60: #{diffusion_forward.3} parent=1 // pred_region
      %s175 = ssub.s32 1024, 1024
      %176 = vsyncadd [#allocation16], %s175
      %s177 = sshll.u32 [#allocation17], 4
      %s178 = int_to_ptr.vmem [resolvable:$true] %s177
      %183 = dma.hbm_to_vmem [thread:$0]  %s29, 1024, %s178, [#allocation16], 64, 64, 4
    $region61: #{diffusion_forward.3} parent=1 // pred_fallthru
      _
    // Predicated region
    $region62: #{diffusion_forward.3} parent=1 // pred_check
      _
    $region63: #{diffusion_forward.3} parent=1 // pred_check_branch
      %185 = sbr.rel (0) target = $region65
    $region64: #{diffusion_forward.3} parent=1 // pred_region
      %s187 = ssub.s32 16, 16
      %188 = vsyncadd [#allocation19], %s187
      %s190 = sshll.u32 [#allocation18], 4
      %s191 = int_to_ptr.vmem [resolvable:$true] %s190
      %193 = dma.hbm_to_vmem [thread:$0]  %s31, 16, %s191, [#allocation19]
    $region65: #{diffusion_forward.3} parent=1 // pred_fallthru
      _
    // Predicated region
    $region66: #{diffusion_forward.3} parent=1 // pred_check
      _
    $region67: #{diffusion_forward.3} parent=1 // pred_check_branch
      %195 = sbr.rel (0) target = $region69
    $region68: #{diffusion_forward.3} parent=1 // pred_region
      _
    $region69: #{diffusion_forward.3} parent=1 // pred_fallthru
      _
    // Predicated region
    $region70: #{diffusion_forward.3} parent=1 // pred_check
      _
    $region71: #{diffusion_forward.3} parent=1 // pred_check_branch
      %197 = sbr.rel (0) target = $region73
    $region72: #{diffusion_forward.3} parent=1 // pred_region
      %s199 = ssub.s32 128, 128
      %200 = vsyncadd [#allocation19], %s199
      %s201 = sshll.u32 [#allocation20], 4
      %s202 = int_to_ptr.vmem [resolvable:$true] %s201
      %207 = dma.hbm_to_vmem [thread:$0]  %s35, 128, %s202, [#allocation19], 16, 16, 1
    $region73: #{diffusion_forward.3} parent=1 // pred_fallthru
      _
    // Predicated region
    $region74: #{diffusion_forward.3} parent=1 // pred_check
      _
    $region75: #{diffusion_forward.3} parent=1 // pred_check_branch
      %209 = sbr.rel (0) target = $region77
    $region76: #{diffusion_forward.3} parent=1 // pred_region
      _
    $region77: #{diffusion_forward.3} parent=1 // pred_fallthru
      _
    // Predicated region
    $region78: #{diffusion_forward.3} parent=1 // pred_check
      _
    $region79: #{diffusion_forward.3} parent=1 // pred_check_branch
      %211 = sbr.rel (0) target = $region81
    $region80: #{diffusion_forward.3} parent=1 // pred_region
      _
    $region81: #{diffusion_forward.3} parent=1 // pred_fallthru
      _
    // Predicated region
    $region82: #{diffusion_forward.3} parent=1 // pred_check
      _
    $region83: #{diffusion_forward.3} parent=1 // pred_check_branch
      %213 = sbr.rel (0) target = $region85
    $region84: #{diffusion_forward.3} parent=1 // pred_region
      _
    $region85: #{diffusion_forward.3} parent=1 // pred_fallthru
      _
    // Predicated region
    $region86: #{diffusion_forward.3} parent=1 // pred_check
      _
    $region87: #{diffusion_forward.3} parent=1 // pred_check_branch
      %215 = sbr.rel (0) target = $region89
    $region88: #{diffusion_forward.3} parent=1 // pred_region
      _
    $region89: #{diffusion_forward.3} parent=1 // pred_fallthru
      _
    // Predicated region
    $region90: #{diffusion_forward.3} parent=1 // pred_check
      _
    $region91: #{diffusion_forward.3} parent=1 // pred_check_branch
      %217 = sbr.rel (0) target = $region93
    $region92: #{diffusion_forward.3} parent=1 // pred_region
      _
    $region93: #{diffusion_forward.3} parent=1 // pred_fallthru
      _
    // Predicated region
    $region94: #{diffusion_forward.3} parent=1 // pred_check
      _
    $region95: #{diffusion_forward.3} parent=1 // pred_check_branch
      %219 = sbr.rel (0) target = $region97
    $region96: #{diffusion_forward.3} parent=1 // pred_region
      _
    $region97: #{diffusion_forward.3} parent=1 // pred_fallthru
      _
    // Predicated region
    $region98: #{diffusion_forward.3} parent=1 // pred_check
      _
    $region99: #{diffusion_forward.3} parent=1 // pred_check_branch
      %221 = sbr.rel (0) target = $region101
    $region100: #{diffusion_forward.3} parent=1 // pred_region
      _
    $region101: #{diffusion_forward.3} parent=1 // pred_fallthru
      _
    // Predicated region
    $region102: #{diffusion_forward.3} parent=1 // pred_check
      _
    $region103: #{diffusion_forward.3} parent=1 // pred_check_branch
      %223 = sbr.rel (0) target = $region105
    $region104: #{diffusion_forward.3} parent=1 // pred_region
      _
    $region105: #{diffusion_forward.3} parent=1 // pred_fallthru
      _
    // Predicated region
    $region106: #{diffusion_forward.3} parent=1 // pred_check
      _
    $region107: #{diffusion_forward.3} parent=1 // pred_check_branch
      %225 = sbr.rel (0) target = $region109
    $region108: #{diffusion_forward.3} parent=1 // pred_region
      _
    $region109: #{diffusion_forward.3} parent=1 // pred_fallthru
      _
    // Predicated region
    $region110: #{diffusion_forward.3} parent=1 // pred_check
      _
    $region111: #{diffusion_forward.3} parent=1 // pred_check_branch
      %227 = sbr.rel (0) target = $region113
    $region112: #{diffusion_forward.3} parent=1 // pred_region
      _
    $region113: #{diffusion_forward.3} parent=1 // pred_fallthru
      _
    // Predicated region
    $region114: #{diffusion_forward.3} parent=1 // pred_check
      _
    $region115: #{diffusion_forward.3} parent=1 // pred_check_branch
      %229 = sbr.rel (0) target = $region117
    $region116: #{diffusion_forward.3} parent=1 // pred_region
      _
    $region117: #{diffusion_forward.3} parent=1 // pred_fallthru
      _
    // Predicated region
    $region118: #{diffusion_forward.3} parent=1 // pred_check
      _
    $region119: #{diffusion_forward.3} parent=1 // pred_check_branch
      %231 = sbr.rel (0) target = $region121
    $region120: #{diffusion_forward.3} parent=1 // pred_region
      _
    $region121: #{diffusion_forward.3} parent=1 // pred_fallthru
      _
    // Predicated region
    $region122: #{diffusion_forward.3} parent=1 // pred_check
      _
    $region123: #{diffusion_forward.3} parent=1 // pred_check_branch
      %233 = sbr.rel (0) target = $region125
    $region124: #{diffusion_forward.3} parent=1 // pred_region
      _
    $region125: #{diffusion_forward.3} parent=1 // pred_fallthru
      _
    // Predicated region
    $region126: #{diffusion_forward.3} parent=1 // pred_check
      _
    $region127: #{diffusion_forward.3} parent=1 // pred_check_branch
      %235 = sbr.rel (0) target = $region129
    $region128: #{diffusion_forward.3} parent=1 // pred_region
      _
    $region129: #{diffusion_forward.3} parent=1 // pred_fallthru
      _
    // Predicated region
    $region130: #{diffusion_forward.3} parent=1 // pred_check
      _
    $region131: #{diffusion_forward.3} parent=1 // pred_check_branch
      %237 = sbr.rel (0) target = $region133
    $region132: #{diffusion_forward.3} parent=1 // pred_region
      %238 = dma.done [#allocation5], 32
    $region133: #{diffusion_forward.3} parent=1 // pred_fallthru
      _
    // Predicated region
    $region134: #{diffusion_forward.3} parent=1 // pred_check
      _
    $region135: #{diffusion_forward.3} parent=1 // pred_check_branch
      %240 = sbr.rel (0) target = $region137
    $region136: #{diffusion_forward.3} parent=1 // pred_region
      %241 = dma.done [#allocation7], 512
    $region137: #{diffusion_forward.3} parent=1 // pred_fallthru
      _
    // Predicated region
    $region138: #{diffusion_forward.3} parent=1 // pred_check
      _
    $region139: #{diffusion_forward.3} parent=1 // pred_check_branch
      %243 = sbr.rel (0) target = $region141
    $region140: #{diffusion_forward.3} parent=1 // pred_region
      %244 = dma.done [#allocation7], 16
    $region141: #{diffusion_forward.3} parent=1 // pred_fallthru
      _
    // Predicated region
    $region142: #{diffusion_forward.3} parent=1 // pred_check
      _
    $region143: #{diffusion_forward.3} parent=1 // pred_check_branch
      %246 = sbr.rel (0) target = $region145
    $region144: #{diffusion_forward.3} parent=1 // pred_region
      %247 = dma.done [#allocation10], 32
    $region145: #{diffusion_forward.3} parent=1 // pred_fallthru
      _
    // Predicated region
    $region146: #{diffusion_forward.3} parent=1 // pred_check
      _
    $region147: #{diffusion_forward.3} parent=1 // pred_check_branch
      %249 = sbr.rel (0) target = $region149
    $region148: #{diffusion_forward.3} parent=1 // pred_region
      %250 = dma.done [#allocation10], 16
    $region149: #{diffusion_forward.3} parent=1 // pred_fallthru
      _
    // Predicated region
    $region150: #{diffusion_forward.3} parent=1 // pred_check
      _
    $region151: #{diffusion_forward.3} parent=1 // pred_check_branch
      %252 = sbr.rel (0) target = $region153
    $region152: #{diffusion_forward.3} parent=1 // pred_region
      %253 = dma.done [#allocation13], 512
    $region153: #{diffusion_forward.3} parent=1 // pred_fallthru
      _
    // Predicated region
    $region154: #{diffusion_forward.3} parent=1 // pred_check
      _
    $region155: #{diffusion_forward.3} parent=1 // pred_check_branch
      %255 = sbr.rel (0) target = $region157
    $region156: #{diffusion_forward.3} parent=1 // pred_region
      %256 = dma.done [#allocation13], 16
    $region157: #{diffusion_forward.3} parent=1 // pred_fallthru
      _
    // Predicated region
    $region158: #{diffusion_forward.3} parent=1 // pred_check
      _
    $region159: #{diffusion_forward.3} parent=1 // pred_check_branch
      %258 = sbr.rel (0) target = $region161
    $region160: #{diffusion_forward.3} parent=1 // pred_region
      %259 = dma.done [#allocation16], 16
    $region161: #{diffusion_forward.3} parent=1 // pred_fallthru
      _
    // Predicated region
    $region162: #{diffusion_forward.3} parent=1 // pred_check
      _
    $region163: #{diffusion_forward.3} parent=1 // pred_check_branch
      %261 = sbr.rel (0) target = $region165
    $region164: #{diffusion_forward.3} parent=1 // pred_region
      %262 = dma.done [#allocation16], 1024
    $region165: #{diffusion_forward.3} parent=1 // pred_fallthru
      _
    // Predicated region
    $region166: #{diffusion_forward.3} parent=1 // pred_check
      _
    $region167: #{diffusion_forward.3} parent=1 // pred_check_branch
      %264 = sbr.rel (0) target = $region169
    $region168: #{diffusion_forward.3} parent=1 // pred_region
      %265 = dma.done [#allocation19], 16
    $region169: #{diffusion_forward.3} parent=1 // pred_fallthru
      _
    // Predicated region
    $region170: #{diffusion_forward.3} parent=1 // pred_check
      _
    $region171: #{diffusion_forward.3} parent=1 // pred_check_branch
      %267 = sbr.rel (0) target = $region173
    $region172: #{diffusion_forward.3} parent=1 // pred_region
      %268 = dma.done [#allocation19], 128
    $region173: #{diffusion_forward.3} parent=1 // pred_fallthru
      _
    %v269 = vld [vmem:[%s1] sm:$0xff]
    %v270 = vld [vmem:[%s1 + $0x8] sm:$0xff]
    %v271 = vld [vmem:[%s1 + $0x10] sm:$0xff]
    %v272 = vld [vmem:[%s1 + $0x18] sm:$0xff]
    %v273 = vld [vmem:[%s1 + $0x20] sm:$0xff]
    %v274 = vld [vmem:[%s1 + $0x28] sm:$0xff]
    %v275 = vld [vmem:[%s1 + $0x30] sm:$0xff]
    %v276 = vld [vmem:[%s1 + $0x38] sm:$0xff]
    %v277 = vld [vmem:[%s1 + $0x40] sm:$0xff]
    %v278 = vld [vmem:[%s1 + $0x48] sm:$0xff]
    %v279 = vld [vmem:[%s1 + $0x50] sm:$0xff]
    %v280 = vld [vmem:[%s1 + $0x58] sm:$0xff]
    %v281 = vld [vmem:[%s1 + $0x60] sm:$0xff]
    %v282 = vld [vmem:[%s1 + $0x68] sm:$0xff]
    %v283 = vld [vmem:[%s1 + $0x70] sm:$0xff]
    %v284 = vld [vmem:[%s1 + $0x78] sm:$0xff]
    %v285 = vld [vmem:[%s1 + $0x80] sm:$0xff]
    %v286 = vld [vmem:[%s1 + $0x88] sm:$0xff]
    %v287 = vld [vmem:[%s1 + $0x90] sm:$0xff]
    %v288 = vld [vmem:[%s1 + $0x98] sm:$0xff]
    %v289 = vld [vmem:[%s1 + $0xa0] sm:$0xff]
    %v290 = vld [vmem:[%s1 + $0xa8] sm:$0xff]
    %v291 = vld [vmem:[%s1 + $0xb0] sm:$0xff]
    %v292 = vld [vmem:[%s1 + $0xb8] sm:$0xff]
    %v293 = vld [vmem:[%s1 + $0xc0] sm:$0xff]
    %v294 = vld [vmem:[%s1 + $0xc8] sm:$0xff]
    %v295 = vld [vmem:[%s1 + $0xd0] sm:$0xff]
    %v296 = vld [vmem:[%s1 + $0xd8] sm:$0xff]
    %v297 = vld [vmem:[%s1 + $0xe0] sm:$0xff]
    %v298 = vld [vmem:[%s1 + $0xe8] sm:$0xff]
    %v299 = vld [vmem:[%s1 + $0xf0] sm:$0xff]
    %v300 = vld [vmem:[%s1 + $0xf8] sm:$0xff]
    %v301 = vld [vmem:[%s1 + $0x100] sm:$0xff]
    %v302 = vld [vmem:[%s1 + $0x108] sm:$0xff]
    %v303 = vld [vmem:[%s1 + $0x110] sm:$0xff]
    %v304 = vld [vmem:[%s1 + $0x118] sm:$0xff]
    %v305 = vld [vmem:[%s1 + $0x120] sm:$0xff]
    %v306 = vld [vmem:[%s1 + $0x128] sm:$0xff]
    %v307 = vld [vmem:[%s1 + $0x130] sm:$0xff]
    %v308 = vld [vmem:[%s1 + $0x138] sm:$0xff]
    %v309 = vld [vmem:[%s1 + $0x140] sm:$0xff]
    %v310 = vld [vmem:[%s1 + $0x148] sm:$0xff]
    %v311 = vld [vmem:[%s1 + $0x150] sm:$0xff]
    %v312 = vld [vmem:[%s1 + $0x158] sm:$0xff]
    %v313 = vld [vmem:[%s1 + $0x160] sm:$0xff]
    %v314 = vld [vmem:[%s1 + $0x168] sm:$0xff]
    %v315 = vld [vmem:[%s1 + $0x170] sm:$0xff]
    %v316 = vld [vmem:[%s1 + $0x178] sm:$0xff]
    %v317 = vld [vmem:[%s1 + $0x180] sm:$0xff]
    %v318 = vld [vmem:[%s1 + $0x188] sm:$0xff]
    %v319 = vld [vmem:[%s1 + $0x190] sm:$0xff]
    %v320 = vld [vmem:[%s1 + $0x198] sm:$0xff]
    %v321 = vld [vmem:[%s1 + $0x1a0] sm:$0xff]
    %v322 = vld [vmem:[%s1 + $0x1a8] sm:$0xff]
    %v323 = vld [vmem:[%s1 + $0x1b0] sm:$0xff]
    %v324 = vld [vmem:[%s1 + $0x1b8] sm:$0xff]
    %v325 = vld [vmem:[%s1 + $0x1c0] sm:$0xff]
    %v326 = vld [vmem:[%s1 + $0x1c8] sm:$0xff]
    %v327 = vld [vmem:[%s1 + $0x1d0] sm:$0xff]
    %v328 = vld [vmem:[%s1 + $0x1d8] sm:$0xff]
    %v329 = vld [vmem:[%s1 + $0x1e0] sm:$0xff]
    %v330 = vld [vmem:[%s1 + $0x1e8] sm:$0xff]
    %v331 = vld [vmem:[%s1 + $0x1f0] sm:$0xff]
    %v332 = vld [vmem:[%s1 + $0x1f8] sm:$0xff]
    %v333 = vld [vmem:[#allocation4] sm:$0x3]
    %v334 = vunpack.c.l.bf16 %v333
    %v335 = vld [vmem:[%s11] sm:$0x1]
    %v337 = vlaneseq
    %v338 = vshrl.u32 %v337, 7
    %v339 = vsub.s32 0, %v338
    %v340 = vrot.slane %v335, %v339
    %vm342 = vcmask 23552
    %v344 = vsel %vm342, %v269, 0
    %v347 = vsel %vm342, %v270, 0
    %v350 = vsel %vm342, %v271, 0
    %v353 = vsel %vm342, %v272, 0
    %v356 = vsel %vm342, %v273, 0
    %v359 = vsel %vm342, %v274, 0
    %v362 = vsel %vm342, %v275, 0
    %v365 = vsel %vm342, %v276, 0
    %v368 = vsel %vm342, %v277, 0
    %v371 = vsel %vm342, %v278, 0
    %v374 = vsel %vm342, %v279, 0
    %v377 = vsel %vm342, %v280, 0
    %v380 = vsel %vm342, %v281, 0
    %v383 = vsel %vm342, %v282, 0
    %v386 = vsel %vm342, %v283, 0
    %v389 = vsel %vm342, %v284, 0
    %v392 = vsel %vm342, %v285, 0
    %v395 = vsel %vm342, %v286, 0
    %v398 = vsel %vm342, %v287, 0
    %v401 = vsel %vm342, %v288, 0
    %v404 = vsel %vm342, %v289, 0
    %v407 = vsel %vm342, %v290, 0
    %v410 = vsel %vm342, %v291, 0
    %v413 = vsel %vm342, %v292, 0
    %v416 = vsel %vm342, %v293, 0
    %v419 = vsel %vm342, %v294, 0
    %v422 = vsel %vm342, %v295, 0
    %v425 = vsel %vm342, %v296, 0
    %v428 = vsel %vm342, %v297, 0
    %v431 = vsel %vm342, %v298, 0
    %v434 = vsel %vm342, %v299, 0
    %v437 = vsel %vm342, %v300, 0
    %v440 = vsel %vm342, %v301, 0
    %v443 = vsel %vm342, %v302, 0
    %v446 = vsel %vm342, %v303, 0
    %v449 = vsel %vm342, %v304, 0
    %v452 = vsel %vm342, %v305, 0
    %v455 = vsel %vm342, %v306, 0
    %v458 = vsel %vm342, %v307, 0
    %v461 = vsel %vm342, %v308, 0
    %v464 = vsel %vm342, %v309, 0
    %v467 = vsel %vm342, %v310, 0
    %v470 = vsel %vm342, %v311, 0
    %v473 = vsel %vm342, %v312, 0
    %v476 = vsel %vm342, %v313, 0
    %v479 = vsel %vm342, %v314, 0
    %v482 = vsel %vm342, %v315, 0
    %v485 = vsel %vm342, %v316, 0
    %v488 = vsel %vm342, %v317, 0
    %v491 = vsel %vm342, %v318, 0
    %v494 = vsel %vm342, %v319, 0
    %v497 = vsel %vm342, %v320, 0
    %v500 = vsel %vm342, %v321, 0
    %v503 = vsel %vm342, %v322, 0
    %v506 = vsel %vm342, %v323, 0
    %v509 = vsel %vm342, %v324, 0
    %v512 = vsel %vm342, %v325, 0
    %v515 = vsel %vm342, %v326, 0
    %v518 = vsel %vm342, %v327, 0
    %v521 = vsel %vm342, %v328, 0
    %v524 = vsel %vm342, %v329, 0
    %v527 = vsel %vm342, %v330, 0
    %v530 = vsel %vm342, %v331, 0
    %v533 = vsel %vm342, %v332, 0
    %vm535 = vcmask 1042432
    %v537 = vsel %vm535, %v334, 0
    %539 = vmatprep.subr.mxu0 0.0
    %540 = vmatpush1.msra.mxu0 %v537
    %541 = vmatprep.subr.mxu0 0.0
    %542 = vmatpush1.msra.mxu0 0.0
    %543 = vmatprep.subr.mxu0 0.0
    %544 = vmatpush1.msra.mxu0 0.0
    %545 = vmatprep.subr.mxu0 0.0
    %546 = vmatpush1.msra.mxu0 0.0
    %547 = vmatprep.subr.mxu0 0.0
    %548 = vmatpush1.msra.mxu0 0.0
    %549 = vmatprep.subr.mxu0 0.0
    %550 = vmatpush1.msra.mxu0 0.0
    %551 = vmatprep.subr.mxu0 0.0
    %552 = vmatpush1.msra.mxu0 0.0
    %553 = vmatprep.subr.mxu0 0.0
    %554 = vmatpush1.msra.mxu0 0.0
    %555 = vmatprep.subr.mxu0 0.0
    %556 = vmatpush1.msra.mxu0 0.0
    %557 = vmatprep.subr.mxu0 0.0
    %558 = vmatpush1.msra.mxu0 0.0
    %559 = vmatprep.subr.mxu0 0.0
    %560 = vmatpush1.msra.mxu0 0.0
    %561 = vmatprep.subr.mxu0 0.0
    %562 = vmatpush1.msra.mxu0 0.0
    %563 = vmatprep.subr.mxu0 0.0
    %564 = vmatpush1.msra.mxu0 0.0
    %565 = vmatprep.subr.mxu0 0.0
    %566 = vmatpush1.msra.mxu0 0.0
    %567 = vmatprep.subr.mxu0 0.0
    %568 = vmatpush1.msra.mxu0 0.0
    %569 = vmatprep.subr.mxu0 0.0
    %570 = vmatpush1.msra.mxu0 0.0
    %571 = vmatprep.subr.mxu0 0.0
    %572 = vmatpush1.msra.mxu0 0.0
    %573 = vmatprep.subr.mxu0 0.0
    %574 = vmatpush1.msra.mxu0 0.0
    %575 = vmatprep.subr.mxu0 0.0
    %576 = vmatpush1.msra.mxu0 0.0
    %577 = vmatprep.subr.mxu0 0.0
    %578 = vmatpush1.msra.mxu0 0.0
    %579 = vmatprep.subr.mxu0 0.0
    %580 = vmatpush1.msra.mxu0 0.0
    %581 = vmatprep.subr.mxu0 0.0
    %582 = vmatpush1.msra.mxu0 0.0
    %583 = vmatprep.subr.mxu0 0.0
    %584 = vmatpush1.msra.mxu0 0.0
    %585 = vmatprep.subr.mxu0 0.0
    %586 = vmatpush1.msra.mxu0 0.0
    %587 = vmatprep.subr.mxu0 0.0
    %588 = vmatpush1.msra.mxu0 0.0
    %589 = vmatprep.subr.mxu0 0.0
    %590 = vmatpush1.msra.mxu0 0.0
    %591 = vmatprep.subr.mxu0 0.0
    %592 = vmatpush1.msra.mxu0 0.0
    %593 = vmatprep.subr.mxu0 0.0
    %594 = vmatpush1.msra.mxu0 0.0
    %595 = vmatprep.subr.mxu0 0.0
    %596 = vmatpush1.msra.mxu0 0.0
    %597 = vmatprep.subr.mxu0 0.0
    %598 = vmatpush1.msra.mxu0 0.0
    %599 = vmatprep.subr.mxu0 0.0
    %600 = vmatpush1.msra.mxu0 0.0
    %601 = vmatprep.subr.mxu0 0.0
    %602 = vmatpush1.msra.mxu0 0.0
    %603 = vmatprep.mubr.f32.mxu0 0.0
    %604 = vmatmul.mubr.f32.gmra.mrb[0].mxu0 %v344
    %v605 = vpop.f32.mrb[0].mxu0
    %v606 = vadd.f32 %v340, %v605
    %v607 = vpop.f32.mrb[0].mxu0
    %608 = vmatprep.mubr.f32.mxu0 0.0
    %609 = vmatmul.mubr.f32.gmra.mrb[0].mxu0 %v347
    %v610 = vpop.f32.mrb[0].mxu0
    %v611 = vadd.f32 %v340, %v610
    %v612 = vpop.f32.mrb[0].mxu0
    %613 = vmatprep.mubr.f32.mxu0 0.0
    %614 = vmatmul.mubr.f32.gmra.mrb[0].mxu0 %v350
    %v615 = vpop.f32.mrb[0].mxu0
    %v616 = vadd.f32 %v340, %v615
    %v617 = vpop.f32.mrb[0].mxu0
    %618 = vmatprep.mubr.f32.mxu0 0.0
    %619 = vmatmul.mubr.f32.gmra.mrb[0].mxu0 %v353
    %v620 = vpop.f32.mrb[0].mxu0
    %v621 = vadd.f32 %v340, %v620
    %v622 = vpop.f32.mrb[0].mxu0
    %623 = vmatprep.mubr.f32.mxu0 0.0
    %624 = vmatmul.mubr.f32.gmra.mrb[0].mxu0 %v356
    %v625 = vpop.f32.mrb[0].mxu0
    %v626 = vadd.f32 %v340, %v625
    %v627 = vpop.f32.mrb[0].mxu0
    %628 = vmatprep.mubr.f32.mxu0 0.0
    %629 = vmatmul.mubr.f32.gmra.mrb[0].mxu0 %v359
    %v630 = vpop.f32.mrb[0].mxu0
    %v631 = vadd.f32 %v340, %v630
    %v632 = vpop.f32.mrb[0].mxu0
    %633 = vmatprep.mubr.f32.mxu0 0.0
    %634 = vmatmul.mubr.f32.gmra.mrb[0].mxu0 %v362
    %v635 = vpop.f32.mrb[0].mxu0
    %v636 = vadd.f32 %v340, %v635
    %v637 = vpop.f32.mrb[0].mxu0
    %638 = vmatprep.mubr.f32.mxu0 0.0
    %639 = vmatmul.mubr.f32.gmra.mrb[0].mxu0 %v365
    %v640 = vpop.f32.mrb[0].mxu0
    %v641 = vadd.f32 %v340, %v640
    %v642 = vpop.f32.mrb[0].mxu0
    %643 = vmatprep.mubr.f32.mxu0 0.0
    %644 = vmatmul.mubr.f32.gmra.mrb[0].mxu0 %v368
    %v645 = vpop.f32.mrb[0].mxu0
    %v646 = vadd.f32 %v340, %v645
    %v647 = vpop.f32.mrb[0].mxu0
    %648 = vmatprep.mubr.f32.mxu0 0.0
    %649 = vmatmul.mubr.f32.gmra.mrb[0].mxu0 %v371
    %v650 = vpop.f32.mrb[0].mxu0
    %v651 = vadd.f32 %v340, %v650
    %v652 = vpop.f32.mrb[0].mxu0
    %653 = vmatprep.mubr.f32.mxu0 0.0
    %654 = vmatmul.mubr.f32.gmra.mrb[0].mxu0 %v374
    %v655 = vpop.f32.mrb[0].mxu0
    %v656 = vadd.f32 %v340, %v655
    %v657 = vpop.f32.mrb[0].mxu0
    %658 = vmatprep.mubr.f32.mxu0 0.0
    %659 = vmatmul.mubr.f32.gmra.mrb[0].mxu0 %v377
    %v660 = vpop.f32.mrb[0].mxu0
    %v661 = vadd.f32 %v340, %v660
    %v662 = vpop.f32.mrb[0].mxu0
    %663 = vmatprep.mubr.f32.mxu0 0.0
    %664 = vmatmul.mubr.f32.gmra.mrb[0].mxu0 %v380
    %v665 = vpop.f32.mrb[0].mxu0
    %v666 = vadd.f32 %v340, %v665
    %v667 = vpop.f32.mrb[0].mxu0
    %668 = vmatprep.mubr.f32.mxu0 0.0
    %669 = vmatmul.mubr.f32.gmra.mrb[0].mxu0 %v383
    %v670 = vpop.f32.mrb[0].mxu0
    %v671 = vadd.f32 %v340, %v670
    %v672 = vpop.f32.mrb[0].mxu0
    %673 = vmatprep.mubr.f32.mxu0 0.0
    %674 = vmatmul.mubr.f32.gmra.mrb[0].mxu0 %v386
    %v675 = vpop.f32.mrb[0].mxu0
    %v676 = vadd.f32 %v340, %v675
    %v677 = vpop.f32.mrb[0].mxu0
    %678 = vmatprep.mubr.f32.mxu0 0.0
    %679 = vmatmul.mubr.f32.gmra.mrb[0].mxu0 %v389
    %v680 = vpop.f32.mrb[0].mxu0
    %v681 = vadd.f32 %v340, %v680
    %v682 = vpop.f32.mrb[0].mxu0
    %683 = vmatprep.mubr.f32.mxu0 0.0
    %684 = vmatmul.mubr.f32.gmra.mrb[0].mxu0 %v392
    %v685 = vpop.f32.mrb[0].mxu0
    %v686 = vadd.f32 %v340, %v685
    %v687 = vpop.f32.mrb[0].mxu0
    %688 = vmatprep.mubr.f32.mxu0 0.0
    %689 = vmatmul.mubr.f32.gmra.mrb[0].mxu0 %v395
    %v690 = vpop.f32.mrb[0].mxu0
    %v691 = vadd.f32 %v340, %v690
    %v692 = vpop.f32.mrb[0].mxu0
    %693 = vmatprep.mubr.f32.mxu0 0.0
    %694 = vmatmul.mubr.f32.gmra.mrb[0].mxu0 %v398
    %v695 = vpop.f32.mrb[0].mxu0
    %v696 = vadd.f32 %v340, %v695
    %v697 = vpop.f32.mrb[0].mxu0
    %698 = vmatprep.mubr.f32.mxu0 0.0
    %699 = vmatmul.mubr.f32.gmra.mrb[0].mxu0 %v401
    %v700 = vpop.f32.mrb[0].mxu0
    %v701 = vadd.f32 %v340, %v700
    %v702 = vpop.f32.mrb[0].mxu0
    %703 = vmatprep.mubr.f32.mxu0 0.0
    %704 = vmatmul.mubr.f32.gmra.mrb[0].mxu0 %v404
    %v705 = vpop.f32.mrb[0].mxu0
    %v706 = vadd.f32 %v340, %v705
    %v707 = vpop.f32.mrb[0].mxu0
    %708 = vmatprep.mubr.f32.mxu0 0.0
    %709 = vmatmul.mubr.f32.gmra.mrb[0].mxu0 %v407
    %v710 = vpop.f32.mrb[0].mxu0
    %v711 = vadd.f32 %v340, %v710
    %v712 = vpop.f32.mrb[0].mxu0
    %713 = vmatprep.mubr.f32.mxu0 0.0
    %714 = vmatmul.mubr.f32.gmra.mrb[0].mxu0 %v410
    %v715 = vpop.f32.mrb[0].mxu0
    %v716 = vadd.f32 %v340, %v715
    %v717 = vpop.f32.mrb[0].mxu0
    %718 = vmatprep.mubr.f32.mxu0 0.0
    %719 = vmatmul.mubr.f32.gmra.mrb[0].mxu0 %v413
    %v720 = vpop.f32.mrb[0].mxu0
    %v721 = vadd.f32 %v340, %v720
    %v722 = vpop.f32.mrb[0].mxu0
    %723 = vmatprep.mubr.f32.mxu0 0.0
    %724 = vmatmul.mubr.f32.gmra.mrb[0].mxu0 %v416
    %v725 = vpop.f32.mrb[0].mxu0
    %v726 = vadd.f32 %v340, %v725
    %v727 = vpop.f32.mrb[0].mxu0
    %728 = vmatprep.mubr.f32.mxu0 0.0
    %729 = vmatmul.mubr.f32.gmra.mrb[0].mxu0 %v419
    %v730 = vpop.f32.mrb[0].mxu0
    %v731 = vadd.f32 %v340, %v730
    %v732 = vpop.f32.mrb[0].mxu0
    %733 = vmatprep.mubr.f32.mxu0 0.0
    %734 = vmatmul.mubr.f32.gmra.mrb[0].mxu0 %v422
    %v735 = vpop.f32.mrb[0].mxu0
    %v736 = vadd.f32 %v340, %v735
    %v737 = vpop.f32.mrb[0].mxu0
    %738 = vmatprep.mubr.f32.mxu0 0.0
    %739 = vmatmul.mubr.f32.gmra.mrb[0].mxu0 %v425
    %v740 = vpop.f32.mrb[0].mxu0
    %v741 = vadd.f32 %v340, %v740
    %v742 = vpop.f32.mrb[0].mxu0
    %743 = vmatprep.mubr.f32.mxu0 0.0
    %744 = vmatmul.mubr.f32.gmra.mrb[0].mxu0 %v428
    %v745 = vpop.f32.mrb[0].mxu0
    %v746 = vadd.f32 %v340, %v745
    %v747 = vpop.f32.mrb[0].mxu0
    %748 = vmatprep.mubr.f32.mxu0 0.0
    %749 = vmatmul.mubr.f32.gmra.mrb[0].mxu0 %v431
    %v750 = vpop.f32.mrb[0].mxu0
    %v751 = vadd.f32 %v340, %v750
    %v752 = vpop.f32.mrb[0].mxu0
    %753 = vmatprep.mubr.f32.mxu0 0.0
    %754 = vmatmul.mubr.f32.gmra.mrb[0].mxu0 %v434
    %v755 = vpop.f32.mrb[0].mxu0
    %v756 = vadd.f32 %v340, %v755
    %v757 = vpop.f32.mrb[0].mxu0
    %758 = vmatprep.mubr.f32.mxu0 0.0
    %759 = vmatmul.mubr.f32.gmra.mrb[0].mxu0 %v437
    %v760 = vpop.f32.mrb[0].mxu0
    %v761 = vadd.f32 %v340, %v760
    %v762 = vpop.f32.mrb[0].mxu0
    %763 = vmatprep.mubr.f32.mxu0 0.0
    %764 = vmatmul.mubr.f32.gmra.mrb[0].mxu0 %v440
    %v765 = vpop.f32.mrb[0].mxu0
    %v766 = vadd.f32 %v340, %v765
    %v767 = vpop.f32.mrb[0].mxu0
    %768 = vmatprep.mubr.f32.mxu0 0.0
    %769 = vmatmul.mubr.f32.gmra.mrb[0].mxu0 %v443
    %v770 = vpop.f32.mrb[0].mxu0
    %v771 = vadd.f32 %v340, %v770
    %v772 = vpop.f32.mrb[0].mxu0
    %773 = vmatprep.mubr.f32.mxu0 0.0
    %774 = vmatmul.mubr.f32.gmra.mrb[0].mxu0 %v446
    %v775 = vpop.f32.mrb[0].mxu0
    %v776 = vadd.f32 %v340, %v775
    %v777 = vpop.f32.mrb[0].mxu0
    %778 = vmatprep.mubr.f32.mxu0 0.0
    %779 = vmatmul.mubr.f32.gmra.mrb[0].mxu0 %v449
    %v780 = vpop.f32.mrb[0].mxu0
    %v781 = vadd.f32 %v340, %v780
    %v782 = vpop.f32.mrb[0].mxu0
    %783 = vmatprep.mubr.f32.mxu0 0.0
    %784 = vmatmul.mubr.f32.gmra.mrb[0].mxu0 %v452
    %v785 = vpop.f32.mrb[0].mxu0
    %v786 = vadd.f32 %v340, %v785
    %v787 = vpop.f32.mrb[0].mxu0
    %788 = vmatprep.mubr.f32.mxu0 0.0
    %789 = vmatmul.mubr.f32.gmra.mrb[0].mxu0 %v455
    %v790 = vpop.f32.mrb[0].mxu0
    %v791 = vadd.f32 %v340, %v790
    %v792 = vpop.f32.mrb[0].mxu0
    %793 = vmatprep.mubr.f32.mxu0 0.0
    %794 = vmatmul.mubr.f32.gmra.mrb[0].mxu0 %v458
    %v795 = vpop.f32.mrb[0].mxu0
    %v796 = vadd.f32 %v340, %v795
    %v797 = vpop.f32.mrb[0].mxu0
    %798 = vmatprep.mubr.f32.mxu0 0.0
    %799 = vmatmul.mubr.f32.gmra.mrb[0].mxu0 %v461
    %v800 = vpop.f32.mrb[0].mxu0
    %v801 = vadd.f32 %v340, %v800
    %v802 = vpop.f32.mrb[0].mxu0
    %803 = vmatprep.mubr.f32.mxu0 0.0
    %804 = vmatmul.mubr.f32.gmra.mrb[0].mxu0 %v464
    %v805 = vpop.f32.mrb[0].mxu0
    %v806 = vadd.f32 %v340, %v805
    %v807 = vpop.f32.mrb[0].mxu0
    %808 = vmatprep.mubr.f32.mxu0 0.0
    %809 = vmatmul.mubr.f32.gmra.mrb[0].mxu0 %v467
    %v810 = vpop.f32.mrb[0].mxu0
    %v811 = vadd.f32 %v340, %v810
    %v812 = vpop.f32.mrb[0].mxu0
    %813 = vmatprep.mubr.f32.mxu0 0.0
    %814 = vmatmul.mubr.f32.gmra.mrb[0].mxu0 %v470
    %v815 = vpop.f32.mrb[0].mxu0
    %v816 = vadd.f32 %v340, %v815
    %v817 = vpop.f32.mrb[0].mxu0
    %818 = vmatprep.mubr.f32.mxu0 0.0
    %819 = vmatmul.mubr.f32.gmra.mrb[0].mxu0 %v473
    %v820 = vpop.f32.mrb[0].mxu0
    %v821 = vadd.f32 %v340, %v820
    %v822 = vpop.f32.mrb[0].mxu0
    %823 = vmatprep.mubr.f32.mxu0 0.0
    %824 = vmatmul.mubr.f32.gmra.mrb[0].mxu0 %v476
    %v825 = vpop.f32.mrb[0].mxu0
    %v826 = vadd.f32 %v340, %v825
    %v827 = vpop.f32.mrb[0].mxu0
    %828 = vmatprep.mubr.f32.mxu0 0.0
    %829 = vmatmul.mubr.f32.gmra.mrb[0].mxu0 %v479
    %v830 = vpop.f32.mrb[0].mxu0
    %v831 = vadd.f32 %v340, %v830
    %v832 = vpop.f32.mrb[0].mxu0
    %833 = vmatprep.mubr.f32.mxu0 0.0
    %834 = vmatmul.mubr.f32.gmra.mrb[0].mxu0 %v482
    %v835 = vpop.f32.mrb[0].mxu0
    %v836 = vadd.f32 %v340, %v835
    %v837 = vpop.f32.mrb[0].mxu0
    %838 = vmatprep.mubr.f32.mxu0 0.0
    %839 = vmatmul.mubr.f32.gmra.mrb[0].mxu0 %v485
    %v840 = vpop.f32.mrb[0].mxu0
    %v841 = vadd.f32 %v340, %v840
    %v842 = vpop.f32.mrb[0].mxu0
    %843 = vmatprep.mubr.f32.mxu0 0.0
    %844 = vmatmul.mubr.f32.gmra.mrb[0].mxu0 %v488
    %v845 = vpop.f32.mrb[0].mxu0
    %v846 = vadd.f32 %v340, %v845
    %v847 = vpop.f32.mrb[0].mxu0
    %848 = vmatprep.mubr.f32.mxu0 0.0
    %849 = vmatmul.mubr.f32.gmra.mrb[0].mxu0 %v491
    %v850 = vpop.f32.mrb[0].mxu0
    %v851 = vadd.f32 %v340, %v850
    %v852 = vpop.f32.mrb[0].mxu0
    %853 = vmatprep.mubr.f32.mxu0 0.0
    %854 = vmatmul.mubr.f32.gmra.mrb[0].mxu0 %v494
    %v855 = vpop.f32.mrb[0].mxu0
    %v856 = vadd.f32 %v340, %v855
    %v857 = vpop.f32.mrb[0].mxu0
    %858 = vmatprep.mubr.f32.mxu0 0.0
    %859 = vmatmul.mubr.f32.gmra.mrb[0].mxu0 %v497
    %v860 = vpop.f32.mrb[0].mxu0
    %v861 = vadd.f32 %v340, %v860
    %v862 = vpop.f32.mrb[0].mxu0
    %863 = vmatprep.mubr.f32.mxu0 0.0
    %864 = vmatmul.mubr.f32.gmra.mrb[0].mxu0 %v500
    %v865 = vpop.f32.mrb[0].mxu0
    %v866 = vadd.f32 %v340, %v865
    %v867 = vpop.f32.mrb[0].mxu0
    %868 = vmatprep.mubr.f32.mxu0 0.0
    %869 = vmatmul.mubr.f32.gmra.mrb[0].mxu0 %v503
    %v870 = vpop.f32.mrb[0].mxu0
    %v871 = vadd.f32 %v340, %v870
    %v872 = vpop.f32.mrb[0].mxu0
    %873 = vmatprep.mubr.f32.mxu0 0.0
    %874 = vmatmul.mubr.f32.gmra.mrb[0].mxu0 %v506
    %v875 = vpop.f32.mrb[0].mxu0
    %v876 = vadd.f32 %v340, %v875
    %v877 = vpop.f32.mrb[0].mxu0
    %878 = vmatprep.mubr.f32.mxu0 0.0
    %879 = vmatmul.mubr.f32.gmra.mrb[0].mxu0 %v509
    %v880 = vpop.f32.mrb[0].mxu0
    %v881 = vadd.f32 %v340, %v880
    %v882 = vpop.f32.mrb[0].mxu0
    %883 = vmatprep.mubr.f32.mxu0 0.0
    %884 = vmatmul.mubr.f32.gmra.mrb[0].mxu0 %v512
    %v885 = vpop.f32.mrb[0].mxu0
    %v886 = vadd.f32 %v340, %v885
    %v887 = vpop.f32.mrb[0].mxu0
    %888 = vmatprep.mubr.f32.mxu0 0.0
    %889 = vmatmul.mubr.f32.gmra.mrb[0].mxu0 %v515
    %v890 = vpop.f32.mrb[0].mxu0
    %v891 = vadd.f32 %v340, %v890
    %v892 = vpop.f32.mrb[0].mxu0
    %893 = vmatprep.mubr.f32.mxu0 0.0
    %894 = vmatmul.mubr.f32.gmra.mrb[0].mxu0 %v518
    %v895 = vpop.f32.mrb[0].mxu0
    %v896 = vadd.f32 %v340, %v895
    %v897 = vpop.f32.mrb[0].mxu0
    %898 = vmatprep.mubr.f32.mxu0 0.0
    %899 = vmatmul.mubr.f32.gmra.mrb[0].mxu0 %v521
    %v900 = vpop.f32.mrb[0].mxu0
    %v901 = vadd.f32 %v340, %v900
    %v902 = vpop.f32.mrb[0].mxu0
    %903 = vmatprep.mubr.f32.mxu0 0.0
    %904 = vmatmul.mubr.f32.gmra.mrb[0].mxu0 %v524
    %v905 = vpop.f32.mrb[0].mxu0
    %v906 = vadd.f32 %v340, %v905
    %v907 = vpop.f32.mrb[0].mxu0
    %908 = vmatprep.mubr.f32.mxu0 0.0
    %909 = vmatmul.mubr.f32.gmra.mrb[0].mxu0 %v527
    %v910 = vpop.f32.mrb[0].mxu0
    %v911 = vadd.f32 %v340, %v910
    %v912 = vpop.f32.mrb[0].mxu0
    %913 = vmatprep.mubr.f32.mxu0 0.0
    %914 = vmatmul.mubr.f32.gmra.mrb[0].mxu0 %v530
    %v915 = vpop.f32.mrb[0].mxu0
    %v916 = vadd.f32 %v340, %v915
    %v917 = vpop.f32.mrb[0].mxu0
    %918 = vmatprep.mubr.f32.mxu0 0.0
    %919 = vmatmul.mubr.f32.gmra.mrb[0].mxu0 %v533
    %v920 = vpop.f32.mrb[0].mxu0
    %v921 = vadd.f32 %v340, %v920
    %v922 = vpop.f32.mrb[0].mxu0
    %923 = vdwg.mxu0
    %v924 = vmax.f32 %v606, 0.0
    %v925 = vmax.f32 %v611, 0.0
    %v926 = vmax.f32 %v616, 0.0
    %v927 = vmax.f32 %v621, 0.0
    %v928 = vmax.f32 %v626, 0.0
    %v929 = vmax.f32 %v631, 0.0
    %v930 = vmax.f32 %v636, 0.0
    %v931 = vmax.f32 %v641, 0.0
    %v932 = vmax.f32 %v646, 0.0
    %v933 = vmax.f32 %v651, 0.0
    %v934 = vmax.f32 %v656, 0.0
    %v935 = vmax.f32 %v661, 0.0
    %v936 = vmax.f32 %v666, 0.0
    %v937 = vmax.f32 %v671, 0.0
    %v938 = vmax.f32 %v676, 0.0
    %v939 = vmax.f32 %v681, 0.0
    %v940 = vmax.f32 %v686, 0.0
    %v941 = vmax.f32 %v691, 0.0
    %v942 = vmax.f32 %v696, 0.0
    %v943 = vmax.f32 %v701, 0.0
    %v944 = vmax.f32 %v706, 0.0
    %v945 = vmax.f32 %v711, 0.0
    %v946 = vmax.f32 %v716, 0.0
    %v947 = vmax.f32 %v721, 0.0
    %v948 = vmax.f32 %v726, 0.0
    %v949 = vmax.f32 %v731, 0.0
    %v950 = vmax.f32 %v736, 0.0
    %v951 = vmax.f32 %v741, 0.0
    %v952 = vmax.f32 %v746, 0.0
    %v953 = vmax.f32 %v751, 0.0
    %v954 = vmax.f32 %v756, 0.0
    %v955 = vmax.f32 %v761, 0.0
    %v956 = vmax.f32 %v766, 0.0
    %v957 = vmax.f32 %v771, 0.0
    %v958 = vmax.f32 %v776, 0.0
    %v959 = vmax.f32 %v781, 0.0
    %v960 = vmax.f32 %v786, 0.0
    %v961 = vmax.f32 %v791, 0.0
    %v962 = vmax.f32 %v796, 0.0
    %v963 = vmax.f32 %v801, 0.0
    %v964 = vmax.f32 %v806, 0.0
    %v965 = vmax.f32 %v811, 0.0
    %v966 = vmax.f32 %v816, 0.0
    %v967 = vmax.f32 %v821, 0.0
    %v968 = vmax.f32 %v826, 0.0
    %v969 = vmax.f32 %v831, 0.0
    %v970 = vmax.f32 %v836, 0.0
    %v971 = vmax.f32 %v841, 0.0
    %v972 = vmax.f32 %v846, 0.0
    %v973 = vmax.f32 %v851, 0.0
    %v974 = vmax.f32 %v856, 0.0
    %v975 = vmax.f32 %v861, 0.0
    %v976 = vmax.f32 %v866, 0.0
    %v977 = vmax.f32 %v871, 0.0
    %v978 = vmax.f32 %v876, 0.0
    %v979 = vmax.f32 %v881, 0.0
    %v980 = vmax.f32 %v886, 0.0
    %v981 = vmax.f32 %v891, 0.0
    %v982 = vmax.f32 %v896, 0.0
    %v983 = vmax.f32 %v901, 0.0
    %v984 = vmax.f32 %v906, 0.0
    %v985 = vmax.f32 %v911, 0.0
    %v986 = vmax.f32 %v916, 0.0
    %v987 = vmax.f32 %v921, 0.0
    %v988 = vld [vmem:[%s3] sm:$0xff]
    %v989 = vld [vmem:[%s3 + $0x8] sm:$0xff]
    %v990 = vld [vmem:[%s3 + $0x10] sm:$0xff]
    %v991 = vld [vmem:[%s3 + $0x18] sm:$0xff]
    %v992 = vld [vmem:[%s3 + $0x20] sm:$0xff]
    %v993 = vld [vmem:[%s3 + $0x28] sm:$0xff]
    %v994 = vld [vmem:[%s3 + $0x30] sm:$0xff]
    %v995 = vld [vmem:[%s3 + $0x38] sm:$0xff]
    %v996 = vld [vmem:[%s3 + $0x40] sm:$0xff]
    %v997 = vld [vmem:[%s3 + $0x48] sm:$0xff]
    %v998 = vld [vmem:[%s3 + $0x50] sm:$0xff]
    %v999 = vld [vmem:[%s3 + $0x58] sm:$0xff]
    %v1000 = vld [vmem:[%s3 + $0x60] sm:$0xff]
    %v1001 = vld [vmem:[%s3 + $0x68] sm:$0xff]
    %v1002 = vld [vmem:[%s3 + $0x70] sm:$0xff]
    %v1003 = vld [vmem:[%s3 + $0x78] sm:$0xff]
    %v1004 = vld [vmem:[%s3 + $0x80] sm:$0xff]
    %v1005 = vld [vmem:[%s3 + $0x88] sm:$0xff]
    %v1006 = vld [vmem:[%s3 + $0x90] sm:$0xff]
    %v1007 = vld [vmem:[%s3 + $0x98] sm:$0xff]
    %v1008 = vld [vmem:[%s3 + $0xa0] sm:$0xff]
    %v1009 = vld [vmem:[%s3 + $0xa8] sm:$0xff]
    %v1010 = vld [vmem:[%s3 + $0xb0] sm:$0xff]
    %v1011 = vld [vmem:[%s3 + $0xb8] sm:$0xff]
    %v1012 = vld [vmem:[%s3 + $0xc0] sm:$0xff]
    %v1013 = vld [vmem:[%s3 + $0xc8] sm:$0xff]
    %v1014 = vld [vmem:[%s3 + $0xd0] sm:$0xff]
    %v1015 = vld [vmem:[%s3 + $0xd8] sm:$0xff]
    %v1016 = vld [vmem:[%s3 + $0xe0] sm:$0xff]
    %v1017 = vld [vmem:[%s3 + $0xe8] sm:$0xff]
    %v1018 = vld [vmem:[%s3 + $0xf0] sm:$0xff]
    %v1019 = vld [vmem:[%s3 + $0xf8] sm:$0xff]
    %v1020 = vld [vmem:[#allocation9] sm:$0x3]
    %v1021 = vunpack.c.l.bf16 %v1020
    %v1022 = vld [vmem:[#allocation11] sm:$0x1]
    %v1024 = vlaneseq
    %v1025 = vshrl.u32 %v1024, 7
    %v1026 = vsub.s32 0, %v1025
    %v1027 = vrot.slane %v1022, %v1026
    %v1030 = vsel %vm342, %v988, 0
    %v1033 = vsel %vm342, %v989, 0
    %v1036 = vsel %vm342, %v990, 0
    %v1039 = vsel %vm342, %v991, 0
    %v1042 = vsel %vm342, %v992, 0
    %v1045 = vsel %vm342, %v993, 0
    %v1048 = vsel %vm342, %v994, 0
    %v1051 = vsel %vm342, %v995, 0
    %v1054 = vsel %vm342, %v996, 0
    %v1057 = vsel %vm342, %v997, 0
    %v1060 = vsel %vm342, %v998, 0
    %v1063 = vsel %vm342, %v999, 0
    %v1066 = vsel %vm342, %v1000, 0
    %v1069 = vsel %vm342, %v1001, 0
    %v1072 = vsel %vm342, %v1002, 0
    %v1075 = vsel %vm342, %v1003, 0
    %v1078 = vsel %vm342, %v1004, 0
    %v1081 = vsel %vm342, %v1005, 0
    %v1084 = vsel %vm342, %v1006, 0
    %v1087 = vsel %vm342, %v1007, 0
    %v1090 = vsel %vm342, %v1008, 0
    %v1093 = vsel %vm342, %v1009, 0
    %v1096 = vsel %vm342, %v1010, 0
    %v1099 = vsel %vm342, %v1011, 0
    %v1102 = vsel %vm342, %v1012, 0
    %v1105 = vsel %vm342, %v1013, 0
    %v1108 = vsel %vm342, %v1014, 0
    %v1111 = vsel %vm342, %v1015, 0
    %v1114 = vsel %vm342, %v1016, 0
    %v1117 = vsel %vm342, %v1017, 0
    %v1120 = vsel %vm342, %v1018, 0
    %v1123 = vsel %vm342, %v1019, 0
    %v1126 = vsel %vm535, %v1021, 0
    %1128 = vmatprep.subr.mxu0 0.0
    %1129 = vmatpush1.msra.mxu0 %v1126
    %1130 = vmatprep.subr.mxu0 0.0
    %1131 = vmatpush1.msra.mxu0 0.0
    %1132 = vmatprep.subr.mxu0 0.0
    %1133 = vmatpush1.msra.mxu0 0.0
    %1134 = vmatprep.subr.mxu0 0.0
    %1135 = vmatpush1.msra.mxu0 0.0
    %1136 = vmatprep.subr.mxu0 0.0
    %1137 = vmatpush1.msra.mxu0 0.0
    %1138 = vmatprep.subr.mxu0 0.0
    %1139 = vmatpush1.msra.mxu0 0.0
    %1140 = vmatprep.subr.mxu0 0.0
    %1141 = vmatpush1.msra.mxu0 0.0
    %1142 = vmatprep.subr.mxu0 0.0
    %1143 = vmatpush1.msra.mxu0 0.0
    %1144 = vmatprep.subr.mxu0 0.0
    %1145 = vmatpush1.msra.mxu0 0.0
    %1146 = vmatprep.subr.mxu0 0.0
    %1147 = vmatpush1.msra.mxu0 0.0
    %1148 = vmatprep.subr.mxu0 0.0
    %1149 = vmatpush1.msra.mxu0 0.0
    %1150 = vmatprep.subr.mxu0 0.0
    %1151 = vmatpush1.msra.mxu0 0.0
    %1152 = vmatprep.subr.mxu0 0.0
    %1153 = vmatpush1.msra.mxu0 0.0
    %1154 = vmatprep.subr.mxu0 0.0
    %1155 = vmatpush1.msra.mxu0 0.0
    %1156 = vmatprep.subr.mxu0 0.0
    %1157 = vmatpush1.msra.mxu0 0.0
    %1158 = vmatprep.subr.mxu0 0.0
    %1159 = vmatpush1.msra.mxu0 0.0
    %1160 = vmatprep.subr.mxu0 0.0
    %1161 = vmatpush1.msra.mxu0 0.0
    %1162 = vmatprep.subr.mxu0 0.0
    %1163 = vmatpush1.msra.mxu0 0.0
    %1164 = vmatprep.subr.mxu0 0.0
    %1165 = vmatpush1.msra.mxu0 0.0
    %1166 = vmatprep.subr.mxu0 0.0
    %1167 = vmatpush1.msra.mxu0 0.0
    %1168 = vmatprep.subr.mxu0 0.0
    %1169 = vmatpush1.msra.mxu0 0.0
    %1170 = vmatprep.subr.mxu0 0.0
    %1171 = vmatpush1.msra.mxu0 0.0
    %1172 = vmatprep.subr.mxu0 0.0
    %1173 = vmatpush1.msra.mxu0 0.0
    %1174 = vmatprep.subr.mxu0 0.0
    %1175 = vmatpush1.msra.mxu0 0.0
    %1176 = vmatprep.subr.mxu0 0.0
    %1177 = vmatpush1.msra.mxu0 0.0
    %1178 = vmatprep.subr.mxu0 0.0
    %1179 = vmatpush1.msra.mxu0 0.0
    %1180 = vmatprep.subr.mxu0 0.0
    %1181 = vmatpush1.msra.mxu0 0.0
    %1182 = vmatprep.subr.mxu0 0.0
    %1183 = vmatpush1.msra.mxu0 0.0
    %1184 = vmatprep.subr.mxu0 0.0
    %1185 = vmatpush1.msra.mxu0 0.0
    %1186 = vmatprep.subr.mxu0 0.0
    %1187 = vmatpush1.msra.mxu0 0.0
    %1188 = vmatprep.subr.mxu0 0.0
    %1189 = vmatpush1.msra.mxu0 0.0
    %1190 = vmatprep.subr.mxu0 0.0
    %1191 = vmatpush1.msra.mxu0 0.0
    %1192 = vmatprep.mubr.f32.mxu0 0.0
    %1193 = vmatmul.mubr.f32.gmra.mrb[0].mxu0 %v1030
    %v1194 = vpop.f32.mrb[0].mxu0
    %v1195 = vadd.f32 %v1027, %v1194
    %v1196 = vpop.f32.mrb[0].mxu0
    %1197 = vmatprep.mubr.f32.mxu0 0.0
    %1198 = vmatmul.mubr.f32.gmra.mrb[0].mxu0 %v1033
    %v1199 = vpop.f32.mrb[0].mxu0
    %v1200 = vadd.f32 %v1027, %v1199
    %v1201 = vpop.f32.mrb[0].mxu0
    %1202 = vmatprep.mubr.f32.mxu0 0.0
    %1203 = vmatmul.mubr.f32.gmra.mrb[0].mxu0 %v1036
    %v1204 = vpop.f32.mrb[0].mxu0
    %v1205 = vadd.f32 %v1027, %v1204
    %v1206 = vpop.f32.mrb[0].mxu0
    %1207 = vmatprep.mubr.f32.mxu0 0.0
    %1208 = vmatmul.mubr.f32.gmra.mrb[0].mxu0 %v1039
    %v1209 = vpop.f32.mrb[0].mxu0
    %v1210 = vadd.f32 %v1027, %v1209
    %v1211 = vpop.f32.mrb[0].mxu0
    %1212 = vmatprep.mubr.f32.mxu0 0.0
    %1213 = vmatmul.mubr.f32.gmra.mrb[0].mxu0 %v1042
    %v1214 = vpop.f32.mrb[0].mxu0
    %v1215 = vadd.f32 %v1027, %v1214
    %v1216 = vpop.f32.mrb[0].mxu0
    %1217 = vmatprep.mubr.f32.mxu0 0.0
    %1218 = vmatmul.mubr.f32.gmra.mrb[0].mxu0 %v1045
    %v1219 = vpop.f32.mrb[0].mxu0
    %v1220 = vadd.f32 %v1027, %v1219
    %v1221 = vpop.f32.mrb[0].mxu0
    %1222 = vmatprep.mubr.f32.mxu0 0.0
    %1223 = vmatmul.mubr.f32.gmra.mrb[0].mxu0 %v1048
    %v1224 = vpop.f32.mrb[0].mxu0
    %v1225 = vadd.f32 %v1027, %v1224
    %v1226 = vpop.f32.mrb[0].mxu0
    %1227 = vmatprep.mubr.f32.mxu0 0.0
    %1228 = vmatmul.mubr.f32.gmra.mrb[0].mxu0 %v1051
    %v1229 = vpop.f32.mrb[0].mxu0
    %v1230 = vadd.f32 %v1027, %v1229
    %v1231 = vpop.f32.mrb[0].mxu0
    %1232 = vmatprep.mubr.f32.mxu0 0.0
    %1233 = vmatmul.mubr.f32.gmra.mrb[0].mxu0 %v1054
    %v1234 = vpop.f32.mrb[0].mxu0
    %v1235 = vadd.f32 %v1027, %v1234
    %v1236 = vpop.f32.mrb[0].mxu0
    %1237 = vmatprep.mubr.f32.mxu0 0.0
    %1238 = vmatmul.mubr.f32.gmra.mrb[0].mxu0 %v1057
    %v1239 = vpop.f32.mrb[0].mxu0
    %v1240 = vadd.f32 %v1027, %v1239
    %v1241 = vpop.f32.mrb[0].mxu0
    %1242 = vmatprep.mubr.f32.mxu0 0.0
    %1243 = vmatmul.mubr.f32.gmra.mrb[0].mxu0 %v1060
    %v1244 = vpop.f32.mrb[0].mxu0
    %v1245 = vadd.f32 %v1027, %v1244
    %v1246 = vpop.f32.mrb[0].mxu0
    %1247 = vmatprep.mubr.f32.mxu0 0.0
    %1248 = vmatmul.mubr.f32.gmra.mrb[0].mxu0 %v1063
    %v1249 = vpop.f32.mrb[0].mxu0
    %v1250 = vadd.f32 %v1027, %v1249
    %v1251 = vpop.f32.mrb[0].mxu0
    %1252 = vmatprep.mubr.f32.mxu0 0.0
    %1253 = vmatmul.mubr.f32.gmra.mrb[0].mxu0 %v1066
    %v1254 = vpop.f32.mrb[0].mxu0
    %v1255 = vadd.f32 %v1027, %v1254
    %v1256 = vpop.f32.mrb[0].mxu0
    %1257 = vmatprep.mubr.f32.mxu0 0.0
    %1258 = vmatmul.mubr.f32.gmra.mrb[0].mxu0 %v1069
    %v1259 = vpop.f32.mrb[0].mxu0
    %v1260 = vadd.f32 %v1027, %v1259
    %v1261 = vpop.f32.mrb[0].mxu0
    %1262 = vmatprep.mubr.f32.mxu0 0.0
    %1263 = vmatmul.mubr.f32.gmra.mrb[0].mxu0 %v1072
    %v1264 = vpop.f32.mrb[0].mxu0
    %v1265 = vadd.f32 %v1027, %v1264
    %v1266 = vpop.f32.mrb[0].mxu0
    %1267 = vmatprep.mubr.f32.mxu0 0.0
    %1268 = vmatmul.mubr.f32.gmra.mrb[0].mxu0 %v1075
    %v1269 = vpop.f32.mrb[0].mxu0
    %v1270 = vadd.f32 %v1027, %v1269
    %v1271 = vpop.f32.mrb[0].mxu0
    %1272 = vmatprep.mubr.f32.mxu0 0.0
    %1273 = vmatmul.mubr.f32.gmra.mrb[0].mxu0 %v1078
    %v1274 = vpop.f32.mrb[0].mxu0
    %v1275 = vadd.f32 %v1027, %v1274
    %v1276 = vpop.f32.mrb[0].mxu0
    %1277 = vmatprep.mubr.f32.mxu0 0.0
    %1278 = vmatmul.mubr.f32.gmra.mrb[0].mxu0 %v1081
    %v1279 = vpop.f32.mrb[0].mxu0
    %v1280 = vadd.f32 %v1027, %v1279
    %v1281 = vpop.f32.mrb[0].mxu0
    %1282 = vmatprep.mubr.f32.mxu0 0.0
    %1283 = vmatmul.mubr.f32.gmra.mrb[0].mxu0 %v1084
    %v1284 = vpop.f32.mrb[0].mxu0
    %v1285 = vadd.f32 %v1027, %v1284
    %v1286 = vpop.f32.mrb[0].mxu0
    %1287 = vmatprep.mubr.f32.mxu0 0.0
    %1288 = vmatmul.mubr.f32.gmra.mrb[0].mxu0 %v1087
    %v1289 = vpop.f32.mrb[0].mxu0
    %v1290 = vadd.f32 %v1027, %v1289
    %v1291 = vpop.f32.mrb[0].mxu0
    %1292 = vmatprep.mubr.f32.mxu0 0.0
    %1293 = vmatmul.mubr.f32.gmra.mrb[0].mxu0 %v1090
    %v1294 = vpop.f32.mrb[0].mxu0
    %v1295 = vadd.f32 %v1027, %v1294
    %v1296 = vpop.f32.mrb[0].mxu0
    %1297 = vmatprep.mubr.f32.mxu0 0.0
    %1298 = vmatmul.mubr.f32.gmra.mrb[0].mxu0 %v1093
    %v1299 = vpop.f32.mrb[0].mxu0
    %v1300 = vadd.f32 %v1027, %v1299
    %v1301 = vpop.f32.mrb[0].mxu0
    %1302 = vmatprep.mubr.f32.mxu0 0.0
    %1303 = vmatmul.mubr.f32.gmra.mrb[0].mxu0 %v1096
    %v1304 = vpop.f32.mrb[0].mxu0
    %v1305 = vadd.f32 %v1027, %v1304
    %v1306 = vpop.f32.mrb[0].mxu0
    %1307 = vmatprep.mubr.f32.mxu0 0.0
    %1308 = vmatmul.mubr.f32.gmra.mrb[0].mxu0 %v1099
    %v1309 = vpop.f32.mrb[0].mxu0
    %v1310 = vadd.f32 %v1027, %v1309
    %v1311 = vpop.f32.mrb[0].mxu0
    %1312 = vmatprep.mubr.f32.mxu0 0.0
    %1313 = vmatmul.mubr.f32.gmra.mrb[0].mxu0 %v1102
    %v1314 = vpop.f32.mrb[0].mxu0
    %v1315 = vadd.f32 %v1027, %v1314
    %v1316 = vpop.f32.mrb[0].mxu0
    %1317 = vmatprep.mubr.f32.mxu0 0.0
    %1318 = vmatmul.mubr.f32.gmra.mrb[0].mxu0 %v1105
    %v1319 = vpop.f32.mrb[0].mxu0
    %v1320 = vadd.f32 %v1027, %v1319
    %v1321 = vpop.f32.mrb[0].mxu0
    %1322 = vmatprep.mubr.f32.mxu0 0.0
    %1323 = vmatmul.mubr.f32.gmra.mrb[0].mxu0 %v1108
    %v1324 = vpop.f32.mrb[0].mxu0
    %v1325 = vadd.f32 %v1027, %v1324
    %v1326 = vpop.f32.mrb[0].mxu0
    %1327 = vmatprep.mubr.f32.mxu0 0.0
    %1328 = vmatmul.mubr.f32.gmra.mrb[0].mxu0 %v1111
    %v1329 = vpop.f32.mrb[0].mxu0
    %v1330 = vadd.f32 %v1027, %v1329
    %v1331 = vpop.f32.mrb[0].mxu0
    %1332 = vmatprep.mubr.f32.mxu0 0.0
    %1333 = vmatmul.mubr.f32.gmra.mrb[0].mxu0 %v1114
    %v1334 = vpop.f32.mrb[0].mxu0
    %v1335 = vadd.f32 %v1027, %v1334
    %v1336 = vpop.f32.mrb[0].mxu0
    %1337 = vmatprep.mubr.f32.mxu0 0.0
    %1338 = vmatmul.mubr.f32.gmra.mrb[0].mxu0 %v1117
    %v1339 = vpop.f32.mrb[0].mxu0
    %v1340 = vadd.f32 %v1027, %v1339
    %v1341 = vpop.f32.mrb[0].mxu0
    %1342 = vmatprep.mubr.f32.mxu0 0.0
    %1343 = vmatmul.mubr.f32.gmra.mrb[0].mxu0 %v1120
    %v1344 = vpop.f32.mrb[0].mxu0
    %v1345 = vadd.f32 %v1027, %v1344
    %v1346 = vpop.f32.mrb[0].mxu0
    %1347 = vmatprep.mubr.f32.mxu0 0.0
    %1348 = vmatmul.mubr.f32.gmra.mrb[0].mxu0 %v1123
    %v1349 = vpop.f32.mrb[0].mxu0
    %v1350 = vadd.f32 %v1027, %v1349
    %v1351 = vpop.f32.mrb[0].mxu0
    %1352 = vdwg.mxu0
    %v1353 = vmax.f32 %v1195, 0.0
    %v1354 = vmax.f32 %v1200, 0.0
    %v1355 = vmax.f32 %v1205, 0.0
    %v1356 = vmax.f32 %v1210, 0.0
    %v1357 = vmax.f32 %v1215, 0.0
    %v1358 = vmax.f32 %v1220, 0.0
    %v1359 = vmax.f32 %v1225, 0.0
    %v1360 = vmax.f32 %v1230, 0.0
    %v1361 = vmax.f32 %v1235, 0.0
    %v1362 = vmax.f32 %v1240, 0.0
    %v1363 = vmax.f32 %v1245, 0.0
    %v1364 = vmax.f32 %v1250, 0.0
    %v1365 = vmax.f32 %v1255, 0.0
    %v1366 = vmax.f32 %v1260, 0.0
    %v1367 = vmax.f32 %v1265, 0.0
    %v1368 = vmax.f32 %v1270, 0.0
    %v1369 = vmax.f32 %v1275, 0.0
    %v1370 = vmax.f32 %v1280, 0.0
    %v1371 = vmax.f32 %v1285, 0.0
    %v1372 = vmax.f32 %v1290, 0.0
    %v1373 = vmax.f32 %v1295, 0.0
    %v1374 = vmax.f32 %v1300, 0.0
    %v1375 = vmax.f32 %v1305, 0.0
    %v1376 = vmax.f32 %v1310, 0.0
    %v1377 = vmax.f32 %v1315, 0.0
    %v1378 = vmax.f32 %v1320, 0.0
    %v1379 = vmax.f32 %v1325, 0.0
    %v1380 = vmax.f32 %v1330, 0.0
    %v1381 = vmax.f32 %v1335, 0.0
    %v1382 = vmax.f32 %v1340, 0.0
    %v1383 = vmax.f32 %v1345, 0.0
    %v1384 = vmax.f32 %v1350, 0.0
    %v1385 = vld [vmem:[#allocation12] sm:$0xf]
    %v1386 = vld [vmem:[#allocation12 + $0x4] sm:$0xf]
    %v1387 = vld [vmem:[#allocation12 + $0x8] sm:$0xf]
    %v1388 = vld [vmem:[#allocation12 + $0xc] sm:$0xf]
    %v1389 = vld [vmem:[#allocation12 + $0x10] sm:$0xf]
    %v1390 = vld [vmem:[#allocation12 + $0x14] sm:$0xf]
    %v1391 = vld [vmem:[#allocation12 + $0x18] sm:$0xf]
    %v1392 = vld [vmem:[#allocation12 + $0x1c] sm:$0xf]
    %v1393 = vunpack.c.l.bf16 %v1385
    %v1394 = vunpack.c.l.bf16 %v1386
    %v1395 = vunpack.c.l.bf16 %v1387
    %v1396 = vunpack.c.l.bf16 %v1388
    %v1397 = vunpack.c.l.bf16 %v1389
    %v1398 = vunpack.c.l.bf16 %v1390
    %v1399 = vunpack.c.l.bf16 %v1391
    %v1400 = vunpack.c.l.bf16 %v1392
    %v1401 = vld [vmem:[#allocation14] sm:$0x1]
    %v1403 = vlaneseq
    %v1404 = vshrl.u32 %v1403, 7
    %v1405 = vsub.s32 0, %v1404
    %v1406 = vrot.slane %v1401, %v1405
    %vm1408 = vcmask 523264
    %v1410 = vsel %vm1408, %v1353, 0
    %v1413 = vsel %vm1408, %v1354, 0
    %v1416 = vsel %vm1408, %v1355, 0
    %v1419 = vsel %vm1408, %v1356, 0
    %v1422 = vsel %vm1408, %v1357, 0
    %v1425 = vsel %vm1408, %v1358, 0
    %v1428 = vsel %vm1408, %v1359, 0
    %v1431 = vsel %vm1408, %v1360, 0
    %v1434 = vsel %vm1408, %v1361, 0
    %v1437 = vsel %vm1408, %v1362, 0
    %v1440 = vsel %vm1408, %v1363, 0
    %v1443 = vsel %vm1408, %v1364, 0
    %v1446 = vsel %vm1408, %v1365, 0
    %v1449 = vsel %vm1408, %v1366, 0
    %v1452 = vsel %vm1408, %v1367, 0
    %v1455 = vsel %vm1408, %v1368, 0
    %v1458 = vsel %vm1408, %v1369, 0
    %v1461 = vsel %vm1408, %v1370, 0
    %v1464 = vsel %vm1408, %v1371, 0
    %v1467 = vsel %vm1408, %v1372, 0
    %v1470 = vsel %vm1408, %v1373, 0
    %v1473 = vsel %vm1408, %v1374, 0
    %v1476 = vsel %vm1408, %v1375, 0
    %v1479 = vsel %vm1408, %v1376, 0
    %v1482 = vsel %vm1408, %v1377, 0
    %v1485 = vsel %vm1408, %v1378, 0
    %v1488 = vsel %vm1408, %v1379, 0
    %v1491 = vsel %vm1408, %v1380, 0
    %v1494 = vsel %vm1408, %v1381, 0
    %v1497 = vsel %vm1408, %v1382, 0
    %v1500 = vsel %vm1408, %v1383, 0
    %v1503 = vsel %vm1408, %v1384, 0
    %1505 = vmatprep.subr.mxu0 0.0
    %1506 = vmatpush1.msra.mxu0 %v1393
    %1507 = vmatprep.subr.mxu0 0.0
    %1508 = vmatpush1.msra.mxu0 %v1394
    %1509 = vmatprep.subr.mxu0 0.0
    %1510 = vmatpush1.msra.mxu0 %v1395
    %1511 = vmatprep.subr.mxu0 0.0
    %1512 = vmatpush1.msra.mxu0 %v1396
    %1513 = vmatprep.subr.mxu0 0.0
    %1514 = vmatpush1.msra.mxu0 %v1397
    %1515 = vmatprep.subr.mxu0 0.0
    %1516 = vmatpush1.msra.mxu0 %v1398
    %1517 = vmatprep.subr.mxu0 0.0
    %1518 = vmatpush1.msra.mxu0 %v1399
    %1519 = vmatprep.subr.mxu0 0.0
    %1520 = vmatpush1.msra.mxu0 %v1400
    %1521 = vmatprep.subr.mxu0 0.0
    %1522 = vmatpush1.msra.mxu0 0.0
    %1523 = vmatprep.subr.mxu0 0.0
    %1524 = vmatpush1.msra.mxu0 0.0
    %1525 = vmatprep.subr.mxu0 0.0
    %1526 = vmatpush1.msra.mxu0 0.0
    %1527 = vmatprep.subr.mxu0 0.0
    %1528 = vmatpush1.msra.mxu0 0.0
    %1529 = vmatprep.subr.mxu0 0.0
    %1530 = vmatpush1.msra.mxu0 0.0
    %1531 = vmatprep.subr.mxu0 0.0
    %1532 = vmatpush1.msra.mxu0 0.0
    %1533 = vmatprep.subr.mxu0 0.0
    %1534 = vmatpush1.msra.mxu0 0.0
    %1535 = vmatprep.subr.mxu0 0.0
    %1536 = vmatpush1.msra.mxu0 0.0
    %1537 = vmatprep.subr.mxu0 0.0
    %1538 = vmatpush1.msra.mxu0 0.0
    %1539 = vmatprep.subr.mxu0 0.0
    %1540 = vmatpush1.msra.mxu0 0.0
    %1541 = vmatprep.subr.mxu0 0.0
    %1542 = vmatpush1.msra.mxu0 0.0
    %1543 = vmatprep.subr.mxu0 0.0
    %1544 = vmatpush1.msra.mxu0 0.0
    %1545 = vmatprep.subr.mxu0 0.0
    %1546 = vmatpush1.msra.mxu0 0.0
    %1547 = vmatprep.subr.mxu0 0.0
    %1548 = vmatpush1.msra.mxu0 0.0
    %1549 = vmatprep.subr.mxu0 0.0
    %1550 = vmatpush1.msra.mxu0 0.0
    %1551 = vmatprep.subr.mxu0 0.0
    %1552 = vmatpush1.msra.mxu0 0.0
    %1553 = vmatprep.subr.mxu0 0.0
    %1554 = vmatpush1.msra.mxu0 0.0
    %1555 = vmatprep.subr.mxu0 0.0
    %1556 = vmatpush1.msra.mxu0 0.0
    %1557 = vmatprep.subr.mxu0 0.0
    %1558 = vmatpush1.msra.mxu0 0.0
    %1559 = vmatprep.subr.mxu0 0.0
    %1560 = vmatpush1.msra.mxu0 0.0
    %1561 = vmatprep.subr.mxu0 0.0
    %1562 = vmatpush1.msra.mxu0 0.0
    %1563 = vmatprep.subr.mxu0 0.0
    %1564 = vmatpush1.msra.mxu0 0.0
    %1565 = vmatprep.subr.mxu0 0.0
    %1566 = vmatpush1.msra.mxu0 0.0
    %1567 = vmatprep.subr.mxu0 0.0
    %1568 = vmatpush1.msra.mxu0 0.0
    %1569 = vmatprep.mubr.f32.mxu0 0.0
    %1570 = vmatmul.mubr.f32.gmra.mrb[0].mxu0 %v1410
    %v1571 = vpop.f32.mrb[0].mxu0
    %v1572 = vadd.f32 %v1406, %v1571
    %v1573 = vpop.f32.mrb[0].mxu0
    %1574 = vmatprep.mubr.f32.mxu0 0.0
    %1575 = vmatmul.mubr.f32.gmra.mrb[0].mxu0 %v1413
    %v1576 = vpop.f32.mrb[0].mxu0
    %v1577 = vadd.f32 %v1406, %v1576
    %v1578 = vpop.f32.mrb[0].mxu0
    %1579 = vmatprep.mubr.f32.mxu0 0.0
    %1580 = vmatmul.mubr.f32.gmra.mrb[0].mxu0 %v1416
    %v1581 = vpop.f32.mrb[0].mxu0
    %v1582 = vadd.f32 %v1406, %v1581
    %v1583 = vpop.f32.mrb[0].mxu0
    %1584 = vmatprep.mubr.f32.mxu0 0.0
    %1585 = vmatmul.mubr.f32.gmra.mrb[0].mxu0 %v1419
    %v1586 = vpop.f32.mrb[0].mxu0
    %v1587 = vadd.f32 %v1406, %v1586
    %v1588 = vpop.f32.mrb[0].mxu0
    %1589 = vmatprep.mubr.f32.mxu0 0.0
    %1590 = vmatmul.mubr.f32.gmra.mrb[0].mxu0 %v1422
    %v1591 = vpop.f32.mrb[0].mxu0
    %v1592 = vadd.f32 %v1406, %v1591
    %v1593 = vpop.f32.mrb[0].mxu0
    %1594 = vmatprep.mubr.f32.mxu0 0.0
    %1595 = vmatmul.mubr.f32.gmra.mrb[0].mxu0 %v1425
    %v1596 = vpop.f32.mrb[0].mxu0
    %v1597 = vadd.f32 %v1406, %v1596
    %v1598 = vpop.f32.mrb[0].mxu0
    %1599 = vmatprep.mubr.f32.mxu0 0.0
    %1600 = vmatmul.mubr.f32.gmra.mrb[0].mxu0 %v1428
    %v1601 = vpop.f32.mrb[0].mxu0
    %v1602 = vadd.f32 %v1406, %v1601
    %v1603 = vpop.f32.mrb[0].mxu0
    %1604 = vmatprep.mubr.f32.mxu0 0.0
    %1605 = vmatmul.mubr.f32.gmra.mrb[0].mxu0 %v1431
    %v1606 = vpop.f32.mrb[0].mxu0
    %v1607 = vadd.f32 %v1406, %v1606
    %v1608 = vpop.f32.mrb[0].mxu0
    %1609 = vmatprep.mubr.f32.mxu0 0.0
    %1610 = vmatmul.mubr.f32.gmra.mrb[0].mxu0 %v1434
    %v1611 = vpop.f32.mrb[0].mxu0
    %v1612 = vadd.f32 %v1406, %v1611
    %v1613 = vpop.f32.mrb[0].mxu0
    %1614 = vmatprep.mubr.f32.mxu0 0.0
    %1615 = vmatmul.mubr.f32.gmra.mrb[0].mxu0 %v1437
    %v1616 = vpop.f32.mrb[0].mxu0
    %v1617 = vadd.f32 %v1406, %v1616
    %v1618 = vpop.f32.mrb[0].mxu0
    %1619 = vmatprep.mubr.f32.mxu0 0.0
    %1620 = vmatmul.mubr.f32.gmra.mrb[0].mxu0 %v1440
    %v1621 = vpop.f32.mrb[0].mxu0
    %v1622 = vadd.f32 %v1406, %v1621
    %v1623 = vpop.f32.mrb[0].mxu0
    %1624 = vmatprep.mubr.f32.mxu0 0.0
    %1625 = vmatmul.mubr.f32.gmra.mrb[0].mxu0 %v1443
    %v1626 = vpop.f32.mrb[0].mxu0
    %v1627 = vadd.f32 %v1406, %v1626
    %v1628 = vpop.f32.mrb[0].mxu0
    %1629 = vmatprep.mubr.f32.mxu0 0.0
    %1630 = vmatmul.mubr.f32.gmra.mrb[0].mxu0 %v1446
    %v1631 = vpop.f32.mrb[0].mxu0
    %v1632 = vadd.f32 %v1406, %v1631
    %v1633 = vpop.f32.mrb[0].mxu0
    %1634 = vmatprep.mubr.f32.mxu0 0.0
    %1635 = vmatmul.mubr.f32.gmra.mrb[0].mxu0 %v1449
    %v1636 = vpop.f32.mrb[0].mxu0
    %v1637 = vadd.f32 %v1406, %v1636
    %v1638 = vpop.f32.mrb[0].mxu0
    %1639 = vmatprep.mubr.f32.mxu0 0.0
    %1640 = vmatmul.mubr.f32.gmra.mrb[0].mxu0 %v1452
    %v1641 = vpop.f32.mrb[0].mxu0
    %v1642 = vadd.f32 %v1406, %v1641
    %v1643 = vpop.f32.mrb[0].mxu0
    %1644 = vmatprep.mubr.f32.mxu0 0.0
    %1645 = vmatmul.mubr.f32.gmra.mrb[0].mxu0 %v1455
    %v1646 = vpop.f32.mrb[0].mxu0
    %v1647 = vadd.f32 %v1406, %v1646
    %v1648 = vpop.f32.mrb[0].mxu0
    %1649 = vmatprep.mubr.f32.mxu0 0.0
    %1650 = vmatmul.mubr.f32.gmra.mrb[0].mxu0 %v1458
    %v1651 = vpop.f32.mrb[0].mxu0
    %v1652 = vadd.f32 %v1406, %v1651
    %v1653 = vpop.f32.mrb[0].mxu0
    %1654 = vmatprep.mubr.f32.mxu0 0.0
    %1655 = vmatmul.mubr.f32.gmra.mrb[0].mxu0 %v1461
    %v1656 = vpop.f32.mrb[0].mxu0
    %v1657 = vadd.f32 %v1406, %v1656
    %v1658 = vpop.f32.mrb[0].mxu0
    %1659 = vmatprep.mubr.f32.mxu0 0.0
    %1660 = vmatmul.mubr.f32.gmra.mrb[0].mxu0 %v1464
    %v1661 = vpop.f32.mrb[0].mxu0
    %v1662 = vadd.f32 %v1406, %v1661
    %v1663 = vpop.f32.mrb[0].mxu0
    %1664 = vmatprep.mubr.f32.mxu0 0.0
    %1665 = vmatmul.mubr.f32.gmra.mrb[0].mxu0 %v1467
    %v1666 = vpop.f32.mrb[0].mxu0
    %v1667 = vadd.f32 %v1406, %v1666
    %v1668 = vpop.f32.mrb[0].mxu0
    %1669 = vmatprep.mubr.f32.mxu0 0.0
    %1670 = vmatmul.mubr.f32.gmra.mrb[0].mxu0 %v1470
    %v1671 = vpop.f32.mrb[0].mxu0
    %v1672 = vadd.f32 %v1406, %v1671
    %v1673 = vpop.f32.mrb[0].mxu0
    %1674 = vmatprep.mubr.f32.mxu0 0.0
    %1675 = vmatmul.mubr.f32.gmra.mrb[0].mxu0 %v1473
    %v1676 = vpop.f32.mrb[0].mxu0
    %v1677 = vadd.f32 %v1406, %v1676
    %v1678 = vpop.f32.mrb[0].mxu0
    %1679 = vmatprep.mubr.f32.mxu0 0.0
    %1680 = vmatmul.mubr.f32.gmra.mrb[0].mxu0 %v1476
    %v1681 = vpop.f32.mrb[0].mxu0
    %v1682 = vadd.f32 %v1406, %v1681
    %v1683 = vpop.f32.mrb[0].mxu0
    %1684 = vmatprep.mubr.f32.mxu0 0.0
    %1685 = vmatmul.mubr.f32.gmra.mrb[0].mxu0 %v1479
    %v1686 = vpop.f32.mrb[0].mxu0
    %v1687 = vadd.f32 %v1406, %v1686
    %v1688 = vpop.f32.mrb[0].mxu0
    %1689 = vmatprep.mubr.f32.mxu0 0.0
    %1690 = vmatmul.mubr.f32.gmra.mrb[0].mxu0 %v1482
    %v1691 = vpop.f32.mrb[0].mxu0
    %v1692 = vadd.f32 %v1406, %v1691
    %v1693 = vpop.f32.mrb[0].mxu0
    %1694 = vmatprep.mubr.f32.mxu0 0.0
    %1695 = vmatmul.mubr.f32.gmra.mrb[0].mxu0 %v1485
    %v1696 = vpop.f32.mrb[0].mxu0
    %v1697 = vadd.f32 %v1406, %v1696
    %v1698 = vpop.f32.mrb[0].mxu0
    %1699 = vmatprep.mubr.f32.mxu0 0.0
    %1700 = vmatmul.mubr.f32.gmra.mrb[0].mxu0 %v1488
    %v1701 = vpop.f32.mrb[0].mxu0
    %v1702 = vadd.f32 %v1406, %v1701
    %v1703 = vpop.f32.mrb[0].mxu0
    %1704 = vmatprep.mubr.f32.mxu0 0.0
    %1705 = vmatmul.mubr.f32.gmra.mrb[0].mxu0 %v1491
    %v1706 = vpop.f32.mrb[0].mxu0
    %v1707 = vadd.f32 %v1406, %v1706
    %v1708 = vpop.f32.mrb[0].mxu0
    %1709 = vmatprep.mubr.f32.mxu0 0.0
    %1710 = vmatmul.mubr.f32.gmra.mrb[0].mxu0 %v1494
    %v1711 = vpop.f32.mrb[0].mxu0
    %v1712 = vadd.f32 %v1406, %v1711
    %v1713 = vpop.f32.mrb[0].mxu0
    %1714 = vmatprep.mubr.f32.mxu0 0.0
    %1715 = vmatmul.mubr.f32.gmra.mrb[0].mxu0 %v1497
    %v1716 = vpop.f32.mrb[0].mxu0
    %v1717 = vadd.f32 %v1406, %v1716
    %v1718 = vpop.f32.mrb[0].mxu0
    %1719 = vmatprep.mubr.f32.mxu0 0.0
    %1720 = vmatmul.mubr.f32.gmra.mrb[0].mxu0 %v1500
    %v1721 = vpop.f32.mrb[0].mxu0
    %v1722 = vadd.f32 %v1406, %v1721
    %v1723 = vpop.f32.mrb[0].mxu0
    %1724 = vmatprep.mubr.f32.mxu0 0.0
    %1725 = vmatmul.mubr.f32.gmra.mrb[0].mxu0 %v1503
    %v1726 = vpop.f32.mrb[0].mxu0
    %v1727 = vadd.f32 %v1406, %v1726
    %v1728 = vpop.f32.mrb[0].mxu0
    %1729 = vdwg.mxu0
    %v1730 = vmax.f32 %v1572, 0.0
    %v1731 = vmax.f32 %v1577, 0.0
    %v1732 = vmax.f32 %v1582, 0.0
    %v1733 = vmax.f32 %v1587, 0.0
    %v1734 = vmax.f32 %v1592, 0.0
    %v1735 = vmax.f32 %v1597, 0.0
    %v1736 = vmax.f32 %v1602, 0.0
    %v1737 = vmax.f32 %v1607, 0.0
    %v1738 = vmax.f32 %v1612, 0.0
    %v1739 = vmax.f32 %v1617, 0.0
    %v1740 = vmax.f32 %v1622, 0.0
    %v1741 = vmax.f32 %v1627, 0.0
    %v1742 = vmax.f32 %v1632, 0.0
    %v1743 = vmax.f32 %v1637, 0.0
    %v1744 = vmax.f32 %v1642, 0.0
    %v1745 = vmax.f32 %v1647, 0.0
    %v1746 = vmax.f32 %v1652, 0.0
    %v1747 = vmax.f32 %v1657, 0.0
    %v1748 = vmax.f32 %v1662, 0.0
    %v1749 = vmax.f32 %v1667, 0.0
    %v1750 = vmax.f32 %v1672, 0.0
    %v1751 = vmax.f32 %v1677, 0.0
    %v1752 = vmax.f32 %v1682, 0.0
    %v1753 = vmax.f32 %v1687, 0.0
    %v1754 = vmax.f32 %v1692, 0.0
    %v1755 = vmax.f32 %v1697, 0.0
    %v1756 = vmax.f32 %v1702, 0.0
    %v1757 = vmax.f32 %v1707, 0.0
    %v1758 = vmax.f32 %v1712, 0.0
    %v1759 = vmax.f32 %v1717, 0.0
    %v1760 = vmax.f32 %v1722, 0.0
    %v1761 = vmax.f32 %v1727, 0.0
    %v1762 = vld [vmem:[%s25] sm:$0xf]
    %v1763 = vld [vmem:[%s25 + $0x4] sm:$0xf]
    %v1764 = vld [vmem:[%s25 + $0x8] sm:$0xf]
    %v1765 = vld [vmem:[%s25 + $0xc] sm:$0xf]
    %v1766 = vld [vmem:[%s25 + $0x10] sm:$0xf]
    %v1767 = vld [vmem:[%s25 + $0x14] sm:$0xf]
    %v1768 = vld [vmem:[%s25 + $0x18] sm:$0xf]
    %v1769 = vld [vmem:[%s25 + $0x1c] sm:$0xf]
    %v1770 = vld [vmem:[%s25 + $0x20] sm:$0xf]
    %v1771 = vld [vmem:[%s25 + $0x24] sm:$0xf]
    %v1772 = vld [vmem:[%s25 + $0x28] sm:$0xf]
    %v1773 = vld [vmem:[%s25 + $0x2c] sm:$0xf]
    %v1774 = vld [vmem:[%s25 + $0x30] sm:$0xf]
    %v1775 = vld [vmem:[%s25 + $0x34] sm:$0xf]
    %v1776 = vld [vmem:[%s25 + $0x38] sm:$0xf]
    %v1777 = vld [vmem:[%s25 + $0x3c] sm:$0xf]
    %v1778 = vunpack.c.l.bf16 %v1762
    %v1779 = vunpack.c.l.bf16 %v1763
    %v1780 = vunpack.c.l.bf16 %v1764
    %v1781 = vunpack.c.l.bf16 %v1765
    %v1782 = vunpack.c.l.bf16 %v1766
    %v1783 = vunpack.c.l.bf16 %v1767
    %v1784 = vunpack.c.l.bf16 %v1768
    %v1785 = vunpack.c.l.bf16 %v1769
    %v1786 = vunpack.c.l.bf16 %v1770
    %v1787 = vunpack.c.l.bf16 %v1771
    %v1788 = vunpack.c.l.bf16 %v1772
    %v1789 = vunpack.c.l.bf16 %v1773
    %v1790 = vunpack.c.l.bf16 %v1774
    %v1791 = vunpack.c.l.bf16 %v1775
    %v1792 = vunpack.c.l.bf16 %v1776
    %v1793 = vunpack.c.l.bf16 %v1777
    %v1794 = vld [vmem:[#allocation15] sm:$0x1]
    %v1796 = vlaneseq
    %v1797 = vshrl.u32 %v1796, 7
    %v1798 = vsub.s32 0, %v1797
    %v1799 = vrot.slane %v1794, %v1798
    %1801 = vmatprep.subr.mxu0 0.0
    %1802 = vmatpush1.msra.mxu0 %v1778
    %1803 = vmatprep.subr.mxu0 0.0
    %1804 = vmatpush1.msra.mxu0 %v1779
    %1805 = vmatprep.subr.mxu0 0.0
    %1806 = vmatpush1.msra.mxu0 %v1780
    %1807 = vmatprep.subr.mxu0 0.0
    %1808 = vmatpush1.msra.mxu0 %v1781
    %1809 = vmatprep.subr.mxu0 0.0
    %1810 = vmatpush1.msra.mxu0 %v1782
    %1811 = vmatprep.subr.mxu0 0.0
    %1812 = vmatpush1.msra.mxu0 %v1783
    %1813 = vmatprep.subr.mxu0 0.0
    %1814 = vmatpush1.msra.mxu0 %v1784
    %1815 = vmatprep.subr.mxu0 0.0
    %1816 = vmatpush1.msra.mxu0 %v1785
    %1817 = vmatprep.subr.mxu0 0.0
    %1818 = vmatpush1.msra.mxu0 %v1786
    %1819 = vmatprep.subr.mxu0 0.0
    %1820 = vmatpush1.msra.mxu0 %v1787
    %1821 = vmatprep.subr.mxu0 0.0
    %1822 = vmatpush1.msra.mxu0 %v1788
    %1823 = vmatprep.subr.mxu0 0.0
    %1824 = vmatpush1.msra.mxu0 %v1789
    %1825 = vmatprep.subr.mxu0 0.0
    %1826 = vmatpush1.msra.mxu0 %v1790
    %1827 = vmatprep.subr.mxu0 0.0
    %1828 = vmatpush1.msra.mxu0 %v1791
    %1829 = vmatprep.subr.mxu0 0.0
    %1830 = vmatpush1.msra.mxu0 %v1792
    %1831 = vmatprep.subr.mxu0 0.0
    %1832 = vmatpush1.msra.mxu0 %v1793
    %1833 = vmatprep.subr.mxu0 0.0
    %1834 = vmatpush1.msra.mxu0 0.0
    %1835 = vmatprep.subr.mxu0 0.0
    %1836 = vmatpush1.msra.mxu0 0.0
    %1837 = vmatprep.subr.mxu0 0.0
    %1838 = vmatpush1.msra.mxu0 0.0
    %1839 = vmatprep.subr.mxu0 0.0
    %1840 = vmatpush1.msra.mxu0 0.0
    %1841 = vmatprep.subr.mxu0 0.0
    %1842 = vmatpush1.msra.mxu0 0.0
    %1843 = vmatprep.subr.mxu0 0.0
    %1844 = vmatpush1.msra.mxu0 0.0
    %1845 = vmatprep.subr.mxu0 0.0
    %1846 = vmatpush1.msra.mxu0 0.0
    %1847 = vmatprep.subr.mxu0 0.0
    %1848 = vmatpush1.msra.mxu0 0.0
    %1849 = vmatprep.subr.mxu0 0.0
    %1850 = vmatpush1.msra.mxu0 0.0
    %1851 = vmatprep.subr.mxu0 0.0
    %1852 = vmatpush1.msra.mxu0 0.0
    %1853 = vmatprep.subr.mxu0 0.0
    %1854 = vmatpush1.msra.mxu0 0.0
    %1855 = vmatprep.subr.mxu0 0.0
    %1856 = vmatpush1.msra.mxu0 0.0
    %1857 = vmatprep.subr.mxu0 0.0
    %1858 = vmatpush1.msra.mxu0 0.0
    %1859 = vmatprep.subr.mxu0 0.0
    %1860 = vmatpush1.msra.mxu0 0.0
    %1861 = vmatprep.subr.mxu0 0.0
    %1862 = vmatpush1.msra.mxu0 0.0
    %1863 = vmatprep.subr.mxu0 0.0
    %1864 = vmatpush1.msra.mxu0 0.0
    %1865 = vmatprep.mubr.f32.mxu0 0.0
    %1866 = vmatmul.mubr.f32.gmra.mrb[0].mxu0 %v1730
    %v1867 = vpop.f32.mrb[0].mxu0
    %v1868 = vadd.f32 %v1799, %v1867
    %v1869 = vpop.f32.mrb[0].mxu0
    %1870 = vmatprep.mubr.f32.mxu0 0.0
    %1871 = vmatmul.mubr.f32.gmra.mrb[0].mxu0 %v1731
    %v1872 = vpop.f32.mrb[0].mxu0
    %v1873 = vadd.f32 %v1799, %v1872
    %v1874 = vpop.f32.mrb[0].mxu0
    %1875 = vmatprep.mubr.f32.mxu0 0.0
    %1876 = vmatmul.mubr.f32.gmra.mrb[0].mxu0 %v1732
    %v1877 = vpop.f32.mrb[0].mxu0
    %v1878 = vadd.f32 %v1799, %v1877
    %v1879 = vpop.f32.mrb[0].mxu0
    %1880 = vmatprep.mubr.f32.mxu0 0.0
    %1881 = vmatmul.mubr.f32.gmra.mrb[0].mxu0 %v1733
    %v1882 = vpop.f32.mrb[0].mxu0
    %v1883 = vadd.f32 %v1799, %v1882
    %v1884 = vpop.f32.mrb[0].mxu0
    %1885 = vmatprep.mubr.f32.mxu0 0.0
    %1886 = vmatmul.mubr.f32.gmra.mrb[0].mxu0 %v1734
    %v1887 = vpop.f32.mrb[0].mxu0
    %v1888 = vadd.f32 %v1799, %v1887
    %v1889 = vpop.f32.mrb[0].mxu0
    %1890 = vmatprep.mubr.f32.mxu0 0.0
    %1891 = vmatmul.mubr.f32.gmra.mrb[0].mxu0 %v1735
    %v1892 = vpop.f32.mrb[0].mxu0
    %v1893 = vadd.f32 %v1799, %v1892
    %v1894 = vpop.f32.mrb[0].mxu0
    %1895 = vmatprep.mubr.f32.mxu0 0.0
    %1896 = vmatmul.mubr.f32.gmra.mrb[0].mxu0 %v1736
    %v1897 = vpop.f32.mrb[0].mxu0
    %v1898 = vadd.f32 %v1799, %v1897
    %v1899 = vpop.f32.mrb[0].mxu0
    %1900 = vmatprep.mubr.f32.mxu0 0.0
    %1901 = vmatmul.mubr.f32.gmra.mrb[0].mxu0 %v1737
    %v1902 = vpop.f32.mrb[0].mxu0
    %v1903 = vadd.f32 %v1799, %v1902
    %v1904 = vpop.f32.mrb[0].mxu0
    %1905 = vmatprep.mubr.f32.mxu0 0.0
    %1906 = vmatmul.mubr.f32.gmra.mrb[0].mxu0 %v1738
    %v1907 = vpop.f32.mrb[0].mxu0
    %v1908 = vadd.f32 %v1799, %v1907
    %v1909 = vpop.f32.mrb[0].mxu0
    %1910 = vmatprep.mubr.f32.mxu0 0.0
    %1911 = vmatmul.mubr.f32.gmra.mrb[0].mxu0 %v1739
    %v1912 = vpop.f32.mrb[0].mxu0
    %v1913 = vadd.f32 %v1799, %v1912
    %v1914 = vpop.f32.mrb[0].mxu0
    %1915 = vmatprep.mubr.f32.mxu0 0.0
    %1916 = vmatmul.mubr.f32.gmra.mrb[0].mxu0 %v1740
    %v1917 = vpop.f32.mrb[0].mxu0
    %v1918 = vadd.f32 %v1799, %v1917
    %v1919 = vpop.f32.mrb[0].mxu0
    %1920 = vmatprep.mubr.f32.mxu0 0.0
    %1921 = vmatmul.mubr.f32.gmra.mrb[0].mxu0 %v1741
    %v1922 = vpop.f32.mrb[0].mxu0
    %v1923 = vadd.f32 %v1799, %v1922
    %v1924 = vpop.f32.mrb[0].mxu0
    %1925 = vmatprep.mubr.f32.mxu0 0.0
    %1926 = vmatmul.mubr.f32.gmra.mrb[0].mxu0 %v1742
    %v1927 = vpop.f32.mrb[0].mxu0
    %v1928 = vadd.f32 %v1799, %v1927
    %v1929 = vpop.f32.mrb[0].mxu0
    %1930 = vmatprep.mubr.f32.mxu0 0.0
    %1931 = vmatmul.mubr.f32.gmra.mrb[0].mxu0 %v1743
    %v1932 = vpop.f32.mrb[0].mxu0
    %v1933 = vadd.f32 %v1799, %v1932
    %v1934 = vpop.f32.mrb[0].mxu0
    %1935 = vmatprep.mubr.f32.mxu0 0.0
    %1936 = vmatmul.mubr.f32.gmra.mrb[0].mxu0 %v1744
    %v1937 = vpop.f32.mrb[0].mxu0
    %v1938 = vadd.f32 %v1799, %v1937
    %v1939 = vpop.f32.mrb[0].mxu0
    %1940 = vmatprep.mubr.f32.mxu0 0.0
    %1941 = vmatmul.mubr.f32.gmra.mrb[0].mxu0 %v1745
    %v1942 = vpop.f32.mrb[0].mxu0
    %v1943 = vadd.f32 %v1799, %v1942
    %v1944 = vpop.f32.mrb[0].mxu0
    %1945 = vmatprep.mubr.f32.mxu0 0.0
    %1946 = vmatmul.mubr.f32.gmra.mrb[0].mxu0 %v1746
    %v1947 = vpop.f32.mrb[0].mxu0
    %v1948 = vadd.f32 %v1799, %v1947
    %v1949 = vpop.f32.mrb[0].mxu0
    %1950 = vmatprep.mubr.f32.mxu0 0.0
    %1951 = vmatmul.mubr.f32.gmra.mrb[0].mxu0 %v1747
    %v1952 = vpop.f32.mrb[0].mxu0
    %v1953 = vadd.f32 %v1799, %v1952
    %v1954 = vpop.f32.mrb[0].mxu0
    %1955 = vmatprep.mubr.f32.mxu0 0.0
    %1956 = vmatmul.mubr.f32.gmra.mrb[0].mxu0 %v1748
    %v1957 = vpop.f32.mrb[0].mxu0
    %v1958 = vadd.f32 %v1799, %v1957
    %v1959 = vpop.f32.mrb[0].mxu0
    %1960 = vmatprep.mubr.f32.mxu0 0.0
    %1961 = vmatmul.mubr.f32.gmra.mrb[0].mxu0 %v1749
    %v1962 = vpop.f32.mrb[0].mxu0
    %v1963 = vadd.f32 %v1799, %v1962
    %v1964 = vpop.f32.mrb[0].mxu0
    %1965 = vmatprep.mubr.f32.mxu0 0.0
    %1966 = vmatmul.mubr.f32.gmra.mrb[0].mxu0 %v1750
    %v1967 = vpop.f32.mrb[0].mxu0
    %v1968 = vadd.f32 %v1799, %v1967
    %v1969 = vpop.f32.mrb[0].mxu0
    %1970 = vmatprep.mubr.f32.mxu0 0.0
    %1971 = vmatmul.mubr.f32.gmra.mrb[0].mxu0 %v1751
    %v1972 = vpop.f32.mrb[0].mxu0
    %v1973 = vadd.f32 %v1799, %v1972
    %v1974 = vpop.f32.mrb[0].mxu0
    %1975 = vmatprep.mubr.f32.mxu0 0.0
    %1976 = vmatmul.mubr.f32.gmra.mrb[0].mxu0 %v1752
    %v1977 = vpop.f32.mrb[0].mxu0
    %v1978 = vadd.f32 %v1799, %v1977
    %v1979 = vpop.f32.mrb[0].mxu0
    %1980 = vmatprep.mubr.f32.mxu0 0.0
    %1981 = vmatmul.mubr.f32.gmra.mrb[0].mxu0 %v1753
    %v1982 = vpop.f32.mrb[0].mxu0
    %v1983 = vadd.f32 %v1799, %v1982
    %v1984 = vpop.f32.mrb[0].mxu0
    %1985 = vmatprep.mubr.f32.mxu0 0.0
    %1986 = vmatmul.mubr.f32.gmra.mrb[0].mxu0 %v1754
    %v1987 = vpop.f32.mrb[0].mxu0
    %v1988 = vadd.f32 %v1799, %v1987
    %v1989 = vpop.f32.mrb[0].mxu0
    %1990 = vmatprep.mubr.f32.mxu0 0.0
    %1991 = vmatmul.mubr.f32.gmra.mrb[0].mxu0 %v1755
    %v1992 = vpop.f32.mrb[0].mxu0
    %v1993 = vadd.f32 %v1799, %v1992
    %v1994 = vpop.f32.mrb[0].mxu0
    %1995 = vmatprep.mubr.f32.mxu0 0.0
    %1996 = vmatmul.mubr.f32.gmra.mrb[0].mxu0 %v1756
    %v1997 = vpop.f32.mrb[0].mxu0
    %v1998 = vadd.f32 %v1799, %v1997
    %v1999 = vpop.f32.mrb[0].mxu0
    %2000 = vmatprep.mubr.f32.mxu0 0.0
    %2001 = vmatmul.mubr.f32.gmra.mrb[0].mxu0 %v1757
    %v2002 = vpop.f32.mrb[0].mxu0
    %v2003 = vadd.f32 %v1799, %v2002
    %v2004 = vpop.f32.mrb[0].mxu0
    %2005 = vmatprep.mubr.f32.mxu0 0.0
    %2006 = vmatmul.mubr.f32.gmra.mrb[0].mxu0 %v1758
    %v2007 = vpop.f32.mrb[0].mxu0
    %v2008 = vadd.f32 %v1799, %v2007
    %v2009 = vpop.f32.mrb[0].mxu0
    %2010 = vmatprep.mubr.f32.mxu0 0.0
    %2011 = vmatmul.mubr.f32.gmra.mrb[0].mxu0 %v1759
    %v2012 = vpop.f32.mrb[0].mxu0
    %v2013 = vadd.f32 %v1799, %v2012
    %v2014 = vpop.f32.mrb[0].mxu0
    %2015 = vmatprep.mubr.f32.mxu0 0.0
    %2016 = vmatmul.mubr.f32.gmra.mrb[0].mxu0 %v1760
    %v2017 = vpop.f32.mrb[0].mxu0
    %v2018 = vadd.f32 %v1799, %v2017
    %v2019 = vpop.f32.mrb[0].mxu0
    %2020 = vmatprep.mubr.f32.mxu0 0.0
    %2021 = vmatmul.mubr.f32.gmra.mrb[0].mxu0 %v1761
    %v2022 = vpop.f32.mrb[0].mxu0
    %v2023 = vadd.f32 %v1799, %v2022
    %v2024 = vpop.f32.mrb[0].mxu0
    %2025 = vdwg.mxu0
    %2026 = vst [vmem:[#allocation2] sm:$0xff] 0.0
    %2027 = vst [vmem:[#allocation3] sm:$0xff] 0.0
    %v2028 = vsel %vm1408, %v924, 0.0
    %v2029 = vsel %vm1408, %v925, 0.0
    %v2030 = vadd.f32 %v2028, %v2029
    %v2031 = vsel %vm1408, %v926, 0.0
    %v2032 = vadd.f32 %v2030, %v2031
    %v2033 = vsel %vm1408, %v927, 0.0
    %v2034 = vadd.f32 %v2032, %v2033
    %v2035 = vsel %vm1408, %v928, 0.0
    %v2036 = vadd.f32 %v2034, %v2035
    %v2037 = vsel %vm1408, %v929, 0.0
    %v2038 = vadd.f32 %v2036, %v2037
    %v2039 = vsel %vm1408, %v930, 0.0
    %v2040 = vadd.f32 %v2038, %v2039
    %v2041 = vsel %vm1408, %v931, 0.0
    %v2042 = vadd.f32 %v2040, %v2041
    %v2043 = vsel %vm1408, %v932, 0.0
    %v2044 = vadd.f32 %v2042, %v2043
    %v2045 = vsel %vm1408, %v933, 0.0
    %v2046 = vadd.f32 %v2044, %v2045
    %v2047 = vsel %vm1408, %v934, 0.0
    %v2048 = vadd.f32 %v2046, %v2047
    %v2049 = vsel %vm1408, %v935, 0.0
    %v2050 = vadd.f32 %v2048, %v2049
    %v2051 = vsel %vm1408, %v936, 0.0
    %v2052 = vadd.f32 %v2050, %v2051
    %v2053 = vsel %vm1408, %v937, 0.0
    %v2054 = vadd.f32 %v2052, %v2053
    %v2055 = vsel %vm1408, %v938, 0.0
    %v2056 = vadd.f32 %v2054, %v2055
    %v2057 = vsel %vm1408, %v939, 0.0
    %v2058 = vadd.f32 %v2056, %v2057
    %v2059 = vsel %vm1408, %v940, 0.0
    %v2060 = vadd.f32 %v2058, %v2059
    %v2061 = vsel %vm1408, %v941, 0.0
    %v2062 = vadd.f32 %v2060, %v2061
    %v2063 = vsel %vm1408, %v942, 0.0
    %v2064 = vadd.f32 %v2062, %v2063
    %v2065 = vsel %vm1408, %v943, 0.0
    %v2066 = vadd.f32 %v2064, %v2065
    %v2067 = vsel %vm1408, %v944, 0.0
    %v2068 = vadd.f32 %v2066, %v2067
    %v2069 = vsel %vm1408, %v945, 0.0
    %v2070 = vadd.f32 %v2068, %v2069
    %v2071 = vsel %vm1408, %v946, 0.0
    %v2072 = vadd.f32 %v2070, %v2071
    %v2073 = vsel %vm1408, %v947, 0.0
    %v2074 = vadd.f32 %v2072, %v2073
    %v2075 = vsel %vm1408, %v948, 0.0
    %v2076 = vadd.f32 %v2074, %v2075
    %v2077 = vsel %vm1408, %v949, 0.0
    %v2078 = vadd.f32 %v2076, %v2077
    %v2079 = vsel %vm1408, %v950, 0.0
    %v2080 = vadd.f32 %v2078, %v2079
    %v2081 = vsel %vm1408, %v951, 0.0
    %v2082 = vadd.f32 %v2080, %v2081
    %v2083 = vsel %vm1408, %v952, 0.0
    %v2084 = vadd.f32 %v2082, %v2083
    %v2085 = vsel %vm1408, %v953, 0.0
    %v2086 = vadd.f32 %v2084, %v2085
    %v2087 = vsel %vm1408, %v954, 0.0
    %v2088 = vadd.f32 %v2086, %v2087
    %v2089 = vsel %vm1408, %v955, 0.0
    %v2090 = vadd.f32 %v2088, %v2089
    %v2091 = vrot.slane %v2090, 4
    %v2092 = vadd.f32 %v2090, %v2091
    %v2093 = vrot.slane %v2092, 2
    %v2094 = vadd.f32 %v2092, %v2093
    %v2095 = vrot.slane %v2094, 1
    %v2096 = vadd.f32 %v2094, %v2095
    %v2097 = vrcp.pop 256.0
    %v2098 = vmul.f32 %v2096, %v2097
    %v2099 = vld [vmem:[#allocation6] sm:$0xf]
    %v2100 = vld [vmem:[#allocation6 + $0x4] sm:$0xf]
    %v2101 = vld [vmem:[#allocation6 + $0x8] sm:$0xf]
    %v2102 = vld [vmem:[#allocation6 + $0xc] sm:$0xf]
    %v2103 = vld [vmem:[#allocation6 + $0x10] sm:$0xf]
    %v2104 = vld [vmem:[#allocation6 + $0x14] sm:$0xf]
    %v2105 = vld [vmem:[#allocation6 + $0x18] sm:$0xf]
    %v2106 = vld [vmem:[#allocation6 + $0x1c] sm:$0xf]
    %v2107 = vunpack.c.l.bf16 %v2099
    %v2108 = vunpack.c.l.bf16 %v2100
    %v2109 = vunpack.c.l.bf16 %v2101
    %v2110 = vunpack.c.l.bf16 %v2102
    %v2111 = vunpack.c.l.bf16 %v2103
    %v2112 = vunpack.c.l.bf16 %v2104
    %v2113 = vunpack.c.l.bf16 %v2105
    %v2114 = vunpack.c.l.bf16 %v2106
    %v2115 = vld [vmem:[#allocation8] sm:$0x1]
    %v2117 = vsel %vm1408, %v2098, 0
    %2119 = vmatprep.subr.mxu0 0.0
    %2120 = vmatpush1.msra.mxu0 %v2107
    %2121 = vmatprep.subr.mxu0 0.0
    %2122 = vmatpush1.msra.mxu0 %v2108
    %2123 = vmatprep.subr.mxu0 0.0
    %2124 = vmatpush1.msra.mxu0 %v2109
    %2125 = vmatprep.subr.mxu0 0.0
    %2126 = vmatpush1.msra.mxu0 %v2110
    %2127 = vmatprep.subr.mxu0 0.0
    %2128 = vmatpush1.msra.mxu0 %v2111
    %2129 = vmatprep.subr.mxu0 0.0
    %2130 = vmatpush1.msra.mxu0 %v2112
    %2131 = vmatprep.subr.mxu0 0.0
    %2132 = vmatpush1.msra.mxu0 %v2113
    %2133 = vmatprep.subr.mxu0 0.0
    %2134 = vmatpush1.msra.mxu0 %v2114
    %2135 = vmatprep.subr.mxu0 0.0
    %2136 = vmatpush1.msra.mxu0 0.0
    %2137 = vmatprep.subr.mxu0 0.0
    %2138 = vmatpush1.msra.mxu0 0.0
    %2139 = vmatprep.subr.mxu0 0.0
    %2140 = vmatpush1.msra.mxu0 0.0
    %2141 = vmatprep.subr.mxu0 0.0
    %2142 = vmatpush1.msra.mxu0 0.0
    %2143 = vmatprep.subr.mxu0 0.0
    %2144 = vmatpush1.msra.mxu0 0.0
    %2145 = vmatprep.subr.mxu0 0.0
    %2146 = vmatpush1.msra.mxu0 0.0
    %2147 = vmatprep.subr.mxu0 0.0
    %2148 = vmatpush1.msra.mxu0 0.0
    %2149 = vmatprep.subr.mxu0 0.0
    %2150 = vmatpush1.msra.mxu0 0.0
    %2151 = vmatprep.subr.mxu0 0.0
    %2152 = vmatpush1.msra.mxu0 0.0
    %2153 = vmatprep.subr.mxu0 0.0
    %2154 = vmatpush1.msra.mxu0 0.0
    %2155 = vmatprep.subr.mxu0 0.0
    %2156 = vmatpush1.msra.mxu0 0.0
    %2157 = vmatprep.subr.mxu0 0.0
    %2158 = vmatpush1.msra.mxu0 0.0
    %2159 = vmatprep.subr.mxu0 0.0
    %2160 = vmatpush1.msra.mxu0 0.0
    %2161 = vmatprep.subr.mxu0 0.0
    %2162 = vmatpush1.msra.mxu0 0.0
    %2163 = vmatprep.subr.mxu0 0.0
    %2164 = vmatpush1.msra.mxu0 0.0
    %2165 = vmatprep.subr.mxu0 0.0
    %2166 = vmatpush1.msra.mxu0 0.0
    %2167 = vmatprep.subr.mxu0 0.0
    %2168 = vmatpush1.msra.mxu0 0.0
    %2169 = vmatprep.subr.mxu0 0.0
    %2170 = vmatpush1.msra.mxu0 0.0
    %2171 = vmatprep.subr.mxu0 0.0
    %2172 = vmatpush1.msra.mxu0 0.0
    %2173 = vmatprep.subr.mxu0 0.0
    %2174 = vmatpush1.msra.mxu0 0.0
    %2175 = vmatprep.subr.mxu0 0.0
    %2176 = vmatpush1.msra.mxu0 0.0
    %2177 = vmatprep.subr.mxu0 0.0
    %2178 = vmatpush1.msra.mxu0 0.0
    %2179 = vmatprep.subr.mxu0 0.0
    %2180 = vmatpush1.msra.mxu0 0.0
    %2181 = vmatprep.subr.mxu0 0.0
    %2182 = vmatpush1.msra.mxu0 0.0
    %2183 = vmatprep.mubr.f32.mxu0 0.0
    %2184 = vmatmul.mubr.f32.gmra.mrb[0].mxu0 %v2117
    %v2185 = vpop.f32.mrb[0].mxu0
    %v2186 = vadd.f32 %v2115, %v2185
    %v2187 = vpop.f32.mrb[0].mxu0
    %2188 = vdwg.mxu0
    %2189 = vst [vmem:[#allocation2] sm:$0x1] %v2186
    %v2190 = vmax.f32 %v1868, %v1888
    %v2191 = vmax.f32 %v1873, %v1893
    %v2192 = vmax.f32 %v1878, %v1898
    %v2193 = vmax.f32 %v1883, %v1903
    %v2194 = vmax.f32 %v2190, %v1908
    %v2195 = vmax.f32 %v2191, %v1913
    %v2196 = vmax.f32 %v2192, %v1918
    %v2197 = vmax.f32 %v2193, %v1923
    %v2198 = vmax.f32 %v2194, %v1928
    %v2199 = vmax.f32 %v2195, %v1933
    %v2200 = vmax.f32 %v2196, %v1938
    %v2201 = vmax.f32 %v2197, %v1943
    %v2202 = vmax.f32 %v2198, %v2199
    %v2203 = vmax.f32 %v2200, %v2201
    %v2204 = vmax.f32 %v2202, %v2203
    %v2205 = vrot.slane %v2204, 4
    %v2206 = vmax.f32 %v2204, %v2205
    %v2207 = vrot.slane %v2206, 2
    %v2208 = vmax.f32 %v2206, %v2207
    %v2209 = vrot.slane %v2208, 1
    %v2210 = vmax.f32 %v2208, %v2209
    %2211 = vst [vmem:[#allocation3] sm:$0x1] %v2210
    %v2212 = vsel %vm1408, %v956, 0.0
    %v2213 = vsel %vm1408, %v957, 0.0
    %v2214 = vadd.f32 %v2212, %v2213
    %v2215 = vsel %vm1408, %v958, 0.0
    %v2216 = vadd.f32 %v2214, %v2215
    %v2217 = vsel %vm1408, %v959, 0.0
    %v2218 = vadd.f32 %v2216, %v2217
    %v2219 = vsel %vm1408, %v960, 0.0
    %v2220 = vadd.f32 %v2218, %v2219
    %v2221 = vsel %vm1408, %v961, 0.0
    %v2222 = vadd.f32 %v2220, %v2221
    %v2223 = vsel %vm1408, %v962, 0.0
    %v2224 = vadd.f32 %v2222, %v2223
    %v2225 = vsel %vm1408, %v963, 0.0
    %v2226 = vadd.f32 %v2224, %v2225
    %v2227 = vsel %vm1408, %v964, 0.0
    %v2228 = vadd.f32 %v2226, %v2227
    %v2229 = vsel %vm1408, %v965, 0.0
    %v2230 = vadd.f32 %v2228, %v2229
    %v2231 = vsel %vm1408, %v966, 0.0
    %v2232 = vadd.f32 %v2230, %v2231
    %v2233 = vsel %vm1408, %v967, 0.0
    %v2234 = vadd.f32 %v2232, %v2233
    %v2235 = vsel %vm1408, %v968, 0.0
    %v2236 = vadd.f32 %v2234, %v2235
    %v2237 = vsel %vm1408, %v969, 0.0
    %v2238 = vadd.f32 %v2236, %v2237
    %v2239 = vsel %vm1408, %v970, 0.0
    %v2240 = vadd.f32 %v2238, %v2239
    %v2241 = vsel %vm1408, %v971, 0.0
    %v2242 = vadd.f32 %v2240, %v2241
    %v2243 = vsel %vm1408, %v972, 0.0
    %v2244 = vadd.f32 %v2242, %v2243
    %v2245 = vsel %vm1408, %v973, 0.0
    %v2246 = vadd.f32 %v2244, %v2245
    %v2247 = vsel %vm1408, %v974, 0.0
    %v2248 = vadd.f32 %v2246, %v2247
    %v2249 = vsel %vm1408, %v975, 0.0
    %v2250 = vadd.f32 %v2248, %v2249
    %v2251 = vsel %vm1408, %v976, 0.0
    %v2252 = vadd.f32 %v2250, %v2251
    %v2253 = vsel %vm1408, %v977, 0.0
    %v2254 = vadd.f32 %v2252, %v2253
    %v2255 = vsel %vm1408, %v978, 0.0
    %v2256 = vadd.f32 %v2254, %v2255
    %v2257 = vsel %vm1408, %v979, 0.0
    %v2258 = vadd.f32 %v2256, %v2257
    %v2259 = vsel %vm1408, %v980, 0.0
    %v2260 = vadd.f32 %v2258, %v2259
    %v2261 = vsel %vm1408, %v981, 0.0
    %v2262 = vadd.f32 %v2260, %v2261
    %v2263 = vsel %vm1408, %v982, 0.0
    %v2264 = vadd.f32 %v2262, %v2263
    %v2265 = vsel %vm1408, %v983, 0.0
    %v2266 = vadd.f32 %v2264, %v2265
    %v2267 = vsel %vm1408, %v984, 0.0
    %v2268 = vadd.f32 %v2266, %v2267
    %v2269 = vsel %vm1408, %v985, 0.0
    %v2270 = vadd.f32 %v2268, %v2269
    %v2271 = vsel %vm1408, %v986, 0.0
    %v2272 = vadd.f32 %v2270, %v2271
    %v2273 = vsel %vm1408, %v987, 0.0
    %v2274 = vadd.f32 %v2272, %v2273
    %v2275 = vrot.slane %v2274, 4
    %v2276 = vadd.f32 %v2274, %v2275
    %v2277 = vrot.slane %v2276, 2
    %v2278 = vadd.f32 %v2276, %v2277
    %v2279 = vrot.slane %v2278, 1
    %v2280 = vadd.f32 %v2278, %v2279
    %v2281 = vmul.f32 %v2280, %v2097
    %v2282 = vld [vmem:[#allocation6] sm:$0xf]
    %v2283 = vld [vmem:[#allocation6 + $0x4] sm:$0xf]
    %v2284 = vld [vmem:[#allocation6 + $0x8] sm:$0xf]
    %v2285 = vld [vmem:[#allocation6 + $0xc] sm:$0xf]
    %v2286 = vld [vmem:[#allocation6 + $0x10] sm:$0xf]
    %v2287 = vld [vmem:[#allocation6 + $0x14] sm:$0xf]
    %v2288 = vld [vmem:[#allocation6 + $0x18] sm:$0xf]
    %v2289 = vld [vmem:[#allocation6 + $0x1c] sm:$0xf]
    %v2290 = vunpack.c.l.bf16 %v2282
    %v2291 = vunpack.c.l.bf16 %v2283
    %v2292 = vunpack.c.l.bf16 %v2284
    %v2293 = vunpack.c.l.bf16 %v2285
    %v2294 = vunpack.c.l.bf16 %v2286
    %v2295 = vunpack.c.l.bf16 %v2287
    %v2296 = vunpack.c.l.bf16 %v2288
    %v2297 = vunpack.c.l.bf16 %v2289
    %v2298 = vld [vmem:[#allocation8] sm:$0x1]
    %v2300 = vsel %vm1408, %v2281, 0
    %2302 = vmatprep.subr.mxu0 0.0
    %2303 = vmatpush1.msra.mxu0 %v2290
    %2304 = vmatprep.subr.mxu0 0.0
    %2305 = vmatpush1.msra.mxu0 %v2291
    %2306 = vmatprep.subr.mxu0 0.0
    %2307 = vmatpush1.msra.mxu0 %v2292
    %2308 = vmatprep.subr.mxu0 0.0
    %2309 = vmatpush1.msra.mxu0 %v2293
    %2310 = vmatprep.subr.mxu0 0.0
    %2311 = vmatpush1.msra.mxu0 %v2294
    %2312 = vmatprep.subr.mxu0 0.0
    %2313 = vmatpush1.msra.mxu0 %v2295
    %2314 = vmatprep.subr.mxu0 0.0
    %2315 = vmatpush1.msra.mxu0 %v2296
    %2316 = vmatprep.subr.mxu0 0.0
    %2317 = vmatpush1.msra.mxu0 %v2297
    %2318 = vmatprep.subr.mxu0 0.0
    %2319 = vmatpush1.msra.mxu0 0.0
    %2320 = vmatprep.subr.mxu0 0.0
    %2321 = vmatpush1.msra.mxu0 0.0
    %2322 = vmatprep.subr.mxu0 0.0
    %2323 = vmatpush1.msra.mxu0 0.0
    %2324 = vmatprep.subr.mxu0 0.0
    %2325 = vmatpush1.msra.mxu0 0.0
    %2326 = vmatprep.subr.mxu0 0.0
    %2327 = vmatpush1.msra.mxu0 0.0
    %2328 = vmatprep.subr.mxu0 0.0
    %2329 = vmatpush1.msra.mxu0 0.0
    %2330 = vmatprep.subr.mxu0 0.0
    %2331 = vmatpush1.msra.mxu0 0.0
    %2332 = vmatprep.subr.mxu0 0.0
    %2333 = vmatpush1.msra.mxu0 0.0
    %2334 = vmatprep.subr.mxu0 0.0
    %2335 = vmatpush1.msra.mxu0 0.0
    %2336 = vmatprep.subr.mxu0 0.0
    %2337 = vmatpush1.msra.mxu0 0.0
    %2338 = vmatprep.subr.mxu0 0.0
    %2339 = vmatpush1.msra.mxu0 0.0
    %2340 = vmatprep.subr.mxu0 0.0
    %2341 = vmatpush1.msra.mxu0 0.0
    %2342 = vmatprep.subr.mxu0 0.0
    %2343 = vmatpush1.msra.mxu0 0.0
    %2344 = vmatprep.subr.mxu0 0.0
    %2345 = vmatpush1.msra.mxu0 0.0
    %2346 = vmatprep.subr.mxu0 0.0
    %2347 = vmatpush1.msra.mxu0 0.0
    %2348 = vmatprep.subr.mxu0 0.0
    %2349 = vmatpush1.msra.mxu0 0.0
    %2350 = vmatprep.subr.mxu0 0.0
    %2351 = vmatpush1.msra.mxu0 0.0
    %2352 = vmatprep.subr.mxu0 0.0
    %2353 = vmatpush1.msra.mxu0 0.0
    %2354 = vmatprep.subr.mxu0 0.0
    %2355 = vmatpush1.msra.mxu0 0.0
    %2356 = vmatprep.subr.mxu0 0.0
    %2357 = vmatpush1.msra.mxu0 0.0
    %2358 = vmatprep.subr.mxu0 0.0
    %2359 = vmatpush1.msra.mxu0 0.0
    %2360 = vmatprep.subr.mxu0 0.0
    %2361 = vmatpush1.msra.mxu0 0.0
    %2362 = vmatprep.subr.mxu0 0.0
    %2363 = vmatpush1.msra.mxu0 0.0
    %2364 = vmatprep.subr.mxu0 0.0
    %2365 = vmatpush1.msra.mxu0 0.0
    %2366 = vmatprep.mubr.f32.mxu0 0.0
    %2367 = vmatmul.mubr.f32.gmra.mrb[0].mxu0 %v2300
    %v2368 = vpop.f32.mrb[0].mxu0
    %v2369 = vadd.f32 %v2298, %v2368
    %v2370 = vpop.f32.mrb[0].mxu0
    %2371 = vdwg.mxu0
    %2372 = vst [vmem:[#allocation2 + $0x1] sm:$0x1] %v2369
    %v2373 = vmax.f32 %v1948, %v1968
    %v2374 = vmax.f32 %v1953, %v1973
    %v2375 = vmax.f32 %v1958, %v1978
    %v2376 = vmax.f32 %v1963, %v1983
    %v2377 = vmax.f32 %v2373, %v1988
    %v2378 = vmax.f32 %v2374, %v1993
    %v2379 = vmax.f32 %v2375, %v1998
    %v2380 = vmax.f32 %v2376, %v2003
    %v2381 = vmax.f32 %v2377, %v2008
    %v2382 = vmax.f32 %v2378, %v2013
    %v2383 = vmax.f32 %v2379, %v2018
    %v2384 = vmax.f32 %v2380, %v2023
    %v2385 = vmax.f32 %v2381, %v2382
    %v2386 = vmax.f32 %v2383, %v2384
    %v2387 = vmax.f32 %v2385, %v2386
    %v2388 = vrot.slane %v2387, 4
    %v2389 = vmax.f32 %v2387, %v2388
    %v2390 = vrot.slane %v2389, 2
    %v2391 = vmax.f32 %v2389, %v2390
    %v2392 = vrot.slane %v2391, 1
    %v2393 = vmax.f32 %v2391, %v2392
    %2394 = vst [vmem:[#allocation3 + $0x1] sm:$0x1] %v2393
    %v2395 = vld [vmem:[#allocation2] sm:$0xff]
    %v2396 = vld [vmem:[#allocation3] sm:$0xff]
    %v2397 = vld [vmem:[%s33] sm:$0xf]
    %v2398 = vld [vmem:[%s33 + $0x4] sm:$0xf]
    %v2399 = vld [vmem:[%s33 + $0x8] sm:$0xf]
    %v2400 = vld [vmem:[%s33 + $0xc] sm:$0xf]
    %v2401 = vld [vmem:[%s33 + $0x10] sm:$0xf]
    %v2402 = vld [vmem:[%s33 + $0x14] sm:$0xf]
    %v2403 = vld [vmem:[%s33 + $0x18] sm:$0xf]
    %v2404 = vld [vmem:[%s33 + $0x1c] sm:$0xf]
    %v2405 = vld [vmem:[%s33 + $0x20] sm:$0xf]
    %v2406 = vld [vmem:[%s33 + $0x24] sm:$0xf]
    %v2407 = vld [vmem:[%s33 + $0x28] sm:$0xf]
    %v2408 = vld [vmem:[%s33 + $0x2c] sm:$0xf]
    %v2409 = vld [vmem:[%s33 + $0x30] sm:$0xf]
    %v2410 = vld [vmem:[%s33 + $0x34] sm:$0xf]
    %v2411 = vld [vmem:[%s33 + $0x38] sm:$0xf]
    %v2412 = vld [vmem:[%s33 + $0x3c] sm:$0xf]
    %v2413 = vunpack.c.l.bf16 %v2397
    %v2414 = vunpack.c.l.bf16 %v2398
    %v2415 = vunpack.c.l.bf16 %v2399
    %v2416 = vunpack.c.l.bf16 %v2400
    %v2417 = vunpack.c.l.bf16 %v2401
    %v2418 = vunpack.c.l.bf16 %v2402
    %v2419 = vunpack.c.l.bf16 %v2403
    %v2420 = vunpack.c.l.bf16 %v2404
    %v2421 = vunpack.c.l.bf16 %v2405
    %v2422 = vunpack.c.l.bf16 %v2406
    %v2423 = vunpack.c.l.bf16 %v2407
    %v2424 = vunpack.c.l.bf16 %v2408
    %v2425 = vunpack.c.l.bf16 %v2409
    %v2426 = vunpack.c.l.bf16 %v2410
    %v2427 = vunpack.c.l.bf16 %v2411
    %v2428 = vunpack.c.l.bf16 %v2412
    %v2429 = vld [vmem:[#allocation20] sm:$0x1]
    %v2431 = vlaneseq
    %v2432 = vshrl.u32 %v2431, 7
    %v2433 = vsub.s32 0, %v2432
    %v2434 = vrot.slane %v2429, %v2433
    %2436 = vmatprep.subr.mxu0 0.0
    %2437 = vmatpush1.msra.mxu0 %v2413
    %2438 = vmatprep.subr.mxu0 0.0
    %2439 = vmatpush1.msra.mxu0 %v2414
    %2440 = vmatprep.subr.mxu0 0.0
    %2441 = vmatpush1.msra.mxu0 %v2415
    %2442 = vmatprep.subr.mxu0 0.0
    %2443 = vmatpush1.msra.mxu0 %v2416
    %2444 = vmatprep.subr.mxu0 0.0
    %2445 = vmatpush1.msra.mxu0 %v2417
    %2446 = vmatprep.subr.mxu0 0.0
    %2447 = vmatpush1.msra.mxu0 %v2418
    %2448 = vmatprep.subr.mxu0 0.0
    %2449 = vmatpush1.msra.mxu0 %v2419
    %2450 = vmatprep.subr.mxu0 0.0
    %2451 = vmatpush1.msra.mxu0 %v2420
    %2452 = vmatprep.subr.mxu0 0.0
    %2453 = vmatpush1.msra.mxu0 %v2421
    %2454 = vmatprep.subr.mxu0 0.0
    %2455 = vmatpush1.msra.mxu0 %v2422
    %2456 = vmatprep.subr.mxu0 0.0
    %2457 = vmatpush1.msra.mxu0 %v2423
    %2458 = vmatprep.subr.mxu0 0.0
    %2459 = vmatpush1.msra.mxu0 %v2424
    %2460 = vmatprep.subr.mxu0 0.0
    %2461 = vmatpush1.msra.mxu0 %v2425
    %2462 = vmatprep.subr.mxu0 0.0
    %2463 = vmatpush1.msra.mxu0 %v2426
    %2464 = vmatprep.subr.mxu0 0.0
    %2465 = vmatpush1.msra.mxu0 %v2427
    %2466 = vmatprep.subr.mxu0 0.0
    %2467 = vmatpush1.msra.mxu0 %v2428
    %2468 = vmatprep.subr.mxu0 0.0
    %2469 = vmatpush1.msra.mxu0 0.0
    %2470 = vmatprep.subr.mxu0 0.0
    %2471 = vmatpush1.msra.mxu0 0.0
    %2472 = vmatprep.subr.mxu0 0.0
    %2473 = vmatpush1.msra.mxu0 0.0
    %2474 = vmatprep.subr.mxu0 0.0
    %2475 = vmatpush1.msra.mxu0 0.0
    %2476 = vmatprep.subr.mxu0 0.0
    %2477 = vmatpush1.msra.mxu0 0.0
    %2478 = vmatprep.subr.mxu0 0.0
    %2479 = vmatpush1.msra.mxu0 0.0
    %2480 = vmatprep.subr.mxu0 0.0
    %2481 = vmatpush1.msra.mxu0 0.0
    %2482 = vmatprep.subr.mxu0 0.0
    %2483 = vmatpush1.msra.mxu0 0.0
    %2484 = vmatprep.subr.mxu0 0.0
    %2485 = vmatpush1.msra.mxu0 0.0
    %2486 = vmatprep.subr.mxu0 0.0
    %2487 = vmatpush1.msra.mxu0 0.0
    %2488 = vmatprep.subr.mxu0 0.0
    %2489 = vmatpush1.msra.mxu0 0.0
    %2490 = vmatprep.subr.mxu0 0.0
    %2491 = vmatpush1.msra.mxu0 0.0
    %2492 = vmatprep.subr.mxu0 0.0
    %2493 = vmatpush1.msra.mxu0 0.0
    %2494 = vmatprep.subr.mxu0 0.0
    %2495 = vmatpush1.msra.mxu0 0.0
    %2496 = vmatprep.subr.mxu0 0.0
    %2497 = vmatpush1.msra.mxu0 0.0
    %2498 = vmatprep.subr.mxu0 0.0
    %2499 = vmatpush1.msra.mxu0 0.0
    %2500 = vmatprep.mubr.f32.mxu0 0.0
    %2501 = vmatmul.mubr.f32.gmra.mrb[0].mxu0 %v2395
    %v2502 = vpop.f32.mrb[0].mxu0
    %v2503 = vadd.f32 %v2434, %v2502
    %v2504 = vpop.f32.mrb[0].mxu0
    %2505 = vdwg.mxu0
    %s2506 = scalar_lea.vmem %s33, 64
    %v2507 = vld [vmem:[%s2506] sm:$0xf]
    %v2508 = vld [vmem:[%s2506 + $0x4] sm:$0xf]
    %v2509 = vld [vmem:[%s2506 + $0x8] sm:$0xf]
    %v2510 = vld [vmem:[%s2506 + $0xc] sm:$0xf]
    %v2511 = vld [vmem:[%s2506 + $0x10] sm:$0xf]
    %v2512 = vld [vmem:[%s2506 + $0x14] sm:$0xf]
    %v2513 = vld [vmem:[%s2506 + $0x18] sm:$0xf]
    %v2514 = vld [vmem:[%s2506 + $0x1c] sm:$0xf]
    %v2515 = vld [vmem:[%s2506 + $0x20] sm:$0xf]
    %v2516 = vld [vmem:[%s2506 + $0x24] sm:$0xf]
    %v2517 = vld [vmem:[%s2506 + $0x28] sm:$0xf]
    %v2518 = vld [vmem:[%s2506 + $0x2c] sm:$0xf]
    %v2519 = vld [vmem:[%s2506 + $0x30] sm:$0xf]
    %v2520 = vld [vmem:[%s2506 + $0x34] sm:$0xf]
    %v2521 = vld [vmem:[%s2506 + $0x38] sm:$0xf]
    %v2522 = vld [vmem:[%s2506 + $0x3c] sm:$0xf]
    %v2523 = vunpack.c.l.bf16 %v2507
    %v2524 = vunpack.c.l.bf16 %v2508
    %v2525 = vunpack.c.l.bf16 %v2509
    %v2526 = vunpack.c.l.bf16 %v2510
    %v2527 = vunpack.c.l.bf16 %v2511
    %v2528 = vunpack.c.l.bf16 %v2512
    %v2529 = vunpack.c.l.bf16 %v2513
    %v2530 = vunpack.c.l.bf16 %v2514
    %v2531 = vunpack.c.l.bf16 %v2515
    %v2532 = vunpack.c.l.bf16 %v2516
    %v2533 = vunpack.c.l.bf16 %v2517
    %v2534 = vunpack.c.l.bf16 %v2518
    %v2535 = vunpack.c.l.bf16 %v2519
    %v2536 = vunpack.c.l.bf16 %v2520
    %v2537 = vunpack.c.l.bf16 %v2521
    %v2538 = vunpack.c.l.bf16 %v2522
    %s2539 = scalar_lea.vmem [#allocation20], 1
    %v2540 = vld [vmem:[%s2539] sm:$0x1]
    %v2542 = vlaneseq
    %v2543 = vshrl.u32 %v2542, 7
    %v2544 = vsub.s32 0, %v2543
    %v2545 = vrot.slane %v2540, %v2544
    %2547 = vmatprep.subr.mxu0 0.0
    %2548 = vmatpush1.msra.mxu0 %v2523
    %2549 = vmatprep.subr.mxu0 0.0
    %2550 = vmatpush1.msra.mxu0 %v2524
    %2551 = vmatprep.subr.mxu0 0.0
    %2552 = vmatpush1.msra.mxu0 %v2525
    %2553 = vmatprep.subr.mxu0 0.0
    %2554 = vmatpush1.msra.mxu0 %v2526
    %2555 = vmatprep.subr.mxu0 0.0
    %2556 = vmatpush1.msra.mxu0 %v2527
    %2557 = vmatprep.subr.mxu0 0.0
    %2558 = vmatpush1.msra.mxu0 %v2528
    %2559 = vmatprep.subr.mxu0 0.0
    %2560 = vmatpush1.msra.mxu0 %v2529
    %2561 = vmatprep.subr.mxu0 0.0
    %2562 = vmatpush1.msra.mxu0 %v2530
    %2563 = vmatprep.subr.mxu0 0.0
    %2564 = vmatpush1.msra.mxu0 %v2531
    %2565 = vmatprep.subr.mxu0 0.0
    %2566 = vmatpush1.msra.mxu0 %v2532
    %2567 = vmatprep.subr.mxu0 0.0
    %2568 = vmatpush1.msra.mxu0 %v2533
    %2569 = vmatprep.subr.mxu0 0.0
    %2570 = vmatpush1.msra.mxu0 %v2534
    %2571 = vmatprep.subr.mxu0 0.0
    %2572 = vmatpush1.msra.mxu0 %v2535
    %2573 = vmatprep.subr.mxu0 0.0
    %2574 = vmatpush1.msra.mxu0 %v2536
    %2575 = vmatprep.subr.mxu0 0.0
    %2576 = vmatpush1.msra.mxu0 %v2537
    %2577 = vmatprep.subr.mxu0 0.0
    %2578 = vmatpush1.msra.mxu0 %v2538
    %2579 = vmatprep.subr.mxu0 0.0
    %2580 = vmatpush1.msra.mxu0 0.0
    %2581 = vmatprep.subr.mxu0 0.0
    %2582 = vmatpush1.msra.mxu0 0.0
    %2583 = vmatprep.subr.mxu0 0.0
    %2584 = vmatpush1.msra.mxu0 0.0
    %2585 = vmatprep.subr.mxu0 0.0
    %2586 = vmatpush1.msra.mxu0 0.0
    %2587 = vmatprep.subr.mxu0 0.0
    %2588 = vmatpush1.msra.mxu0 0.0
    %2589 = vmatprep.subr.mxu0 0.0
    %2590 = vmatpush1.msra.mxu0 0.0
    %2591 = vmatprep.subr.mxu0 0.0
    %2592 = vmatpush1.msra.mxu0 0.0
    %2593 = vmatprep.subr.mxu0 0.0
    %2594 = vmatpush1.msra.mxu0 0.0
    %2595 = vmatprep.subr.mxu0 0.0
    %2596 = vmatpush1.msra.mxu0 0.0
    %2597 = vmatprep.subr.mxu0 0.0
    %2598 = vmatpush1.msra.mxu0 0.0
    %2599 = vmatprep.subr.mxu0 0.0
    %2600 = vmatpush1.msra.mxu0 0.0
    %2601 = vmatprep.subr.mxu0 0.0
    %2602 = vmatpush1.msra.mxu0 0.0
    %2603 = vmatprep.subr.mxu0 0.0
    %2604 = vmatpush1.msra.mxu0 0.0
    %2605 = vmatprep.subr.mxu0 0.0
    %2606 = vmatpush1.msra.mxu0 0.0
    %2607 = vmatprep.subr.mxu0 0.0
    %2608 = vmatpush1.msra.mxu0 0.0
    %2609 = vmatprep.subr.mxu0 0.0
    %2610 = vmatpush1.msra.mxu0 0.0
    %2611 = vmatprep.mubr.f32.mxu0 0.0
    %2612 = vmatmul.mubr.f32.gmra.mrb[0].mxu0 %v2503
    %v2613 = vpop.f32.mrb[0].mxu0
    %v2614 = vadd.f32 %v2545, %v2613
    %v2615 = vpop.f32.mrb[0].mxu0
    %2616 = vdwg.mxu0
    %v2617 = vadd.f32 %v2395, %v2614
    %s2618 = scalar_lea.vmem %s33, 128
    %v2619 = vld [vmem:[%s2618] sm:$0xf]
    %v2620 = vld [vmem:[%s2618 + $0x4] sm:$0xf]
    %v2621 = vld [vmem:[%s2618 + $0x8] sm:$0xf]
    %v2622 = vld [vmem:[%s2618 + $0xc] sm:$0xf]
    %v2623 = vld [vmem:[%s2618 + $0x10] sm:$0xf]
    %v2624 = vld [vmem:[%s2618 + $0x14] sm:$0xf]
    %v2625 = vld [vmem:[%s2618 + $0x18] sm:$0xf]
    %v2626 = vld [vmem:[%s2618 + $0x1c] sm:$0xf]
    %v2627 = vld [vmem:[%s2618 + $0x20] sm:$0xf]
    %v2628 = vld [vmem:[%s2618 + $0x24] sm:$0xf]
    %v2629 = vld [vmem:[%s2618 + $0x28] sm:$0xf]
    %v2630 = vld [vmem:[%s2618 + $0x2c] sm:$0xf]
    %v2631 = vld [vmem:[%s2618 + $0x30] sm:$0xf]
    %v2632 = vld [vmem:[%s2618 + $0x34] sm:$0xf]
    %v2633 = vld [vmem:[%s2618 + $0x38] sm:$0xf]
    %v2634 = vld [vmem:[%s2618 + $0x3c] sm:$0xf]
    %v2635 = vunpack.c.l.bf16 %v2619
    %v2636 = vunpack.c.l.bf16 %v2620
    %v2637 = vunpack.c.l.bf16 %v2621
    %v2638 = vunpack.c.l.bf16 %v2622
    %v2639 = vunpack.c.l.bf16 %v2623
    %v2640 = vunpack.c.l.bf16 %v2624
    %v2641 = vunpack.c.l.bf16 %v2625
    %v2642 = vunpack.c.l.bf16 %v2626
    %v2643 = vunpack.c.l.bf16 %v2627
    %v2644 = vunpack.c.l.bf16 %v2628
    %v2645 = vunpack.c.l.bf16 %v2629
    %v2646 = vunpack.c.l.bf16 %v2630
    %v2647 = vunpack.c.l.bf16 %v2631
    %v2648 = vunpack.c.l.bf16 %v2632
    %v2649 = vunpack.c.l.bf16 %v2633
    %v2650 = vunpack.c.l.bf16 %v2634
    %s2651 = scalar_lea.vmem [#allocation20], 2
    %v2652 = vld [vmem:[%s2651] sm:$0x1]
    %v2654 = vlaneseq
    %v2655 = vshrl.u32 %v2654, 7
    %v2656 = vsub.s32 0, %v2655
    %v2657 = vrot.slane %v2652, %v2656
    %2659 = vmatprep.subr.mxu0 0.0
    %2660 = vmatpush1.msra.mxu0 %v2635
    %2661 = vmatprep.subr.mxu0 0.0
    %2662 = vmatpush1.msra.mxu0 %v2636
    %2663 = vmatprep.subr.mxu0 0.0
    %2664 = vmatpush1.msra.mxu0 %v2637
    %2665 = vmatprep.subr.mxu0 0.0
    %2666 = vmatpush1.msra.mxu0 %v2638
    %2667 = vmatprep.subr.mxu0 0.0
    %2668 = vmatpush1.msra.mxu0 %v2639
    %2669 = vmatprep.subr.mxu0 0.0
    %2670 = vmatpush1.msra.mxu0 %v2640
    %2671 = vmatprep.subr.mxu0 0.0
    %2672 = vmatpush1.msra.mxu0 %v2641
    %2673 = vmatprep.subr.mxu0 0.0
    %2674 = vmatpush1.msra.mxu0 %v2642
    %2675 = vmatprep.subr.mxu0 0.0
    %2676 = vmatpush1.msra.mxu0 %v2643
    %2677 = vmatprep.subr.mxu0 0.0
    %2678 = vmatpush1.msra.mxu0 %v2644
    %2679 = vmatprep.subr.mxu0 0.0
    %2680 = vmatpush1.msra.mxu0 %v2645
    %2681 = vmatprep.subr.mxu0 0.0
    %2682 = vmatpush1.msra.mxu0 %v2646
    %2683 = vmatprep.subr.mxu0 0.0
    %2684 = vmatpush1.msra.mxu0 %v2647
    %2685 = vmatprep.subr.mxu0 0.0
    %2686 = vmatpush1.msra.mxu0 %v2648
    %2687 = vmatprep.subr.mxu0 0.0
    %2688 = vmatpush1.msra.mxu0 %v2649
    %2689 = vmatprep.subr.mxu0 0.0
    %2690 = vmatpush1.msra.mxu0 %v2650
    %2691 = vmatprep.subr.mxu0 0.0
    %2692 = vmatpush1.msra.mxu0 0.0
    %2693 = vmatprep.subr.mxu0 0.0
    %2694 = vmatpush1.msra.mxu0 0.0
    %2695 = vmatprep.subr.mxu0 0.0
    %2696 = vmatpush1.msra.mxu0 0.0
    %2697 = vmatprep.subr.mxu0 0.0
    %2698 = vmatpush1.msra.mxu0 0.0
    %2699 = vmatprep.subr.mxu0 0.0
    %2700 = vmatpush1.msra.mxu0 0.0
    %2701 = vmatprep.subr.mxu0 0.0
    %2702 = vmatpush1.msra.mxu0 0.0
    %2703 = vmatprep.subr.mxu0 0.0
    %2704 = vmatpush1.msra.mxu0 0.0
    %2705 = vmatprep.subr.mxu0 0.0
    %2706 = vmatpush1.msra.mxu0 0.0
    %2707 = vmatprep.subr.mxu0 0.0
    %2708 = vmatpush1.msra.mxu0 0.0
    %2709 = vmatprep.subr.mxu0 0.0
    %2710 = vmatpush1.msra.mxu0 0.0
    %2711 = vmatprep.subr.mxu0 0.0
    %2712 = vmatpush1.msra.mxu0 0.0
    %2713 = vmatprep.subr.mxu0 0.0
    %2714 = vmatpush1.msra.mxu0 0.0
    %2715 = vmatprep.subr.mxu0 0.0
    %2716 = vmatpush1.msra.mxu0 0.0
    %2717 = vmatprep.subr.mxu0 0.0
    %2718 = vmatpush1.msra.mxu0 0.0
    %2719 = vmatprep.subr.mxu0 0.0
    %2720 = vmatpush1.msra.mxu0 0.0
    %2721 = vmatprep.subr.mxu0 0.0
    %2722 = vmatpush1.msra.mxu0 0.0
    %2723 = vmatprep.mubr.f32.mxu0 0.0
    %2724 = vmatmul.mubr.f32.gmra.mrb[0].mxu0 %v2396
    %v2725 = vpop.f32.mrb[0].mxu0
    %v2726 = vadd.f32 %v2657, %v2725
    %v2727 = vpop.f32.mrb[0].mxu0
    %2728 = vdwg.mxu0
    %s2729 = scalar_lea.vmem %s33, 192
    %v2730 = vld [vmem:[%s2729] sm:$0xf]
    %v2731 = vld [vmem:[%s2729 + $0x4] sm:$0xf]
    %v2732 = vld [vmem:[%s2729 + $0x8] sm:$0xf]
    %v2733 = vld [vmem:[%s2729 + $0xc] sm:$0xf]
    %v2734 = vld [vmem:[%s2729 + $0x10] sm:$0xf]
    %v2735 = vld [vmem:[%s2729 + $0x14] sm:$0xf]
    %v2736 = vld [vmem:[%s2729 + $0x18] sm:$0xf]
    %v2737 = vld [vmem:[%s2729 + $0x1c] sm:$0xf]
    %v2738 = vld [vmem:[%s2729 + $0x20] sm:$0xf]
    %v2739 = vld [vmem:[%s2729 + $0x24] sm:$0xf]
    %v2740 = vld [vmem:[%s2729 + $0x28] sm:$0xf]
    %v2741 = vld [vmem:[%s2729 + $0x2c] sm:$0xf]
    %v2742 = vld [vmem:[%s2729 + $0x30] sm:$0xf]
    %v2743 = vld [vmem:[%s2729 + $0x34] sm:$0xf]
    %v2744 = vld [vmem:[%s2729 + $0x38] sm:$0xf]
    %v2745 = vld [vmem:[%s2729 + $0x3c] sm:$0xf]
    %v2746 = vunpack.c.l.bf16 %v2730
    %v2747 = vunpack.c.l.bf16 %v2731
    %v2748 = vunpack.c.l.bf16 %v2732
    %v2749 = vunpack.c.l.bf16 %v2733
    %v2750 = vunpack.c.l.bf16 %v2734
    %v2751 = vunpack.c.l.bf16 %v2735
    %v2752 = vunpack.c.l.bf16 %v2736
    %v2753 = vunpack.c.l.bf16 %v2737
    %v2754 = vunpack.c.l.bf16 %v2738
    %v2755 = vunpack.c.l.bf16 %v2739
    %v2756 = vunpack.c.l.bf16 %v2740
    %v2757 = vunpack.c.l.bf16 %v2741
    %v2758 = vunpack.c.l.bf16 %v2742
    %v2759 = vunpack.c.l.bf16 %v2743
    %v2760 = vunpack.c.l.bf16 %v2744
    %v2761 = vunpack.c.l.bf16 %v2745
    %s2762 = scalar_lea.vmem [#allocation20], 3
    %v2763 = vld [vmem:[%s2762] sm:$0x1]
    %v2765 = vlaneseq
    %v2766 = vshrl.u32 %v2765, 7
    %v2767 = vsub.s32 0, %v2766
    %v2768 = vrot.slane %v2763, %v2767
    %2770 = vmatprep.subr.mxu0 0.0
    %2771 = vmatpush1.msra.mxu0 %v2746
    %2772 = vmatprep.subr.mxu0 0.0
    %2773 = vmatpush1.msra.mxu0 %v2747
    %2774 = vmatprep.subr.mxu0 0.0
    %2775 = vmatpush1.msra.mxu0 %v2748
    %2776 = vmatprep.subr.mxu0 0.0
    %2777 = vmatpush1.msra.mxu0 %v2749
    %2778 = vmatprep.subr.mxu0 0.0
    %2779 = vmatpush1.msra.mxu0 %v2750
    %2780 = vmatprep.subr.mxu0 0.0
    %2781 = vmatpush1.msra.mxu0 %v2751
    %2782 = vmatprep.subr.mxu0 0.0
    %2783 = vmatpush1.msra.mxu0 %v2752
    %2784 = vmatprep.subr.mxu0 0.0
    %2785 = vmatpush1.msra.mxu0 %v2753
    %2786 = vmatprep.subr.mxu0 0.0
    %2787 = vmatpush1.msra.mxu0 %v2754
    %2788 = vmatprep.subr.mxu0 0.0
    %2789 = vmatpush1.msra.mxu0 %v2755
    %2790 = vmatprep.subr.mxu0 0.0
    %2791 = vmatpush1.msra.mxu0 %v2756
    %2792 = vmatprep.subr.mxu0 0.0
    %2793 = vmatpush1.msra.mxu0 %v2757
    %2794 = vmatprep.subr.mxu0 0.0
    %2795 = vmatpush1.msra.mxu0 %v2758
    %2796 = vmatprep.subr.mxu0 0.0
    %2797 = vmatpush1.msra.mxu0 %v2759
    %2798 = vmatprep.subr.mxu0 0.0
    %2799 = vmatpush1.msra.mxu0 %v2760
    %2800 = vmatprep.subr.mxu0 0.0
    %2801 = vmatpush1.msra.mxu0 %v2761
    %2802 = vmatprep.subr.mxu0 0.0
    %2803 = vmatpush1.msra.mxu0 0.0
    %2804 = vmatprep.subr.mxu0 0.0
    %2805 = vmatpush1.msra.mxu0 0.0
    %2806 = vmatprep.subr.mxu0 0.0
    %2807 = vmatpush1.msra.mxu0 0.0
    %2808 = vmatprep.subr.mxu0 0.0
    %2809 = vmatpush1.msra.mxu0 0.0
    %2810 = vmatprep.subr.mxu0 0.0
    %2811 = vmatpush1.msra.mxu0 0.0
    %2812 = vmatprep.subr.mxu0 0.0
    %2813 = vmatpush1.msra.mxu0 0.0
    %2814 = vmatprep.subr.mxu0 0.0
    %2815 = vmatpush1.msra.mxu0 0.0
    %2816 = vmatprep.subr.mxu0 0.0
    %2817 = vmatpush1.msra.mxu0 0.0
    %2818 = vmatprep.subr.mxu0 0.0
    %2819 = vmatpush1.msra.mxu0 0.0
    %2820 = vmatprep.subr.mxu0 0.0
    %2821 = vmatpush1.msra.mxu0 0.0
    %2822 = vmatprep.subr.mxu0 0.0
    %2823 = vmatpush1.msra.mxu0 0.0
    %2824 = vmatprep.subr.mxu0 0.0
    %2825 = vmatpush1.msra.mxu0 0.0
    %2826 = vmatprep.subr.mxu0 0.0
    %2827 = vmatpush1.msra.mxu0 0.0
    %2828 = vmatprep.subr.mxu0 0.0
    %2829 = vmatpush1.msra.mxu0 0.0
    %2830 = vmatprep.subr.mxu0 0.0
    %2831 = vmatpush1.msra.mxu0 0.0
    %2832 = vmatprep.subr.mxu0 0.0
    %2833 = vmatpush1.msra.mxu0 0.0
    %2834 = vmatprep.mubr.f32.mxu0 0.0
    %2835 = vmatmul.mubr.f32.gmra.mrb[0].mxu0 %v2726
    %v2836 = vpop.f32.mrb[0].mxu0
    %v2837 = vadd.f32 %v2768, %v2836
    %v2838 = vpop.f32.mrb[0].mxu0
    %2839 = vdwg.mxu0
    %v2840 = vadd.f32 %v2396, %v2837
    %s2841 = scalar_lea.vmem %s33, 256
    %v2842 = vld [vmem:[%s2841] sm:$0xf]
    %v2843 = vld [vmem:[%s2841 + $0x4] sm:$0xf]
    %v2844 = vld [vmem:[%s2841 + $0x8] sm:$0xf]
    %v2845 = vld [vmem:[%s2841 + $0xc] sm:$0xf]
    %v2846 = vld [vmem:[%s2841 + $0x10] sm:$0xf]
    %v2847 = vld [vmem:[%s2841 + $0x14] sm:$0xf]
    %v2848 = vld [vmem:[%s2841 + $0x18] sm:$0xf]
    %v2849 = vld [vmem:[%s2841 + $0x1c] sm:$0xf]
    %v2850 = vld [vmem:[%s2841 + $0x20] sm:$0xf]
    %v2851 = vld [vmem:[%s2841 + $0x24] sm:$0xf]
    %v2852 = vld [vmem:[%s2841 + $0x28] sm:$0xf]
    %v2853 = vld [vmem:[%s2841 + $0x2c] sm:$0xf]
    %v2854 = vld [vmem:[%s2841 + $0x30] sm:$0xf]
    %v2855 = vld [vmem:[%s2841 + $0x34] sm:$0xf]
    %v2856 = vld [vmem:[%s2841 + $0x38] sm:$0xf]
    %v2857 = vld [vmem:[%s2841 + $0x3c] sm:$0xf]
    %v2858 = vunpack.c.l.bf16 %v2842
    %v2859 = vunpack.c.l.bf16 %v2843
    %v2860 = vunpack.c.l.bf16 %v2844
    %v2861 = vunpack.c.l.bf16 %v2845
    %v2862 = vunpack.c.l.bf16 %v2846
    %v2863 = vunpack.c.l.bf16 %v2847
    %v2864 = vunpack.c.l.bf16 %v2848
    %v2865 = vunpack.c.l.bf16 %v2849
    %v2866 = vunpack.c.l.bf16 %v2850
    %v2867 = vunpack.c.l.bf16 %v2851
    %v2868 = vunpack.c.l.bf16 %v2852
    %v2869 = vunpack.c.l.bf16 %v2853
    %v2870 = vunpack.c.l.bf16 %v2854
    %v2871 = vunpack.c.l.bf16 %v2855
    %v2872 = vunpack.c.l.bf16 %v2856
    %v2873 = vunpack.c.l.bf16 %v2857
    %s2874 = scalar_lea.vmem [#allocation20], 4
    %v2875 = vld [vmem:[%s2874] sm:$0x1]
    %v2877 = vlaneseq
    %v2878 = vshrl.u32 %v2877, 7
    %v2879 = vsub.s32 0, %v2878
    %v2880 = vrot.slane %v2875, %v2879
    %2882 = vmatprep.subr.mxu0 0.0
    %2883 = vmatpush1.msra.mxu0 %v2858
    %2884 = vmatprep.subr.mxu0 0.0
    %2885 = vmatpush1.msra.mxu0 %v2859
    %2886 = vmatprep.subr.mxu0 0.0
    %2887 = vmatpush1.msra.mxu0 %v2860
    %2888 = vmatprep.subr.mxu0 0.0
    %2889 = vmatpush1.msra.mxu0 %v2861
    %2890 = vmatprep.subr.mxu0 0.0
    %2891 = vmatpush1.msra.mxu0 %v2862
    %2892 = vmatprep.subr.mxu0 0.0
    %2893 = vmatpush1.msra.mxu0 %v2863
    %2894 = vmatprep.subr.mxu0 0.0
    %2895 = vmatpush1.msra.mxu0 %v2864
    %2896 = vmatprep.subr.mxu0 0.0
    %2897 = vmatpush1.msra.mxu0 %v2865
    %2898 = vmatprep.subr.mxu0 0.0
    %2899 = vmatpush1.msra.mxu0 %v2866
    %2900 = vmatprep.subr.mxu0 0.0
    %2901 = vmatpush1.msra.mxu0 %v2867
    %2902 = vmatprep.subr.mxu0 0.0
    %2903 = vmatpush1.msra.mxu0 %v2868
    %2904 = vmatprep.subr.mxu0 0.0
    %2905 = vmatpush1.msra.mxu0 %v2869
    %2906 = vmatprep.subr.mxu0 0.0
    %2907 = vmatpush1.msra.mxu0 %v2870
    %2908 = vmatprep.subr.mxu0 0.0
    %2909 = vmatpush1.msra.mxu0 %v2871
    %2910 = vmatprep.subr.mxu0 0.0
    %2911 = vmatpush1.msra.mxu0 %v2872
    %2912 = vmatprep.subr.mxu0 0.0
    %2913 = vmatpush1.msra.mxu0 %v2873
    %2914 = vmatprep.subr.mxu0 0.0
    %2915 = vmatpush1.msra.mxu0 0.0
    %2916 = vmatprep.subr.mxu0 0.0
    %2917 = vmatpush1.msra.mxu0 0.0
    %2918 = vmatprep.subr.mxu0 0.0
    %2919 = vmatpush1.msra.mxu0 0.0
    %2920 = vmatprep.subr.mxu0 0.0
    %2921 = vmatpush1.msra.mxu0 0.0
    %2922 = vmatprep.subr.mxu0 0.0
    %2923 = vmatpush1.msra.mxu0 0.0
    %2924 = vmatprep.subr.mxu0 0.0
    %2925 = vmatpush1.msra.mxu0 0.0
    %2926 = vmatprep.subr.mxu0 0.0
    %2927 = vmatpush1.msra.mxu0 0.0
    %2928 = vmatprep.subr.mxu0 0.0
    %2929 = vmatpush1.msra.mxu0 0.0
    %2930 = vmatprep.subr.mxu0 0.0
    %2931 = vmatpush1.msra.mxu0 0.0
    %2932 = vmatprep.subr.mxu0 0.0
    %2933 = vmatpush1.msra.mxu0 0.0
    %2934 = vmatprep.subr.mxu0 0.0
    %2935 = vmatpush1.msra.mxu0 0.0
    %2936 = vmatprep.subr.mxu0 0.0
    %2937 = vmatpush1.msra.mxu0 0.0
    %2938 = vmatprep.subr.mxu0 0.0
    %2939 = vmatpush1.msra.mxu0 0.0
    %2940 = vmatprep.subr.mxu0 0.0
    %2941 = vmatpush1.msra.mxu0 0.0
    %2942 = vmatprep.subr.mxu0 0.0
    %2943 = vmatpush1.msra.mxu0 0.0
    %2944 = vmatprep.subr.mxu0 0.0
    %2945 = vmatpush1.msra.mxu0 0.0
    %2946 = vmatprep.mubr.f32.mxu0 0.0
    %2947 = vmatmul.mubr.f32.gmra.mrb[0].mxu0 %v2840
    %v2948 = vpop.f32.mrb[0].mxu0
    %v2949 = vadd.f32 %v2880, %v2948
    %v2950 = vpop.f32.mrb[0].mxu0
    %2951 = vdwg.mxu0
    %s2952 = scalar_lea.vmem %s33, 320
    %v2953 = vld [vmem:[%s2952] sm:$0xf]
    %v2954 = vld [vmem:[%s2952 + $0x4] sm:$0xf]
    %v2955 = vld [vmem:[%s2952 + $0x8] sm:$0xf]
    %v2956 = vld [vmem:[%s2952 + $0xc] sm:$0xf]
    %v2957 = vld [vmem:[%s2952 + $0x10] sm:$0xf]
    %v2958 = vld [vmem:[%s2952 + $0x14] sm:$0xf]
    %v2959 = vld [vmem:[%s2952 + $0x18] sm:$0xf]
    %v2960 = vld [vmem:[%s2952 + $0x1c] sm:$0xf]
    %v2961 = vld [vmem:[%s2952 + $0x20] sm:$0xf]
    %v2962 = vld [vmem:[%s2952 + $0x24] sm:$0xf]
    %v2963 = vld [vmem:[%s2952 + $0x28] sm:$0xf]
    %v2964 = vld [vmem:[%s2952 + $0x2c] sm:$0xf]
    %v2965 = vld [vmem:[%s2952 + $0x30] sm:$0xf]
    %v2966 = vld [vmem:[%s2952 + $0x34] sm:$0xf]
    %v2967 = vld [vmem:[%s2952 + $0x38] sm:$0xf]
    %v2968 = vld [vmem:[%s2952 + $0x3c] sm:$0xf]
    %v2969 = vunpack.c.l.bf16 %v2953
    %v2970 = vunpack.c.l.bf16 %v2954
    %v2971 = vunpack.c.l.bf16 %v2955
    %v2972 = vunpack.c.l.bf16 %v2956
    %v2973 = vunpack.c.l.bf16 %v2957
    %v2974 = vunpack.c.l.bf16 %v2958
    %v2975 = vunpack.c.l.bf16 %v2959
    %v2976 = vunpack.c.l.bf16 %v2960
    %v2977 = vunpack.c.l.bf16 %v2961
    %v2978 = vunpack.c.l.bf16 %v2962
    %v2979 = vunpack.c.l.bf16 %v2963
    %v2980 = vunpack.c.l.bf16 %v2964
    %v2981 = vunpack.c.l.bf16 %v2965
    %v2982 = vunpack.c.l.bf16 %v2966
    %v2983 = vunpack.c.l.bf16 %v2967
    %v2984 = vunpack.c.l.bf16 %v2968
    %s2985 = scalar_lea.vmem [#allocation20], 5
    %v2986 = vld [vmem:[%s2985] sm:$0x1]
    %v2988 = vlaneseq
    %v2989 = vshrl.u32 %v2988, 7
    %v2990 = vsub.s32 0, %v2989
    %v2991 = vrot.slane %v2986, %v2990
    %2993 = vmatprep.subr.mxu0 0.0
    %2994 = vmatpush1.msra.mxu0 %v2969
    %2995 = vmatprep.subr.mxu0 0.0
    %2996 = vmatpush1.msra.mxu0 %v2970
    %2997 = vmatprep.subr.mxu0 0.0
    %2998 = vmatpush1.msra.mxu0 %v2971
    %2999 = vmatprep.subr.mxu0 0.0
    %3000 = vmatpush1.msra.mxu0 %v2972
    %3001 = vmatprep.subr.mxu0 0.0
    %3002 = vmatpush1.msra.mxu0 %v2973
    %3003 = vmatprep.subr.mxu0 0.0
    %3004 = vmatpush1.msra.mxu0 %v2974
    %3005 = vmatprep.subr.mxu0 0.0
    %3006 = vmatpush1.msra.mxu0 %v2975
    %3007 = vmatprep.subr.mxu0 0.0
    %3008 = vmatpush1.msra.mxu0 %v2976
    %3009 = vmatprep.subr.mxu0 0.0
    %3010 = vmatpush1.msra.mxu0 %v2977
    %3011 = vmatprep.subr.mxu0 0.0
    %3012 = vmatpush1.msra.mxu0 %v2978
    %3013 = vmatprep.subr.mxu0 0.0
    %3014 = vmatpush1.msra.mxu0 %v2979
    %3015 = vmatprep.subr.mxu0 0.0
    %3016 = vmatpush1.msra.mxu0 %v2980
    %3017 = vmatprep.subr.mxu0 0.0
    %3018 = vmatpush1.msra.mxu0 %v2981
    %3019 = vmatprep.subr.mxu0 0.0
    %3020 = vmatpush1.msra.mxu0 %v2982
    %3021 = vmatprep.subr.mxu0 0.0
    %3022 = vmatpush1.msra.mxu0 %v2983
    %3023 = vmatprep.subr.mxu0 0.0
    %3024 = vmatpush1.msra.mxu0 %v2984
    %3025 = vmatprep.subr.mxu0 0.0
    %3026 = vmatpush1.msra.mxu0 0.0
    %3027 = vmatprep.subr.mxu0 0.0
    %3028 = vmatpush1.msra.mxu0 0.0
    %3029 = vmatprep.subr.mxu0 0.0
    %3030 = vmatpush1.msra.mxu0 0.0
    %3031 = vmatprep.subr.mxu0 0.0
    %3032 = vmatpush1.msra.mxu0 0.0
    %3033 = vmatprep.subr.mxu0 0.0
    %3034 = vmatpush1.msra.mxu0 0.0
    %3035 = vmatprep.subr.mxu0 0.0
    %3036 = vmatpush1.msra.mxu0 0.0
    %3037 = vmatprep.subr.mxu0 0.0
    %3038 = vmatpush1.msra.mxu0 0.0
    %3039 = vmatprep.subr.mxu0 0.0
    %3040 = vmatpush1.msra.mxu0 0.0
    %3041 = vmatprep.subr.mxu0 0.0
    %3042 = vmatpush1.msra.mxu0 0.0
    %3043 = vmatprep.subr.mxu0 0.0
    %3044 = vmatpush1.msra.mxu0 0.0
    %3045 = vmatprep.subr.mxu0 0.0
    %3046 = vmatpush1.msra.mxu0 0.0
    %3047 = vmatprep.subr.mxu0 0.0
    %3048 = vmatpush1.msra.mxu0 0.0
    %3049 = vmatprep.subr.mxu0 0.0
    %3050 = vmatpush1.msra.mxu0 0.0
    %3051 = vmatprep.subr.mxu0 0.0
    %3052 = vmatpush1.msra.mxu0 0.0
    %3053 = vmatprep.subr.mxu0 0.0
    %3054 = vmatpush1.msra.mxu0 0.0
    %3055 = vmatprep.subr.mxu0 0.0
    %3056 = vmatpush1.msra.mxu0 0.0
    %3057 = vmatprep.mubr.f32.mxu0 0.0
    %3058 = vmatmul.mubr.f32.gmra.mrb[0].mxu0 %v2949
    %v3059 = vpop.f32.mrb[0].mxu0
    %v3060 = vadd.f32 %v2991, %v3059
    %v3061 = vpop.f32.mrb[0].mxu0
    %3062 = vdwg.mxu0
    %v3063 = vadd.f32 %v2617, %v3060
    %s3064 = scalar_lea.vmem %s33, 384
    %v3065 = vld [vmem:[%s3064] sm:$0xf]
    %v3066 = vld [vmem:[%s3064 + $0x4] sm:$0xf]
    %v3067 = vld [vmem:[%s3064 + $0x8] sm:$0xf]
    %v3068 = vld [vmem:[%s3064 + $0xc] sm:$0xf]
    %v3069 = vld [vmem:[%s3064 + $0x10] sm:$0xf]
    %v3070 = vld [vmem:[%s3064 + $0x14] sm:$0xf]
    %v3071 = vld [vmem:[%s3064 + $0x18] sm:$0xf]
    %v3072 = vld [vmem:[%s3064 + $0x1c] sm:$0xf]
    %v3073 = vld [vmem:[%s3064 + $0x20] sm:$0xf]
    %v3074 = vld [vmem:[%s3064 + $0x24] sm:$0xf]
    %v3075 = vld [vmem:[%s3064 + $0x28] sm:$0xf]
    %v3076 = vld [vmem:[%s3064 + $0x2c] sm:$0xf]
    %v3077 = vld [vmem:[%s3064 + $0x30] sm:$0xf]
    %v3078 = vld [vmem:[%s3064 + $0x34] sm:$0xf]
    %v3079 = vld [vmem:[%s3064 + $0x38] sm:$0xf]
    %v3080 = vld [vmem:[%s3064 + $0x3c] sm:$0xf]
    %v3081 = vunpack.c.l.bf16 %v3065
    %v3082 = vunpack.c.l.bf16 %v3066
    %v3083 = vunpack.c.l.bf16 %v3067
    %v3084 = vunpack.c.l.bf16 %v3068
    %v3085 = vunpack.c.l.bf16 %v3069
    %v3086 = vunpack.c.l.bf16 %v3070
    %v3087 = vunpack.c.l.bf16 %v3071
    %v3088 = vunpack.c.l.bf16 %v3072
    %v3089 = vunpack.c.l.bf16 %v3073
    %v3090 = vunpack.c.l.bf16 %v3074
    %v3091 = vunpack.c.l.bf16 %v3075
    %v3092 = vunpack.c.l.bf16 %v3076
    %v3093 = vunpack.c.l.bf16 %v3077
    %v3094 = vunpack.c.l.bf16 %v3078
    %v3095 = vunpack.c.l.bf16 %v3079
    %v3096 = vunpack.c.l.bf16 %v3080
    %s3097 = scalar_lea.vmem [#allocation20], 6
    %v3098 = vld [vmem:[%s3097] sm:$0x1]
    %v3100 = vlaneseq
    %v3101 = vshrl.u32 %v3100, 7
    %v3102 = vsub.s32 0, %v3101
    %v3103 = vrot.slane %v3098, %v3102
    %3105 = vmatprep.subr.mxu0 0.0
    %3106 = vmatpush1.msra.mxu0 %v3081
    %3107 = vmatprep.subr.mxu0 0.0
    %3108 = vmatpush1.msra.mxu0 %v3082
    %3109 = vmatprep.subr.mxu0 0.0
    %3110 = vmatpush1.msra.mxu0 %v3083
    %3111 = vmatprep.subr.mxu0 0.0
    %3112 = vmatpush1.msra.mxu0 %v3084
    %3113 = vmatprep.subr.mxu0 0.0
    %3114 = vmatpush1.msra.mxu0 %v3085
    %3115 = vmatprep.subr.mxu0 0.0
    %3116 = vmatpush1.msra.mxu0 %v3086
    %3117 = vmatprep.subr.mxu0 0.0
    %3118 = vmatpush1.msra.mxu0 %v3087
    %3119 = vmatprep.subr.mxu0 0.0
    %3120 = vmatpush1.msra.mxu0 %v3088
    %3121 = vmatprep.subr.mxu0 0.0
    %3122 = vmatpush1.msra.mxu0 %v3089
    %3123 = vmatprep.subr.mxu0 0.0
    %3124 = vmatpush1.msra.mxu0 %v3090
    %3125 = vmatprep.subr.mxu0 0.0
    %3126 = vmatpush1.msra.mxu0 %v3091
    %3127 = vmatprep.subr.mxu0 0.0
    %3128 = vmatpush1.msra.mxu0 %v3092
    %3129 = vmatprep.subr.mxu0 0.0
    %3130 = vmatpush1.msra.mxu0 %v3093
    %3131 = vmatprep.subr.mxu0 0.0
    %3132 = vmatpush1.msra.mxu0 %v3094
    %3133 = vmatprep.subr.mxu0 0.0
    %3134 = vmatpush1.msra.mxu0 %v3095
    %3135 = vmatprep.subr.mxu0 0.0
    %3136 = vmatpush1.msra.mxu0 %v3096
    %3137 = vmatprep.subr.mxu0 0.0
    %3138 = vmatpush1.msra.mxu0 0.0
    %3139 = vmatprep.subr.mxu0 0.0
    %3140 = vmatpush1.msra.mxu0 0.0
    %3141 = vmatprep.subr.mxu0 0.0
    %3142 = vmatpush1.msra.mxu0 0.0
    %3143 = vmatprep.subr.mxu0 0.0
    %3144 = vmatpush1.msra.mxu0 0.0
    %3145 = vmatprep.subr.mxu0 0.0
    %3146 = vmatpush1.msra.mxu0 0.0
    %3147 = vmatprep.subr.mxu0 0.0
    %3148 = vmatpush1.msra.mxu0 0.0
    %3149 = vmatprep.subr.mxu0 0.0
    %3150 = vmatpush1.msra.mxu0 0.0
    %3151 = vmatprep.subr.mxu0 0.0
    %3152 = vmatpush1.msra.mxu0 0.0
    %3153 = vmatprep.subr.mxu0 0.0
    %3154 = vmatpush1.msra.mxu0 0.0
    %3155 = vmatprep.subr.mxu0 0.0
    %3156 = vmatpush1.msra.mxu0 0.0
    %3157 = vmatprep.subr.mxu0 0.0
    %3158 = vmatpush1.msra.mxu0 0.0
    %3159 = vmatprep.subr.mxu0 0.0
    %3160 = vmatpush1.msra.mxu0 0.0
    %3161 = vmatprep.subr.mxu0 0.0
    %3162 = vmatpush1.msra.mxu0 0.0
    %3163 = vmatprep.subr.mxu0 0.0
    %3164 = vmatpush1.msra.mxu0 0.0
    %3165 = vmatprep.subr.mxu0 0.0
    %3166 = vmatpush1.msra.mxu0 0.0
    %3167 = vmatprep.subr.mxu0 0.0
    %3168 = vmatpush1.msra.mxu0 0.0
    %3169 = vmatprep.mubr.f32.mxu0 0.0
    %3170 = vmatmul.mubr.f32.gmra.mrb[0].mxu0 %v2617
    %v3171 = vpop.f32.mrb[0].mxu0
    %v3172 = vadd.f32 %v3103, %v3171
    %v3173 = vpop.f32.mrb[0].mxu0
    %3174 = vdwg.mxu0
    %s3175 = scalar_lea.vmem %s33, 448
    %v3176 = vld [vmem:[%s3175] sm:$0xf]
    %v3177 = vld [vmem:[%s3175 + $0x4] sm:$0xf]
    %v3178 = vld [vmem:[%s3175 + $0x8] sm:$0xf]
    %v3179 = vld [vmem:[%s3175 + $0xc] sm:$0xf]
    %v3180 = vld [vmem:[%s3175 + $0x10] sm:$0xf]
    %v3181 = vld [vmem:[%s3175 + $0x14] sm:$0xf]
    %v3182 = vld [vmem:[%s3175 + $0x18] sm:$0xf]
    %v3183 = vld [vmem:[%s3175 + $0x1c] sm:$0xf]
    %v3184 = vld [vmem:[%s3175 + $0x20] sm:$0xf]
    %v3185 = vld [vmem:[%s3175 + $0x24] sm:$0xf]
    %v3186 = vld [vmem:[%s3175 + $0x28] sm:$0xf]
    %v3187 = vld [vmem:[%s3175 + $0x2c] sm:$0xf]
    %v3188 = vld [vmem:[%s3175 + $0x30] sm:$0xf]
    %v3189 = vld [vmem:[%s3175 + $0x34] sm:$0xf]
    %v3190 = vld [vmem:[%s3175 + $0x38] sm:$0xf]
    %v3191 = vld [vmem:[%s3175 + $0x3c] sm:$0xf]
    %v3192 = vunpack.c.l.bf16 %v3176
    %v3193 = vunpack.c.l.bf16 %v3177
    %v3194 = vunpack.c.l.bf16 %v3178
    %v3195 = vunpack.c.l.bf16 %v3179
    %v3196 = vunpack.c.l.bf16 %v3180
    %v3197 = vunpack.c.l.bf16 %v3181
    %v3198 = vunpack.c.l.bf16 %v3182
    %v3199 = vunpack.c.l.bf16 %v3183
    %v3200 = vunpack.c.l.bf16 %v3184
    %v3201 = vunpack.c.l.bf16 %v3185
    %v3202 = vunpack.c.l.bf16 %v3186
    %v3203 = vunpack.c.l.bf16 %v3187
    %v3204 = vunpack.c.l.bf16 %v3188
    %v3205 = vunpack.c.l.bf16 %v3189
    %v3206 = vunpack.c.l.bf16 %v3190
    %v3207 = vunpack.c.l.bf16 %v3191
    %s3208 = scalar_lea.vmem [#allocation20], 7
    %v3209 = vld [vmem:[%s3208] sm:$0x1]
    %v3211 = vlaneseq
    %v3212 = vshrl.u32 %v3211, 7
    %v3213 = vsub.s32 0, %v3212
    %v3214 = vrot.slane %v3209, %v3213
    %3216 = vmatprep.subr.mxu0 0.0
    %3217 = vmatpush1.msra.mxu0 %v3192
    %3218 = vmatprep.subr.mxu0 0.0
    %3219 = vmatpush1.msra.mxu0 %v3193
    %3220 = vmatprep.subr.mxu0 0.0
    %3221 = vmatpush1.msra.mxu0 %v3194
    %3222 = vmatprep.subr.mxu0 0.0
    %3223 = vmatpush1.msra.mxu0 %v3195
    %3224 = vmatprep.subr.mxu0 0.0
    %3225 = vmatpush1.msra.mxu0 %v3196
    %3226 = vmatprep.subr.mxu0 0.0
    %3227 = vmatpush1.msra.mxu0 %v3197
    %3228 = vmatprep.subr.mxu0 0.0
    %3229 = vmatpush1.msra.mxu0 %v3198
    %3230 = vmatprep.subr.mxu0 0.0
    %3231 = vmatpush1.msra.mxu0 %v3199
    %3232 = vmatprep.subr.mxu0 0.0
    %3233 = vmatpush1.msra.mxu0 %v3200
    %3234 = vmatprep.subr.mxu0 0.0
    %3235 = vmatpush1.msra.mxu0 %v3201
    %3236 = vmatprep.subr.mxu0 0.0
    %3237 = vmatpush1.msra.mxu0 %v3202
    %3238 = vmatprep.subr.mxu0 0.0
    %3239 = vmatpush1.msra.mxu0 %v3203
    %3240 = vmatprep.subr.mxu0 0.0
    %3241 = vmatpush1.msra.mxu0 %v3204
    %3242 = vmatprep.subr.mxu0 0.0
    %3243 = vmatpush1.msra.mxu0 %v3205
    %3244 = vmatprep.subr.mxu0 0.0
    %3245 = vmatpush1.msra.mxu0 %v3206
    %3246 = vmatprep.subr.mxu0 0.0
    %3247 = vmatpush1.msra.mxu0 %v3207
    %3248 = vmatprep.subr.mxu0 0.0
    %3249 = vmatpush1.msra.mxu0 0.0
    %3250 = vmatprep.subr.mxu0 0.0
    %3251 = vmatpush1.msra.mxu0 0.0
    %3252 = vmatprep.subr.mxu0 0.0
    %3253 = vmatpush1.msra.mxu0 0.0
    %3254 = vmatprep.subr.mxu0 0.0
    %3255 = vmatpush1.msra.mxu0 0.0
    %3256 = vmatprep.subr.mxu0 0.0
    %3257 = vmatpush1.msra.mxu0 0.0
    %3258 = vmatprep.subr.mxu0 0.0
    %3259 = vmatpush1.msra.mxu0 0.0
    %3260 = vmatprep.subr.mxu0 0.0
    %3261 = vmatpush1.msra.mxu0 0.0
    %3262 = vmatprep.subr.mxu0 0.0
    %3263 = vmatpush1.msra.mxu0 0.0
    %3264 = vmatprep.subr.mxu0 0.0
    %3265 = vmatpush1.msra.mxu0 0.0
    %3266 = vmatprep.subr.mxu0 0.0
    %3267 = vmatpush1.msra.mxu0 0.0
    %3268 = vmatprep.subr.mxu0 0.0
    %3269 = vmatpush1.msra.mxu0 0.0
    %3270 = vmatprep.subr.mxu0 0.0
    %3271 = vmatpush1.msra.mxu0 0.0
    %3272 = vmatprep.subr.mxu0 0.0
    %3273 = vmatpush1.msra.mxu0 0.0
    %3274 = vmatprep.subr.mxu0 0.0
    %3275 = vmatpush1.msra.mxu0 0.0
    %3276 = vmatprep.subr.mxu0 0.0
    %3277 = vmatpush1.msra.mxu0 0.0
    %3278 = vmatprep.subr.mxu0 0.0
    %3279 = vmatpush1.msra.mxu0 0.0
    %3280 = vmatprep.mubr.f32.mxu0 0.0
    %3281 = vmatmul.mubr.f32.gmra.mrb[0].mxu0 %v3172
    %v3282 = vpop.f32.mrb[0].mxu0
    %v3283 = vadd.f32 %v3214, %v3282
    %v3284 = vpop.f32.mrb[0].mxu0
    %3285 = vdwg.mxu0
    %v3286 = vadd.f32 %v2840, %v3283
    %v3287 = vld [vmem:[%s5] sm:$0xff]
    %v3288 = vld [vmem:[#allocation17] sm:$0xf]
    %v3289 = vld [vmem:[#allocation17 + $0x4] sm:$0xf]
    %v3290 = vld [vmem:[#allocation17 + $0x8] sm:$0xf]
    %v3291 = vld [vmem:[#allocation17 + $0xc] sm:$0xf]
    %v3292 = vld [vmem:[#allocation17 + $0x10] sm:$0xf]
    %v3293 = vld [vmem:[#allocation17 + $0x14] sm:$0xf]
    %v3294 = vld [vmem:[#allocation17 + $0x18] sm:$0xf]
    %v3295 = vld [vmem:[#allocation17 + $0x1c] sm:$0xf]
    %v3296 = vld [vmem:[#allocation17 + $0x20] sm:$0xf]
    %v3297 = vld [vmem:[#allocation17 + $0x24] sm:$0xf]
    %v3298 = vld [vmem:[#allocation17 + $0x28] sm:$0xf]
    %v3299 = vld [vmem:[#allocation17 + $0x2c] sm:$0xf]
    %v3300 = vld [vmem:[#allocation17 + $0x30] sm:$0xf]
    %v3301 = vld [vmem:[#allocation17 + $0x34] sm:$0xf]
    %v3302 = vld [vmem:[#allocation17 + $0x38] sm:$0xf]
    %v3303 = vld [vmem:[#allocation17 + $0x3c] sm:$0xf]
    %v3304 = vunpack.c.l.bf16 %v3288
    %v3305 = vunpack.c.l.bf16 %v3289
    %v3306 = vunpack.c.l.bf16 %v3290
    %v3307 = vunpack.c.l.bf16 %v3291
    %v3308 = vunpack.c.l.bf16 %v3292
    %v3309 = vunpack.c.l.bf16 %v3293
    %v3310 = vunpack.c.l.bf16 %v3294
    %v3311 = vunpack.c.l.bf16 %v3295
    %v3312 = vunpack.c.l.bf16 %v3296
    %v3313 = vunpack.c.l.bf16 %v3297
    %v3314 = vunpack.c.l.bf16 %v3298
    %v3315 = vunpack.c.l.bf16 %v3299
    %v3316 = vunpack.c.l.bf16 %v3300
    %v3317 = vunpack.c.l.bf16 %v3301
    %v3318 = vunpack.c.l.bf16 %v3302
    %v3319 = vunpack.c.l.bf16 %v3303
    %v3320 = vld [vmem:[#allocation18] sm:$0x1]
    %v3322 = vlaneseq
    %v3323 = vshrl.u32 %v3322, 7
    %v3324 = vsub.s32 0, %v3323
    %v3325 = vrot.slane %v3320, %v3324
    %3327 = vmatprep.subr.mxu0 0.0
    %3328 = vmatpush1.msra.mxu0 %v3304
    %3329 = vmatprep.subr.mxu0 0.0
    %3330 = vmatpush1.msra.mxu0 %v3305
    %3331 = vmatprep.subr.mxu0 0.0
    %3332 = vmatpush1.msra.mxu0 %v3306
    %3333 = vmatprep.subr.mxu0 0.0
    %3334 = vmatpush1.msra.mxu0 %v3307
    %3335 = vmatprep.subr.mxu0 0.0
    %3336 = vmatpush1.msra.mxu0 %v3308
    %3337 = vmatprep.subr.mxu0 0.0
    %3338 = vmatpush1.msra.mxu0 %v3309
    %3339 = vmatprep.subr.mxu0 0.0
    %3340 = vmatpush1.msra.mxu0 %v3310
    %3341 = vmatprep.subr.mxu0 0.0
    %3342 = vmatpush1.msra.mxu0 %v3311
    %3343 = vmatprep.subr.mxu0 0.0
    %3344 = vmatpush1.msra.mxu0 %v3312
    %3345 = vmatprep.subr.mxu0 0.0
    %3346 = vmatpush1.msra.mxu0 %v3313
    %3347 = vmatprep.subr.mxu0 0.0
    %3348 = vmatpush1.msra.mxu0 %v3314
    %3349 = vmatprep.subr.mxu0 0.0
    %3350 = vmatpush1.msra.mxu0 %v3315
    %3351 = vmatprep.subr.mxu0 0.0
    %3352 = vmatpush1.msra.mxu0 %v3316
    %3353 = vmatprep.subr.mxu0 0.0
    %3354 = vmatpush1.msra.mxu0 %v3317
    %3355 = vmatprep.subr.mxu0 0.0
    %3356 = vmatpush1.msra.mxu0 %v3318
    %3357 = vmatprep.subr.mxu0 0.0
    %3358 = vmatpush1.msra.mxu0 %v3319
    %3359 = vmatprep.subr.mxu0 0.0
    %3360 = vmatpush1.msra.mxu0 0.0
    %3361 = vmatprep.subr.mxu0 0.0
    %3362 = vmatpush1.msra.mxu0 0.0
    %3363 = vmatprep.subr.mxu0 0.0
    %3364 = vmatpush1.msra.mxu0 0.0
    %3365 = vmatprep.subr.mxu0 0.0
    %3366 = vmatpush1.msra.mxu0 0.0
    %3367 = vmatprep.subr.mxu0 0.0
    %3368 = vmatpush1.msra.mxu0 0.0
    %3369 = vmatprep.subr.mxu0 0.0
    %3370 = vmatpush1.msra.mxu0 0.0
    %3371 = vmatprep.subr.mxu0 0.0
    %3372 = vmatpush1.msra.mxu0 0.0
    %3373 = vmatprep.subr.mxu0 0.0
    %3374 = vmatpush1.msra.mxu0 0.0
    %3375 = vmatprep.subr.mxu0 0.0
    %3376 = vmatpush1.msra.mxu0 0.0
    %3377 = vmatprep.subr.mxu0 0.0
    %3378 = vmatpush1.msra.mxu0 0.0
    %3379 = vmatprep.subr.mxu0 0.0
    %3380 = vmatpush1.msra.mxu0 0.0
    %3381 = vmatprep.subr.mxu0 0.0
    %3382 = vmatpush1.msra.mxu0 0.0
    %3383 = vmatprep.subr.mxu0 0.0
    %3384 = vmatpush1.msra.mxu0 0.0
    %3385 = vmatprep.subr.mxu0 0.0
    %3386 = vmatpush1.msra.mxu0 0.0
    %3387 = vmatprep.subr.mxu0 0.0
    %3388 = vmatpush1.msra.mxu0 0.0
    %3389 = vmatprep.subr.mxu0 0.0
    %3390 = vmatpush1.msra.mxu0 0.0
    %3391 = vmatprep.mubr.f32.mxu0 0.0
    %3392 = vmatmul.mubr.f32.gmra.mrb[0].mxu0 %v3287
    %v3393 = vpop.f32.mrb[0].mxu0
    %v3394 = vadd.f32 %v3325, %v3393
    %v3395 = vpop.f32.mrb[0].mxu0
    %3396 = vdwg.mxu0
    %v3397 = vmax.f32 %v3394, 0.0
    %v3398 = vld [vmem:[%s7] sm:$0xff]
    %v3399 = vld [vmem:[%s37] sm:$0xf]
    %v3400 = vld [vmem:[%s37 + $0x4] sm:$0xf]
    %v3401 = vunpack.c.l.bf16 %v3399
    %v3402 = vunpack.c.l.bf16 %v3400
    %v3403 = vld [vmem:[%s39] sm:$0x1]
    %v3405 = vlaneseq
    %v3406 = vshrl.u32 %v3405, 7
    %v3407 = vsub.s32 0, %v3406
    %v3408 = vrot.slane %v3403, %v3407
    %vm3410 = vcmask 130048
    %v3412 = vsel %vm3410, %v3398, 0
    %3414 = vmatprep.subr.mxu0 0.0
    %3415 = vmatpush1.msra.mxu0 %v3401
    %3416 = vmatprep.subr.mxu0 0.0
    %3417 = vmatpush1.msra.mxu0 %v3402
    %3418 = vmatprep.subr.mxu0 0.0
    %3419 = vmatpush1.msra.mxu0 0.0
    %3420 = vmatprep.subr.mxu0 0.0
    %3421 = vmatpush1.msra.mxu0 0.0
    %3422 = vmatprep.subr.mxu0 0.0
    %3423 = vmatpush1.msra.mxu0 0.0
    %3424 = vmatprep.subr.mxu0 0.0
    %3425 = vmatpush1.msra.mxu0 0.0
    %3426 = vmatprep.subr.mxu0 0.0
    %3427 = vmatpush1.msra.mxu0 0.0
    %3428 = vmatprep.subr.mxu0 0.0
    %3429 = vmatpush1.msra.mxu0 0.0
    %3430 = vmatprep.subr.mxu0 0.0
    %3431 = vmatpush1.msra.mxu0 0.0
    %3432 = vmatprep.subr.mxu0 0.0
    %3433 = vmatpush1.msra.mxu0 0.0
    %3434 = vmatprep.subr.mxu0 0.0
    %3435 = vmatpush1.msra.mxu0 0.0
    %3436 = vmatprep.subr.mxu0 0.0
    %3437 = vmatpush1.msra.mxu0 0.0
    %3438 = vmatprep.subr.mxu0 0.0
    %3439 = vmatpush1.msra.mxu0 0.0
    %3440 = vmatprep.subr.mxu0 0.0
    %3441 = vmatpush1.msra.mxu0 0.0
    %3442 = vmatprep.subr.mxu0 0.0
    %3443 = vmatpush1.msra.mxu0 0.0
    %3444 = vmatprep.subr.mxu0 0.0
    %3445 = vmatpush1.msra.mxu0 0.0
    %3446 = vmatprep.subr.mxu0 0.0
    %3447 = vmatpush1.msra.mxu0 0.0
    %3448 = vmatprep.subr.mxu0 0.0
    %3449 = vmatpush1.msra.mxu0 0.0
    %3450 = vmatprep.subr.mxu0 0.0
    %3451 = vmatpush1.msra.mxu0 0.0
    %3452 = vmatprep.subr.mxu0 0.0
    %3453 = vmatpush1.msra.mxu0 0.0
    %3454 = vmatprep.subr.mxu0 0.0
    %3455 = vmatpush1.msra.mxu0 0.0
    %3456 = vmatprep.subr.mxu0 0.0
    %3457 = vmatpush1.msra.mxu0 0.0
    %3458 = vmatprep.subr.mxu0 0.0
    %3459 = vmatpush1.msra.mxu0 0.0
    %3460 = vmatprep.subr.mxu0 0.0
    %3461 = vmatpush1.msra.mxu0 0.0
    %3462 = vmatprep.subr.mxu0 0.0
    %3463 = vmatpush1.msra.mxu0 0.0
    %3464 = vmatprep.subr.mxu0 0.0
    %3465 = vmatpush1.msra.mxu0 0.0
    %3466 = vmatprep.subr.mxu0 0.0
    %3467 = vmatpush1.msra.mxu0 0.0
    %3468 = vmatprep.subr.mxu0 0.0
    %3469 = vmatpush1.msra.mxu0 0.0
    %3470 = vmatprep.subr.mxu0 0.0
    %3471 = vmatpush1.msra.mxu0 0.0
    %3472 = vmatprep.subr.mxu0 0.0
    %3473 = vmatpush1.msra.mxu0 0.0
    %3474 = vmatprep.subr.mxu0 0.0
    %3475 = vmatpush1.msra.mxu0 0.0
    %3476 = vmatprep.subr.mxu0 0.0
    %3477 = vmatpush1.msra.mxu0 0.0
    %3478 = vmatprep.mubr.f32.mxu0 0.0
    %3479 = vmatmul.mubr.f32.gmra.mrb[0].mxu0 %v3412
    %v3480 = vpop.f32.mrb[0].mxu0
    %v3481 = vadd.f32 %v3408, %v3480
    %v3482 = vpop.f32.mrb[0].mxu0
    %3483 = vdwg.mxu0
    %v3484 = vmax.f32 %v3481, 0.0
    %v3485 = vld [vmem:[%s41] sm:$0xf]
    %v3486 = vld [vmem:[%s41 + $0x4] sm:$0xf]
    %v3487 = vld [vmem:[%s41 + $0x8] sm:$0xf]
    %v3488 = vld [vmem:[%s41 + $0xc] sm:$0xf]
    %v3489 = vld [vmem:[%s41 + $0x10] sm:$0xf]
    %v3490 = vld [vmem:[%s41 + $0x14] sm:$0xf]
    %v3491 = vld [vmem:[%s41 + $0x18] sm:$0xf]
    %v3492 = vld [vmem:[%s41 + $0x1c] sm:$0xf]
    %v3493 = vld [vmem:[%s41 + $0x20] sm:$0xf]
    %v3494 = vld [vmem:[%s41 + $0x24] sm:$0xf]
    %v3495 = vld [vmem:[%s41 + $0x28] sm:$0xf]
    %v3496 = vld [vmem:[%s41 + $0x2c] sm:$0xf]
    %v3497 = vld [vmem:[%s41 + $0x30] sm:$0xf]
    %v3498 = vld [vmem:[%s41 + $0x34] sm:$0xf]
    %v3499 = vld [vmem:[%s41 + $0x38] sm:$0xf]
    %v3500 = vld [vmem:[%s41 + $0x3c] sm:$0xf]
    %v3501 = vunpack.c.l.bf16 %v3485
    %v3502 = vunpack.c.l.bf16 %v3486
    %v3503 = vunpack.c.l.bf16 %v3487
    %v3504 = vunpack.c.l.bf16 %v3488
    %v3505 = vunpack.c.l.bf16 %v3489
    %v3506 = vunpack.c.l.bf16 %v3490
    %v3507 = vunpack.c.l.bf16 %v3491
    %v3508 = vunpack.c.l.bf16 %v3492
    %v3509 = vunpack.c.l.bf16 %v3493
    %v3510 = vunpack.c.l.bf16 %v3494
    %v3511 = vunpack.c.l.bf16 %v3495
    %v3512 = vunpack.c.l.bf16 %v3496
    %v3513 = vunpack.c.l.bf16 %v3497
    %v3514 = vunpack.c.l.bf16 %v3498
    %v3515 = vunpack.c.l.bf16 %v3499
    %v3516 = vunpack.c.l.bf16 %v3500
    %v3517 = vld [vmem:[%s43] sm:$0xf]
    %v3518 = vld [vmem:[%s43 + $0x4] sm:$0xf]
    %v3519 = vld [vmem:[%s43 + $0x8] sm:$0xf]
    %v3520 = vld [vmem:[%s43 + $0xc] sm:$0xf]
    %v3521 = vld [vmem:[%s43 + $0x10] sm:$0xf]
    %v3522 = vld [vmem:[%s43 + $0x14] sm:$0xf]
    %v3523 = vld [vmem:[%s43 + $0x18] sm:$0xf]
    %v3524 = vld [vmem:[%s43 + $0x1c] sm:$0xf]
    %v3525 = vld [vmem:[%s43 + $0x20] sm:$0xf]
    %v3526 = vld [vmem:[%s43 + $0x24] sm:$0xf]
    %v3527 = vld [vmem:[%s43 + $0x28] sm:$0xf]
    %v3528 = vld [vmem:[%s43 + $0x2c] sm:$0xf]
    %v3529 = vld [vmem:[%s43 + $0x30] sm:$0xf]
    %v3530 = vld [vmem:[%s43 + $0x34] sm:$0xf]
    %v3531 = vld [vmem:[%s43 + $0x38] sm:$0xf]
    %v3532 = vld [vmem:[%s43 + $0x3c] sm:$0xf]
    %v3533 = vunpack.c.l.bf16 %v3517
    %v3534 = vunpack.c.l.bf16 %v3518
    %v3535 = vunpack.c.l.bf16 %v3519
    %v3536 = vunpack.c.l.bf16 %v3520
    %v3537 = vunpack.c.l.bf16 %v3521
    %v3538 = vunpack.c.l.bf16 %v3522
    %v3539 = vunpack.c.l.bf16 %v3523
    %v3540 = vunpack.c.l.bf16 %v3524
    %v3541 = vunpack.c.l.bf16 %v3525
    %v3542 = vunpack.c.l.bf16 %v3526
    %v3543 = vunpack.c.l.bf16 %v3527
    %v3544 = vunpack.c.l.bf16 %v3528
    %v3545 = vunpack.c.l.bf16 %v3529
    %v3546 = vunpack.c.l.bf16 %v3530
    %v3547 = vunpack.c.l.bf16 %v3531
    %v3548 = vunpack.c.l.bf16 %v3532
    %3549 = vmatprep.subr.mxu0 0.0
    %3550 = vmatpush1.msra.mxu0 %v3533
    %3551 = vmatprep.subr.mxu0 0.0
    %3552 = vmatpush1.msra.mxu0 %v3534
    %3553 = vmatprep.subr.mxu0 0.0
    %3554 = vmatpush1.msra.mxu0 %v3535
    %3555 = vmatprep.subr.mxu0 0.0
    %3556 = vmatpush1.msra.mxu0 %v3536
    %3557 = vmatprep.subr.mxu0 0.0
    %3558 = vmatpush1.msra.mxu0 %v3537
    %3559 = vmatprep.subr.mxu0 0.0
    %3560 = vmatpush1.msra.mxu0 %v3538
    %3561 = vmatprep.subr.mxu0 0.0
    %3562 = vmatpush1.msra.mxu0 %v3539
    %3563 = vmatprep.subr.mxu0 0.0
    %3564 = vmatpush1.msra.mxu0 %v3540
    %3565 = vmatprep.subr.mxu0 0.0
    %3566 = vmatpush1.msra.mxu0 %v3541
    %3567 = vmatprep.subr.mxu0 0.0
    %3568 = vmatpush1.msra.mxu0 %v3542
    %3569 = vmatprep.subr.mxu0 0.0
    %3570 = vmatpush1.msra.mxu0 %v3543
    %3571 = vmatprep.subr.mxu0 0.0
    %3572 = vmatpush1.msra.mxu0 %v3544
    %3573 = vmatprep.subr.mxu0 0.0
    %3574 = vmatpush1.msra.mxu0 %v3545
    %3575 = vmatprep.subr.mxu0 0.0
    %3576 = vmatpush1.msra.mxu0 %v3546
    %3577 = vmatprep.subr.mxu0 0.0
    %3578 = vmatpush1.msra.mxu0 %v3547
    %3579 = vmatprep.subr.mxu0 0.0
    %3580 = vmatpush1.msra.mxu0 %v3548
    %3581 = vmatprep.subr.mxu0 0.0
    %3582 = vmatpush1.msra.mxu0 0.0
    %3583 = vmatprep.subr.mxu0 0.0
    %3584 = vmatpush1.msra.mxu0 0.0
    %3585 = vmatprep.subr.mxu0 0.0
    %3586 = vmatpush1.msra.mxu0 0.0
    %3587 = vmatprep.subr.mxu0 0.0
    %3588 = vmatpush1.msra.mxu0 0.0
    %3589 = vmatprep.subr.mxu0 0.0
    %3590 = vmatpush1.msra.mxu0 0.0
    %3591 = vmatprep.subr.mxu0 0.0
    %3592 = vmatpush1.msra.mxu0 0.0
    %3593 = vmatprep.subr.mxu0 0.0
    %3594 = vmatpush1.msra.mxu0 0.0
    %3595 = vmatprep.subr.mxu0 0.0
    %3596 = vmatpush1.msra.mxu0 0.0
    %3597 = vmatprep.subr.mxu0 0.0
    %3598 = vmatpush1.msra.mxu0 0.0
    %3599 = vmatprep.subr.mxu0 0.0
    %3600 = vmatpush1.msra.mxu0 0.0
    %3601 = vmatprep.subr.mxu0 0.0
    %3602 = vmatpush1.msra.mxu0 0.0
    %3603 = vmatprep.subr.mxu0 0.0
    %3604 = vmatpush1.msra.mxu0 0.0
    %3605 = vmatprep.subr.mxu0 0.0
    %3606 = vmatpush1.msra.mxu0 0.0
    %3607 = vmatprep.subr.mxu0 0.0
    %3608 = vmatpush1.msra.mxu0 0.0
    %3609 = vmatprep.subr.mxu0 0.0
    %3610 = vmatpush1.msra.mxu0 0.0
    %3611 = vmatprep.subr.mxu0 0.0
    %3612 = vmatpush1.msra.mxu0 0.0
    %3613 = vmatprep.mubr.f32.mxu0 0.0
    %3614 = vmatmul.mubr.f32.gmra.mrb[0].mxu0 %v3063
    %v3615 = vpop.f32.mrb[0].mxu0
    %v3616 = vadd.f32 0.0, %v3615
    %v3617 = vpop.f32.mrb[0].mxu0
    %3618 = vdwg.mxu0
    %3619 = vmatprep.subr.mxu0 0.0
    %3620 = vmatpush1.msra.mxu0 %v3501
    %3621 = vmatprep.subr.mxu0 0.0
    %3622 = vmatpush1.msra.mxu0 %v3502
    %3623 = vmatprep.subr.mxu0 0.0
    %3624 = vmatpush1.msra.mxu0 %v3503
    %3625 = vmatprep.subr.mxu0 0.0
    %3626 = vmatpush1.msra.mxu0 %v3504
    %3627 = vmatprep.subr.mxu0 0.0
    %3628 = vmatpush1.msra.mxu0 %v3505
    %3629 = vmatprep.subr.mxu0 0.0
    %3630 = vmatpush1.msra.mxu0 %v3506
    %3631 = vmatprep.subr.mxu0 0.0
    %3632 = vmatpush1.msra.mxu0 %v3507
    %3633 = vmatprep.subr.mxu0 0.0
    %3634 = vmatpush1.msra.mxu0 %v3508
    %3635 = vmatprep.subr.mxu0 0.0
    %3636 = vmatpush1.msra.mxu0 %v3509
    %3637 = vmatprep.subr.mxu0 0.0
    %3638 = vmatpush1.msra.mxu0 %v3510
    %3639 = vmatprep.subr.mxu0 0.0
    %3640 = vmatpush1.msra.mxu0 %v3511
    %3641 = vmatprep.subr.mxu0 0.0
    %3642 = vmatpush1.msra.mxu0 %v3512
    %3643 = vmatprep.subr.mxu0 0.0
    %3644 = vmatpush1.msra.mxu0 %v3513
    %3645 = vmatprep.subr.mxu0 0.0
    %3646 = vmatpush1.msra.mxu0 %v3514
    %3647 = vmatprep.subr.mxu0 0.0
    %3648 = vmatpush1.msra.mxu0 %v3515
    %3649 = vmatprep.subr.mxu0 0.0
    %3650 = vmatpush1.msra.mxu0 %v3516
    %3651 = vmatprep.subr.mxu0 0.0
    %3652 = vmatpush1.msra.mxu0 0.0
    %3653 = vmatprep.subr.mxu0 0.0
    %3654 = vmatpush1.msra.mxu0 0.0
    %3655 = vmatprep.subr.mxu0 0.0
    %3656 = vmatpush1.msra.mxu0 0.0
    %3657 = vmatprep.subr.mxu0 0.0
    %3658 = vmatpush1.msra.mxu0 0.0
    %3659 = vmatprep.subr.mxu0 0.0
    %3660 = vmatpush1.msra.mxu0 0.0
    %3661 = vmatprep.subr.mxu0 0.0
    %3662 = vmatpush1.msra.mxu0 0.0
    %3663 = vmatprep.subr.mxu0 0.0
    %3664 = vmatpush1.msra.mxu0 0.0
    %3665 = vmatprep.subr.mxu0 0.0
    %3666 = vmatpush1.msra.mxu0 0.0
    %3667 = vmatprep.subr.mxu0 0.0
    %3668 = vmatpush1.msra.mxu0 0.0
    %3669 = vmatprep.subr.mxu0 0.0
    %3670 = vmatpush1.msra.mxu0 0.0
    %3671 = vmatprep.subr.mxu0 0.0
    %3672 = vmatpush1.msra.mxu0 0.0
    %3673 = vmatprep.subr.mxu0 0.0
    %3674 = vmatpush1.msra.mxu0 0.0
    %3675 = vmatprep.subr.mxu0 0.0
    %3676 = vmatpush1.msra.mxu0 0.0
    %3677 = vmatprep.subr.mxu0 0.0
    %3678 = vmatpush1.msra.mxu0 0.0
    %3679 = vmatprep.subr.mxu0 0.0
    %3680 = vmatpush1.msra.mxu0 0.0
    %3681 = vmatprep.subr.mxu0 0.0
    %3682 = vmatpush1.msra.mxu0 0.0
    %3683 = vmatprep.mubr.f32.mxu0 0.0
    %3684 = vmatmul.mubr.f32.gmra.mrb[0].mxu0 %v3397
    %v3685 = vpop.f32.mrb[0].mxu0
    %v3686 = vadd.f32 %v3616, %v3685
    %v3687 = vpop.f32.mrb[0].mxu0
    %3688 = vdwg.mxu0
    %v3689 = vld [vmem:[%s45] sm:$0xf]
    %v3690 = vld [vmem:[%s45 + $0x4] sm:$0xf]
    %v3691 = vld [vmem:[%s45 + $0x8] sm:$0xf]
    %v3692 = vld [vmem:[%s45 + $0xc] sm:$0xf]
    %v3693 = vld [vmem:[%s45 + $0x10] sm:$0xf]
    %v3694 = vld [vmem:[%s45 + $0x14] sm:$0xf]
    %v3695 = vld [vmem:[%s45 + $0x18] sm:$0xf]
    %v3696 = vld [vmem:[%s45 + $0x1c] sm:$0xf]
    %v3697 = vld [vmem:[%s45 + $0x20] sm:$0xf]
    %v3698 = vld [vmem:[%s45 + $0x24] sm:$0xf]
    %v3699 = vld [vmem:[%s45 + $0x28] sm:$0xf]
    %v3700 = vld [vmem:[%s45 + $0x2c] sm:$0xf]
    %v3701 = vld [vmem:[%s45 + $0x30] sm:$0xf]
    %v3702 = vld [vmem:[%s45 + $0x34] sm:$0xf]
    %v3703 = vld [vmem:[%s45 + $0x38] sm:$0xf]
    %v3704 = vld [vmem:[%s45 + $0x3c] sm:$0xf]
    %v3705 = vunpack.c.l.bf16 %v3689
    %v3706 = vunpack.c.l.bf16 %v3690
    %v3707 = vunpack.c.l.bf16 %v3691
    %v3708 = vunpack.c.l.bf16 %v3692
    %v3709 = vunpack.c.l.bf16 %v3693
    %v3710 = vunpack.c.l.bf16 %v3694
    %v3711 = vunpack.c.l.bf16 %v3695
    %v3712 = vunpack.c.l.bf16 %v3696
    %v3713 = vunpack.c.l.bf16 %v3697
    %v3714 = vunpack.c.l.bf16 %v3698
    %v3715 = vunpack.c.l.bf16 %v3699
    %v3716 = vunpack.c.l.bf16 %v3700
    %v3717 = vunpack.c.l.bf16 %v3701
    %v3718 = vunpack.c.l.bf16 %v3702
    %v3719 = vunpack.c.l.bf16 %v3703
    %v3720 = vunpack.c.l.bf16 %v3704
    %3721 = vmatprep.subr.mxu0 0.0
    %3722 = vmatpush1.msra.mxu0 %v3705
    %3723 = vmatprep.subr.mxu0 0.0
    %3724 = vmatpush1.msra.mxu0 %v3706
    %3725 = vmatprep.subr.mxu0 0.0
    %3726 = vmatpush1.msra.mxu0 %v3707
    %3727 = vmatprep.subr.mxu0 0.0
    %3728 = vmatpush1.msra.mxu0 %v3708
    %3729 = vmatprep.subr.mxu0 0.0
    %3730 = vmatpush1.msra.mxu0 %v3709
    %3731 = vmatprep.subr.mxu0 0.0
    %3732 = vmatpush1.msra.mxu0 %v3710
    %3733 = vmatprep.subr.mxu0 0.0
    %3734 = vmatpush1.msra.mxu0 %v3711
    %3735 = vmatprep.subr.mxu0 0.0
    %3736 = vmatpush1.msra.mxu0 %v3712
    %3737 = vmatprep.subr.mxu0 0.0
    %3738 = vmatpush1.msra.mxu0 %v3713
    %3739 = vmatprep.subr.mxu0 0.0
    %3740 = vmatpush1.msra.mxu0 %v3714
    %3741 = vmatprep.subr.mxu0 0.0
    %3742 = vmatpush1.msra.mxu0 %v3715
    %3743 = vmatprep.subr.mxu0 0.0
    %3744 = vmatpush1.msra.mxu0 %v3716
    %3745 = vmatprep.subr.mxu0 0.0
    %3746 = vmatpush1.msra.mxu0 %v3717
    %3747 = vmatprep.subr.mxu0 0.0
    %3748 = vmatpush1.msra.mxu0 %v3718
    %3749 = vmatprep.subr.mxu0 0.0
    %3750 = vmatpush1.msra.mxu0 %v3719
    %3751 = vmatprep.subr.mxu0 0.0
    %3752 = vmatpush1.msra.mxu0 %v3720
    %3753 = vmatprep.subr.mxu0 0.0
    %3754 = vmatpush1.msra.mxu0 0.0
    %3755 = vmatprep.subr.mxu0 0.0
    %3756 = vmatpush1.msra.mxu0 0.0
    %3757 = vmatprep.subr.mxu0 0.0
    %3758 = vmatpush1.msra.mxu0 0.0
    %3759 = vmatprep.subr.mxu0 0.0
    %3760 = vmatpush1.msra.mxu0 0.0
    %3761 = vmatprep.subr.mxu0 0.0
    %3762 = vmatpush1.msra.mxu0 0.0
    %3763 = vmatprep.subr.mxu0 0.0
    %3764 = vmatpush1.msra.mxu0 0.0
    %3765 = vmatprep.subr.mxu0 0.0
    %3766 = vmatpush1.msra.mxu0 0.0
    %3767 = vmatprep.subr.mxu0 0.0
    %3768 = vmatpush1.msra.mxu0 0.0
    %3769 = vmatprep.subr.mxu0 0.0
    %3770 = vmatpush1.msra.mxu0 0.0
    %3771 = vmatprep.subr.mxu0 0.0
    %3772 = vmatpush1.msra.mxu0 0.0
    %3773 = vmatprep.subr.mxu0 0.0
    %3774 = vmatpush1.msra.mxu0 0.0
    %3775 = vmatprep.subr.mxu0 0.0
    %3776 = vmatpush1.msra.mxu0 0.0
    %3777 = vmatprep.subr.mxu0 0.0
    %3778 = vmatpush1.msra.mxu0 0.0
    %3779 = vmatprep.subr.mxu0 0.0
    %3780 = vmatpush1.msra.mxu0 0.0
    %3781 = vmatprep.subr.mxu0 0.0
    %3782 = vmatpush1.msra.mxu0 0.0
    %3783 = vmatprep.subr.mxu0 0.0
    %3784 = vmatpush1.msra.mxu0 0.0
    %3785 = vmatprep.mubr.f32.mxu0 0.0
    %3786 = vmatmul.mubr.f32.gmra.mrb[0].mxu0 %v3286
    %v3787 = vpop.f32.mrb[0].mxu0
    %v3788 = vadd.f32 0.0, %v3787
    %v3789 = vpop.f32.mrb[0].mxu0
    %3790 = vdwg.mxu0
    %v3791 = vadd.f32 %v3686, %v3788
    %v3792 = vld [vmem:[%s47] sm:$0xf]
    %v3793 = vld [vmem:[%s47 + $0x4] sm:$0xf]
    %v3794 = vld [vmem:[%s47 + $0x8] sm:$0xf]
    %v3795 = vld [vmem:[%s47 + $0xc] sm:$0xf]
    %v3796 = vld [vmem:[%s47 + $0x10] sm:$0xf]
    %v3797 = vld [vmem:[%s47 + $0x14] sm:$0xf]
    %v3798 = vld [vmem:[%s47 + $0x18] sm:$0xf]
    %v3799 = vld [vmem:[%s47 + $0x1c] sm:$0xf]
    %v3800 = vld [vmem:[%s47 + $0x20] sm:$0xf]
    %v3801 = vld [vmem:[%s47 + $0x24] sm:$0xf]
    %v3802 = vld [vmem:[%s47 + $0x28] sm:$0xf]
    %v3803 = vld [vmem:[%s47 + $0x2c] sm:$0xf]
    %v3804 = vld [vmem:[%s47 + $0x30] sm:$0xf]
    %v3805 = vld [vmem:[%s47 + $0x34] sm:$0xf]
    %v3806 = vld [vmem:[%s47 + $0x38] sm:$0xf]
    %v3807 = vld [vmem:[%s47 + $0x3c] sm:$0xf]
    %v3808 = vunpack.c.l.bf16 %v3792
    %v3809 = vunpack.c.l.bf16 %v3793
    %v3810 = vunpack.c.l.bf16 %v3794
    %v3811 = vunpack.c.l.bf16 %v3795
    %v3812 = vunpack.c.l.bf16 %v3796
    %v3813 = vunpack.c.l.bf16 %v3797
    %v3814 = vunpack.c.l.bf16 %v3798
    %v3815 = vunpack.c.l.bf16 %v3799
    %v3816 = vunpack.c.l.bf16 %v3800
    %v3817 = vunpack.c.l.bf16 %v3801
    %v3818 = vunpack.c.l.bf16 %v3802
    %v3819 = vunpack.c.l.bf16 %v3803
    %v3820 = vunpack.c.l.bf16 %v3804
    %v3821 = vunpack.c.l.bf16 %v3805
    %v3822 = vunpack.c.l.bf16 %v3806
    %v3823 = vunpack.c.l.bf16 %v3807
    %3824 = vmatprep.subr.mxu0 0.0
    %3825 = vmatpush1.msra.mxu0 %v3808
    %3826 = vmatprep.subr.mxu0 0.0
    %3827 = vmatpush1.msra.mxu0 %v3809
    %3828 = vmatprep.subr.mxu0 0.0
    %3829 = vmatpush1.msra.mxu0 %v3810
    %3830 = vmatprep.subr.mxu0 0.0
    %3831 = vmatpush1.msra.mxu0 %v3811
    %3832 = vmatprep.subr.mxu0 0.0
    %3833 = vmatpush1.msra.mxu0 %v3812
    %3834 = vmatprep.subr.mxu0 0.0
    %3835 = vmatpush1.msra.mxu0 %v3813
    %3836 = vmatprep.subr.mxu0 0.0
    %3837 = vmatpush1.msra.mxu0 %v3814
    %3838 = vmatprep.subr.mxu0 0.0
    %3839 = vmatpush1.msra.mxu0 %v3815
    %3840 = vmatprep.subr.mxu0 0.0
    %3841 = vmatpush1.msra.mxu0 %v3816
    %3842 = vmatprep.subr.mxu0 0.0
    %3843 = vmatpush1.msra.mxu0 %v3817
    %3844 = vmatprep.subr.mxu0 0.0
    %3845 = vmatpush1.msra.mxu0 %v3818
    %3846 = vmatprep.subr.mxu0 0.0
    %3847 = vmatpush1.msra.mxu0 %v3819
    %3848 = vmatprep.subr.mxu0 0.0
    %3849 = vmatpush1.msra.mxu0 %v3820
    %3850 = vmatprep.subr.mxu0 0.0
    %3851 = vmatpush1.msra.mxu0 %v3821
    %3852 = vmatprep.subr.mxu0 0.0
    %3853 = vmatpush1.msra.mxu0 %v3822
    %3854 = vmatprep.subr.mxu0 0.0
    %3855 = vmatpush1.msra.mxu0 %v3823
    %3856 = vmatprep.subr.mxu0 0.0
    %3857 = vmatpush1.msra.mxu0 0.0
    %3858 = vmatprep.subr.mxu0 0.0
    %3859 = vmatpush1.msra.mxu0 0.0
    %3860 = vmatprep.subr.mxu0 0.0
    %3861 = vmatpush1.msra.mxu0 0.0
    %3862 = vmatprep.subr.mxu0 0.0
    %3863 = vmatpush1.msra.mxu0 0.0
    %3864 = vmatprep.subr.mxu0 0.0
    %3865 = vmatpush1.msra.mxu0 0.0
    %3866 = vmatprep.subr.mxu0 0.0
    %3867 = vmatpush1.msra.mxu0 0.0
    %3868 = vmatprep.subr.mxu0 0.0
    %3869 = vmatpush1.msra.mxu0 0.0
    %3870 = vmatprep.subr.mxu0 0.0
    %3871 = vmatpush1.msra.mxu0 0.0
    %3872 = vmatprep.subr.mxu0 0.0
    %3873 = vmatpush1.msra.mxu0 0.0
    %3874 = vmatprep.subr.mxu0 0.0
    %3875 = vmatpush1.msra.mxu0 0.0
    %3876 = vmatprep.subr.mxu0 0.0
    %3877 = vmatpush1.msra.mxu0 0.0
    %3878 = vmatprep.subr.mxu0 0.0
    %3879 = vmatpush1.msra.mxu0 0.0
    %3880 = vmatprep.subr.mxu0 0.0
    %3881 = vmatpush1.msra.mxu0 0.0
    %3882 = vmatprep.subr.mxu0 0.0
    %3883 = vmatpush1.msra.mxu0 0.0
    %3884 = vmatprep.subr.mxu0 0.0
    %3885 = vmatpush1.msra.mxu0 0.0
    %3886 = vmatprep.subr.mxu0 0.0
    %3887 = vmatpush1.msra.mxu0 0.0
    %3888 = vmatprep.mubr.f32.mxu0 0.0
    %3889 = vmatmul.mubr.f32.gmra.mrb[0].mxu0 %v3484
    %v3890 = vpop.f32.mrb[0].mxu0
    %v3891 = vadd.f32 0.0, %v3890
    %v3892 = vpop.f32.mrb[0].mxu0
    %3893 = vdwg.mxu0
    %v3894 = vadd.f32 %v3791, %v3891
    %v3895 = vld [vmem:[%s49] sm:$0x1]
    %v3897 = vlaneseq
    %v3898 = vshrl.u32 %v3897, 7
    %v3899 = vsub.s32 0, %v3898
    %v3900 = vrot.slane %v3895, %v3899
    %v3902 = vadd.f32 %v3894, %v3900
    %v3903 = vmax.f32 %v3902, 0.0
    %v3904 = vld [vmem:[%s51] sm:$0xf]
    %v3905 = vld [vmem:[%s51 + $0x4] sm:$0xf]
    %v3906 = vld [vmem:[%s51 + $0x8] sm:$0xf]
    %v3907 = vld [vmem:[%s51 + $0xc] sm:$0xf]
    %v3908 = vld [vmem:[%s51 + $0x10] sm:$0xf]
    %v3909 = vld [vmem:[%s51 + $0x14] sm:$0xf]
    %v3910 = vld [vmem:[%s51 + $0x18] sm:$0xf]
    %v3911 = vld [vmem:[%s51 + $0x1c] sm:$0xf]
    %v3912 = vld [vmem:[%s51 + $0x20] sm:$0xf]
    %v3913 = vld [vmem:[%s51 + $0x24] sm:$0xf]
    %v3914 = vld [vmem:[%s51 + $0x28] sm:$0xf]
    %v3915 = vld [vmem:[%s51 + $0x2c] sm:$0xf]
    %v3916 = vld [vmem:[%s51 + $0x30] sm:$0xf]
    %v3917 = vld [vmem:[%s51 + $0x34] sm:$0xf]
    %v3918 = vld [vmem:[%s51 + $0x38] sm:$0xf]
    %v3919 = vld [vmem:[%s51 + $0x3c] sm:$0xf]
    %v3920 = vunpack.c.l.bf16 %v3904
    %v3921 = vunpack.c.l.bf16 %v3905
    %v3922 = vunpack.c.l.bf16 %v3906
    %v3923 = vunpack.c.l.bf16 %v3907
    %v3924 = vunpack.c.l.bf16 %v3908
    %v3925 = vunpack.c.l.bf16 %v3909
    %v3926 = vunpack.c.l.bf16 %v3910
    %v3927 = vunpack.c.l.bf16 %v3911
    %v3928 = vunpack.c.l.bf16 %v3912
    %v3929 = vunpack.c.l.bf16 %v3913
    %v3930 = vunpack.c.l.bf16 %v3914
    %v3931 = vunpack.c.l.bf16 %v3915
    %v3932 = vunpack.c.l.bf16 %v3916
    %v3933 = vunpack.c.l.bf16 %v3917
    %v3934 = vunpack.c.l.bf16 %v3918
    %v3935 = vunpack.c.l.bf16 %v3919
    %v3936 = vld [vmem:[%s53] sm:$0x1]
    %v3938 = vlaneseq
    %v3939 = vshrl.u32 %v3938, 7
    %v3940 = vsub.s32 0, %v3939
    %v3941 = vrot.slane %v3936, %v3940
    %3943 = vmatprep.subr.mxu0 0.0
    %3944 = vmatpush1.msra.mxu0 %v3920
    %3945 = vmatprep.subr.mxu0 0.0
    %3946 = vmatpush1.msra.mxu0 %v3921
    %3947 = vmatprep.subr.mxu0 0.0
    %3948 = vmatpush1.msra.mxu0 %v3922
    %3949 = vmatprep.subr.mxu0 0.0
    %3950 = vmatpush1.msra.mxu0 %v3923
    %3951 = vmatprep.subr.mxu0 0.0
    %3952 = vmatpush1.msra.mxu0 %v3924
    %3953 = vmatprep.subr.mxu0 0.0
    %3954 = vmatpush1.msra.mxu0 %v3925
    %3955 = vmatprep.subr.mxu0 0.0
    %3956 = vmatpush1.msra.mxu0 %v3926
    %3957 = vmatprep.subr.mxu0 0.0
    %3958 = vmatpush1.msra.mxu0 %v3927
    %3959 = vmatprep.subr.mxu0 0.0
    %3960 = vmatpush1.msra.mxu0 %v3928
    %3961 = vmatprep.subr.mxu0 0.0
    %3962 = vmatpush1.msra.mxu0 %v3929
    %3963 = vmatprep.subr.mxu0 0.0
    %3964 = vmatpush1.msra.mxu0 %v3930
    %3965 = vmatprep.subr.mxu0 0.0
    %3966 = vmatpush1.msra.mxu0 %v3931
    %3967 = vmatprep.subr.mxu0 0.0
    %3968 = vmatpush1.msra.mxu0 %v3932
    %3969 = vmatprep.subr.mxu0 0.0
    %3970 = vmatpush1.msra.mxu0 %v3933
    %3971 = vmatprep.subr.mxu0 0.0
    %3972 = vmatpush1.msra.mxu0 %v3934
    %3973 = vmatprep.subr.mxu0 0.0
    %3974 = vmatpush1.msra.mxu0 %v3935
    %3975 = vmatprep.subr.mxu0 0.0
    %3976 = vmatpush1.msra.mxu0 0.0
    %3977 = vmatprep.subr.mxu0 0.0
    %3978 = vmatpush1.msra.mxu0 0.0
    %3979 = vmatprep.subr.mxu0 0.0
    %3980 = vmatpush1.msra.mxu0 0.0
    %3981 = vmatprep.subr.mxu0 0.0
    %3982 = vmatpush1.msra.mxu0 0.0
    %3983 = vmatprep.subr.mxu0 0.0
    %3984 = vmatpush1.msra.mxu0 0.0
    %3985 = vmatprep.subr.mxu0 0.0
    %3986 = vmatpush1.msra.mxu0 0.0
    %3987 = vmatprep.subr.mxu0 0.0
    %3988 = vmatpush1.msra.mxu0 0.0
    %3989 = vmatprep.subr.mxu0 0.0
    %3990 = vmatpush1.msra.mxu0 0.0
    %3991 = vmatprep.subr.mxu0 0.0
    %3992 = vmatpush1.msra.mxu0 0.0
    %3993 = vmatprep.subr.mxu0 0.0
    %3994 = vmatpush1.msra.mxu0 0.0
    %3995 = vmatprep.subr.mxu0 0.0
    %3996 = vmatpush1.msra.mxu0 0.0
    %3997 = vmatprep.subr.mxu0 0.0
    %3998 = vmatpush1.msra.mxu0 0.0
    %3999 = vmatprep.subr.mxu0 0.0
    %4000 = vmatpush1.msra.mxu0 0.0
    %4001 = vmatprep.subr.mxu0 0.0
    %4002 = vmatpush1.msra.mxu0 0.0
    %4003 = vmatprep.subr.mxu0 0.0
    %4004 = vmatpush1.msra.mxu0 0.0
    %4005 = vmatprep.subr.mxu0 0.0
    %4006 = vmatpush1.msra.mxu0 0.0
    %4007 = vmatprep.mubr.f32.mxu0 0.0
    %4008 = vmatmul.mubr.f32.gmra.mrb[0].mxu0 %v3903
    %v4009 = vpop.f32.mrb[0].mxu0
    %v4010 = vadd.f32 %v3941, %v4009
    %v4011 = vpop.f32.mrb[0].mxu0
    %4012 = vdwg.mxu0
    %v4013 = vmax.f32 %v4010, 0.0
    %s4014 = scalar_lea.vmem %s51, 64
    %v4015 = vld [vmem:[%s4014] sm:$0xf]
    %v4016 = vld [vmem:[%s4014 + $0x4] sm:$0xf]
    %v4017 = vld [vmem:[%s4014 + $0x8] sm:$0xf]
    %v4018 = vld [vmem:[%s4014 + $0xc] sm:$0xf]
    %v4019 = vld [vmem:[%s4014 + $0x10] sm:$0xf]
    %v4020 = vld [vmem:[%s4014 + $0x14] sm:$0xf]
    %v4021 = vld [vmem:[%s4014 + $0x18] sm:$0xf]
    %v4022 = vld [vmem:[%s4014 + $0x1c] sm:$0xf]
    %v4023 = vld [vmem:[%s4014 + $0x20] sm:$0xf]
    %v4024 = vld [vmem:[%s4014 + $0x24] sm:$0xf]
    %v4025 = vld [vmem:[%s4014 + $0x28] sm:$0xf]
    %v4026 = vld [vmem:[%s4014 + $0x2c] sm:$0xf]
    %v4027 = vld [vmem:[%s4014 + $0x30] sm:$0xf]
    %v4028 = vld [vmem:[%s4014 + $0x34] sm:$0xf]
    %v4029 = vld [vmem:[%s4014 + $0x38] sm:$0xf]
    %v4030 = vld [vmem:[%s4014 + $0x3c] sm:$0xf]
    %v4031 = vunpack.c.l.bf16 %v4015
    %v4032 = vunpack.c.l.bf16 %v4016
    %v4033 = vunpack.c.l.bf16 %v4017
    %v4034 = vunpack.c.l.bf16 %v4018
    %v4035 = vunpack.c.l.bf16 %v4019
    %v4036 = vunpack.c.l.bf16 %v4020
    %v4037 = vunpack.c.l.bf16 %v4021
    %v4038 = vunpack.c.l.bf16 %v4022
    %v4039 = vunpack.c.l.bf16 %v4023
    %v4040 = vunpack.c.l.bf16 %v4024
    %v4041 = vunpack.c.l.bf16 %v4025
    %v4042 = vunpack.c.l.bf16 %v4026
    %v4043 = vunpack.c.l.bf16 %v4027
    %v4044 = vunpack.c.l.bf16 %v4028
    %v4045 = vunpack.c.l.bf16 %v4029
    %v4046 = vunpack.c.l.bf16 %v4030
    %s4047 = scalar_lea.vmem %s53, 1
    %v4048 = vld [vmem:[%s4047] sm:$0x1]
    %v4050 = vlaneseq
    %v4051 = vshrl.u32 %v4050, 7
    %v4052 = vsub.s32 0, %v4051
    %v4053 = vrot.slane %v4048, %v4052
    %4055 = vmatprep.subr.mxu0 0.0
    %4056 = vmatpush1.msra.mxu0 %v4031
    %4057 = vmatprep.subr.mxu0 0.0
    %4058 = vmatpush1.msra.mxu0 %v4032
    %4059 = vmatprep.subr.mxu0 0.0
    %4060 = vmatpush1.msra.mxu0 %v4033
    %4061 = vmatprep.subr.mxu0 0.0
    %4062 = vmatpush1.msra.mxu0 %v4034
    %4063 = vmatprep.subr.mxu0 0.0
    %4064 = vmatpush1.msra.mxu0 %v4035
    %4065 = vmatprep.subr.mxu0 0.0
    %4066 = vmatpush1.msra.mxu0 %v4036
    %4067 = vmatprep.subr.mxu0 0.0
    %4068 = vmatpush1.msra.mxu0 %v4037
    %4069 = vmatprep.subr.mxu0 0.0
    %4070 = vmatpush1.msra.mxu0 %v4038
    %4071 = vmatprep.subr.mxu0 0.0
    %4072 = vmatpush1.msra.mxu0 %v4039
    %4073 = vmatprep.subr.mxu0 0.0
    %4074 = vmatpush1.msra.mxu0 %v4040
    %4075 = vmatprep.subr.mxu0 0.0
    %4076 = vmatpush1.msra.mxu0 %v4041
    %4077 = vmatprep.subr.mxu0 0.0
    %4078 = vmatpush1.msra.mxu0 %v4042
    %4079 = vmatprep.subr.mxu0 0.0
    %4080 = vmatpush1.msra.mxu0 %v4043
    %4081 = vmatprep.subr.mxu0 0.0
    %4082 = vmatpush1.msra.mxu0 %v4044
    %4083 = vmatprep.subr.mxu0 0.0
    %4084 = vmatpush1.msra.mxu0 %v4045
    %4085 = vmatprep.subr.mxu0 0.0
    %4086 = vmatpush1.msra.mxu0 %v4046
    %4087 = vmatprep.subr.mxu0 0.0
    %4088 = vmatpush1.msra.mxu0 0.0
    %4089 = vmatprep.subr.mxu0 0.0
    %4090 = vmatpush1.msra.mxu0 0.0
    %4091 = vmatprep.subr.mxu0 0.0
    %4092 = vmatpush1.msra.mxu0 0.0
    %4093 = vmatprep.subr.mxu0 0.0
    %4094 = vmatpush1.msra.mxu0 0.0
    %4095 = vmatprep.subr.mxu0 0.0
    %4096 = vmatpush1.msra.mxu0 0.0
    %4097 = vmatprep.subr.mxu0 0.0
    %4098 = vmatpush1.msra.mxu0 0.0
    %4099 = vmatprep.subr.mxu0 0.0
    %4100 = vmatpush1.msra.mxu0 0.0
    %4101 = vmatprep.subr.mxu0 0.0
    %4102 = vmatpush1.msra.mxu0 0.0
    %4103 = vmatprep.subr.mxu0 0.0
    %4104 = vmatpush1.msra.mxu0 0.0
    %4105 = vmatprep.subr.mxu0 0.0
    %4106 = vmatpush1.msra.mxu0 0.0
    %4107 = vmatprep.subr.mxu0 0.0
    %4108 = vmatpush1.msra.mxu0 0.0
    %4109 = vmatprep.subr.mxu0 0.0
    %4110 = vmatpush1.msra.mxu0 0.0
    %4111 = vmatprep.subr.mxu0 0.0
    %4112 = vmatpush1.msra.mxu0 0.0
    %4113 = vmatprep.subr.mxu0 0.0
    %4114 = vmatpush1.msra.mxu0 0.0
    %4115 = vmatprep.subr.mxu0 0.0
    %4116 = vmatpush1.msra.mxu0 0.0
    %4117 = vmatprep.subr.mxu0 0.0
    %4118 = vmatpush1.msra.mxu0 0.0
    %4119 = vmatprep.mubr.f32.mxu0 0.0
    %4120 = vmatmul.mubr.f32.gmra.mrb[0].mxu0 %v4013
    %v4121 = vpop.f32.mrb[0].mxu0
    %v4122 = vadd.f32 %v4053, %v4121
    %v4123 = vpop.f32.mrb[0].mxu0
    %4124 = vdwg.mxu0
    %v4125 = vmax.f32 %v4122, 0.0
    %s4126 = scalar_lea.vmem %s51, 128
    %v4127 = vld [vmem:[%s4126] sm:$0xf]
    %v4128 = vld [vmem:[%s4126 + $0x4] sm:$0xf]
    %v4129 = vld [vmem:[%s4126 + $0x8] sm:$0xf]
    %v4130 = vld [vmem:[%s4126 + $0xc] sm:$0xf]
    %v4131 = vld [vmem:[%s4126 + $0x10] sm:$0xf]
    %v4132 = vld [vmem:[%s4126 + $0x14] sm:$0xf]
    %v4133 = vld [vmem:[%s4126 + $0x18] sm:$0xf]
    %v4134 = vld [vmem:[%s4126 + $0x1c] sm:$0xf]
    %v4135 = vld [vmem:[%s4126 + $0x20] sm:$0xf]
    %v4136 = vld [vmem:[%s4126 + $0x24] sm:$0xf]
    %v4137 = vld [vmem:[%s4126 + $0x28] sm:$0xf]
    %v4138 = vld [vmem:[%s4126 + $0x2c] sm:$0xf]
    %v4139 = vld [vmem:[%s4126 + $0x30] sm:$0xf]
    %v4140 = vld [vmem:[%s4126 + $0x34] sm:$0xf]
    %v4141 = vld [vmem:[%s4126 + $0x38] sm:$0xf]
    %v4142 = vld [vmem:[%s4126 + $0x3c] sm:$0xf]
    %v4143 = vunpack.c.l.bf16 %v4127
    %v4144 = vunpack.c.l.bf16 %v4128
    %v4145 = vunpack.c.l.bf16 %v4129
    %v4146 = vunpack.c.l.bf16 %v4130
    %v4147 = vunpack.c.l.bf16 %v4131
    %v4148 = vunpack.c.l.bf16 %v4132
    %v4149 = vunpack.c.l.bf16 %v4133
    %v4150 = vunpack.c.l.bf16 %v4134
    %v4151 = vunpack.c.l.bf16 %v4135
    %v4152 = vunpack.c.l.bf16 %v4136
    %v4153 = vunpack.c.l.bf16 %v4137
    %v4154 = vunpack.c.l.bf16 %v4138
    %v4155 = vunpack.c.l.bf16 %v4139
    %v4156 = vunpack.c.l.bf16 %v4140
    %v4157 = vunpack.c.l.bf16 %v4141
    %v4158 = vunpack.c.l.bf16 %v4142
    %s4159 = scalar_lea.vmem %s53, 2
    %v4160 = vld [vmem:[%s4159] sm:$0x1]
    %v4162 = vlaneseq
    %v4163 = vshrl.u32 %v4162, 7
    %v4164 = vsub.s32 0, %v4163
    %v4165 = vrot.slane %v4160, %v4164
    %4167 = vmatprep.subr.mxu0 0.0
    %4168 = vmatpush1.msra.mxu0 %v4143
    %4169 = vmatprep.subr.mxu0 0.0
    %4170 = vmatpush1.msra.mxu0 %v4144
    %4171 = vmatprep.subr.mxu0 0.0
    %4172 = vmatpush1.msra.mxu0 %v4145
    %4173 = vmatprep.subr.mxu0 0.0
    %4174 = vmatpush1.msra.mxu0 %v4146
    %4175 = vmatprep.subr.mxu0 0.0
    %4176 = vmatpush1.msra.mxu0 %v4147
    %4177 = vmatprep.subr.mxu0 0.0
    %4178 = vmatpush1.msra.mxu0 %v4148
    %4179 = vmatprep.subr.mxu0 0.0
    %4180 = vmatpush1.msra.mxu0 %v4149
    %4181 = vmatprep.subr.mxu0 0.0
    %4182 = vmatpush1.msra.mxu0 %v4150
    %4183 = vmatprep.subr.mxu0 0.0
    %4184 = vmatpush1.msra.mxu0 %v4151
    %4185 = vmatprep.subr.mxu0 0.0
    %4186 = vmatpush1.msra.mxu0 %v4152
    %4187 = vmatprep.subr.mxu0 0.0
    %4188 = vmatpush1.msra.mxu0 %v4153
    %4189 = vmatprep.subr.mxu0 0.0
    %4190 = vmatpush1.msra.mxu0 %v4154
    %4191 = vmatprep.subr.mxu0 0.0
    %4192 = vmatpush1.msra.mxu0 %v4155
    %4193 = vmatprep.subr.mxu0 0.0
    %4194 = vmatpush1.msra.mxu0 %v4156
    %4195 = vmatprep.subr.mxu0 0.0
    %4196 = vmatpush1.msra.mxu0 %v4157
    %4197 = vmatprep.subr.mxu0 0.0
    %4198 = vmatpush1.msra.mxu0 %v4158
    %4199 = vmatprep.subr.mxu0 0.0
    %4200 = vmatpush1.msra.mxu0 0.0
    %4201 = vmatprep.subr.mxu0 0.0
    %4202 = vmatpush1.msra.mxu0 0.0
    %4203 = vmatprep.subr.mxu0 0.0
    %4204 = vmatpush1.msra.mxu0 0.0
    %4205 = vmatprep.subr.mxu0 0.0
    %4206 = vmatpush1.msra.mxu0 0.0
    %4207 = vmatprep.subr.mxu0 0.0
    %4208 = vmatpush1.msra.mxu0 0.0
    %4209 = vmatprep.subr.mxu0 0.0
    %4210 = vmatpush1.msra.mxu0 0.0
    %4211 = vmatprep.subr.mxu0 0.0
    %4212 = vmatpush1.msra.mxu0 0.0
    %4213 = vmatprep.subr.mxu0 0.0
    %4214 = vmatpush1.msra.mxu0 0.0
    %4215 = vmatprep.subr.mxu0 0.0
    %4216 = vmatpush1.msra.mxu0 0.0
    %4217 = vmatprep.subr.mxu0 0.0
    %4218 = vmatpush1.msra.mxu0 0.0
    %4219 = vmatprep.subr.mxu0 0.0
    %4220 = vmatpush1.msra.mxu0 0.0
    %4221 = vmatprep.subr.mxu0 0.0
    %4222 = vmatpush1.msra.mxu0 0.0
    %4223 = vmatprep.subr.mxu0 0.0
    %4224 = vmatpush1.msra.mxu0 0.0
    %4225 = vmatprep.subr.mxu0 0.0
    %4226 = vmatpush1.msra.mxu0 0.0
    %4227 = vmatprep.subr.mxu0 0.0
    %4228 = vmatpush1.msra.mxu0 0.0
    %4229 = vmatprep.subr.mxu0 0.0
    %4230 = vmatpush1.msra.mxu0 0.0
    %4231 = vmatprep.mubr.f32.mxu0 0.0
    %4232 = vmatmul.mubr.f32.gmra.mrb[0].mxu0 %v4125
    %v4233 = vpop.f32.mrb[0].mxu0
    %v4234 = vadd.f32 %v4165, %v4233
    %v4235 = vpop.f32.mrb[0].mxu0
    %4236 = vdwg.mxu0
    %v4237 = vmax.f32 %v4234, 0.0
    %v4238 = vld [vmem:[%s55] sm:$0xf]
    %v4239 = vld [vmem:[%s55 + $0x4] sm:$0xf]
    %v4240 = vld [vmem:[%s55 + $0x8] sm:$0xf]
    %v4241 = vld [vmem:[%s55 + $0xc] sm:$0xf]
    %v4242 = vld [vmem:[%s55 + $0x10] sm:$0xf]
    %v4243 = vld [vmem:[%s55 + $0x14] sm:$0xf]
    %v4244 = vld [vmem:[%s55 + $0x18] sm:$0xf]
    %v4245 = vld [vmem:[%s55 + $0x1c] sm:$0xf]
    %v4246 = vld [vmem:[%s55 + $0x20] sm:$0xf]
    %v4247 = vld [vmem:[%s55 + $0x24] sm:$0xf]
    %v4248 = vld [vmem:[%s55 + $0x28] sm:$0xf]
    %v4249 = vld [vmem:[%s55 + $0x2c] sm:$0xf]
    %v4250 = vld [vmem:[%s55 + $0x30] sm:$0xf]
    %v4251 = vld [vmem:[%s55 + $0x34] sm:$0xf]
    %v4252 = vld [vmem:[%s55 + $0x38] sm:$0xf]
    %v4253 = vld [vmem:[%s55 + $0x3c] sm:$0xf]
    %v4254 = vunpack.c.l.bf16 %v4238
    %v4255 = vunpack.c.l.bf16 %v4239
    %v4256 = vunpack.c.l.bf16 %v4240
    %v4257 = vunpack.c.l.bf16 %v4241
    %v4258 = vunpack.c.l.bf16 %v4242
    %v4259 = vunpack.c.l.bf16 %v4243
    %v4260 = vunpack.c.l.bf16 %v4244
    %v4261 = vunpack.c.l.bf16 %v4245
    %v4262 = vunpack.c.l.bf16 %v4246
    %v4263 = vunpack.c.l.bf16 %v4247
    %v4264 = vunpack.c.l.bf16 %v4248
    %v4265 = vunpack.c.l.bf16 %v4249
    %v4266 = vunpack.c.l.bf16 %v4250
    %v4267 = vunpack.c.l.bf16 %v4251
    %v4268 = vunpack.c.l.bf16 %v4252
    %v4269 = vunpack.c.l.bf16 %v4253
    %v4270 = vld [vmem:[%s57] sm:$0xf]
    %v4271 = vld [vmem:[%s57 + $0x4] sm:$0xf]
    %v4272 = vld [vmem:[%s57 + $0x8] sm:$0xf]
    %v4273 = vld [vmem:[%s57 + $0xc] sm:$0xf]
    %v4274 = vld [vmem:[%s57 + $0x10] sm:$0xf]
    %v4275 = vld [vmem:[%s57 + $0x14] sm:$0xf]
    %v4276 = vld [vmem:[%s57 + $0x18] sm:$0xf]
    %v4277 = vld [vmem:[%s57 + $0x1c] sm:$0xf]
    %v4278 = vld [vmem:[%s57 + $0x20] sm:$0xf]
    %v4279 = vld [vmem:[%s57 + $0x24] sm:$0xf]
    %v4280 = vld [vmem:[%s57 + $0x28] sm:$0xf]
    %v4281 = vld [vmem:[%s57 + $0x2c] sm:$0xf]
    %v4282 = vld [vmem:[%s57 + $0x30] sm:$0xf]
    %v4283 = vld [vmem:[%s57 + $0x34] sm:$0xf]
    %v4284 = vld [vmem:[%s57 + $0x38] sm:$0xf]
    %v4285 = vld [vmem:[%s57 + $0x3c] sm:$0xf]
    %v4286 = vunpack.c.l.bf16 %v4270
    %v4287 = vunpack.c.l.bf16 %v4271
    %v4288 = vunpack.c.l.bf16 %v4272
    %v4289 = vunpack.c.l.bf16 %v4273
    %v4290 = vunpack.c.l.bf16 %v4274
    %v4291 = vunpack.c.l.bf16 %v4275
    %v4292 = vunpack.c.l.bf16 %v4276
    %v4293 = vunpack.c.l.bf16 %v4277
    %v4294 = vunpack.c.l.bf16 %v4278
    %v4295 = vunpack.c.l.bf16 %v4279
    %v4296 = vunpack.c.l.bf16 %v4280
    %v4297 = vunpack.c.l.bf16 %v4281
    %v4298 = vunpack.c.l.bf16 %v4282
    %v4299 = vunpack.c.l.bf16 %v4283
    %v4300 = vunpack.c.l.bf16 %v4284
    %v4301 = vunpack.c.l.bf16 %v4285
    %4302 = vmatprep.subr.mxu0 0.0
    %4303 = vmatpush1.msra.mxu0 %v4286
    %4304 = vmatprep.subr.mxu0 0.0
    %4305 = vmatpush1.msra.mxu0 %v4287
    %4306 = vmatprep.subr.mxu0 0.0
    %4307 = vmatpush1.msra.mxu0 %v4288
    %4308 = vmatprep.subr.mxu0 0.0
    %4309 = vmatpush1.msra.mxu0 %v4289
    %4310 = vmatprep.subr.mxu0 0.0
    %4311 = vmatpush1.msra.mxu0 %v4290
    %4312 = vmatprep.subr.mxu0 0.0
    %4313 = vmatpush1.msra.mxu0 %v4291
    %4314 = vmatprep.subr.mxu0 0.0
    %4315 = vmatpush1.msra.mxu0 %v4292
    %4316 = vmatprep.subr.mxu0 0.0
    %4317 = vmatpush1.msra.mxu0 %v4293
    %4318 = vmatprep.subr.mxu0 0.0
    %4319 = vmatpush1.msra.mxu0 %v4294
    %4320 = vmatprep.subr.mxu0 0.0
    %4321 = vmatpush1.msra.mxu0 %v4295
    %4322 = vmatprep.subr.mxu0 0.0
    %4323 = vmatpush1.msra.mxu0 %v4296
    %4324 = vmatprep.subr.mxu0 0.0
    %4325 = vmatpush1.msra.mxu0 %v4297
    %4326 = vmatprep.subr.mxu0 0.0
    %4327 = vmatpush1.msra.mxu0 %v4298
    %4328 = vmatprep.subr.mxu0 0.0
    %4329 = vmatpush1.msra.mxu0 %v4299
    %4330 = vmatprep.subr.mxu0 0.0
    %4331 = vmatpush1.msra.mxu0 %v4300
    %4332 = vmatprep.subr.mxu0 0.0
    %4333 = vmatpush1.msra.mxu0 %v4301
    %4334 = vmatprep.subr.mxu0 0.0
    %4335 = vmatpush1.msra.mxu0 0.0
    %4336 = vmatprep.subr.mxu0 0.0
    %4337 = vmatpush1.msra.mxu0 0.0
    %4338 = vmatprep.subr.mxu0 0.0
    %4339 = vmatpush1.msra.mxu0 0.0
    %4340 = vmatprep.subr.mxu0 0.0
    %4341 = vmatpush1.msra.mxu0 0.0
    %4342 = vmatprep.subr.mxu0 0.0
    %4343 = vmatpush1.msra.mxu0 0.0
    %4344 = vmatprep.subr.mxu0 0.0
    %4345 = vmatpush1.msra.mxu0 0.0
    %4346 = vmatprep.subr.mxu0 0.0
    %4347 = vmatpush1.msra.mxu0 0.0
    %4348 = vmatprep.subr.mxu0 0.0
    %4349 = vmatpush1.msra.mxu0 0.0
    %4350 = vmatprep.subr.mxu0 0.0
    %4351 = vmatpush1.msra.mxu0 0.0
    %4352 = vmatprep.subr.mxu0 0.0
    %4353 = vmatpush1.msra.mxu0 0.0
    %4354 = vmatprep.subr.mxu0 0.0
    %4355 = vmatpush1.msra.mxu0 0.0
    %4356 = vmatprep.subr.mxu0 0.0
    %4357 = vmatpush1.msra.mxu0 0.0
    %4358 = vmatprep.subr.mxu0 0.0
    %4359 = vmatpush1.msra.mxu0 0.0
    %4360 = vmatprep.subr.mxu0 0.0
    %4361 = vmatpush1.msra.mxu0 0.0
    %4362 = vmatprep.subr.mxu0 0.0
    %4363 = vmatpush1.msra.mxu0 0.0
    %4364 = vmatprep.subr.mxu0 0.0
    %4365 = vmatpush1.msra.mxu0 0.0
    %4366 = vmatprep.mubr.f32.mxu0 0.0
    %4367 = vmatmul.mubr.f32.gmra.mrb[0].mxu0 %v4237
    %v4368 = vpop.f32.mrb[0].mxu0
    %v4369 = vadd.f32 0.0, %v4368
    %v4370 = vpop.f32.mrb[0].mxu0
    %4371 = vdwg.mxu0
    %4372 = vmatprep.subr.mxu0 0.0
    %4373 = vmatpush1.msra.mxu0 %v4254
    %4374 = vmatprep.subr.mxu0 0.0
    %4375 = vmatpush1.msra.mxu0 %v4255
    %4376 = vmatprep.subr.mxu0 0.0
    %4377 = vmatpush1.msra.mxu0 %v4256
    %4378 = vmatprep.subr.mxu0 0.0
    %4379 = vmatpush1.msra.mxu0 %v4257
    %4380 = vmatprep.subr.mxu0 0.0
    %4381 = vmatpush1.msra.mxu0 %v4258
    %4382 = vmatprep.subr.mxu0 0.0
    %4383 = vmatpush1.msra.mxu0 %v4259
    %4384 = vmatprep.subr.mxu0 0.0
    %4385 = vmatpush1.msra.mxu0 %v4260
    %4386 = vmatprep.subr.mxu0 0.0
    %4387 = vmatpush1.msra.mxu0 %v4261
    %4388 = vmatprep.subr.mxu0 0.0
    %4389 = vmatpush1.msra.mxu0 %v4262
    %4390 = vmatprep.subr.mxu0 0.0
    %4391 = vmatpush1.msra.mxu0 %v4263
    %4392 = vmatprep.subr.mxu0 0.0
    %4393 = vmatpush1.msra.mxu0 %v4264
    %4394 = vmatprep.subr.mxu0 0.0
    %4395 = vmatpush1.msra.mxu0 %v4265
    %4396 = vmatprep.subr.mxu0 0.0
    %4397 = vmatpush1.msra.mxu0 %v4266
    %4398 = vmatprep.subr.mxu0 0.0
    %4399 = vmatpush1.msra.mxu0 %v4267
    %4400 = vmatprep.subr.mxu0 0.0
    %4401 = vmatpush1.msra.mxu0 %v4268
    %4402 = vmatprep.subr.mxu0 0.0
    %4403 = vmatpush1.msra.mxu0 %v4269
    %4404 = vmatprep.subr.mxu0 0.0
    %4405 = vmatpush1.msra.mxu0 0.0
    %4406 = vmatprep.subr.mxu0 0.0
    %4407 = vmatpush1.msra.mxu0 0.0
    %4408 = vmatprep.subr.mxu0 0.0
    %4409 = vmatpush1.msra.mxu0 0.0
    %4410 = vmatprep.subr.mxu0 0.0
    %4411 = vmatpush1.msra.mxu0 0.0
    %4412 = vmatprep.subr.mxu0 0.0
    %4413 = vmatpush1.msra.mxu0 0.0
    %4414 = vmatprep.subr.mxu0 0.0
    %4415 = vmatpush1.msra.mxu0 0.0
    %4416 = vmatprep.subr.mxu0 0.0
    %4417 = vmatpush1.msra.mxu0 0.0
    %4418 = vmatprep.subr.mxu0 0.0
    %4419 = vmatpush1.msra.mxu0 0.0
    %4420 = vmatprep.subr.mxu0 0.0
    %4421 = vmatpush1.msra.mxu0 0.0
    %4422 = vmatprep.subr.mxu0 0.0
    %4423 = vmatpush1.msra.mxu0 0.0
    %4424 = vmatprep.subr.mxu0 0.0
    %4425 = vmatpush1.msra.mxu0 0.0
    %4426 = vmatprep.subr.mxu0 0.0
    %4427 = vmatpush1.msra.mxu0 0.0
    %4428 = vmatprep.subr.mxu0 0.0
    %4429 = vmatpush1.msra.mxu0 0.0
    %4430 = vmatprep.subr.mxu0 0.0
    %4431 = vmatpush1.msra.mxu0 0.0
    %4432 = vmatprep.subr.mxu0 0.0
    %4433 = vmatpush1.msra.mxu0 0.0
    %4434 = vmatprep.subr.mxu0 0.0
    %4435 = vmatpush1.msra.mxu0 0.0
    %4436 = vmatprep.mubr.f32.mxu0 0.0
    %4437 = vmatmul.mubr.f32.gmra.mrb[0].mxu0 %v4125
    %v4438 = vpop.f32.mrb[0].mxu0
    %v4439 = vadd.f32 %v4369, %v4438
    %v4440 = vpop.f32.mrb[0].mxu0
    %4441 = vdwg.mxu0
    %v4442 = vld [vmem:[%s59] sm:$0x1]
    %v4444 = vlaneseq
    %v4445 = vshrl.u32 %v4444, 7
    %v4446 = vsub.s32 0, %v4445
    %v4447 = vrot.slane %v4442, %v4446
    %v4449 = vadd.f32 %v4439, %v4447
    %v4450 = vmax.f32 %v4449, 0.0
    %s4451 = scalar_lea.vmem %s51, 192
    %v4452 = vld [vmem:[%s4451] sm:$0xf]
    %v4453 = vld [vmem:[%s4451 + $0x4] sm:$0xf]
    %v4454 = vld [vmem:[%s4451 + $0x8] sm:$0xf]
    %v4455 = vld [vmem:[%s4451 + $0xc] sm:$0xf]
    %v4456 = vld [vmem:[%s4451 + $0x10] sm:$0xf]
    %v4457 = vld [vmem:[%s4451 + $0x14] sm:$0xf]
    %v4458 = vld [vmem:[%s4451 + $0x18] sm:$0xf]
    %v4459 = vld [vmem:[%s4451 + $0x1c] sm:$0xf]
    %v4460 = vld [vmem:[%s4451 + $0x20] sm:$0xf]
    %v4461 = vld [vmem:[%s4451 + $0x24] sm:$0xf]
    %v4462 = vld [vmem:[%s4451 + $0x28] sm:$0xf]
    %v4463 = vld [vmem:[%s4451 + $0x2c] sm:$0xf]
    %v4464 = vld [vmem:[%s4451 + $0x30] sm:$0xf]
    %v4465 = vld [vmem:[%s4451 + $0x34] sm:$0xf]
    %v4466 = vld [vmem:[%s4451 + $0x38] sm:$0xf]
    %v4467 = vld [vmem:[%s4451 + $0x3c] sm:$0xf]
    %v4468 = vunpack.c.l.bf16 %v4452
    %v4469 = vunpack.c.l.bf16 %v4453
    %v4470 = vunpack.c.l.bf16 %v4454
    %v4471 = vunpack.c.l.bf16 %v4455
    %v4472 = vunpack.c.l.bf16 %v4456
    %v4473 = vunpack.c.l.bf16 %v4457
    %v4474 = vunpack.c.l.bf16 %v4458
    %v4475 = vunpack.c.l.bf16 %v4459
    %v4476 = vunpack.c.l.bf16 %v4460
    %v4477 = vunpack.c.l.bf16 %v4461
    %v4478 = vunpack.c.l.bf16 %v4462
    %v4479 = vunpack.c.l.bf16 %v4463
    %v4480 = vunpack.c.l.bf16 %v4464
    %v4481 = vunpack.c.l.bf16 %v4465
    %v4482 = vunpack.c.l.bf16 %v4466
    %v4483 = vunpack.c.l.bf16 %v4467
    %s4484 = scalar_lea.vmem %s53, 3
    %v4485 = vld [vmem:[%s4484] sm:$0x1]
    %v4487 = vlaneseq
    %v4488 = vshrl.u32 %v4487, 7
    %v4489 = vsub.s32 0, %v4488
    %v4490 = vrot.slane %v4485, %v4489
    %4492 = vmatprep.subr.mxu0 0.0
    %4493 = vmatpush1.msra.mxu0 %v4468
    %4494 = vmatprep.subr.mxu0 0.0
    %4495 = vmatpush1.msra.mxu0 %v4469
    %4496 = vmatprep.subr.mxu0 0.0
    %4497 = vmatpush1.msra.mxu0 %v4470
    %4498 = vmatprep.subr.mxu0 0.0
    %4499 = vmatpush1.msra.mxu0 %v4471
    %4500 = vmatprep.subr.mxu0 0.0
    %4501 = vmatpush1.msra.mxu0 %v4472
    %4502 = vmatprep.subr.mxu0 0.0
    %4503 = vmatpush1.msra.mxu0 %v4473
    %4504 = vmatprep.subr.mxu0 0.0
    %4505 = vmatpush1.msra.mxu0 %v4474
    %4506 = vmatprep.subr.mxu0 0.0
    %4507 = vmatpush1.msra.mxu0 %v4475
    %4508 = vmatprep.subr.mxu0 0.0
    %4509 = vmatpush1.msra.mxu0 %v4476
    %4510 = vmatprep.subr.mxu0 0.0
    %4511 = vmatpush1.msra.mxu0 %v4477
    %4512 = vmatprep.subr.mxu0 0.0
    %4513 = vmatpush1.msra.mxu0 %v4478
    %4514 = vmatprep.subr.mxu0 0.0
    %4515 = vmatpush1.msra.mxu0 %v4479
    %4516 = vmatprep.subr.mxu0 0.0
    %4517 = vmatpush1.msra.mxu0 %v4480
    %4518 = vmatprep.subr.mxu0 0.0
    %4519 = vmatpush1.msra.mxu0 %v4481
    %4520 = vmatprep.subr.mxu0 0.0
    %4521 = vmatpush1.msra.mxu0 %v4482
    %4522 = vmatprep.subr.mxu0 0.0
    %4523 = vmatpush1.msra.mxu0 %v4483
    %4524 = vmatprep.subr.mxu0 0.0
    %4525 = vmatpush1.msra.mxu0 0.0
    %4526 = vmatprep.subr.mxu0 0.0
    %4527 = vmatpush1.msra.mxu0 0.0
    %4528 = vmatprep.subr.mxu0 0.0
    %4529 = vmatpush1.msra.mxu0 0.0
    %4530 = vmatprep.subr.mxu0 0.0
    %4531 = vmatpush1.msra.mxu0 0.0
    %4532 = vmatprep.subr.mxu0 0.0
    %4533 = vmatpush1.msra.mxu0 0.0
    %4534 = vmatprep.subr.mxu0 0.0
    %4535 = vmatpush1.msra.mxu0 0.0
    %4536 = vmatprep.subr.mxu0 0.0
    %4537 = vmatpush1.msra.mxu0 0.0
    %4538 = vmatprep.subr.mxu0 0.0
    %4539 = vmatpush1.msra.mxu0 0.0
    %4540 = vmatprep.subr.mxu0 0.0
    %4541 = vmatpush1.msra.mxu0 0.0
    %4542 = vmatprep.subr.mxu0 0.0
    %4543 = vmatpush1.msra.mxu0 0.0
    %4544 = vmatprep.subr.mxu0 0.0
    %4545 = vmatpush1.msra.mxu0 0.0
    %4546 = vmatprep.subr.mxu0 0.0
    %4547 = vmatpush1.msra.mxu0 0.0
    %4548 = vmatprep.subr.mxu0 0.0
    %4549 = vmatpush1.msra.mxu0 0.0
    %4550 = vmatprep.subr.mxu0 0.0
    %4551 = vmatpush1.msra.mxu0 0.0
    %4552 = vmatprep.subr.mxu0 0.0
    %4553 = vmatpush1.msra.mxu0 0.0
    %4554 = vmatprep.subr.mxu0 0.0
    %4555 = vmatpush1.msra.mxu0 0.0
    %4556 = vmatprep.mubr.f32.mxu0 0.0
    %4557 = vmatmul.mubr.f32.gmra.mrb[0].mxu0 %v4450
    %v4558 = vpop.f32.mrb[0].mxu0
    %v4559 = vadd.f32 %v4490, %v4558
    %v4560 = vpop.f32.mrb[0].mxu0
    %4561 = vdwg.mxu0
    %v4562 = vmax.f32 %v4559, 0.0
    %s4563 = scalar_lea.vmem %s55, 64
    %v4564 = vld [vmem:[%s4563] sm:$0xf]
    %v4565 = vld [vmem:[%s4563 + $0x4] sm:$0xf]
    %v4566 = vld [vmem:[%s4563 + $0x8] sm:$0xf]
    %v4567 = vld [vmem:[%s4563 + $0xc] sm:$0xf]
    %v4568 = vld [vmem:[%s4563 + $0x10] sm:$0xf]
    %v4569 = vld [vmem:[%s4563 + $0x14] sm:$0xf]
    %v4570 = vld [vmem:[%s4563 + $0x18] sm:$0xf]
    %v4571 = vld [vmem:[%s4563 + $0x1c] sm:$0xf]
    %v4572 = vld [vmem:[%s4563 + $0x20] sm:$0xf]
    %v4573 = vld [vmem:[%s4563 + $0x24] sm:$0xf]
    %v4574 = vld [vmem:[%s4563 + $0x28] sm:$0xf]
    %v4575 = vld [vmem:[%s4563 + $0x2c] sm:$0xf]
    %v4576 = vld [vmem:[%s4563 + $0x30] sm:$0xf]
    %v4577 = vld [vmem:[%s4563 + $0x34] sm:$0xf]
    %v4578 = vld [vmem:[%s4563 + $0x38] sm:$0xf]
    %v4579 = vld [vmem:[%s4563 + $0x3c] sm:$0xf]
    %v4580 = vunpack.c.l.bf16 %v4564
    %v4581 = vunpack.c.l.bf16 %v4565
    %v4582 = vunpack.c.l.bf16 %v4566
    %v4583 = vunpack.c.l.bf16 %v4567
    %v4584 = vunpack.c.l.bf16 %v4568
    %v4585 = vunpack.c.l.bf16 %v4569
    %v4586 = vunpack.c.l.bf16 %v4570
    %v4587 = vunpack.c.l.bf16 %v4571
    %v4588 = vunpack.c.l.bf16 %v4572
    %v4589 = vunpack.c.l.bf16 %v4573
    %v4590 = vunpack.c.l.bf16 %v4574
    %v4591 = vunpack.c.l.bf16 %v4575
    %v4592 = vunpack.c.l.bf16 %v4576
    %v4593 = vunpack.c.l.bf16 %v4577
    %v4594 = vunpack.c.l.bf16 %v4578
    %v4595 = vunpack.c.l.bf16 %v4579
    %s4596 = scalar_lea.vmem %s57, 64
    %v4597 = vld [vmem:[%s4596] sm:$0xf]
    %v4598 = vld [vmem:[%s4596 + $0x4] sm:$0xf]
    %v4599 = vld [vmem:[%s4596 + $0x8] sm:$0xf]
    %v4600 = vld [vmem:[%s4596 + $0xc] sm:$0xf]
    %v4601 = vld [vmem:[%s4596 + $0x10] sm:$0xf]
    %v4602 = vld [vmem:[%s4596 + $0x14] sm:$0xf]
    %v4603 = vld [vmem:[%s4596 + $0x18] sm:$0xf]
    %v4604 = vld [vmem:[%s4596 + $0x1c] sm:$0xf]
    %v4605 = vld [vmem:[%s4596 + $0x20] sm:$0xf]
    %v4606 = vld [vmem:[%s4596 + $0x24] sm:$0xf]
    %v4607 = vld [vmem:[%s4596 + $0x28] sm:$0xf]
    %v4608 = vld [vmem:[%s4596 + $0x2c] sm:$0xf]
    %v4609 = vld [vmem:[%s4596 + $0x30] sm:$0xf]
    %v4610 = vld [vmem:[%s4596 + $0x34] sm:$0xf]
    %v4611 = vld [vmem:[%s4596 + $0x38] sm:$0xf]
    %v4612 = vld [vmem:[%s4596 + $0x3c] sm:$0xf]
    %v4613 = vunpack.c.l.bf16 %v4597
    %v4614 = vunpack.c.l.bf16 %v4598
    %v4615 = vunpack.c.l.bf16 %v4599
    %v4616 = vunpack.c.l.bf16 %v4600
    %v4617 = vunpack.c.l.bf16 %v4601
    %v4618 = vunpack.c.l.bf16 %v4602
    %v4619 = vunpack.c.l.bf16 %v4603
    %v4620 = vunpack.c.l.bf16 %v4604
    %v4621 = vunpack.c.l.bf16 %v4605
    %v4622 = vunpack.c.l.bf16 %v4606
    %v4623 = vunpack.c.l.bf16 %v4607
    %v4624 = vunpack.c.l.bf16 %v4608
    %v4625 = vunpack.c.l.bf16 %v4609
    %v4626 = vunpack.c.l.bf16 %v4610
    %v4627 = vunpack.c.l.bf16 %v4611
    %v4628 = vunpack.c.l.bf16 %v4612
    %4629 = vmatprep.subr.mxu0 0.0
    %4630 = vmatpush1.msra.mxu0 %v4613
    %4631 = vmatprep.subr.mxu0 0.0
    %4632 = vmatpush1.msra.mxu0 %v4614
    %4633 = vmatprep.subr.mxu0 0.0
    %4634 = vmatpush1.msra.mxu0 %v4615
    %4635 = vmatprep.subr.mxu0 0.0
    %4636 = vmatpush1.msra.mxu0 %v4616
    %4637 = vmatprep.subr.mxu0 0.0
    %4638 = vmatpush1.msra.mxu0 %v4617
    %4639 = vmatprep.subr.mxu0 0.0
    %4640 = vmatpush1.msra.mxu0 %v4618
    %4641 = vmatprep.subr.mxu0 0.0
    %4642 = vmatpush1.msra.mxu0 %v4619
    %4643 = vmatprep.subr.mxu0 0.0
    %4644 = vmatpush1.msra.mxu0 %v4620
    %4645 = vmatprep.subr.mxu0 0.0
    %4646 = vmatpush1.msra.mxu0 %v4621
    %4647 = vmatprep.subr.mxu0 0.0
    %4648 = vmatpush1.msra.mxu0 %v4622
    %4649 = vmatprep.subr.mxu0 0.0
    %4650 = vmatpush1.msra.mxu0 %v4623
    %4651 = vmatprep.subr.mxu0 0.0
    %4652 = vmatpush1.msra.mxu0 %v4624
    %4653 = vmatprep.subr.mxu0 0.0
    %4654 = vmatpush1.msra.mxu0 %v4625
    %4655 = vmatprep.subr.mxu0 0.0
    %4656 = vmatpush1.msra.mxu0 %v4626
    %4657 = vmatprep.subr.mxu0 0.0
    %4658 = vmatpush1.msra.mxu0 %v4627
    %4659 = vmatprep.subr.mxu0 0.0
    %4660 = vmatpush1.msra.mxu0 %v4628
    %4661 = vmatprep.subr.mxu0 0.0
    %4662 = vmatpush1.msra.mxu0 0.0
    %4663 = vmatprep.subr.mxu0 0.0
    %4664 = vmatpush1.msra.mxu0 0.0
    %4665 = vmatprep.subr.mxu0 0.0
    %4666 = vmatpush1.msra.mxu0 0.0
    %4667 = vmatprep.subr.mxu0 0.0
    %4668 = vmatpush1.msra.mxu0 0.0
    %4669 = vmatprep.subr.mxu0 0.0
    %4670 = vmatpush1.msra.mxu0 0.0
    %4671 = vmatprep.subr.mxu0 0.0
    %4672 = vmatpush1.msra.mxu0 0.0
    %4673 = vmatprep.subr.mxu0 0.0
    %4674 = vmatpush1.msra.mxu0 0.0
    %4675 = vmatprep.subr.mxu0 0.0
    %4676 = vmatpush1.msra.mxu0 0.0
    %4677 = vmatprep.subr.mxu0 0.0
    %4678 = vmatpush1.msra.mxu0 0.0
    %4679 = vmatprep.subr.mxu0 0.0
    %4680 = vmatpush1.msra.mxu0 0.0
    %4681 = vmatprep.subr.mxu0 0.0
    %4682 = vmatpush1.msra.mxu0 0.0
    %4683 = vmatprep.subr.mxu0 0.0
    %4684 = vmatpush1.msra.mxu0 0.0
    %4685 = vmatprep.subr.mxu0 0.0
    %4686 = vmatpush1.msra.mxu0 0.0
    %4687 = vmatprep.subr.mxu0 0.0
    %4688 = vmatpush1.msra.mxu0 0.0
    %4689 = vmatprep.subr.mxu0 0.0
    %4690 = vmatpush1.msra.mxu0 0.0
    %4691 = vmatprep.subr.mxu0 0.0
    %4692 = vmatpush1.msra.mxu0 0.0
    %4693 = vmatprep.mubr.f32.mxu0 0.0
    %4694 = vmatmul.mubr.f32.gmra.mrb[0].mxu0 %v4562
    %v4695 = vpop.f32.mrb[0].mxu0
    %v4696 = vadd.f32 0.0, %v4695
    %v4697 = vpop.f32.mrb[0].mxu0
    %4698 = vdwg.mxu0
    %4699 = vmatprep.subr.mxu0 0.0
    %4700 = vmatpush1.msra.mxu0 %v4580
    %4701 = vmatprep.subr.mxu0 0.0
    %4702 = vmatpush1.msra.mxu0 %v4581
    %4703 = vmatprep.subr.mxu0 0.0
    %4704 = vmatpush1.msra.mxu0 %v4582
    %4705 = vmatprep.subr.mxu0 0.0
    %4706 = vmatpush1.msra.mxu0 %v4583
    %4707 = vmatprep.subr.mxu0 0.0
    %4708 = vmatpush1.msra.mxu0 %v4584
    %4709 = vmatprep.subr.mxu0 0.0
    %4710 = vmatpush1.msra.mxu0 %v4585
    %4711 = vmatprep.subr.mxu0 0.0
    %4712 = vmatpush1.msra.mxu0 %v4586
    %4713 = vmatprep.subr.mxu0 0.0
    %4714 = vmatpush1.msra.mxu0 %v4587
    %4715 = vmatprep.subr.mxu0 0.0
    %4716 = vmatpush1.msra.mxu0 %v4588
    %4717 = vmatprep.subr.mxu0 0.0
    %4718 = vmatpush1.msra.mxu0 %v4589
    %4719 = vmatprep.subr.mxu0 0.0
    %4720 = vmatpush1.msra.mxu0 %v4590
    %4721 = vmatprep.subr.mxu0 0.0
    %4722 = vmatpush1.msra.mxu0 %v4591
    %4723 = vmatprep.subr.mxu0 0.0
    %4724 = vmatpush1.msra.mxu0 %v4592
    %4725 = vmatprep.subr.mxu0 0.0
    %4726 = vmatpush1.msra.mxu0 %v4593
    %4727 = vmatprep.subr.mxu0 0.0
    %4728 = vmatpush1.msra.mxu0 %v4594
    %4729 = vmatprep.subr.mxu0 0.0
    %4730 = vmatpush1.msra.mxu0 %v4595
    %4731 = vmatprep.subr.mxu0 0.0
    %4732 = vmatpush1.msra.mxu0 0.0
    %4733 = vmatprep.subr.mxu0 0.0
    %4734 = vmatpush1.msra.mxu0 0.0
    %4735 = vmatprep.subr.mxu0 0.0
    %4736 = vmatpush1.msra.mxu0 0.0
    %4737 = vmatprep.subr.mxu0 0.0
    %4738 = vmatpush1.msra.mxu0 0.0
    %4739 = vmatprep.subr.mxu0 0.0
    %4740 = vmatpush1.msra.mxu0 0.0
    %4741 = vmatprep.subr.mxu0 0.0
    %4742 = vmatpush1.msra.mxu0 0.0
    %4743 = vmatprep.subr.mxu0 0.0
    %4744 = vmatpush1.msra.mxu0 0.0
    %4745 = vmatprep.subr.mxu0 0.0
    %4746 = vmatpush1.msra.mxu0 0.0
    %4747 = vmatprep.subr.mxu0 0.0
    %4748 = vmatpush1.msra.mxu0 0.0
    %4749 = vmatprep.subr.mxu0 0.0
    %4750 = vmatpush1.msra.mxu0 0.0
    %4751 = vmatprep.subr.mxu0 0.0
    %4752 = vmatpush1.msra.mxu0 0.0
    %4753 = vmatprep.subr.mxu0 0.0
    %4754 = vmatpush1.msra.mxu0 0.0
    %4755 = vmatprep.subr.mxu0 0.0
    %4756 = vmatpush1.msra.mxu0 0.0
    %4757 = vmatprep.subr.mxu0 0.0
    %4758 = vmatpush1.msra.mxu0 0.0
    %4759 = vmatprep.subr.mxu0 0.0
    %4760 = vmatpush1.msra.mxu0 0.0
    %4761 = vmatprep.subr.mxu0 0.0
    %4762 = vmatpush1.msra.mxu0 0.0
    %4763 = vmatprep.mubr.f32.mxu0 0.0
    %4764 = vmatmul.mubr.f32.gmra.mrb[0].mxu0 %v4013
    %v4765 = vpop.f32.mrb[0].mxu0
    %v4766 = vadd.f32 %v4696, %v4765
    %v4767 = vpop.f32.mrb[0].mxu0
    %4768 = vdwg.mxu0
    %s4769 = scalar_lea.vmem %s59, 1
    %v4770 = vld [vmem:[%s4769] sm:$0x1]
    %v4772 = vlaneseq
    %v4773 = vshrl.u32 %v4772, 7
    %v4774 = vsub.s32 0, %v4773
    %v4775 = vrot.slane %v4770, %v4774
    %v4777 = vadd.f32 %v4766, %v4775
    %v4778 = vmax.f32 %v4777, 0.0
    %s4779 = scalar_lea.vmem %s51, 256
    %v4780 = vld [vmem:[%s4779] sm:$0xf]
    %v4781 = vld [vmem:[%s4779 + $0x4] sm:$0xf]
    %v4782 = vld [vmem:[%s4779 + $0x8] sm:$0xf]
    %v4783 = vld [vmem:[%s4779 + $0xc] sm:$0xf]
    %v4784 = vld [vmem:[%s4779 + $0x10] sm:$0xf]
    %v4785 = vld [vmem:[%s4779 + $0x14] sm:$0xf]
    %v4786 = vld [vmem:[%s4779 + $0x18] sm:$0xf]
    %v4787 = vld [vmem:[%s4779 + $0x1c] sm:$0xf]
    %v4788 = vld [vmem:[%s4779 + $0x20] sm:$0xf]
    %v4789 = vld [vmem:[%s4779 + $0x24] sm:$0xf]
    %v4790 = vld [vmem:[%s4779 + $0x28] sm:$0xf]
    %v4791 = vld [vmem:[%s4779 + $0x2c] sm:$0xf]
    %v4792 = vld [vmem:[%s4779 + $0x30] sm:$0xf]
    %v4793 = vld [vmem:[%s4779 + $0x34] sm:$0xf]
    %v4794 = vld [vmem:[%s4779 + $0x38] sm:$0xf]
    %v4795 = vld [vmem:[%s4779 + $0x3c] sm:$0xf]
    %v4796 = vunpack.c.l.bf16 %v4780
    %v4797 = vunpack.c.l.bf16 %v4781
    %v4798 = vunpack.c.l.bf16 %v4782
    %v4799 = vunpack.c.l.bf16 %v4783
    %v4800 = vunpack.c.l.bf16 %v4784
    %v4801 = vunpack.c.l.bf16 %v4785
    %v4802 = vunpack.c.l.bf16 %v4786
    %v4803 = vunpack.c.l.bf16 %v4787
    %v4804 = vunpack.c.l.bf16 %v4788
    %v4805 = vunpack.c.l.bf16 %v4789
    %v4806 = vunpack.c.l.bf16 %v4790
    %v4807 = vunpack.c.l.bf16 %v4791
    %v4808 = vunpack.c.l.bf16 %v4792
    %v4809 = vunpack.c.l.bf16 %v4793
    %v4810 = vunpack.c.l.bf16 %v4794
    %v4811 = vunpack.c.l.bf16 %v4795
    %s4812 = scalar_lea.vmem %s53, 4
    %v4813 = vld [vmem:[%s4812] sm:$0x1]
    %v4815 = vlaneseq
    %v4816 = vshrl.u32 %v4815, 7
    %v4817 = vsub.s32 0, %v4816
    %v4818 = vrot.slane %v4813, %v4817
    %4820 = vmatprep.subr.mxu0 0.0
    %4821 = vmatpush1.msra.mxu0 %v4796
    %4822 = vmatprep.subr.mxu0 0.0
    %4823 = vmatpush1.msra.mxu0 %v4797
    %4824 = vmatprep.subr.mxu0 0.0
    %4825 = vmatpush1.msra.mxu0 %v4798
    %4826 = vmatprep.subr.mxu0 0.0
    %4827 = vmatpush1.msra.mxu0 %v4799
    %4828 = vmatprep.subr.mxu0 0.0
    %4829 = vmatpush1.msra.mxu0 %v4800
    %4830 = vmatprep.subr.mxu0 0.0
    %4831 = vmatpush1.msra.mxu0 %v4801
    %4832 = vmatprep.subr.mxu0 0.0
    %4833 = vmatpush1.msra.mxu0 %v4802
    %4834 = vmatprep.subr.mxu0 0.0
    %4835 = vmatpush1.msra.mxu0 %v4803
    %4836 = vmatprep.subr.mxu0 0.0
    %4837 = vmatpush1.msra.mxu0 %v4804
    %4838 = vmatprep.subr.mxu0 0.0
    %4839 = vmatpush1.msra.mxu0 %v4805
    %4840 = vmatprep.subr.mxu0 0.0
    %4841 = vmatpush1.msra.mxu0 %v4806
    %4842 = vmatprep.subr.mxu0 0.0
    %4843 = vmatpush1.msra.mxu0 %v4807
    %4844 = vmatprep.subr.mxu0 0.0
    %4845 = vmatpush1.msra.mxu0 %v4808
    %4846 = vmatprep.subr.mxu0 0.0
    %4847 = vmatpush1.msra.mxu0 %v4809
    %4848 = vmatprep.subr.mxu0 0.0
    %4849 = vmatpush1.msra.mxu0 %v4810
    %4850 = vmatprep.subr.mxu0 0.0
    %4851 = vmatpush1.msra.mxu0 %v4811
    %4852 = vmatprep.subr.mxu0 0.0
    %4853 = vmatpush1.msra.mxu0 0.0
    %4854 = vmatprep.subr.mxu0 0.0
    %4855 = vmatpush1.msra.mxu0 0.0
    %4856 = vmatprep.subr.mxu0 0.0
    %4857 = vmatpush1.msra.mxu0 0.0
    %4858 = vmatprep.subr.mxu0 0.0
    %4859 = vmatpush1.msra.mxu0 0.0
    %4860 = vmatprep.subr.mxu0 0.0
    %4861 = vmatpush1.msra.mxu0 0.0
    %4862 = vmatprep.subr.mxu0 0.0
    %4863 = vmatpush1.msra.mxu0 0.0
    %4864 = vmatprep.subr.mxu0 0.0
    %4865 = vmatpush1.msra.mxu0 0.0
    %4866 = vmatprep.subr.mxu0 0.0
    %4867 = vmatpush1.msra.mxu0 0.0
    %4868 = vmatprep.subr.mxu0 0.0
    %4869 = vmatpush1.msra.mxu0 0.0
    %4870 = vmatprep.subr.mxu0 0.0
    %4871 = vmatpush1.msra.mxu0 0.0
    %4872 = vmatprep.subr.mxu0 0.0
    %4873 = vmatpush1.msra.mxu0 0.0
    %4874 = vmatprep.subr.mxu0 0.0
    %4875 = vmatpush1.msra.mxu0 0.0
    %4876 = vmatprep.subr.mxu0 0.0
    %4877 = vmatpush1.msra.mxu0 0.0
    %4878 = vmatprep.subr.mxu0 0.0
    %4879 = vmatpush1.msra.mxu0 0.0
    %4880 = vmatprep.subr.mxu0 0.0
    %4881 = vmatpush1.msra.mxu0 0.0
    %4882 = vmatprep.subr.mxu0 0.0
    %4883 = vmatpush1.msra.mxu0 0.0
    %4884 = vmatprep.mubr.f32.mxu0 0.0
    %4885 = vmatmul.mubr.f32.gmra.mrb[0].mxu0 %v4778
    %v4886 = vpop.f32.mrb[0].mxu0
    %v4887 = vadd.f32 %v4818, %v4886
    %v4888 = vpop.f32.mrb[0].mxu0
    %4889 = vdwg.mxu0
    %v4890 = vmax.f32 %v4887, 0.0
    %s4891 = scalar_lea.vmem %s55, 128
    %v4892 = vld [vmem:[%s4891] sm:$0xf]
    %v4893 = vld [vmem:[%s4891 + $0x4] sm:$0xf]
    %v4894 = vld [vmem:[%s4891 + $0x8] sm:$0xf]
    %v4895 = vld [vmem:[%s4891 + $0xc] sm:$0xf]
    %v4896 = vld [vmem:[%s4891 + $0x10] sm:$0xf]
    %v4897 = vld [vmem:[%s4891 + $0x14] sm:$0xf]
    %v4898 = vld [vmem:[%s4891 + $0x18] sm:$0xf]
    %v4899 = vld [vmem:[%s4891 + $0x1c] sm:$0xf]
    %v4900 = vld [vmem:[%s4891 + $0x20] sm:$0xf]
    %v4901 = vld [vmem:[%s4891 + $0x24] sm:$0xf]
    %v4902 = vld [vmem:[%s4891 + $0x28] sm:$0xf]
    %v4903 = vld [vmem:[%s4891 + $0x2c] sm:$0xf]
    %v4904 = vld [vmem:[%s4891 + $0x30] sm:$0xf]
    %v4905 = vld [vmem:[%s4891 + $0x34] sm:$0xf]
    %v4906 = vld [vmem:[%s4891 + $0x38] sm:$0xf]
    %v4907 = vld [vmem:[%s4891 + $0x3c] sm:$0xf]
    %v4908 = vunpack.c.l.bf16 %v4892
    %v4909 = vunpack.c.l.bf16 %v4893
    %v4910 = vunpack.c.l.bf16 %v4894
    %v4911 = vunpack.c.l.bf16 %v4895
    %v4912 = vunpack.c.l.bf16 %v4896
    %v4913 = vunpack.c.l.bf16 %v4897
    %v4914 = vunpack.c.l.bf16 %v4898
    %v4915 = vunpack.c.l.bf16 %v4899
    %v4916 = vunpack.c.l.bf16 %v4900
    %v4917 = vunpack.c.l.bf16 %v4901
    %v4918 = vunpack.c.l.bf16 %v4902
    %v4919 = vunpack.c.l.bf16 %v4903
    %v4920 = vunpack.c.l.bf16 %v4904
    %v4921 = vunpack.c.l.bf16 %v4905
    %v4922 = vunpack.c.l.bf16 %v4906
    %v4923 = vunpack.c.l.bf16 %v4907
    %s4924 = scalar_lea.vmem %s57, 128
    %v4925 = vld [vmem:[%s4924] sm:$0xf]
    %v4926 = vld [vmem:[%s4924 + $0x4] sm:$0xf]
    %v4927 = vld [vmem:[%s4924 + $0x8] sm:$0xf]
    %v4928 = vld [vmem:[%s4924 + $0xc] sm:$0xf]
    %v4929 = vld [vmem:[%s4924 + $0x10] sm:$0xf]
    %v4930 = vld [vmem:[%s4924 + $0x14] sm:$0xf]
    %v4931 = vld [vmem:[%s4924 + $0x18] sm:$0xf]
    %v4932 = vld [vmem:[%s4924 + $0x1c] sm:$0xf]
    %v4933 = vld [vmem:[%s4924 + $0x20] sm:$0xf]
    %v4934 = vld [vmem:[%s4924 + $0x24] sm:$0xf]
    %v4935 = vld [vmem:[%s4924 + $0x28] sm:$0xf]
    %v4936 = vld [vmem:[%s4924 + $0x2c] sm:$0xf]
    %v4937 = vld [vmem:[%s4924 + $0x30] sm:$0xf]
    %v4938 = vld [vmem:[%s4924 + $0x34] sm:$0xf]
    %v4939 = vld [vmem:[%s4924 + $0x38] sm:$0xf]
    %v4940 = vld [vmem:[%s4924 + $0x3c] sm:$0xf]
    %v4941 = vunpack.c.l.bf16 %v4925
    %v4942 = vunpack.c.l.bf16 %v4926
    %v4943 = vunpack.c.l.bf16 %v4927
    %v4944 = vunpack.c.l.bf16 %v4928
    %v4945 = vunpack.c.l.bf16 %v4929
    %v4946 = vunpack.c.l.bf16 %v4930
    %v4947 = vunpack.c.l.bf16 %v4931
    %v4948 = vunpack.c.l.bf16 %v4932
    %v4949 = vunpack.c.l.bf16 %v4933
    %v4950 = vunpack.c.l.bf16 %v4934
    %v4951 = vunpack.c.l.bf16 %v4935
    %v4952 = vunpack.c.l.bf16 %v4936
    %v4953 = vunpack.c.l.bf16 %v4937
    %v4954 = vunpack.c.l.bf16 %v4938
    %v4955 = vunpack.c.l.bf16 %v4939
    %v4956 = vunpack.c.l.bf16 %v4940
    %4957 = vmatprep.subr.mxu0 0.0
    %4958 = vmatpush1.msra.mxu0 %v4941
    %4959 = vmatprep.subr.mxu0 0.0
    %4960 = vmatpush1.msra.mxu0 %v4942
    %4961 = vmatprep.subr.mxu0 0.0
    %4962 = vmatpush1.msra.mxu0 %v4943
    %4963 = vmatprep.subr.mxu0 0.0
    %4964 = vmatpush1.msra.mxu0 %v4944
    %4965 = vmatprep.subr.mxu0 0.0
    %4966 = vmatpush1.msra.mxu0 %v4945
    %4967 = vmatprep.subr.mxu0 0.0
    %4968 = vmatpush1.msra.mxu0 %v4946
    %4969 = vmatprep.subr.mxu0 0.0
    %4970 = vmatpush1.msra.mxu0 %v4947
    %4971 = vmatprep.subr.mxu0 0.0
    %4972 = vmatpush1.msra.mxu0 %v4948
    %4973 = vmatprep.subr.mxu0 0.0
    %4974 = vmatpush1.msra.mxu0 %v4949
    %4975 = vmatprep.subr.mxu0 0.0
    %4976 = vmatpush1.msra.mxu0 %v4950
    %4977 = vmatprep.subr.mxu0 0.0
    %4978 = vmatpush1.msra.mxu0 %v4951
    %4979 = vmatprep.subr.mxu0 0.0
    %4980 = vmatpush1.msra.mxu0 %v4952
    %4981 = vmatprep.subr.mxu0 0.0
    %4982 = vmatpush1.msra.mxu0 %v4953
    %4983 = vmatprep.subr.mxu0 0.0
    %4984 = vmatpush1.msra.mxu0 %v4954
    %4985 = vmatprep.subr.mxu0 0.0
    %4986 = vmatpush1.msra.mxu0 %v4955
    %4987 = vmatprep.subr.mxu0 0.0
    %4988 = vmatpush1.msra.mxu0 %v4956
    %4989 = vmatprep.subr.mxu0 0.0
    %4990 = vmatpush1.msra.mxu0 0.0
    %4991 = vmatprep.subr.mxu0 0.0
    %4992 = vmatpush1.msra.mxu0 0.0
    %4993 = vmatprep.subr.mxu0 0.0
    %4994 = vmatpush1.msra.mxu0 0.0
    %4995 = vmatprep.subr.mxu0 0.0
    %4996 = vmatpush1.msra.mxu0 0.0
    %4997 = vmatprep.subr.mxu0 0.0
    %4998 = vmatpush1.msra.mxu0 0.0
    %4999 = vmatprep.subr.mxu0 0.0
    %5000 = vmatpush1.msra.mxu0 0.0
    %5001 = vmatprep.subr.mxu0 0.0
    %5002 = vmatpush1.msra.mxu0 0.0
    %5003 = vmatprep.subr.mxu0 0.0
    %5004 = vmatpush1.msra.mxu0 0.0
    %5005 = vmatprep.subr.mxu0 0.0
    %5006 = vmatpush1.msra.mxu0 0.0
    %5007 = vmatprep.subr.mxu0 0.0
    %5008 = vmatpush1.msra.mxu0 0.0
    %5009 = vmatprep.subr.mxu0 0.0
    %5010 = vmatpush1.msra.mxu0 0.0
    %5011 = vmatprep.subr.mxu0 0.0
    %5012 = vmatpush1.msra.mxu0 0.0
    %5013 = vmatprep.subr.mxu0 0.0
    %5014 = vmatpush1.msra.mxu0 0.0
    %5015 = vmatprep.subr.mxu0 0.0
    %5016 = vmatpush1.msra.mxu0 0.0
    %5017 = vmatprep.subr.mxu0 0.0
    %5018 = vmatpush1.msra.mxu0 0.0
    %5019 = vmatprep.subr.mxu0 0.0
    %5020 = vmatpush1.msra.mxu0 0.0
    %5021 = vmatprep.mubr.f32.mxu0 0.0
    %5022 = vmatmul.mubr.f32.gmra.mrb[0].mxu0 %v4890
    %v5023 = vpop.f32.mrb[0].mxu0
    %v5024 = vadd.f32 0.0, %v5023
    %v5025 = vpop.f32.mrb[0].mxu0
    %5026 = vdwg.mxu0
    %5027 = vmatprep.subr.mxu0 0.0
    %5028 = vmatpush1.msra.mxu0 %v4908
    %5029 = vmatprep.subr.mxu0 0.0
    %5030 = vmatpush1.msra.mxu0 %v4909
    %5031 = vmatprep.subr.mxu0 0.0
    %5032 = vmatpush1.msra.mxu0 %v4910
    %5033 = vmatprep.subr.mxu0 0.0
    %5034 = vmatpush1.msra.mxu0 %v4911
    %5035 = vmatprep.subr.mxu0 0.0
    %5036 = vmatpush1.msra.mxu0 %v4912
    %5037 = vmatprep.subr.mxu0 0.0
    %5038 = vmatpush1.msra.mxu0 %v4913
    %5039 = vmatprep.subr.mxu0 0.0
    %5040 = vmatpush1.msra.mxu0 %v4914
    %5041 = vmatprep.subr.mxu0 0.0
    %5042 = vmatpush1.msra.mxu0 %v4915
    %5043 = vmatprep.subr.mxu0 0.0
    %5044 = vmatpush1.msra.mxu0 %v4916
    %5045 = vmatprep.subr.mxu0 0.0
    %5046 = vmatpush1.msra.mxu0 %v4917
    %5047 = vmatprep.subr.mxu0 0.0
    %5048 = vmatpush1.msra.mxu0 %v4918
    %5049 = vmatprep.subr.mxu0 0.0
    %5050 = vmatpush1.msra.mxu0 %v4919
    %5051 = vmatprep.subr.mxu0 0.0
    %5052 = vmatpush1.msra.mxu0 %v4920
    %5053 = vmatprep.subr.mxu0 0.0
    %5054 = vmatpush1.msra.mxu0 %v4921
    %5055 = vmatprep.subr.mxu0 0.0
    %5056 = vmatpush1.msra.mxu0 %v4922
    %5057 = vmatprep.subr.mxu0 0.0
    %5058 = vmatpush1.msra.mxu0 %v4923
    %5059 = vmatprep.subr.mxu0 0.0
    %5060 = vmatpush1.msra.mxu0 0.0
    %5061 = vmatprep.subr.mxu0 0.0
    %5062 = vmatpush1.msra.mxu0 0.0
    %5063 = vmatprep.subr.mxu0 0.0
    %5064 = vmatpush1.msra.mxu0 0.0
    %5065 = vmatprep.subr.mxu0 0.0
    %5066 = vmatpush1.msra.mxu0 0.0
    %5067 = vmatprep.subr.mxu0 0.0
    %5068 = vmatpush1.msra.mxu0 0.0
    %5069 = vmatprep.subr.mxu0 0.0
    %5070 = vmatpush1.msra.mxu0 0.0
    %5071 = vmatprep.subr.mxu0 0.0
    %5072 = vmatpush1.msra.mxu0 0.0
    %5073 = vmatprep.subr.mxu0 0.0
    %5074 = vmatpush1.msra.mxu0 0.0
    %5075 = vmatprep.subr.mxu0 0.0
    %5076 = vmatpush1.msra.mxu0 0.0
    %5077 = vmatprep.subr.mxu0 0.0
    %5078 = vmatpush1.msra.mxu0 0.0
    %5079 = vmatprep.subr.mxu0 0.0
    %5080 = vmatpush1.msra.mxu0 0.0
    %5081 = vmatprep.subr.mxu0 0.0
    %5082 = vmatpush1.msra.mxu0 0.0
    %5083 = vmatprep.subr.mxu0 0.0
    %5084 = vmatpush1.msra.mxu0 0.0
    %5085 = vmatprep.subr.mxu0 0.0
    %5086 = vmatpush1.msra.mxu0 0.0
    %5087 = vmatprep.subr.mxu0 0.0
    %5088 = vmatpush1.msra.mxu0 0.0
    %5089 = vmatprep.subr.mxu0 0.0
    %5090 = vmatpush1.msra.mxu0 0.0
    %5091 = vmatprep.mubr.f32.mxu0 0.0
    %5092 = vmatmul.mubr.f32.gmra.mrb[0].mxu0 %v3903
    %v5093 = vpop.f32.mrb[0].mxu0
    %v5094 = vadd.f32 %v5024, %v5093
    %v5095 = vpop.f32.mrb[0].mxu0
    %5096 = vdwg.mxu0
    %s5097 = scalar_lea.vmem %s59, 2
    %v5098 = vld [vmem:[%s5097] sm:$0x1]
    %v5100 = vlaneseq
    %v5101 = vshrl.u32 %v5100, 7
    %v5102 = vsub.s32 0, %v5101
    %v5103 = vrot.slane %v5098, %v5102
    %v5105 = vadd.f32 %v5094, %v5103
    %v5106 = vmax.f32 %v5105, 0.0
    %s5107 = scalar_lea.vmem %s51, 320
    %v5108 = vld [vmem:[%s5107] sm:$0xf]
    %v5109 = vld [vmem:[%s5107 + $0x4] sm:$0xf]
    %v5110 = vld [vmem:[%s5107 + $0x8] sm:$0xf]
    %v5111 = vld [vmem:[%s5107 + $0xc] sm:$0xf]
    %v5112 = vld [vmem:[%s5107 + $0x10] sm:$0xf]
    %v5113 = vld [vmem:[%s5107 + $0x14] sm:$0xf]
    %v5114 = vld [vmem:[%s5107 + $0x18] sm:$0xf]
    %v5115 = vld [vmem:[%s5107 + $0x1c] sm:$0xf]
    %v5116 = vld [vmem:[%s5107 + $0x20] sm:$0xf]
    %v5117 = vld [vmem:[%s5107 + $0x24] sm:$0xf]
    %v5118 = vld [vmem:[%s5107 + $0x28] sm:$0xf]
    %v5119 = vld [vmem:[%s5107 + $0x2c] sm:$0xf]
    %v5120 = vld [vmem:[%s5107 + $0x30] sm:$0xf]
    %v5121 = vld [vmem:[%s5107 + $0x34] sm:$0xf]
    %v5122 = vld [vmem:[%s5107 + $0x38] sm:$0xf]
    %v5123 = vld [vmem:[%s5107 + $0x3c] sm:$0xf]
    %v5124 = vunpack.c.l.bf16 %v5108
    %v5125 = vunpack.c.l.bf16 %v5109
    %v5126 = vunpack.c.l.bf16 %v5110
    %v5127 = vunpack.c.l.bf16 %v5111
    %v5128 = vunpack.c.l.bf16 %v5112
    %v5129 = vunpack.c.l.bf16 %v5113
    %v5130 = vunpack.c.l.bf16 %v5114
    %v5131 = vunpack.c.l.bf16 %v5115
    %v5132 = vunpack.c.l.bf16 %v5116
    %v5133 = vunpack.c.l.bf16 %v5117
    %v5134 = vunpack.c.l.bf16 %v5118
    %v5135 = vunpack.c.l.bf16 %v5119
    %v5136 = vunpack.c.l.bf16 %v5120
    %v5137 = vunpack.c.l.bf16 %v5121
    %v5138 = vunpack.c.l.bf16 %v5122
    %v5139 = vunpack.c.l.bf16 %v5123
    %s5140 = scalar_lea.vmem %s53, 5
    %v5141 = vld [vmem:[%s5140] sm:$0x1]
    %v5143 = vlaneseq
    %v5144 = vshrl.u32 %v5143, 7
    %v5145 = vsub.s32 0, %v5144
    %v5146 = vrot.slane %v5141, %v5145
    %5148 = vmatprep.subr.mxu0 0.0
    %5149 = vmatpush1.msra.mxu0 %v5124
    %5150 = vmatprep.subr.mxu0 0.0
    %5151 = vmatpush1.msra.mxu0 %v5125
    %5152 = vmatprep.subr.mxu0 0.0
    %5153 = vmatpush1.msra.mxu0 %v5126
    %5154 = vmatprep.subr.mxu0 0.0
    %5155 = vmatpush1.msra.mxu0 %v5127
    %5156 = vmatprep.subr.mxu0 0.0
    %5157 = vmatpush1.msra.mxu0 %v5128
    %5158 = vmatprep.subr.mxu0 0.0
    %5159 = vmatpush1.msra.mxu0 %v5129
    %5160 = vmatprep.subr.mxu0 0.0
    %5161 = vmatpush1.msra.mxu0 %v5130
    %5162 = vmatprep.subr.mxu0 0.0
    %5163 = vmatpush1.msra.mxu0 %v5131
    %5164 = vmatprep.subr.mxu0 0.0
    %5165 = vmatpush1.msra.mxu0 %v5132
    %5166 = vmatprep.subr.mxu0 0.0
    %5167 = vmatpush1.msra.mxu0 %v5133
    %5168 = vmatprep.subr.mxu0 0.0
    %5169 = vmatpush1.msra.mxu0 %v5134
    %5170 = vmatprep.subr.mxu0 0.0
    %5171 = vmatpush1.msra.mxu0 %v5135
    %5172 = vmatprep.subr.mxu0 0.0
    %5173 = vmatpush1.msra.mxu0 %v5136
    %5174 = vmatprep.subr.mxu0 0.0
    %5175 = vmatpush1.msra.mxu0 %v5137
    %5176 = vmatprep.subr.mxu0 0.0
    %5177 = vmatpush1.msra.mxu0 %v5138
    %5178 = vmatprep.subr.mxu0 0.0
    %5179 = vmatpush1.msra.mxu0 %v5139
    %5180 = vmatprep.subr.mxu0 0.0
    %5181 = vmatpush1.msra.mxu0 0.0
    %5182 = vmatprep.subr.mxu0 0.0
    %5183 = vmatpush1.msra.mxu0 0.0
    %5184 = vmatprep.subr.mxu0 0.0
    %5185 = vmatpush1.msra.mxu0 0.0
    %5186 = vmatprep.subr.mxu0 0.0
    %5187 = vmatpush1.msra.mxu0 0.0
    %5188 = vmatprep.subr.mxu0 0.0
    %5189 = vmatpush1.msra.mxu0 0.0
    %5190 = vmatprep.subr.mxu0 0.0
    %5191 = vmatpush1.msra.mxu0 0.0
    %5192 = vmatprep.subr.mxu0 0.0
    %5193 = vmatpush1.msra.mxu0 0.0
    %5194 = vmatprep.subr.mxu0 0.0
    %5195 = vmatpush1.msra.mxu0 0.0
    %5196 = vmatprep.subr.mxu0 0.0
    %5197 = vmatpush1.msra.mxu0 0.0
    %5198 = vmatprep.subr.mxu0 0.0
    %5199 = vmatpush1.msra.mxu0 0.0
    %5200 = vmatprep.subr.mxu0 0.0
    %5201 = vmatpush1.msra.mxu0 0.0
    %5202 = vmatprep.subr.mxu0 0.0
    %5203 = vmatpush1.msra.mxu0 0.0
    %5204 = vmatprep.subr.mxu0 0.0
    %5205 = vmatpush1.msra.mxu0 0.0
    %5206 = vmatprep.subr.mxu0 0.0
    %5207 = vmatpush1.msra.mxu0 0.0
    %5208 = vmatprep.subr.mxu0 0.0
    %5209 = vmatpush1.msra.mxu0 0.0
    %5210 = vmatprep.subr.mxu0 0.0
    %5211 = vmatpush1.msra.mxu0 0.0
    %5212 = vmatprep.mubr.f32.mxu0 0.0
    %5213 = vmatmul.mubr.f32.gmra.mrb[0].mxu0 %v5106
    %v5214 = vpop.f32.mrb[0].mxu0
    %v5215 = vadd.f32 %v5146, %v5214
    %v5216 = vpop.f32.mrb[0].mxu0
    %5217 = vdwg.mxu0
    %v5218 = vmax.f32 %v5215, 0.0
    %v5219 = vld [vmem:[%s61] sm:$0xf]
    %v5220 = vld [vmem:[%s61 + $0x4] sm:$0xf]
    %v5221 = vld [vmem:[%s61 + $0x8] sm:$0xf]
    %v5222 = vld [vmem:[%s61 + $0xc] sm:$0xf]
    %v5223 = vld [vmem:[%s61 + $0x10] sm:$0xf]
    %v5224 = vld [vmem:[%s61 + $0x14] sm:$0xf]
    %v5225 = vld [vmem:[%s61 + $0x18] sm:$0xf]
    %v5226 = vld [vmem:[%s61 + $0x1c] sm:$0xf]
    %v5227 = vld [vmem:[%s61 + $0x20] sm:$0xf]
    %v5228 = vld [vmem:[%s61 + $0x24] sm:$0xf]
    %v5229 = vld [vmem:[%s61 + $0x28] sm:$0xf]
    %v5230 = vld [vmem:[%s61 + $0x2c] sm:$0xf]
    %v5231 = vld [vmem:[%s61 + $0x30] sm:$0xf]
    %v5232 = vld [vmem:[%s61 + $0x34] sm:$0xf]
    %v5233 = vld [vmem:[%s61 + $0x38] sm:$0xf]
    %v5234 = vld [vmem:[%s61 + $0x3c] sm:$0xf]
    %v5235 = vunpack.c.l.bf16 %v5219
    %v5236 = vunpack.c.l.bf16 %v5220
    %v5237 = vunpack.c.l.bf16 %v5221
    %v5238 = vunpack.c.l.bf16 %v5222
    %v5239 = vunpack.c.l.bf16 %v5223
    %v5240 = vunpack.c.l.bf16 %v5224
    %v5241 = vunpack.c.l.bf16 %v5225
    %v5242 = vunpack.c.l.bf16 %v5226
    %v5243 = vunpack.c.l.bf16 %v5227
    %v5244 = vunpack.c.l.bf16 %v5228
    %v5245 = vunpack.c.l.bf16 %v5229
    %v5246 = vunpack.c.l.bf16 %v5230
    %v5247 = vunpack.c.l.bf16 %v5231
    %v5248 = vunpack.c.l.bf16 %v5232
    %v5249 = vunpack.c.l.bf16 %v5233
    %v5250 = vunpack.c.l.bf16 %v5234
    %v5251 = vld [vmem:[%s63] sm:$0x1]
    %v5253 = vlaneseq
    %v5254 = vshrl.u32 %v5253, 7
    %v5255 = vsub.s32 0, %v5254
    %v5256 = vrot.slane %v5251, %v5255
    %5258 = vmatprep.subr.mxu0 0.0
    %5259 = vmatpush1.msra.mxu0 %v5235
    %5260 = vmatprep.subr.mxu0 0.0
    %5261 = vmatpush1.msra.mxu0 %v5236
    %5262 = vmatprep.subr.mxu0 0.0
    %5263 = vmatpush1.msra.mxu0 %v5237
    %5264 = vmatprep.subr.mxu0 0.0
    %5265 = vmatpush1.msra.mxu0 %v5238
    %5266 = vmatprep.subr.mxu0 0.0
    %5267 = vmatpush1.msra.mxu0 %v5239
    %5268 = vmatprep.subr.mxu0 0.0
    %5269 = vmatpush1.msra.mxu0 %v5240
    %5270 = vmatprep.subr.mxu0 0.0
    %5271 = vmatpush1.msra.mxu0 %v5241
    %5272 = vmatprep.subr.mxu0 0.0
    %5273 = vmatpush1.msra.mxu0 %v5242
    %5274 = vmatprep.subr.mxu0 0.0
    %5275 = vmatpush1.msra.mxu0 %v5243
    %5276 = vmatprep.subr.mxu0 0.0
    %5277 = vmatpush1.msra.mxu0 %v5244
    %5278 = vmatprep.subr.mxu0 0.0
    %5279 = vmatpush1.msra.mxu0 %v5245
    %5280 = vmatprep.subr.mxu0 0.0
    %5281 = vmatpush1.msra.mxu0 %v5246
    %5282 = vmatprep.subr.mxu0 0.0
    %5283 = vmatpush1.msra.mxu0 %v5247
    %5284 = vmatprep.subr.mxu0 0.0
    %5285 = vmatpush1.msra.mxu0 %v5248
    %5286 = vmatprep.subr.mxu0 0.0
    %5287 = vmatpush1.msra.mxu0 %v5249
    %5288 = vmatprep.subr.mxu0 0.0
    %5289 = vmatpush1.msra.mxu0 %v5250
    %5290 = vmatprep.subr.mxu0 0.0
    %5291 = vmatpush1.msra.mxu0 0.0
    %5292 = vmatprep.subr.mxu0 0.0
    %5293 = vmatpush1.msra.mxu0 0.0
    %5294 = vmatprep.subr.mxu0 0.0
    %5295 = vmatpush1.msra.mxu0 0.0
    %5296 = vmatprep.subr.mxu0 0.0
    %5297 = vmatpush1.msra.mxu0 0.0
    %5298 = vmatprep.subr.mxu0 0.0
    %5299 = vmatpush1.msra.mxu0 0.0
    %5300 = vmatprep.subr.mxu0 0.0
    %5301 = vmatpush1.msra.mxu0 0.0
    %5302 = vmatprep.subr.mxu0 0.0
    %5303 = vmatpush1.msra.mxu0 0.0
    %5304 = vmatprep.subr.mxu0 0.0
    %5305 = vmatpush1.msra.mxu0 0.0
    %5306 = vmatprep.subr.mxu0 0.0
    %5307 = vmatpush1.msra.mxu0 0.0
    %5308 = vmatprep.subr.mxu0 0.0
    %5309 = vmatpush1.msra.mxu0 0.0
    %5310 = vmatprep.subr.mxu0 0.0
    %5311 = vmatpush1.msra.mxu0 0.0
    %5312 = vmatprep.subr.mxu0 0.0
    %5313 = vmatpush1.msra.mxu0 0.0
    %5314 = vmatprep.subr.mxu0 0.0
    %5315 = vmatpush1.msra.mxu0 0.0
    %5316 = vmatprep.subr.mxu0 0.0
    %5317 = vmatpush1.msra.mxu0 0.0
    %5318 = vmatprep.subr.mxu0 0.0
    %5319 = vmatpush1.msra.mxu0 0.0
    %5320 = vmatprep.subr.mxu0 0.0
    %5321 = vmatpush1.msra.mxu0 0.0
    %5322 = vmatprep.mubr.f32.mxu0 0.0
    %5323 = vmatmul.mubr.f32.gmra.mrb[0].mxu0 %v5218
    %v5324 = vpop.f32.mrb[0].mxu0
    %v5325 = vadd.f32 %v5256, %v5324
    %v5326 = vpop.f32.mrb[0].mxu0
    %5327 = vdwg.mxu0
    %5328 = vst.msk [vmem:[%s65] sm:$0xff] %vm3410, %v5325
    %v5329 = vld [vmem:[%s7 + $0x8] sm:$0xff]
    %s5330 = scalar_lea.vmem %s37, 8
    %v5331 = vld [vmem:[%s5330] sm:$0xf]
    %v5332 = vld [vmem:[%s5330 + $0x4] sm:$0xf]
    %v5333 = vunpack.c.l.bf16 %v5331
    %v5334 = vunpack.c.l.bf16 %v5332
    %s5335 = scalar_lea.vmem %s39, 1
    %v5336 = vld [vmem:[%s5335] sm:$0x1]
    %v5338 = vlaneseq
    %v5339 = vshrl.u32 %v5338, 7
    %v5340 = vsub.s32 0, %v5339
    %v5341 = vrot.slane %v5336, %v5340
    %v5344 = vsel %vm3410, %v5329, 0
    %5346 = vmatprep.subr.mxu0 0.0
    %5347 = vmatpush1.msra.mxu0 %v5333
    %5348 = vmatprep.subr.mxu0 0.0
    %5349 = vmatpush1.msra.mxu0 %v5334
    %5350 = vmatprep.subr.mxu0 0.0
    %5351 = vmatpush1.msra.mxu0 0.0
    %5352 = vmatprep.subr.mxu0 0.0
    %5353 = vmatpush1.msra.mxu0 0.0
    %5354 = vmatprep.subr.mxu0 0.0
    %5355 = vmatpush1.msra.mxu0 0.0
    %5356 = vmatprep.subr.mxu0 0.0
    %5357 = vmatpush1.msra.mxu0 0.0
    %5358 = vmatprep.subr.mxu0 0.0
    %5359 = vmatpush1.msra.mxu0 0.0
    %5360 = vmatprep.subr.mxu0 0.0
    %5361 = vmatpush1.msra.mxu0 0.0
    %5362 = vmatprep.subr.mxu0 0.0
    %5363 = vmatpush1.msra.mxu0 0.0
    %5364 = vmatprep.subr.mxu0 0.0
    %5365 = vmatpush1.msra.mxu0 0.0
    %5366 = vmatprep.subr.mxu0 0.0
    %5367 = vmatpush1.msra.mxu0 0.0
    %5368 = vmatprep.subr.mxu0 0.0
    %5369 = vmatpush1.msra.mxu0 0.0
    %5370 = vmatprep.subr.mxu0 0.0
    %5371 = vmatpush1.msra.mxu0 0.0
    %5372 = vmatprep.subr.mxu0 0.0
    %5373 = vmatpush1.msra.mxu0 0.0
    %5374 = vmatprep.subr.mxu0 0.0
    %5375 = vmatpush1.msra.mxu0 0.0
    %5376 = vmatprep.subr.mxu0 0.0
    %5377 = vmatpush1.msra.mxu0 0.0
    %5378 = vmatprep.subr.mxu0 0.0
    %5379 = vmatpush1.msra.mxu0 0.0
    %5380 = vmatprep.subr.mxu0 0.0
    %5381 = vmatpush1.msra.mxu0 0.0
    %5382 = vmatprep.subr.mxu0 0.0
    %5383 = vmatpush1.msra.mxu0 0.0
    %5384 = vmatprep.subr.mxu0 0.0
    %5385 = vmatpush1.msra.mxu0 0.0
    %5386 = vmatprep.subr.mxu0 0.0
    %5387 = vmatpush1.msra.mxu0 0.0
    %5388 = vmatprep.subr.mxu0 0.0
    %5389 = vmatpush1.msra.mxu0 0.0
    %5390 = vmatprep.subr.mxu0 0.0
    %5391 = vmatpush1.msra.mxu0 0.0
    %5392 = vmatprep.subr.mxu0 0.0
    %5393 = vmatpush1.msra.mxu0 0.0
    %5394 = vmatprep.subr.mxu0 0.0
    %5395 = vmatpush1.msra.mxu0 0.0
    %5396 = vmatprep.subr.mxu0 0.0
    %5397 = vmatpush1.msra.mxu0 0.0
    %5398 = vmatprep.subr.mxu0 0.0
    %5399 = vmatpush1.msra.mxu0 0.0
    %5400 = vmatprep.subr.mxu0 0.0
    %5401 = vmatpush1.msra.mxu0 0.0
    %5402 = vmatprep.subr.mxu0 0.0
    %5403 = vmatpush1.msra.mxu0 0.0
    %5404 = vmatprep.subr.mxu0 0.0
    %5405 = vmatpush1.msra.mxu0 0.0
    %5406 = vmatprep.subr.mxu0 0.0
    %5407 = vmatpush1.msra.mxu0 0.0
    %5408 = vmatprep.subr.mxu0 0.0
    %5409 = vmatpush1.msra.mxu0 0.0
    %5410 = vmatprep.mubr.f32.mxu0 0.0
    %5411 = vmatmul.mubr.f32.gmra.mrb[0].mxu0 %v5344
    %v5412 = vpop.f32.mrb[0].mxu0
    %v5413 = vadd.f32 %v5341, %v5412
    %v5414 = vpop.f32.mrb[0].mxu0
    %5415 = vdwg.mxu0
    %v5416 = vmax.f32 %v5413, 0.0
    %s5417 = scalar_lea.vmem %s41, 64
    %v5418 = vld [vmem:[%s5417] sm:$0xf]
    %v5419 = vld [vmem:[%s5417 + $0x4] sm:$0xf]
    %v5420 = vld [vmem:[%s5417 + $0x8] sm:$0xf]
    %v5421 = vld [vmem:[%s5417 + $0xc] sm:$0xf]
    %v5422 = vld [vmem:[%s5417 + $0x10] sm:$0xf]
    %v5423 = vld [vmem:[%s5417 + $0x14] sm:$0xf]
    %v5424 = vld [vmem:[%s5417 + $0x18] sm:$0xf]
    %v5425 = vld [vmem:[%s5417 + $0x1c] sm:$0xf]
    %v5426 = vld [vmem:[%s5417 + $0x20] sm:$0xf]
    %v5427 = vld [vmem:[%s5417 + $0x24] sm:$0xf]
    %v5428 = vld [vmem:[%s5417 + $0x28] sm:$0xf]
    %v5429 = vld [vmem:[%s5417 + $0x2c] sm:$0xf]
    %v5430 = vld [vmem:[%s5417 + $0x30] sm:$0xf]
    %v5431 = vld [vmem:[%s5417 + $0x34] sm:$0xf]
    %v5432 = vld [vmem:[%s5417 + $0x38] sm:$0xf]
    %v5433 = vld [vmem:[%s5417 + $0x3c] sm:$0xf]
    %v5434 = vunpack.c.l.bf16 %v5418
    %v5435 = vunpack.c.l.bf16 %v5419
    %v5436 = vunpack.c.l.bf16 %v5420
    %v5437 = vunpack.c.l.bf16 %v5421
    %v5438 = vunpack.c.l.bf16 %v5422
    %v5439 = vunpack.c.l.bf16 %v5423
    %v5440 = vunpack.c.l.bf16 %v5424
    %v5441 = vunpack.c.l.bf16 %v5425
    %v5442 = vunpack.c.l.bf16 %v5426
    %v5443 = vunpack.c.l.bf16 %v5427
    %v5444 = vunpack.c.l.bf16 %v5428
    %v5445 = vunpack.c.l.bf16 %v5429
    %v5446 = vunpack.c.l.bf16 %v5430
    %v5447 = vunpack.c.l.bf16 %v5431
    %v5448 = vunpack.c.l.bf16 %v5432
    %v5449 = vunpack.c.l.bf16 %v5433
    %s5450 = scalar_lea.vmem %s43, 64
    %v5451 = vld [vmem:[%s5450] sm:$0xf]
    %v5452 = vld [vmem:[%s5450 + $0x4] sm:$0xf]
    %v5453 = vld [vmem:[%s5450 + $0x8] sm:$0xf]
    %v5454 = vld [vmem:[%s5450 + $0xc] sm:$0xf]
    %v5455 = vld [vmem:[%s5450 + $0x10] sm:$0xf]
    %v5456 = vld [vmem:[%s5450 + $0x14] sm:$0xf]
    %v5457 = vld [vmem:[%s5450 + $0x18] sm:$0xf]
    %v5458 = vld [vmem:[%s5450 + $0x1c] sm:$0xf]
    %v5459 = vld [vmem:[%s5450 + $0x20] sm:$0xf]
    %v5460 = vld [vmem:[%s5450 + $0x24] sm:$0xf]
    %v5461 = vld [vmem:[%s5450 + $0x28] sm:$0xf]
    %v5462 = vld [vmem:[%s5450 + $0x2c] sm:$0xf]
    %v5463 = vld [vmem:[%s5450 + $0x30] sm:$0xf]
    %v5464 = vld [vmem:[%s5450 + $0x34] sm:$0xf]
    %v5465 = vld [vmem:[%s5450 + $0x38] sm:$0xf]
    %v5466 = vld [vmem:[%s5450 + $0x3c] sm:$0xf]
    %v5467 = vunpack.c.l.bf16 %v5451
    %v5468 = vunpack.c.l.bf16 %v5452
    %v5469 = vunpack.c.l.bf16 %v5453
    %v5470 = vunpack.c.l.bf16 %v5454
    %v5471 = vunpack.c.l.bf16 %v5455
    %v5472 = vunpack.c.l.bf16 %v5456
    %v5473 = vunpack.c.l.bf16 %v5457
    %v5474 = vunpack.c.l.bf16 %v5458
    %v5475 = vunpack.c.l.bf16 %v5459
    %v5476 = vunpack.c.l.bf16 %v5460
    %v5477 = vunpack.c.l.bf16 %v5461
    %v5478 = vunpack.c.l.bf16 %v5462
    %v5479 = vunpack.c.l.bf16 %v5463
    %v5480 = vunpack.c.l.bf16 %v5464
    %v5481 = vunpack.c.l.bf16 %v5465
    %v5482 = vunpack.c.l.bf16 %v5466
    %5483 = vmatprep.subr.mxu0 0.0
    %5484 = vmatpush1.msra.mxu0 %v5467
    %5485 = vmatprep.subr.mxu0 0.0
    %5486 = vmatpush1.msra.mxu0 %v5468
    %5487 = vmatprep.subr.mxu0 0.0
    %5488 = vmatpush1.msra.mxu0 %v5469
    %5489 = vmatprep.subr.mxu0 0.0
    %5490 = vmatpush1.msra.mxu0 %v5470
    %5491 = vmatprep.subr.mxu0 0.0
    %5492 = vmatpush1.msra.mxu0 %v5471
    %5493 = vmatprep.subr.mxu0 0.0
    %5494 = vmatpush1.msra.mxu0 %v5472
    %5495 = vmatprep.subr.mxu0 0.0
    %5496 = vmatpush1.msra.mxu0 %v5473
    %5497 = vmatprep.subr.mxu0 0.0
    %5498 = vmatpush1.msra.mxu0 %v5474
    %5499 = vmatprep.subr.mxu0 0.0
    %5500 = vmatpush1.msra.mxu0 %v5475
    %5501 = vmatprep.subr.mxu0 0.0
    %5502 = vmatpush1.msra.mxu0 %v5476
    %5503 = vmatprep.subr.mxu0 0.0
    %5504 = vmatpush1.msra.mxu0 %v5477
    %5505 = vmatprep.subr.mxu0 0.0
    %5506 = vmatpush1.msra.mxu0 %v5478
    %5507 = vmatprep.subr.mxu0 0.0
    %5508 = vmatpush1.msra.mxu0 %v5479
    %5509 = vmatprep.subr.mxu0 0.0
    %5510 = vmatpush1.msra.mxu0 %v5480
    %5511 = vmatprep.subr.mxu0 0.0
    %5512 = vmatpush1.msra.mxu0 %v5481
    %5513 = vmatprep.subr.mxu0 0.0
    %5514 = vmatpush1.msra.mxu0 %v5482
    %5515 = vmatprep.subr.mxu0 0.0
    %5516 = vmatpush1.msra.mxu0 0.0
    %5517 = vmatprep.subr.mxu0 0.0
    %5518 = vmatpush1.msra.mxu0 0.0
    %5519 = vmatprep.subr.mxu0 0.0
    %5520 = vmatpush1.msra.mxu0 0.0
    %5521 = vmatprep.subr.mxu0 0.0
    %5522 = vmatpush1.msra.mxu0 0.0
    %5523 = vmatprep.subr.mxu0 0.0
    %5524 = vmatpush1.msra.mxu0 0.0
    %5525 = vmatprep.subr.mxu0 0.0
    %5526 = vmatpush1.msra.mxu0 0.0
    %5527 = vmatprep.subr.mxu0 0.0
    %5528 = vmatpush1.msra.mxu0 0.0
    %5529 = vmatprep.subr.mxu0 0.0
    %5530 = vmatpush1.msra.mxu0 0.0
    %5531 = vmatprep.subr.mxu0 0.0
    %5532 = vmatpush1.msra.mxu0 0.0
    %5533 = vmatprep.subr.mxu0 0.0
    %5534 = vmatpush1.msra.mxu0 0.0
    %5535 = vmatprep.subr.mxu0 0.0
    %5536 = vmatpush1.msra.mxu0 0.0
    %5537 = vmatprep.subr.mxu0 0.0
    %5538 = vmatpush1.msra.mxu0 0.0
    %5539 = vmatprep.subr.mxu0 0.0
    %5540 = vmatpush1.msra.mxu0 0.0
    %5541 = vmatprep.subr.mxu0 0.0
    %5542 = vmatpush1.msra.mxu0 0.0
    %5543 = vmatprep.subr.mxu0 0.0
    %5544 = vmatpush1.msra.mxu0 0.0
    %5545 = vmatprep.subr.mxu0 0.0
    %5546 = vmatpush1.msra.mxu0 0.0
    %5547 = vmatprep.mubr.f32.mxu0 0.0
    %5548 = vmatmul.mubr.f32.gmra.mrb[0].mxu0 %v3063
    %v5549 = vpop.f32.mrb[0].mxu0
    %v5550 = vadd.f32 0.0, %v5549
    %v5551 = vpop.f32.mrb[0].mxu0
    %5552 = vdwg.mxu0
    %5553 = vmatprep.subr.mxu0 0.0
    %5554 = vmatpush1.msra.mxu0 %v5434
    %5555 = vmatprep.subr.mxu0 0.0
    %5556 = vmatpush1.msra.mxu0 %v5435
    %5557 = vmatprep.subr.mxu0 0.0
    %5558 = vmatpush1.msra.mxu0 %v5436
    %5559 = vmatprep.subr.mxu0 0.0
    %5560 = vmatpush1.msra.mxu0 %v5437
    %5561 = vmatprep.subr.mxu0 0.0
    %5562 = vmatpush1.msra.mxu0 %v5438
    %5563 = vmatprep.subr.mxu0 0.0
    %5564 = vmatpush1.msra.mxu0 %v5439
    %5565 = vmatprep.subr.mxu0 0.0
    %5566 = vmatpush1.msra.mxu0 %v5440
    %5567 = vmatprep.subr.mxu0 0.0
    %5568 = vmatpush1.msra.mxu0 %v5441
    %5569 = vmatprep.subr.mxu0 0.0
    %5570 = vmatpush1.msra.mxu0 %v5442
    %5571 = vmatprep.subr.mxu0 0.0
    %5572 = vmatpush1.msra.mxu0 %v5443
    %5573 = vmatprep.subr.mxu0 0.0
    %5574 = vmatpush1.msra.mxu0 %v5444
    %5575 = vmatprep.subr.mxu0 0.0
    %5576 = vmatpush1.msra.mxu0 %v5445
    %5577 = vmatprep.subr.mxu0 0.0
    %5578 = vmatpush1.msra.mxu0 %v5446
    %5579 = vmatprep.subr.mxu0 0.0
    %5580 = vmatpush1.msra.mxu0 %v5447
    %5581 = vmatprep.subr.mxu0 0.0
    %5582 = vmatpush1.msra.mxu0 %v5448
    %5583 = vmatprep.subr.mxu0 0.0
    %5584 = vmatpush1.msra.mxu0 %v5449
    %5585 = vmatprep.subr.mxu0 0.0
    %5586 = vmatpush1.msra.mxu0 0.0
    %5587 = vmatprep.subr.mxu0 0.0
    %5588 = vmatpush1.msra.mxu0 0.0
    %5589 = vmatprep.subr.mxu0 0.0
    %5590 = vmatpush1.msra.mxu0 0.0
    %5591 = vmatprep.subr.mxu0 0.0
    %5592 = vmatpush1.msra.mxu0 0.0
    %5593 = vmatprep.subr.mxu0 0.0
    %5594 = vmatpush1.msra.mxu0 0.0
    %5595 = vmatprep.subr.mxu0 0.0
    %5596 = vmatpush1.msra.mxu0 0.0
    %5597 = vmatprep.subr.mxu0 0.0
    %5598 = vmatpush1.msra.mxu0 0.0
    %5599 = vmatprep.subr.mxu0 0.0
    %5600 = vmatpush1.msra.mxu0 0.0
    %5601 = vmatprep.subr.mxu0 0.0
    %5602 = vmatpush1.msra.mxu0 0.0
    %5603 = vmatprep.subr.mxu0 0.0
    %5604 = vmatpush1.msra.mxu0 0.0
    %5605 = vmatprep.subr.mxu0 0.0
    %5606 = vmatpush1.msra.mxu0 0.0
    %5607 = vmatprep.subr.mxu0 0.0
    %5608 = vmatpush1.msra.mxu0 0.0
    %5609 = vmatprep.subr.mxu0 0.0
    %5610 = vmatpush1.msra.mxu0 0.0
    %5611 = vmatprep.subr.mxu0 0.0
    %5612 = vmatpush1.msra.mxu0 0.0
    %5613 = vmatprep.subr.mxu0 0.0
    %5614 = vmatpush1.msra.mxu0 0.0
    %5615 = vmatprep.subr.mxu0 0.0
    %5616 = vmatpush1.msra.mxu0 0.0
    %5617 = vmatprep.mubr.f32.mxu0 0.0
    %5618 = vmatmul.mubr.f32.gmra.mrb[0].mxu0 %v3397
    %v5619 = vpop.f32.mrb[0].mxu0
    %v5620 = vadd.f32 %v5550, %v5619
    %v5621 = vpop.f32.mrb[0].mxu0
    %5622 = vdwg.mxu0
    %s5623 = scalar_lea.vmem %s45, 64
    %v5624 = vld [vmem:[%s5623] sm:$0xf]
    %v5625 = vld [vmem:[%s5623 + $0x4] sm:$0xf]
    %v5626 = vld [vmem:[%s5623 + $0x8] sm:$0xf]
    %v5627 = vld [vmem:[%s5623 + $0xc] sm:$0xf]
    %v5628 = vld [vmem:[%s5623 + $0x10] sm:$0xf]
    %v5629 = vld [vmem:[%s5623 + $0x14] sm:$0xf]
    %v5630 = vld [vmem:[%s5623 + $0x18] sm:$0xf]
    %v5631 = vld [vmem:[%s5623 + $0x1c] sm:$0xf]
    %v5632 = vld [vmem:[%s5623 + $0x20] sm:$0xf]
    %v5633 = vld [vmem:[%s5623 + $0x24] sm:$0xf]
    %v5634 = vld [vmem:[%s5623 + $0x28] sm:$0xf]
    %v5635 = vld [vmem:[%s5623 + $0x2c] sm:$0xf]
    %v5636 = vld [vmem:[%s5623 + $0x30] sm:$0xf]
    %v5637 = vld [vmem:[%s5623 + $0x34] sm:$0xf]
    %v5638 = vld [vmem:[%s5623 + $0x38] sm:$0xf]
    %v5639 = vld [vmem:[%s5623 + $0x3c] sm:$0xf]
    %v5640 = vunpack.c.l.bf16 %v5624
    %v5641 = vunpack.c.l.bf16 %v5625
    %v5642 = vunpack.c.l.bf16 %v5626
    %v5643 = vunpack.c.l.bf16 %v5627
    %v5644 = vunpack.c.l.bf16 %v5628
    %v5645 = vunpack.c.l.bf16 %v5629
    %v5646 = vunpack.c.l.bf16 %v5630
    %v5647 = vunpack.c.l.bf16 %v5631
    %v5648 = vunpack.c.l.bf16 %v5632
    %v5649 = vunpack.c.l.bf16 %v5633
    %v5650 = vunpack.c.l.bf16 %v5634
    %v5651 = vunpack.c.l.bf16 %v5635
    %v5652 = vunpack.c.l.bf16 %v5636
    %v5653 = vunpack.c.l.bf16 %v5637
    %v5654 = vunpack.c.l.bf16 %v5638
    %v5655 = vunpack.c.l.bf16 %v5639
    %5656 = vmatprep.subr.mxu0 0.0
    %5657 = vmatpush1.msra.mxu0 %v5640
    %5658 = vmatprep.subr.mxu0 0.0
    %5659 = vmatpush1.msra.mxu0 %v5641
    %5660 = vmatprep.subr.mxu0 0.0
    %5661 = vmatpush1.msra.mxu0 %v5642
    %5662 = vmatprep.subr.mxu0 0.0
    %5663 = vmatpush1.msra.mxu0 %v5643
    %5664 = vmatprep.subr.mxu0 0.0
    %5665 = vmatpush1.msra.mxu0 %v5644
    %5666 = vmatprep.subr.mxu0 0.0
    %5667 = vmatpush1.msra.mxu0 %v5645
    %5668 = vmatprep.subr.mxu0 0.0
    %5669 = vmatpush1.msra.mxu0 %v5646
    %5670 = vmatprep.subr.mxu0 0.0
    %5671 = vmatpush1.msra.mxu0 %v5647
    %5672 = vmatprep.subr.mxu0 0.0
    %5673 = vmatpush1.msra.mxu0 %v5648
    %5674 = vmatprep.subr.mxu0 0.0
    %5675 = vmatpush1.msra.mxu0 %v5649
    %5676 = vmatprep.subr.mxu0 0.0
    %5677 = vmatpush1.msra.mxu0 %v5650
    %5678 = vmatprep.subr.mxu0 0.0
    %5679 = vmatpush1.msra.mxu0 %v5651
    %5680 = vmatprep.subr.mxu0 0.0
    %5681 = vmatpush1.msra.mxu0 %v5652
    %5682 = vmatprep.subr.mxu0 0.0
    %5683 = vmatpush1.msra.mxu0 %v5653
    %5684 = vmatprep.subr.mxu0 0.0
    %5685 = vmatpush1.msra.mxu0 %v5654
    %5686 = vmatprep.subr.mxu0 0.0
    %5687 = vmatpush1.msra.mxu0 %v5655
    %5688 = vmatprep.subr.mxu0 0.0
    %5689 = vmatpush1.msra.mxu0 0.0
    %5690 = vmatprep.subr.mxu0 0.0
    %5691 = vmatpush1.msra.mxu0 0.0
    %5692 = vmatprep.subr.mxu0 0.0
    %5693 = vmatpush1.msra.mxu0 0.0
    %5694 = vmatprep.subr.mxu0 0.0
    %5695 = vmatpush1.msra.mxu0 0.0
    %5696 = vmatprep.subr.mxu0 0.0
    %5697 = vmatpush1.msra.mxu0 0.0
    %5698 = vmatprep.subr.mxu0 0.0
    %5699 = vmatpush1.msra.mxu0 0.0
    %5700 = vmatprep.subr.mxu0 0.0
    %5701 = vmatpush1.msra.mxu0 0.0
    %5702 = vmatprep.subr.mxu0 0.0
    %5703 = vmatpush1.msra.mxu0 0.0
    %5704 = vmatprep.subr.mxu0 0.0
    %5705 = vmatpush1.msra.mxu0 0.0
    %5706 = vmatprep.subr.mxu0 0.0
    %5707 = vmatpush1.msra.mxu0 0.0
    %5708 = vmatprep.subr.mxu0 0.0
    %5709 = vmatpush1.msra.mxu0 0.0
    %5710 = vmatprep.subr.mxu0 0.0
    %5711 = vmatpush1.msra.mxu0 0.0
    %5712 = vmatprep.subr.mxu0 0.0
    %5713 = vmatpush1.msra.mxu0 0.0
    %5714 = vmatprep.subr.mxu0 0.0
    %5715 = vmatpush1.msra.mxu0 0.0
    %5716 = vmatprep.subr.mxu0 0.0
    %5717 = vmatpush1.msra.mxu0 0.0
    %5718 = vmatprep.subr.mxu0 0.0
    %5719 = vmatpush1.msra.mxu0 0.0
    %5720 = vmatprep.mubr.f32.mxu0 0.0
    %5721 = vmatmul.mubr.f32.gmra.mrb[0].mxu0 %v3286
    %v5722 = vpop.f32.mrb[0].mxu0
    %v5723 = vadd.f32 0.0, %v5722
    %v5724 = vpop.f32.mrb[0].mxu0
    %5725 = vdwg.mxu0
    %v5726 = vadd.f32 %v5620, %v5723
    %s5727 = scalar_lea.vmem %s47, 64
    %v5728 = vld [vmem:[%s5727] sm:$0xf]
    %v5729 = vld [vmem:[%s5727 + $0x4] sm:$0xf]
    %v5730 = vld [vmem:[%s5727 + $0x8] sm:$0xf]
    %v5731 = vld [vmem:[%s5727 + $0xc] sm:$0xf]
    %v5732 = vld [vmem:[%s5727 + $0x10] sm:$0xf]
    %v5733 = vld [vmem:[%s5727 + $0x14] sm:$0xf]
    %v5734 = vld [vmem:[%s5727 + $0x18] sm:$0xf]
    %v5735 = vld [vmem:[%s5727 + $0x1c] sm:$0xf]
    %v5736 = vld [vmem:[%s5727 + $0x20] sm:$0xf]
    %v5737 = vld [vmem:[%s5727 + $0x24] sm:$0xf]
    %v5738 = vld [vmem:[%s5727 + $0x28] sm:$0xf]
    %v5739 = vld [vmem:[%s5727 + $0x2c] sm:$0xf]
    %v5740 = vld [vmem:[%s5727 + $0x30] sm:$0xf]
    %v5741 = vld [vmem:[%s5727 + $0x34] sm:$0xf]
    %v5742 = vld [vmem:[%s5727 + $0x38] sm:$0xf]
    %v5743 = vld [vmem:[%s5727 + $0x3c] sm:$0xf]
    %v5744 = vunpack.c.l.bf16 %v5728
    %v5745 = vunpack.c.l.bf16 %v5729
    %v5746 = vunpack.c.l.bf16 %v5730
    %v5747 = vunpack.c.l.bf16 %v5731
    %v5748 = vunpack.c.l.bf16 %v5732
    %v5749 = vunpack.c.l.bf16 %v5733
    %v5750 = vunpack.c.l.bf16 %v5734
    %v5751 = vunpack.c.l.bf16 %v5735
    %v5752 = vunpack.c.l.bf16 %v5736
    %v5753 = vunpack.c.l.bf16 %v5737
    %v5754 = vunpack.c.l.bf16 %v5738
    %v5755 = vunpack.c.l.bf16 %v5739
    %v5756 = vunpack.c.l.bf16 %v5740
    %v5757 = vunpack.c.l.bf16 %v5741
    %v5758 = vunpack.c.l.bf16 %v5742
    %v5759 = vunpack.c.l.bf16 %v5743
    %5760 = vmatprep.subr.mxu0 0.0
    %5761 = vmatpush1.msra.mxu0 %v5744
    %5762 = vmatprep.subr.mxu0 0.0
    %5763 = vmatpush1.msra.mxu0 %v5745
    %5764 = vmatprep.subr.mxu0 0.0
    %5765 = vmatpush1.msra.mxu0 %v5746
    %5766 = vmatprep.subr.mxu0 0.0
    %5767 = vmatpush1.msra.mxu0 %v5747
    %5768 = vmatprep.subr.mxu0 0.0
    %5769 = vmatpush1.msra.mxu0 %v5748
    %5770 = vmatprep.subr.mxu0 0.0
    %5771 = vmatpush1.msra.mxu0 %v5749
    %5772 = vmatprep.subr.mxu0 0.0
    %5773 = vmatpush1.msra.mxu0 %v5750
    %5774 = vmatprep.subr.mxu0 0.0
    %5775 = vmatpush1.msra.mxu0 %v5751
    %5776 = vmatprep.subr.mxu0 0.0
    %5777 = vmatpush1.msra.mxu0 %v5752
    %5778 = vmatprep.subr.mxu0 0.0
    %5779 = vmatpush1.msra.mxu0 %v5753
    %5780 = vmatprep.subr.mxu0 0.0
    %5781 = vmatpush1.msra.mxu0 %v5754
    %5782 = vmatprep.subr.mxu0 0.0
    %5783 = vmatpush1.msra.mxu0 %v5755
    %5784 = vmatprep.subr.mxu0 0.0
    %5785 = vmatpush1.msra.mxu0 %v5756
    %5786 = vmatprep.subr.mxu0 0.0
    %5787 = vmatpush1.msra.mxu0 %v5757
    %5788 = vmatprep.subr.mxu0 0.0
    %5789 = vmatpush1.msra.mxu0 %v5758
    %5790 = vmatprep.subr.mxu0 0.0
    %5791 = vmatpush1.msra.mxu0 %v5759
    %5792 = vmatprep.subr.mxu0 0.0
    %5793 = vmatpush1.msra.mxu0 0.0
    %5794 = vmatprep.subr.mxu0 0.0
    %5795 = vmatpush1.msra.mxu0 0.0
    %5796 = vmatprep.subr.mxu0 0.0
    %5797 = vmatpush1.msra.mxu0 0.0
    %5798 = vmatprep.subr.mxu0 0.0
    %5799 = vmatpush1.msra.mxu0 0.0
    %5800 = vmatprep.subr.mxu0 0.0
    %5801 = vmatpush1.msra.mxu0 0.0
    %5802 = vmatprep.subr.mxu0 0.0
    %5803 = vmatpush1.msra.mxu0 0.0
    %5804 = vmatprep.subr.mxu0 0.0
    %5805 = vmatpush1.msra.mxu0 0.0
    %5806 = vmatprep.subr.mxu0 0.0
    %5807 = vmatpush1.msra.mxu0 0.0
    %5808 = vmatprep.subr.mxu0 0.0
    %5809 = vmatpush1.msra.mxu0 0.0
    %5810 = vmatprep.subr.mxu0 0.0
    %5811 = vmatpush1.msra.mxu0 0.0
    %5812 = vmatprep.subr.mxu0 0.0
    %5813 = vmatpush1.msra.mxu0 0.0
    %5814 = vmatprep.subr.mxu0 0.0
    %5815 = vmatpush1.msra.mxu0 0.0
    %5816 = vmatprep.subr.mxu0 0.0
    %5817 = vmatpush1.msra.mxu0 0.0
    %5818 = vmatprep.subr.mxu0 0.0
    %5819 = vmatpush1.msra.mxu0 0.0
    %5820 = vmatprep.subr.mxu0 0.0
    %5821 = vmatpush1.msra.mxu0 0.0
    %5822 = vmatprep.subr.mxu0 0.0
    %5823 = vmatpush1.msra.mxu0 0.0
    %5824 = vmatprep.mubr.f32.mxu0 0.0
    %5825 = vmatmul.mubr.f32.gmra.mrb[0].mxu0 %v5416
    %v5826 = vpop.f32.mrb[0].mxu0
    %v5827 = vadd.f32 0.0, %v5826
    %v5828 = vpop.f32.mrb[0].mxu0
    %5829 = vdwg.mxu0
    %v5830 = vadd.f32 %v5726, %v5827
    %s5831 = scalar_lea.vmem %s49, 1
    %v5832 = vld [vmem:[%s5831] sm:$0x1]
    %v5834 = vlaneseq
    %v5835 = vshrl.u32 %v5834, 7
    %v5836 = vsub.s32 0, %v5835
    %v5837 = vrot.slane %v5832, %v5836
    %v5839 = vadd.f32 %v5830, %v5837
    %v5840 = vmax.f32 %v5839, 0.0
    %s5841 = scalar_lea.vmem %s51, 384
    %v5842 = vld [vmem:[%s5841] sm:$0xf]
    %v5843 = vld [vmem:[%s5841 + $0x4] sm:$0xf]
    %v5844 = vld [vmem:[%s5841 + $0x8] sm:$0xf]
    %v5845 = vld [vmem:[%s5841 + $0xc] sm:$0xf]
    %v5846 = vld [vmem:[%s5841 + $0x10] sm:$0xf]
    %v5847 = vld [vmem:[%s5841 + $0x14] sm:$0xf]
    %v5848 = vld [vmem:[%s5841 + $0x18] sm:$0xf]
    %v5849 = vld [vmem:[%s5841 + $0x1c] sm:$0xf]
    %v5850 = vld [vmem:[%s5841 + $0x20] sm:$0xf]
    %v5851 = vld [vmem:[%s5841 + $0x24] sm:$0xf]
    %v5852 = vld [vmem:[%s5841 + $0x28] sm:$0xf]
    %v5853 = vld [vmem:[%s5841 + $0x2c] sm:$0xf]
    %v5854 = vld [vmem:[%s5841 + $0x30] sm:$0xf]
    %v5855 = vld [vmem:[%s5841 + $0x34] sm:$0xf]
    %v5856 = vld [vmem:[%s5841 + $0x38] sm:$0xf]
    %v5857 = vld [vmem:[%s5841 + $0x3c] sm:$0xf]
    %v5858 = vunpack.c.l.bf16 %v5842
    %v5859 = vunpack.c.l.bf16 %v5843
    %v5860 = vunpack.c.l.bf16 %v5844
    %v5861 = vunpack.c.l.bf16 %v5845
    %v5862 = vunpack.c.l.bf16 %v5846
    %v5863 = vunpack.c.l.bf16 %v5847
    %v5864 = vunpack.c.l.bf16 %v5848
    %v5865 = vunpack.c.l.bf16 %v5849
    %v5866 = vunpack.c.l.bf16 %v5850
    %v5867 = vunpack.c.l.bf16 %v5851
    %v5868 = vunpack.c.l.bf16 %v5852
    %v5869 = vunpack.c.l.bf16 %v5853
    %v5870 = vunpack.c.l.bf16 %v5854
    %v5871 = vunpack.c.l.bf16 %v5855
    %v5872 = vunpack.c.l.bf16 %v5856
    %v5873 = vunpack.c.l.bf16 %v5857
    %s5874 = scalar_lea.vmem %s53, 6
    %v5875 = vld [vmem:[%s5874] sm:$0x1]
    %v5877 = vlaneseq
    %v5878 = vshrl.u32 %v5877, 7
    %v5879 = vsub.s32 0, %v5878
    %v5880 = vrot.slane %v5875, %v5879
    %5882 = vmatprep.subr.mxu0 0.0
    %5883 = vmatpush1.msra.mxu0 %v5858
    %5884 = vmatprep.subr.mxu0 0.0
    %5885 = vmatpush1.msra.mxu0 %v5859
    %5886 = vmatprep.subr.mxu0 0.0
    %5887 = vmatpush1.msra.mxu0 %v5860
    %5888 = vmatprep.subr.mxu0 0.0
    %5889 = vmatpush1.msra.mxu0 %v5861
    %5890 = vmatprep.subr.mxu0 0.0
    %5891 = vmatpush1.msra.mxu0 %v5862
    %5892 = vmatprep.subr.mxu0 0.0
    %5893 = vmatpush1.msra.mxu0 %v5863
    %5894 = vmatprep.subr.mxu0 0.0
    %5895 = vmatpush1.msra.mxu0 %v5864
    %5896 = vmatprep.subr.mxu0 0.0
    %5897 = vmatpush1.msra.mxu0 %v5865
    %5898 = vmatprep.subr.mxu0 0.0
    %5899 = vmatpush1.msra.mxu0 %v5866
    %5900 = vmatprep.subr.mxu0 0.0
    %5901 = vmatpush1.msra.mxu0 %v5867
    %5902 = vmatprep.subr.mxu0 0.0
    %5903 = vmatpush1.msra.mxu0 %v5868
    %5904 = vmatprep.subr.mxu0 0.0
    %5905 = vmatpush1.msra.mxu0 %v5869
    %5906 = vmatprep.subr.mxu0 0.0
    %5907 = vmatpush1.msra.mxu0 %v5870
    %5908 = vmatprep.subr.mxu0 0.0
    %5909 = vmatpush1.msra.mxu0 %v5871
    %5910 = vmatprep.subr.mxu0 0.0
    %5911 = vmatpush1.msra.mxu0 %v5872
    %5912 = vmatprep.subr.mxu0 0.0
    %5913 = vmatpush1.msra.mxu0 %v5873
    %5914 = vmatprep.subr.mxu0 0.0
    %5915 = vmatpush1.msra.mxu0 0.0
    %5916 = vmatprep.subr.mxu0 0.0
    %5917 = vmatpush1.msra.mxu0 0.0
    %5918 = vmatprep.subr.mxu0 0.0
    %5919 = vmatpush1.msra.mxu0 0.0
    %5920 = vmatprep.subr.mxu0 0.0
    %5921 = vmatpush1.msra.mxu0 0.0
    %5922 = vmatprep.subr.mxu0 0.0
    %5923 = vmatpush1.msra.mxu0 0.0
    %5924 = vmatprep.subr.mxu0 0.0
    %5925 = vmatpush1.msra.mxu0 0.0
    %5926 = vmatprep.subr.mxu0 0.0
    %5927 = vmatpush1.msra.mxu0 0.0
    %5928 = vmatprep.subr.mxu0 0.0
    %5929 = vmatpush1.msra.mxu0 0.0
    %5930 = vmatprep.subr.mxu0 0.0
    %5931 = vmatpush1.msra.mxu0 0.0
    %5932 = vmatprep.subr.mxu0 0.0
    %5933 = vmatpush1.msra.mxu0 0.0
    %5934 = vmatprep.subr.mxu0 0.0
    %5935 = vmatpush1.msra.mxu0 0.0
    %5936 = vmatprep.subr.mxu0 0.0
    %5937 = vmatpush1.msra.mxu0 0.0
    %5938 = vmatprep.subr.mxu0 0.0
    %5939 = vmatpush1.msra.mxu0 0.0
    %5940 = vmatprep.subr.mxu0 0.0
    %5941 = vmatpush1.msra.mxu0 0.0
    %5942 = vmatprep.subr.mxu0 0.0
    %5943 = vmatpush1.msra.mxu0 0.0
    %5944 = vmatprep.subr.mxu0 0.0
    %5945 = vmatpush1.msra.mxu0 0.0
    %5946 = vmatprep.mubr.f32.mxu0 0.0
    %5947 = vmatmul.mubr.f32.gmra.mrb[0].mxu0 %v5840
    %v5948 = vpop.f32.mrb[0].mxu0
    %v5949 = vadd.f32 %v5880, %v5948
    %v5950 = vpop.f32.mrb[0].mxu0
    %5951 = vdwg.mxu0
    %v5952 = vmax.f32 %v5949, 0.0
    %s5953 = scalar_lea.vmem %s51, 448
    %v5954 = vld [vmem:[%s5953] sm:$0xf]
    %v5955 = vld [vmem:[%s5953 + $0x4] sm:$0xf]
    %v5956 = vld [vmem:[%s5953 + $0x8] sm:$0xf]
    %v5957 = vld [vmem:[%s5953 + $0xc] sm:$0xf]
    %v5958 = vld [vmem:[%s5953 + $0x10] sm:$0xf]
    %v5959 = vld [vmem:[%s5953 + $0x14] sm:$0xf]
    %v5960 = vld [vmem:[%s5953 + $0x18] sm:$0xf]
    %v5961 = vld [vmem:[%s5953 + $0x1c] sm:$0xf]
    %v5962 = vld [vmem:[%s5953 + $0x20] sm:$0xf]
    %v5963 = vld [vmem:[%s5953 + $0x24] sm:$0xf]
    %v5964 = vld [vmem:[%s5953 + $0x28] sm:$0xf]
    %v5965 = vld [vmem:[%s5953 + $0x2c] sm:$0xf]
    %v5966 = vld [vmem:[%s5953 + $0x30] sm:$0xf]
    %v5967 = vld [vmem:[%s5953 + $0x34] sm:$0xf]
    %v5968 = vld [vmem:[%s5953 + $0x38] sm:$0xf]
    %v5969 = vld [vmem:[%s5953 + $0x3c] sm:$0xf]
    %v5970 = vunpack.c.l.bf16 %v5954
    %v5971 = vunpack.c.l.bf16 %v5955
    %v5972 = vunpack.c.l.bf16 %v5956
    %v5973 = vunpack.c.l.bf16 %v5957
    %v5974 = vunpack.c.l.bf16 %v5958
    %v5975 = vunpack.c.l.bf16 %v5959
    %v5976 = vunpack.c.l.bf16 %v5960
    %v5977 = vunpack.c.l.bf16 %v5961
    %v5978 = vunpack.c.l.bf16 %v5962
    %v5979 = vunpack.c.l.bf16 %v5963
    %v5980 = vunpack.c.l.bf16 %v5964
    %v5981 = vunpack.c.l.bf16 %v5965
    %v5982 = vunpack.c.l.bf16 %v5966
    %v5983 = vunpack.c.l.bf16 %v5967
    %v5984 = vunpack.c.l.bf16 %v5968
    %v5985 = vunpack.c.l.bf16 %v5969
    %s5986 = scalar_lea.vmem %s53, 7
    %v5987 = vld [vmem:[%s5986] sm:$0x1]
    %v5989 = vlaneseq
    %v5990 = vshrl.u32 %v5989, 7
    %v5991 = vsub.s32 0, %v5990
    %v5992 = vrot.slane %v5987, %v5991
    %5994 = vmatprep.subr.mxu0 0.0
    %5995 = vmatpush1.msra.mxu0 %v5970
    %5996 = vmatprep.subr.mxu0 0.0
    %5997 = vmatpush1.msra.mxu0 %v5971
    %5998 = vmatprep.subr.mxu0 0.0
    %5999 = vmatpush1.msra.mxu0 %v5972
    %6000 = vmatprep.subr.mxu0 0.0
    %6001 = vmatpush1.msra.mxu0 %v5973
    %6002 = vmatprep.subr.mxu0 0.0
    %6003 = vmatpush1.msra.mxu0 %v5974
    %6004 = vmatprep.subr.mxu0 0.0
    %6005 = vmatpush1.msra.mxu0 %v5975
    %6006 = vmatprep.subr.mxu0 0.0
    %6007 = vmatpush1.msra.mxu0 %v5976
    %6008 = vmatprep.subr.mxu0 0.0
    %6009 = vmatpush1.msra.mxu0 %v5977
    %6010 = vmatprep.subr.mxu0 0.0
    %6011 = vmatpush1.msra.mxu0 %v5978
    %6012 = vmatprep.subr.mxu0 0.0
    %6013 = vmatpush1.msra.mxu0 %v5979
    %6014 = vmatprep.subr.mxu0 0.0
    %6015 = vmatpush1.msra.mxu0 %v5980
    %6016 = vmatprep.subr.mxu0 0.0
    %6017 = vmatpush1.msra.mxu0 %v5981
    %6018 = vmatprep.subr.mxu0 0.0
    %6019 = vmatpush1.msra.mxu0 %v5982
    %6020 = vmatprep.subr.mxu0 0.0
    %6021 = vmatpush1.msra.mxu0 %v5983
    %6022 = vmatprep.subr.mxu0 0.0
    %6023 = vmatpush1.msra.mxu0 %v5984
    %6024 = vmatprep.subr.mxu0 0.0
    %6025 = vmatpush1.msra.mxu0 %v5985
    %6026 = vmatprep.subr.mxu0 0.0
    %6027 = vmatpush1.msra.mxu0 0.0
    %6028 = vmatprep.subr.mxu0 0.0
    %6029 = vmatpush1.msra.mxu0 0.0
    %6030 = vmatprep.subr.mxu0 0.0
    %6031 = vmatpush1.msra.mxu0 0.0
    %6032 = vmatprep.subr.mxu0 0.0
    %6033 = vmatpush1.msra.mxu0 0.0
    %6034 = vmatprep.subr.mxu0 0.0
    %6035 = vmatpush1.msra.mxu0 0.0
    %6036 = vmatprep.subr.mxu0 0.0
    %6037 = vmatpush1.msra.mxu0 0.0
    %6038 = vmatprep.subr.mxu0 0.0
    %6039 = vmatpush1.msra.mxu0 0.0
    %6040 = vmatprep.subr.mxu0 0.0
    %6041 = vmatpush1.msra.mxu0 0.0
    %6042 = vmatprep.subr.mxu0 0.0
    %6043 = vmatpush1.msra.mxu0 0.0
    %6044 = vmatprep.subr.mxu0 0.0
    %6045 = vmatpush1.msra.mxu0 0.0
    %6046 = vmatprep.subr.mxu0 0.0
    %6047 = vmatpush1.msra.mxu0 0.0
    %6048 = vmatprep.subr.mxu0 0.0
    %6049 = vmatpush1.msra.mxu0 0.0
    %6050 = vmatprep.subr.mxu0 0.0
    %6051 = vmatpush1.msra.mxu0 0.0
    %6052 = vmatprep.subr.mxu0 0.0
    %6053 = vmatpush1.msra.mxu0 0.0
    %6054 = vmatprep.subr.mxu0 0.0
    %6055 = vmatpush1.msra.mxu0 0.0
    %6056 = vmatprep.subr.mxu0 0.0
    %6057 = vmatpush1.msra.mxu0 0.0
    %6058 = vmatprep.mubr.f32.mxu0 0.0
    %6059 = vmatmul.mubr.f32.gmra.mrb[0].mxu0 %v5952
    %v6060 = vpop.f32.mrb[0].mxu0
    %v6061 = vadd.f32 %v5992, %v6060
    %v6062 = vpop.f32.mrb[0].mxu0
    %6063 = vdwg.mxu0
    %v6064 = vmax.f32 %v6061, 0.0
    %s6065 = scalar_lea.vmem %s51, 512
    %v6066 = vld [vmem:[%s6065] sm:$0xf]
    %v6067 = vld [vmem:[%s6065 + $0x4] sm:$0xf]
    %v6068 = vld [vmem:[%s6065 + $0x8] sm:$0xf]
    %v6069 = vld [vmem:[%s6065 + $0xc] sm:$0xf]
    %v6070 = vld [vmem:[%s6065 + $0x10] sm:$0xf]
    %v6071 = vld [vmem:[%s6065 + $0x14] sm:$0xf]
    %v6072 = vld [vmem:[%s6065 + $0x18] sm:$0xf]
    %v6073 = vld [vmem:[%s6065 + $0x1c] sm:$0xf]
    %v6074 = vld [vmem:[%s6065 + $0x20] sm:$0xf]
    %v6075 = vld [vmem:[%s6065 + $0x24] sm:$0xf]
    %v6076 = vld [vmem:[%s6065 + $0x28] sm:$0xf]
    %v6077 = vld [vmem:[%s6065 + $0x2c] sm:$0xf]
    %v6078 = vld [vmem:[%s6065 + $0x30] sm:$0xf]
    %v6079 = vld [vmem:[%s6065 + $0x34] sm:$0xf]
    %v6080 = vld [vmem:[%s6065 + $0x38] sm:$0xf]
    %v6081 = vld [vmem:[%s6065 + $0x3c] sm:$0xf]
    %v6082 = vunpack.c.l.bf16 %v6066
    %v6083 = vunpack.c.l.bf16 %v6067
    %v6084 = vunpack.c.l.bf16 %v6068
    %v6085 = vunpack.c.l.bf16 %v6069
    %v6086 = vunpack.c.l.bf16 %v6070
    %v6087 = vunpack.c.l.bf16 %v6071
    %v6088 = vunpack.c.l.bf16 %v6072
    %v6089 = vunpack.c.l.bf16 %v6073
    %v6090 = vunpack.c.l.bf16 %v6074
    %v6091 = vunpack.c.l.bf16 %v6075
    %v6092 = vunpack.c.l.bf16 %v6076
    %v6093 = vunpack.c.l.bf16 %v6077
    %v6094 = vunpack.c.l.bf16 %v6078
    %v6095 = vunpack.c.l.bf16 %v6079
    %v6096 = vunpack.c.l.bf16 %v6080
    %v6097 = vunpack.c.l.bf16 %v6081
    %s6098 = scalar_lea.vmem %s53, 8
    %v6099 = vld [vmem:[%s6098] sm:$0x1]
    %v6101 = vlaneseq
    %v6102 = vshrl.u32 %v6101, 7
    %v6103 = vsub.s32 0, %v6102
    %v6104 = vrot.slane %v6099, %v6103
    %6106 = vmatprep.subr.mxu0 0.0
    %6107 = vmatpush1.msra.mxu0 %v6082
    %6108 = vmatprep.subr.mxu0 0.0
    %6109 = vmatpush1.msra.mxu0 %v6083
    %6110 = vmatprep.subr.mxu0 0.0
    %6111 = vmatpush1.msra.mxu0 %v6084
    %6112 = vmatprep.subr.mxu0 0.0
    %6113 = vmatpush1.msra.mxu0 %v6085
    %6114 = vmatprep.subr.mxu0 0.0
    %6115 = vmatpush1.msra.mxu0 %v6086
    %6116 = vmatprep.subr.mxu0 0.0
    %6117 = vmatpush1.msra.mxu0 %v6087
    %6118 = vmatprep.subr.mxu0 0.0
    %6119 = vmatpush1.msra.mxu0 %v6088
    %6120 = vmatprep.subr.mxu0 0.0
    %6121 = vmatpush1.msra.mxu0 %v6089
    %6122 = vmatprep.subr.mxu0 0.0
    %6123 = vmatpush1.msra.mxu0 %v6090
    %6124 = vmatprep.subr.mxu0 0.0
    %6125 = vmatpush1.msra.mxu0 %v6091
    %6126 = vmatprep.subr.mxu0 0.0
    %6127 = vmatpush1.msra.mxu0 %v6092
    %6128 = vmatprep.subr.mxu0 0.0
    %6129 = vmatpush1.msra.mxu0 %v6093
    %6130 = vmatprep.subr.mxu0 0.0
    %6131 = vmatpush1.msra.mxu0 %v6094
    %6132 = vmatprep.subr.mxu0 0.0
    %6133 = vmatpush1.msra.mxu0 %v6095
    %6134 = vmatprep.subr.mxu0 0.0
    %6135 = vmatpush1.msra.mxu0 %v6096
    %6136 = vmatprep.subr.mxu0 0.0
    %6137 = vmatpush1.msra.mxu0 %v6097
    %6138 = vmatprep.subr.mxu0 0.0
    %6139 = vmatpush1.msra.mxu0 0.0
    %6140 = vmatprep.subr.mxu0 0.0
    %6141 = vmatpush1.msra.mxu0 0.0
    %6142 = vmatprep.subr.mxu0 0.0
    %6143 = vmatpush1.msra.mxu0 0.0
    %6144 = vmatprep.subr.mxu0 0.0
    %6145 = vmatpush1.msra.mxu0 0.0
    %6146 = vmatprep.subr.mxu0 0.0
    %6147 = vmatpush1.msra.mxu0 0.0
    %6148 = vmatprep.subr.mxu0 0.0
    %6149 = vmatpush1.msra.mxu0 0.0
    %6150 = vmatprep.subr.mxu0 0.0
    %6151 = vmatpush1.msra.mxu0 0.0
    %6152 = vmatprep.subr.mxu0 0.0
    %6153 = vmatpush1.msra.mxu0 0.0
    %6154 = vmatprep.subr.mxu0 0.0
    %6155 = vmatpush1.msra.mxu0 0.0
    %6156 = vmatprep.subr.mxu0 0.0
    %6157 = vmatpush1.msra.mxu0 0.0
    %6158 = vmatprep.subr.mxu0 0.0
    %6159 = vmatpush1.msra.mxu0 0.0
    %6160 = vmatprep.subr.mxu0 0.0
    %6161 = vmatpush1.msra.mxu0 0.0
    %6162 = vmatprep.subr.mxu0 0.0
    %6163 = vmatpush1.msra.mxu0 0.0
    %6164 = vmatprep.subr.mxu0 0.0
    %6165 = vmatpush1.msra.mxu0 0.0
    %6166 = vmatprep.subr.mxu0 0.0
    %6167 = vmatpush1.msra.mxu0 0.0
    %6168 = vmatprep.subr.mxu0 0.0
    %6169 = vmatpush1.msra.mxu0 0.0
    %6170 = vmatprep.mubr.f32.mxu0 0.0
    %6171 = vmatmul.mubr.f32.gmra.mrb[0].mxu0 %v6064
    %v6172 = vpop.f32.mrb[0].mxu0
    %v6173 = vadd.f32 %v6104, %v6172
    %v6174 = vpop.f32.mrb[0].mxu0
    %6175 = vdwg.mxu0
    %v6176 = vmax.f32 %v6173, 0.0
    %s6177 = scalar_lea.vmem %s55, 192
    %v6178 = vld [vmem:[%s6177] sm:$0xf]
    %v6179 = vld [vmem:[%s6177 + $0x4] sm:$0xf]
    %v6180 = vld [vmem:[%s6177 + $0x8] sm:$0xf]
    %v6181 = vld [vmem:[%s6177 + $0xc] sm:$0xf]
    %v6182 = vld [vmem:[%s6177 + $0x10] sm:$0xf]
    %v6183 = vld [vmem:[%s6177 + $0x14] sm:$0xf]
    %v6184 = vld [vmem:[%s6177 + $0x18] sm:$0xf]
    %v6185 = vld [vmem:[%s6177 + $0x1c] sm:$0xf]
    %v6186 = vld [vmem:[%s6177 + $0x20] sm:$0xf]
    %v6187 = vld [vmem:[%s6177 + $0x24] sm:$0xf]
    %v6188 = vld [vmem:[%s6177 + $0x28] sm:$0xf]
    %v6189 = vld [vmem:[%s6177 + $0x2c] sm:$0xf]
    %v6190 = vld [vmem:[%s6177 + $0x30] sm:$0xf]
    %v6191 = vld [vmem:[%s6177 + $0x34] sm:$0xf]
    %v6192 = vld [vmem:[%s6177 + $0x38] sm:$0xf]
    %v6193 = vld [vmem:[%s6177 + $0x3c] sm:$0xf]
    %v6194 = vunpack.c.l.bf16 %v6178
    %v6195 = vunpack.c.l.bf16 %v6179
    %v6196 = vunpack.c.l.bf16 %v6180
    %v6197 = vunpack.c.l.bf16 %v6181
    %v6198 = vunpack.c.l.bf16 %v6182
    %v6199 = vunpack.c.l.bf16 %v6183
    %v6200 = vunpack.c.l.bf16 %v6184
    %v6201 = vunpack.c.l.bf16 %v6185
    %v6202 = vunpack.c.l.bf16 %v6186
    %v6203 = vunpack.c.l.bf16 %v6187
    %v6204 = vunpack.c.l.bf16 %v6188
    %v6205 = vunpack.c.l.bf16 %v6189
    %v6206 = vunpack.c.l.bf16 %v6190
    %v6207 = vunpack.c.l.bf16 %v6191
    %v6208 = vunpack.c.l.bf16 %v6192
    %v6209 = vunpack.c.l.bf16 %v6193
    %s6210 = scalar_lea.vmem %s57, 192
    %v6211 = vld [vmem:[%s6210] sm:$0xf]
    %v6212 = vld [vmem:[%s6210 + $0x4] sm:$0xf]
    %v6213 = vld [vmem:[%s6210 + $0x8] sm:$0xf]
    %v6214 = vld [vmem:[%s6210 + $0xc] sm:$0xf]
    %v6215 = vld [vmem:[%s6210 + $0x10] sm:$0xf]
    %v6216 = vld [vmem:[%s6210 + $0x14] sm:$0xf]
    %v6217 = vld [vmem:[%s6210 + $0x18] sm:$0xf]
    %v6218 = vld [vmem:[%s6210 + $0x1c] sm:$0xf]
    %v6219 = vld [vmem:[%s6210 + $0x20] sm:$0xf]
    %v6220 = vld [vmem:[%s6210 + $0x24] sm:$0xf]
    %v6221 = vld [vmem:[%s6210 + $0x28] sm:$0xf]
    %v6222 = vld [vmem:[%s6210 + $0x2c] sm:$0xf]
    %v6223 = vld [vmem:[%s6210 + $0x30] sm:$0xf]
    %v6224 = vld [vmem:[%s6210 + $0x34] sm:$0xf]
    %v6225 = vld [vmem:[%s6210 + $0x38] sm:$0xf]
    %v6226 = vld [vmem:[%s6210 + $0x3c] sm:$0xf]
    %v6227 = vunpack.c.l.bf16 %v6211
    %v6228 = vunpack.c.l.bf16 %v6212
    %v6229 = vunpack.c.l.bf16 %v6213
    %v6230 = vunpack.c.l.bf16 %v6214
    %v6231 = vunpack.c.l.bf16 %v6215
    %v6232 = vunpack.c.l.bf16 %v6216
    %v6233 = vunpack.c.l.bf16 %v6217
    %v6234 = vunpack.c.l.bf16 %v6218
    %v6235 = vunpack.c.l.bf16 %v6219
    %v6236 = vunpack.c.l.bf16 %v6220
    %v6237 = vunpack.c.l.bf16 %v6221
    %v6238 = vunpack.c.l.bf16 %v6222
    %v6239 = vunpack.c.l.bf16 %v6223
    %v6240 = vunpack.c.l.bf16 %v6224
    %v6241 = vunpack.c.l.bf16 %v6225
    %v6242 = vunpack.c.l.bf16 %v6226
    %6243 = vmatprep.subr.mxu0 0.0
    %6244 = vmatpush1.msra.mxu0 %v6227
    %6245 = vmatprep.subr.mxu0 0.0
    %6246 = vmatpush1.msra.mxu0 %v6228
    %6247 = vmatprep.subr.mxu0 0.0
    %6248 = vmatpush1.msra.mxu0 %v6229
    %6249 = vmatprep.subr.mxu0 0.0
    %6250 = vmatpush1.msra.mxu0 %v6230
    %6251 = vmatprep.subr.mxu0 0.0
    %6252 = vmatpush1.msra.mxu0 %v6231
    %6253 = vmatprep.subr.mxu0 0.0
    %6254 = vmatpush1.msra.mxu0 %v6232
    %6255 = vmatprep.subr.mxu0 0.0
    %6256 = vmatpush1.msra.mxu0 %v6233
    %6257 = vmatprep.subr.mxu0 0.0
    %6258 = vmatpush1.msra.mxu0 %v6234
    %6259 = vmatprep.subr.mxu0 0.0
    %6260 = vmatpush1.msra.mxu0 %v6235
    %6261 = vmatprep.subr.mxu0 0.0
    %6262 = vmatpush1.msra.mxu0 %v6236
    %6263 = vmatprep.subr.mxu0 0.0
    %6264 = vmatpush1.msra.mxu0 %v6237
    %6265 = vmatprep.subr.mxu0 0.0
    %6266 = vmatpush1.msra.mxu0 %v6238
    %6267 = vmatprep.subr.mxu0 0.0
    %6268 = vmatpush1.msra.mxu0 %v6239
    %6269 = vmatprep.subr.mxu0 0.0
    %6270 = vmatpush1.msra.mxu0 %v6240
    %6271 = vmatprep.subr.mxu0 0.0
    %6272 = vmatpush1.msra.mxu0 %v6241
    %6273 = vmatprep.subr.mxu0 0.0
    %6274 = vmatpush1.msra.mxu0 %v6242
    %6275 = vmatprep.subr.mxu0 0.0
    %6276 = vmatpush1.msra.mxu0 0.0
    %6277 = vmatprep.subr.mxu0 0.0
    %6278 = vmatpush1.msra.mxu0 0.0
    %6279 = vmatprep.subr.mxu0 0.0
    %6280 = vmatpush1.msra.mxu0 0.0
    %6281 = vmatprep.subr.mxu0 0.0
    %6282 = vmatpush1.msra.mxu0 0.0
    %6283 = vmatprep.subr.mxu0 0.0
    %6284 = vmatpush1.msra.mxu0 0.0
    %6285 = vmatprep.subr.mxu0 0.0
    %6286 = vmatpush1.msra.mxu0 0.0
    %6287 = vmatprep.subr.mxu0 0.0
    %6288 = vmatpush1.msra.mxu0 0.0
    %6289 = vmatprep.subr.mxu0 0.0
    %6290 = vmatpush1.msra.mxu0 0.0
    %6291 = vmatprep.subr.mxu0 0.0
    %6292 = vmatpush1.msra.mxu0 0.0
    %6293 = vmatprep.subr.mxu0 0.0
    %6294 = vmatpush1.msra.mxu0 0.0
    %6295 = vmatprep.subr.mxu0 0.0
    %6296 = vmatpush1.msra.mxu0 0.0
    %6297 = vmatprep.subr.mxu0 0.0
    %6298 = vmatpush1.msra.mxu0 0.0
    %6299 = vmatprep.subr.mxu0 0.0
    %6300 = vmatpush1.msra.mxu0 0.0
    %6301 = vmatprep.subr.mxu0 0.0
    %6302 = vmatpush1.msra.mxu0 0.0
    %6303 = vmatprep.subr.mxu0 0.0
    %6304 = vmatpush1.msra.mxu0 0.0
    %6305 = vmatprep.subr.mxu0 0.0
    %6306 = vmatpush1.msra.mxu0 0.0
    %6307 = vmatprep.mubr.f32.mxu0 0.0
    %6308 = vmatmul.mubr.f32.gmra.mrb[0].mxu0 %v6176
    %v6309 = vpop.f32.mrb[0].mxu0
    %v6310 = vadd.f32 0.0, %v6309
    %v6311 = vpop.f32.mrb[0].mxu0
    %6312 = vdwg.mxu0
    %6313 = vmatprep.subr.mxu0 0.0
    %6314 = vmatpush1.msra.mxu0 %v6194
    %6315 = vmatprep.subr.mxu0 0.0
    %6316 = vmatpush1.msra.mxu0 %v6195
    %6317 = vmatprep.subr.mxu0 0.0
    %6318 = vmatpush1.msra.mxu0 %v6196
    %6319 = vmatprep.subr.mxu0 0.0
    %6320 = vmatpush1.msra.mxu0 %v6197
    %6321 = vmatprep.subr.mxu0 0.0
    %6322 = vmatpush1.msra.mxu0 %v6198
    %6323 = vmatprep.subr.mxu0 0.0
    %6324 = vmatpush1.msra.mxu0 %v6199
    %6325 = vmatprep.subr.mxu0 0.0
    %6326 = vmatpush1.msra.mxu0 %v6200
    %6327 = vmatprep.subr.mxu0 0.0
    %6328 = vmatpush1.msra.mxu0 %v6201
    %6329 = vmatprep.subr.mxu0 0.0
    %6330 = vmatpush1.msra.mxu0 %v6202
    %6331 = vmatprep.subr.mxu0 0.0
    %6332 = vmatpush1.msra.mxu0 %v6203
    %6333 = vmatprep.subr.mxu0 0.0
    %6334 = vmatpush1.msra.mxu0 %v6204
    %6335 = vmatprep.subr.mxu0 0.0
    %6336 = vmatpush1.msra.mxu0 %v6205
    %6337 = vmatprep.subr.mxu0 0.0
    %6338 = vmatpush1.msra.mxu0 %v6206
    %6339 = vmatprep.subr.mxu0 0.0
    %6340 = vmatpush1.msra.mxu0 %v6207
    %6341 = vmatprep.subr.mxu0 0.0
    %6342 = vmatpush1.msra.mxu0 %v6208
    %6343 = vmatprep.subr.mxu0 0.0
    %6344 = vmatpush1.msra.mxu0 %v6209
    %6345 = vmatprep.subr.mxu0 0.0
    %6346 = vmatpush1.msra.mxu0 0.0
    %6347 = vmatprep.subr.mxu0 0.0
    %6348 = vmatpush1.msra.mxu0 0.0
    %6349 = vmatprep.subr.mxu0 0.0
    %6350 = vmatpush1.msra.mxu0 0.0
    %6351 = vmatprep.subr.mxu0 0.0
    %6352 = vmatpush1.msra.mxu0 0.0
    %6353 = vmatprep.subr.mxu0 0.0
    %6354 = vmatpush1.msra.mxu0 0.0
    %6355 = vmatprep.subr.mxu0 0.0
    %6356 = vmatpush1.msra.mxu0 0.0
    %6357 = vmatprep.subr.mxu0 0.0
    %6358 = vmatpush1.msra.mxu0 0.0
    %6359 = vmatprep.subr.mxu0 0.0
    %6360 = vmatpush1.msra.mxu0 0.0
    %6361 = vmatprep.subr.mxu0 0.0
    %6362 = vmatpush1.msra.mxu0 0.0
    %6363 = vmatprep.subr.mxu0 0.0
    %6364 = vmatpush1.msra.mxu0 0.0
    %6365 = vmatprep.subr.mxu0 0.0
    %6366 = vmatpush1.msra.mxu0 0.0
    %6367 = vmatprep.subr.mxu0 0.0
    %6368 = vmatpush1.msra.mxu0 0.0
    %6369 = vmatprep.subr.mxu0 0.0
    %6370 = vmatpush1.msra.mxu0 0.0
    %6371 = vmatprep.subr.mxu0 0.0
    %6372 = vmatpush1.msra.mxu0 0.0
    %6373 = vmatprep.subr.mxu0 0.0
    %6374 = vmatpush1.msra.mxu0 0.0
    %6375 = vmatprep.subr.mxu0 0.0
    %6376 = vmatpush1.msra.mxu0 0.0
    %6377 = vmatprep.mubr.f32.mxu0 0.0
    %6378 = vmatmul.mubr.f32.gmra.mrb[0].mxu0 %v6064
    %v6379 = vpop.f32.mrb[0].mxu0
    %v6380 = vadd.f32 %v6310, %v6379
    %v6381 = vpop.f32.mrb[0].mxu0
    %6382 = vdwg.mxu0
    %s6383 = scalar_lea.vmem %s59, 3
    %v6384 = vld [vmem:[%s6383] sm:$0x1]
    %v6386 = vlaneseq
    %v6387 = vshrl.u32 %v6386, 7
    %v6388 = vsub.s32 0, %v6387
    %v6389 = vrot.slane %v6384, %v6388
    %v6391 = vadd.f32 %v6380, %v6389
    %v6392 = vmax.f32 %v6391, 0.0
    %s6393 = scalar_lea.vmem %s51, 576
    %v6394 = vld [vmem:[%s6393] sm:$0xf]
    %v6395 = vld [vmem:[%s6393 + $0x4] sm:$0xf]
    %v6396 = vld [vmem:[%s6393 + $0x8] sm:$0xf]
    %v6397 = vld [vmem:[%s6393 + $0xc] sm:$0xf]
    %v6398 = vld [vmem:[%s6393 + $0x10] sm:$0xf]
    %v6399 = vld [vmem:[%s6393 + $0x14] sm:$0xf]
    %v6400 = vld [vmem:[%s6393 + $0x18] sm:$0xf]
    %v6401 = vld [vmem:[%s6393 + $0x1c] sm:$0xf]
    %v6402 = vld [vmem:[%s6393 + $0x20] sm:$0xf]
    %v6403 = vld [vmem:[%s6393 + $0x24] sm:$0xf]
    %v6404 = vld [vmem:[%s6393 + $0x28] sm:$0xf]
    %v6405 = vld [vmem:[%s6393 + $0x2c] sm:$0xf]
    %v6406 = vld [vmem:[%s6393 + $0x30] sm:$0xf]
    %v6407 = vld [vmem:[%s6393 + $0x34] sm:$0xf]
    %v6408 = vld [vmem:[%s6393 + $0x38] sm:$0xf]
    %v6409 = vld [vmem:[%s6393 + $0x3c] sm:$0xf]
    %v6410 = vunpack.c.l.bf16 %v6394
    %v6411 = vunpack.c.l.bf16 %v6395
    %v6412 = vunpack.c.l.bf16 %v6396
    %v6413 = vunpack.c.l.bf16 %v6397
    %v6414 = vunpack.c.l.bf16 %v6398
    %v6415 = vunpack.c.l.bf16 %v6399
    %v6416 = vunpack.c.l.bf16 %v6400
    %v6417 = vunpack.c.l.bf16 %v6401
    %v6418 = vunpack.c.l.bf16 %v6402
    %v6419 = vunpack.c.l.bf16 %v6403
    %v6420 = vunpack.c.l.bf16 %v6404
    %v6421 = vunpack.c.l.bf16 %v6405
    %v6422 = vunpack.c.l.bf16 %v6406
    %v6423 = vunpack.c.l.bf16 %v6407
    %v6424 = vunpack.c.l.bf16 %v6408
    %v6425 = vunpack.c.l.bf16 %v6409
    %s6426 = scalar_lea.vmem %s53, 9
    %v6427 = vld [vmem:[%s6426] sm:$0x1]
    %v6429 = vlaneseq
    %v6430 = vshrl.u32 %v6429, 7
    %v6431 = vsub.s32 0, %v6430
    %v6432 = vrot.slane %v6427, %v6431
    %6434 = vmatprep.subr.mxu0 0.0
    %6435 = vmatpush1.msra.mxu0 %v6410
    %6436 = vmatprep.subr.mxu0 0.0
    %6437 = vmatpush1.msra.mxu0 %v6411
    %6438 = vmatprep.subr.mxu0 0.0
    %6439 = vmatpush1.msra.mxu0 %v6412
    %6440 = vmatprep.subr.mxu0 0.0
    %6441 = vmatpush1.msra.mxu0 %v6413
    %6442 = vmatprep.subr.mxu0 0.0
    %6443 = vmatpush1.msra.mxu0 %v6414
    %6444 = vmatprep.subr.mxu0 0.0
    %6445 = vmatpush1.msra.mxu0 %v6415
    %6446 = vmatprep.subr.mxu0 0.0
    %6447 = vmatpush1.msra.mxu0 %v6416
    %6448 = vmatprep.subr.mxu0 0.0
    %6449 = vmatpush1.msra.mxu0 %v6417
    %6450 = vmatprep.subr.mxu0 0.0
    %6451 = vmatpush1.msra.mxu0 %v6418
    %6452 = vmatprep.subr.mxu0 0.0
    %6453 = vmatpush1.msra.mxu0 %v6419
    %6454 = vmatprep.subr.mxu0 0.0
    %6455 = vmatpush1.msra.mxu0 %v6420
    %6456 = vmatprep.subr.mxu0 0.0
    %6457 = vmatpush1.msra.mxu0 %v6421
    %6458 = vmatprep.subr.mxu0 0.0
    %6459 = vmatpush1.msra.mxu0 %v6422
    %6460 = vmatprep.subr.mxu0 0.0
    %6461 = vmatpush1.msra.mxu0 %v6423
    %6462 = vmatprep.subr.mxu0 0.0
    %6463 = vmatpush1.msra.mxu0 %v6424
    %6464 = vmatprep.subr.mxu0 0.0
    %6465 = vmatpush1.msra.mxu0 %v6425
    %6466 = vmatprep.subr.mxu0 0.0
    %6467 = vmatpush1.msra.mxu0 0.0
    %6468 = vmatprep.subr.mxu0 0.0
    %6469 = vmatpush1.msra.mxu0 0.0
    %6470 = vmatprep.subr.mxu0 0.0
    %6471 = vmatpush1.msra.mxu0 0.0
    %6472 = vmatprep.subr.mxu0 0.0
    %6473 = vmatpush1.msra.mxu0 0.0
    %6474 = vmatprep.subr.mxu0 0.0
    %6475 = vmatpush1.msra.mxu0 0.0
    %6476 = vmatprep.subr.mxu0 0.0
    %6477 = vmatpush1.msra.mxu0 0.0
    %6478 = vmatprep.subr.mxu0 0.0
    %6479 = vmatpush1.msra.mxu0 0.0
    %6480 = vmatprep.subr.mxu0 0.0
    %6481 = vmatpush1.msra.mxu0 0.0
    %6482 = vmatprep.subr.mxu0 0.0
    %6483 = vmatpush1.msra.mxu0 0.0
    %6484 = vmatprep.subr.mxu0 0.0
    %6485 = vmatpush1.msra.mxu0 0.0
    %6486 = vmatprep.subr.mxu0 0.0
    %6487 = vmatpush1.msra.mxu0 0.0
    %6488 = vmatprep.subr.mxu0 0.0
    %6489 = vmatpush1.msra.mxu0 0.0
    %6490 = vmatprep.subr.mxu0 0.0
    %6491 = vmatpush1.msra.mxu0 0.0
    %6492 = vmatprep.subr.mxu0 0.0
    %6493 = vmatpush1.msra.mxu0 0.0
    %6494 = vmatprep.subr.mxu0 0.0
    %6495 = vmatpush1.msra.mxu0 0.0
    %6496 = vmatprep.subr.mxu0 0.0
    %6497 = vmatpush1.msra.mxu0 0.0
    %6498 = vmatprep.mubr.f32.mxu0 0.0
    %6499 = vmatmul.mubr.f32.gmra.mrb[0].mxu0 %v6392
    %v6500 = vpop.f32.mrb[0].mxu0
    %v6501 = vadd.f32 %v6432, %v6500
    %v6502 = vpop.f32.mrb[0].mxu0
    %6503 = vdwg.mxu0
    %v6504 = vmax.f32 %v6501, 0.0
    %s6505 = scalar_lea.vmem %s55, 256
    %v6506 = vld [vmem:[%s6505] sm:$0xf]
    %v6507 = vld [vmem:[%s6505 + $0x4] sm:$0xf]
    %v6508 = vld [vmem:[%s6505 + $0x8] sm:$0xf]
    %v6509 = vld [vmem:[%s6505 + $0xc] sm:$0xf]
    %v6510 = vld [vmem:[%s6505 + $0x10] sm:$0xf]
    %v6511 = vld [vmem:[%s6505 + $0x14] sm:$0xf]
    %v6512 = vld [vmem:[%s6505 + $0x18] sm:$0xf]
    %v6513 = vld [vmem:[%s6505 + $0x1c] sm:$0xf]
    %v6514 = vld [vmem:[%s6505 + $0x20] sm:$0xf]
    %v6515 = vld [vmem:[%s6505 + $0x24] sm:$0xf]
    %v6516 = vld [vmem:[%s6505 + $0x28] sm:$0xf]
    %v6517 = vld [vmem:[%s6505 + $0x2c] sm:$0xf]
    %v6518 = vld [vmem:[%s6505 + $0x30] sm:$0xf]
    %v6519 = vld [vmem:[%s6505 + $0x34] sm:$0xf]
    %v6520 = vld [vmem:[%s6505 + $0x38] sm:$0xf]
    %v6521 = vld [vmem:[%s6505 + $0x3c] sm:$0xf]
    %v6522 = vunpack.c.l.bf16 %v6506
    %v6523 = vunpack.c.l.bf16 %v6507
    %v6524 = vunpack.c.l.bf16 %v6508
    %v6525 = vunpack.c.l.bf16 %v6509
    %v6526 = vunpack.c.l.bf16 %v6510
    %v6527 = vunpack.c.l.bf16 %v6511
    %v6528 = vunpack.c.l.bf16 %v6512
    %v6529 = vunpack.c.l.bf16 %v6513
    %v6530 = vunpack.c.l.bf16 %v6514
    %v6531 = vunpack.c.l.bf16 %v6515
    %v6532 = vunpack.c.l.bf16 %v6516
    %v6533 = vunpack.c.l.bf16 %v6517
    %v6534 = vunpack.c.l.bf16 %v6518
    %v6535 = vunpack.c.l.bf16 %v6519
    %v6536 = vunpack.c.l.bf16 %v6520
    %v6537 = vunpack.c.l.bf16 %v6521
    %s6538 = scalar_lea.vmem %s57, 256
    %v6539 = vld [vmem:[%s6538] sm:$0xf]
    %v6540 = vld [vmem:[%s6538 + $0x4] sm:$0xf]
    %v6541 = vld [vmem:[%s6538 + $0x8] sm:$0xf]
    %v6542 = vld [vmem:[%s6538 + $0xc] sm:$0xf]
    %v6543 = vld [vmem:[%s6538 + $0x10] sm:$0xf]
    %v6544 = vld [vmem:[%s6538 + $0x14] sm:$0xf]
    %v6545 = vld [vmem:[%s6538 + $0x18] sm:$0xf]
    %v6546 = vld [vmem:[%s6538 + $0x1c] sm:$0xf]
    %v6547 = vld [vmem:[%s6538 + $0x20] sm:$0xf]
    %v6548 = vld [vmem:[%s6538 + $0x24] sm:$0xf]
    %v6549 = vld [vmem:[%s6538 + $0x28] sm:$0xf]
    %v6550 = vld [vmem:[%s6538 + $0x2c] sm:$0xf]
    %v6551 = vld [vmem:[%s6538 + $0x30] sm:$0xf]
    %v6552 = vld [vmem:[%s6538 + $0x34] sm:$0xf]
    %v6553 = vld [vmem:[%s6538 + $0x38] sm:$0xf]
    %v6554 = vld [vmem:[%s6538 + $0x3c] sm:$0xf]
    %v6555 = vunpack.c.l.bf16 %v6539
    %v6556 = vunpack.c.l.bf16 %v6540
    %v6557 = vunpack.c.l.bf16 %v6541
    %v6558 = vunpack.c.l.bf16 %v6542
    %v6559 = vunpack.c.l.bf16 %v6543
    %v6560 = vunpack.c.l.bf16 %v6544
    %v6561 = vunpack.c.l.bf16 %v6545
    %v6562 = vunpack.c.l.bf16 %v6546
    %v6563 = vunpack.c.l.bf16 %v6547
    %v6564 = vunpack.c.l.bf16 %v6548
    %v6565 = vunpack.c.l.bf16 %v6549
    %v6566 = vunpack.c.l.bf16 %v6550
    %v6567 = vunpack.c.l.bf16 %v6551
    %v6568 = vunpack.c.l.bf16 %v6552
    %v6569 = vunpack.c.l.bf16 %v6553
    %v6570 = vunpack.c.l.bf16 %v6554
    %6571 = vmatprep.subr.mxu0 0.0
    %6572 = vmatpush1.msra.mxu0 %v6555
    %6573 = vmatprep.subr.mxu0 0.0
    %6574 = vmatpush1.msra.mxu0 %v6556
    %6575 = vmatprep.subr.mxu0 0.0
    %6576 = vmatpush1.msra.mxu0 %v6557
    %6577 = vmatprep.subr.mxu0 0.0
    %6578 = vmatpush1.msra.mxu0 %v6558
    %6579 = vmatprep.subr.mxu0 0.0
    %6580 = vmatpush1.msra.mxu0 %v6559
    %6581 = vmatprep.subr.mxu0 0.0
    %6582 = vmatpush1.msra.mxu0 %v6560
    %6583 = vmatprep.subr.mxu0 0.0
    %6584 = vmatpush1.msra.mxu0 %v6561
    %6585 = vmatprep.subr.mxu0 0.0
    %6586 = vmatpush1.msra.mxu0 %v6562
    %6587 = vmatprep.subr.mxu0 0.0
    %6588 = vmatpush1.msra.mxu0 %v6563
    %6589 = vmatprep.subr.mxu0 0.0
    %6590 = vmatpush1.msra.mxu0 %v6564
    %6591 = vmatprep.subr.mxu0 0.0
    %6592 = vmatpush1.msra.mxu0 %v6565
    %6593 = vmatprep.subr.mxu0 0.0
    %6594 = vmatpush1.msra.mxu0 %v6566
    %6595 = vmatprep.subr.mxu0 0.0
    %6596 = vmatpush1.msra.mxu0 %v6567
    %6597 = vmatprep.subr.mxu0 0.0
    %6598 = vmatpush1.msra.mxu0 %v6568
    %6599 = vmatprep.subr.mxu0 0.0
    %6600 = vmatpush1.msra.mxu0 %v6569
    %6601 = vmatprep.subr.mxu0 0.0
    %6602 = vmatpush1.msra.mxu0 %v6570
    %6603 = vmatprep.subr.mxu0 0.0
    %6604 = vmatpush1.msra.mxu0 0.0
    %6605 = vmatprep.subr.mxu0 0.0
    %6606 = vmatpush1.msra.mxu0 0.0
    %6607 = vmatprep.subr.mxu0 0.0
    %6608 = vmatpush1.msra.mxu0 0.0
    %6609 = vmatprep.subr.mxu0 0.0
    %6610 = vmatpush1.msra.mxu0 0.0
    %6611 = vmatprep.subr.mxu0 0.0
    %6612 = vmatpush1.msra.mxu0 0.0
    %6613 = vmatprep.subr.mxu0 0.0
    %6614 = vmatpush1.msra.mxu0 0.0
    %6615 = vmatprep.subr.mxu0 0.0
    %6616 = vmatpush1.msra.mxu0 0.0
    %6617 = vmatprep.subr.mxu0 0.0
    %6618 = vmatpush1.msra.mxu0 0.0
    %6619 = vmatprep.subr.mxu0 0.0
    %6620 = vmatpush1.msra.mxu0 0.0
    %6621 = vmatprep.subr.mxu0 0.0
    %6622 = vmatpush1.msra.mxu0 0.0
    %6623 = vmatprep.subr.mxu0 0.0
    %6624 = vmatpush1.msra.mxu0 0.0
    %6625 = vmatprep.subr.mxu0 0.0
    %6626 = vmatpush1.msra.mxu0 0.0
    %6627 = vmatprep.subr.mxu0 0.0
    %6628 = vmatpush1.msra.mxu0 0.0
    %6629 = vmatprep.subr.mxu0 0.0
    %6630 = vmatpush1.msra.mxu0 0.0
    %6631 = vmatprep.subr.mxu0 0.0
    %6632 = vmatpush1.msra.mxu0 0.0
    %6633 = vmatprep.subr.mxu0 0.0
    %6634 = vmatpush1.msra.mxu0 0.0
    %6635 = vmatprep.mubr.f32.mxu0 0.0
    %6636 = vmatmul.mubr.f32.gmra.mrb[0].mxu0 %v6504
    %v6637 = vpop.f32.mrb[0].mxu0
    %v6638 = vadd.f32 0.0, %v6637
    %v6639 = vpop.f32.mrb[0].mxu0
    %6640 = vdwg.mxu0
    %6641 = vmatprep.subr.mxu0 0.0
    %6642 = vmatpush1.msra.mxu0 %v6522
    %6643 = vmatprep.subr.mxu0 0.0
    %6644 = vmatpush1.msra.mxu0 %v6523
    %6645 = vmatprep.subr.mxu0 0.0
    %6646 = vmatpush1.msra.mxu0 %v6524
    %6647 = vmatprep.subr.mxu0 0.0
    %6648 = vmatpush1.msra.mxu0 %v6525
    %6649 = vmatprep.subr.mxu0 0.0
    %6650 = vmatpush1.msra.mxu0 %v6526
    %6651 = vmatprep.subr.mxu0 0.0
    %6652 = vmatpush1.msra.mxu0 %v6527
    %6653 = vmatprep.subr.mxu0 0.0
    %6654 = vmatpush1.msra.mxu0 %v6528
    %6655 = vmatprep.subr.mxu0 0.0
    %6656 = vmatpush1.msra.mxu0 %v6529
    %6657 = vmatprep.subr.mxu0 0.0
    %6658 = vmatpush1.msra.mxu0 %v6530
    %6659 = vmatprep.subr.mxu0 0.0
    %6660 = vmatpush1.msra.mxu0 %v6531
    %6661 = vmatprep.subr.mxu0 0.0
    %6662 = vmatpush1.msra.mxu0 %v6532
    %6663 = vmatprep.subr.mxu0 0.0
    %6664 = vmatpush1.msra.mxu0 %v6533
    %6665 = vmatprep.subr.mxu0 0.0
    %6666 = vmatpush1.msra.mxu0 %v6534
    %6667 = vmatprep.subr.mxu0 0.0
    %6668 = vmatpush1.msra.mxu0 %v6535
    %6669 = vmatprep.subr.mxu0 0.0
    %6670 = vmatpush1.msra.mxu0 %v6536
    %6671 = vmatprep.subr.mxu0 0.0
    %6672 = vmatpush1.msra.mxu0 %v6537
    %6673 = vmatprep.subr.mxu0 0.0
    %6674 = vmatpush1.msra.mxu0 0.0
    %6675 = vmatprep.subr.mxu0 0.0
    %6676 = vmatpush1.msra.mxu0 0.0
    %6677 = vmatprep.subr.mxu0 0.0
    %6678 = vmatpush1.msra.mxu0 0.0
    %6679 = vmatprep.subr.mxu0 0.0
    %6680 = vmatpush1.msra.mxu0 0.0
    %6681 = vmatprep.subr.mxu0 0.0
    %6682 = vmatpush1.msra.mxu0 0.0
    %6683 = vmatprep.subr.mxu0 0.0
    %6684 = vmatpush1.msra.mxu0 0.0
    %6685 = vmatprep.subr.mxu0 0.0
    %6686 = vmatpush1.msra.mxu0 0.0
    %6687 = vmatprep.subr.mxu0 0.0
    %6688 = vmatpush1.msra.mxu0 0.0
    %6689 = vmatprep.subr.mxu0 0.0
    %6690 = vmatpush1.msra.mxu0 0.0
    %6691 = vmatprep.subr.mxu0 0.0
    %6692 = vmatpush1.msra.mxu0 0.0
    %6693 = vmatprep.subr.mxu0 0.0
    %6694 = vmatpush1.msra.mxu0 0.0
    %6695 = vmatprep.subr.mxu0 0.0
    %6696 = vmatpush1.msra.mxu0 0.0
    %6697 = vmatprep.subr.mxu0 0.0
    %6698 = vmatpush1.msra.mxu0 0.0
    %6699 = vmatprep.subr.mxu0 0.0
    %6700 = vmatpush1.msra.mxu0 0.0
    %6701 = vmatprep.subr.mxu0 0.0
    %6702 = vmatpush1.msra.mxu0 0.0
    %6703 = vmatprep.subr.mxu0 0.0
    %6704 = vmatpush1.msra.mxu0 0.0
    %6705 = vmatprep.mubr.f32.mxu0 0.0
    %6706 = vmatmul.mubr.f32.gmra.mrb[0].mxu0 %v5952
    %v6707 = vpop.f32.mrb[0].mxu0
    %v6708 = vadd.f32 %v6638, %v6707
    %v6709 = vpop.f32.mrb[0].mxu0
    %6710 = vdwg.mxu0
    %s6711 = scalar_lea.vmem %s59, 4
    %v6712 = vld [vmem:[%s6711] sm:$0x1]
    %v6714 = vlaneseq
    %v6715 = vshrl.u32 %v6714, 7
    %v6716 = vsub.s32 0, %v6715
    %v6717 = vrot.slane %v6712, %v6716
    %v6719 = vadd.f32 %v6708, %v6717
    %v6720 = vmax.f32 %v6719, 0.0
    %s6721 = scalar_lea.vmem %s51, 640
    %v6722 = vld [vmem:[%s6721] sm:$0xf]
    %v6723 = vld [vmem:[%s6721 + $0x4] sm:$0xf]
    %v6724 = vld [vmem:[%s6721 + $0x8] sm:$0xf]
    %v6725 = vld [vmem:[%s6721 + $0xc] sm:$0xf]
    %v6726 = vld [vmem:[%s6721 + $0x10] sm:$0xf]
    %v6727 = vld [vmem:[%s6721 + $0x14] sm:$0xf]
    %v6728 = vld [vmem:[%s6721 + $0x18] sm:$0xf]
    %v6729 = vld [vmem:[%s6721 + $0x1c] sm:$0xf]
    %v6730 = vld [vmem:[%s6721 + $0x20] sm:$0xf]
    %v6731 = vld [vmem:[%s6721 + $0x24] sm:$0xf]
    %v6732 = vld [vmem:[%s6721 + $0x28] sm:$0xf]
    %v6733 = vld [vmem:[%s6721 + $0x2c] sm:$0xf]
    %v6734 = vld [vmem:[%s6721 + $0x30] sm:$0xf]
    %v6735 = vld [vmem:[%s6721 + $0x34] sm:$0xf]
    %v6736 = vld [vmem:[%s6721 + $0x38] sm:$0xf]
    %v6737 = vld [vmem:[%s6721 + $0x3c] sm:$0xf]
    %v6738 = vunpack.c.l.bf16 %v6722
    %v6739 = vunpack.c.l.bf16 %v6723
    %v6740 = vunpack.c.l.bf16 %v6724
    %v6741 = vunpack.c.l.bf16 %v6725
    %v6742 = vunpack.c.l.bf16 %v6726
    %v6743 = vunpack.c.l.bf16 %v6727
    %v6744 = vunpack.c.l.bf16 %v6728
    %v6745 = vunpack.c.l.bf16 %v6729
    %v6746 = vunpack.c.l.bf16 %v6730
    %v6747 = vunpack.c.l.bf16 %v6731
    %v6748 = vunpack.c.l.bf16 %v6732
    %v6749 = vunpack.c.l.bf16 %v6733
    %v6750 = vunpack.c.l.bf16 %v6734
    %v6751 = vunpack.c.l.bf16 %v6735
    %v6752 = vunpack.c.l.bf16 %v6736
    %v6753 = vunpack.c.l.bf16 %v6737
    %s6754 = scalar_lea.vmem %s53, 10
    %v6755 = vld [vmem:[%s6754] sm:$0x1]
    %v6757 = vlaneseq
    %v6758 = vshrl.u32 %v6757, 7
    %v6759 = vsub.s32 0, %v6758
    %v6760 = vrot.slane %v6755, %v6759
    %6762 = vmatprep.subr.mxu0 0.0
    %6763 = vmatpush1.msra.mxu0 %v6738
    %6764 = vmatprep.subr.mxu0 0.0
    %6765 = vmatpush1.msra.mxu0 %v6739
    %6766 = vmatprep.subr.mxu0 0.0
    %6767 = vmatpush1.msra.mxu0 %v6740
    %6768 = vmatprep.subr.mxu0 0.0
    %6769 = vmatpush1.msra.mxu0 %v6741
    %6770 = vmatprep.subr.mxu0 0.0
    %6771 = vmatpush1.msra.mxu0 %v6742
    %6772 = vmatprep.subr.mxu0 0.0
    %6773 = vmatpush1.msra.mxu0 %v6743
    %6774 = vmatprep.subr.mxu0 0.0
    %6775 = vmatpush1.msra.mxu0 %v6744
    %6776 = vmatprep.subr.mxu0 0.0
    %6777 = vmatpush1.msra.mxu0 %v6745
    %6778 = vmatprep.subr.mxu0 0.0
    %6779 = vmatpush1.msra.mxu0 %v6746
    %6780 = vmatprep.subr.mxu0 0.0
    %6781 = vmatpush1.msra.mxu0 %v6747
    %6782 = vmatprep.subr.mxu0 0.0
    %6783 = vmatpush1.msra.mxu0 %v6748
    %6784 = vmatprep.subr.mxu0 0.0
    %6785 = vmatpush1.msra.mxu0 %v6749
    %6786 = vmatprep.subr.mxu0 0.0
    %6787 = vmatpush1.msra.mxu0 %v6750
    %6788 = vmatprep.subr.mxu0 0.0
    %6789 = vmatpush1.msra.mxu0 %v6751
    %6790 = vmatprep.subr.mxu0 0.0
    %6791 = vmatpush1.msra.mxu0 %v6752
    %6792 = vmatprep.subr.mxu0 0.0
    %6793 = vmatpush1.msra.mxu0 %v6753
    %6794 = vmatprep.subr.mxu0 0.0
    %6795 = vmatpush1.msra.mxu0 0.0
    %6796 = vmatprep.subr.mxu0 0.0
    %6797 = vmatpush1.msra.mxu0 0.0
    %6798 = vmatprep.subr.mxu0 0.0
    %6799 = vmatpush1.msra.mxu0 0.0
    %6800 = vmatprep.subr.mxu0 0.0
    %6801 = vmatpush1.msra.mxu0 0.0
    %6802 = vmatprep.subr.mxu0 0.0
    %6803 = vmatpush1.msra.mxu0 0.0
    %6804 = vmatprep.subr.mxu0 0.0
    %6805 = vmatpush1.msra.mxu0 0.0
    %6806 = vmatprep.subr.mxu0 0.0
    %6807 = vmatpush1.msra.mxu0 0.0
    %6808 = vmatprep.subr.mxu0 0.0
    %6809 = vmatpush1.msra.mxu0 0.0
    %6810 = vmatprep.subr.mxu0 0.0
    %6811 = vmatpush1.msra.mxu0 0.0
    %6812 = vmatprep.subr.mxu0 0.0
    %6813 = vmatpush1.msra.mxu0 0.0
    %6814 = vmatprep.subr.mxu0 0.0
    %6815 = vmatpush1.msra.mxu0 0.0
    %6816 = vmatprep.subr.mxu0 0.0
    %6817 = vmatpush1.msra.mxu0 0.0
    %6818 = vmatprep.subr.mxu0 0.0
    %6819 = vmatpush1.msra.mxu0 0.0
    %6820 = vmatprep.subr.mxu0 0.0
    %6821 = vmatpush1.msra.mxu0 0.0
    %6822 = vmatprep.subr.mxu0 0.0
    %6823 = vmatpush1.msra.mxu0 0.0
    %6824 = vmatprep.subr.mxu0 0.0
    %6825 = vmatpush1.msra.mxu0 0.0
    %6826 = vmatprep.mubr.f32.mxu0 0.0
    %6827 = vmatmul.mubr.f32.gmra.mrb[0].mxu0 %v6720
    %v6828 = vpop.f32.mrb[0].mxu0
    %v6829 = vadd.f32 %v6760, %v6828
    %v6830 = vpop.f32.mrb[0].mxu0
    %6831 = vdwg.mxu0
    %v6832 = vmax.f32 %v6829, 0.0
    %s6833 = scalar_lea.vmem %s55, 320
    %v6834 = vld [vmem:[%s6833] sm:$0xf]
    %v6835 = vld [vmem:[%s6833 + $0x4] sm:$0xf]
    %v6836 = vld [vmem:[%s6833 + $0x8] sm:$0xf]
    %v6837 = vld [vmem:[%s6833 + $0xc] sm:$0xf]
    %v6838 = vld [vmem:[%s6833 + $0x10] sm:$0xf]
    %v6839 = vld [vmem:[%s6833 + $0x14] sm:$0xf]
    %v6840 = vld [vmem:[%s6833 + $0x18] sm:$0xf]
    %v6841 = vld [vmem:[%s6833 + $0x1c] sm:$0xf]
    %v6842 = vld [vmem:[%s6833 + $0x20] sm:$0xf]
    %v6843 = vld [vmem:[%s6833 + $0x24] sm:$0xf]
    %v6844 = vld [vmem:[%s6833 + $0x28] sm:$0xf]
    %v6845 = vld [vmem:[%s6833 + $0x2c] sm:$0xf]
    %v6846 = vld [vmem:[%s6833 + $0x30] sm:$0xf]
    %v6847 = vld [vmem:[%s6833 + $0x34] sm:$0xf]
    %v6848 = vld [vmem:[%s6833 + $0x38] sm:$0xf]
    %v6849 = vld [vmem:[%s6833 + $0x3c] sm:$0xf]
    %v6850 = vunpack.c.l.bf16 %v6834
    %v6851 = vunpack.c.l.bf16 %v6835
    %v6852 = vunpack.c.l.bf16 %v6836
    %v6853 = vunpack.c.l.bf16 %v6837
    %v6854 = vunpack.c.l.bf16 %v6838
    %v6855 = vunpack.c.l.bf16 %v6839
    %v6856 = vunpack.c.l.bf16 %v6840
    %v6857 = vunpack.c.l.bf16 %v6841
    %v6858 = vunpack.c.l.bf16 %v6842
    %v6859 = vunpack.c.l.bf16 %v6843
    %v6860 = vunpack.c.l.bf16 %v6844
    %v6861 = vunpack.c.l.bf16 %v6845
    %v6862 = vunpack.c.l.bf16 %v6846
    %v6863 = vunpack.c.l.bf16 %v6847
    %v6864 = vunpack.c.l.bf16 %v6848
    %v6865 = vunpack.c.l.bf16 %v6849
    %s6866 = scalar_lea.vmem %s57, 320
    %v6867 = vld [vmem:[%s6866] sm:$0xf]
    %v6868 = vld [vmem:[%s6866 + $0x4] sm:$0xf]
    %v6869 = vld [vmem:[%s6866 + $0x8] sm:$0xf]
    %v6870 = vld [vmem:[%s6866 + $0xc] sm:$0xf]
    %v6871 = vld [vmem:[%s6866 + $0x10] sm:$0xf]
    %v6872 = vld [vmem:[%s6866 + $0x14] sm:$0xf]
    %v6873 = vld [vmem:[%s6866 + $0x18] sm:$0xf]
    %v6874 = vld [vmem:[%s6866 + $0x1c] sm:$0xf]
    %v6875 = vld [vmem:[%s6866 + $0x20] sm:$0xf]
    %v6876 = vld [vmem:[%s6866 + $0x24] sm:$0xf]
    %v6877 = vld [vmem:[%s6866 + $0x28] sm:$0xf]
    %v6878 = vld [vmem:[%s6866 + $0x2c] sm:$0xf]
    %v6879 = vld [vmem:[%s6866 + $0x30] sm:$0xf]
    %v6880 = vld [vmem:[%s6866 + $0x34] sm:$0xf]
    %v6881 = vld [vmem:[%s6866 + $0x38] sm:$0xf]
    %v6882 = vld [vmem:[%s6866 + $0x3c] sm:$0xf]
    %v6883 = vunpack.c.l.bf16 %v6867
    %v6884 = vunpack.c.l.bf16 %v6868
    %v6885 = vunpack.c.l.bf16 %v6869
    %v6886 = vunpack.c.l.bf16 %v6870
    %v6887 = vunpack.c.l.bf16 %v6871
    %v6888 = vunpack.c.l.bf16 %v6872
    %v6889 = vunpack.c.l.bf16 %v6873
    %v6890 = vunpack.c.l.bf16 %v6874
    %v6891 = vunpack.c.l.bf16 %v6875
    %v6892 = vunpack.c.l.bf16 %v6876
    %v6893 = vunpack.c.l.bf16 %v6877
    %v6894 = vunpack.c.l.bf16 %v6878
    %v6895 = vunpack.c.l.bf16 %v6879
    %v6896 = vunpack.c.l.bf16 %v6880
    %v6897 = vunpack.c.l.bf16 %v6881
    %v6898 = vunpack.c.l.bf16 %v6882
    %6899 = vmatprep.subr.mxu0 0.0
    %6900 = vmatpush1.msra.mxu0 %v6883
    %6901 = vmatprep.subr.mxu0 0.0
    %6902 = vmatpush1.msra.mxu0 %v6884
    %6903 = vmatprep.subr.mxu0 0.0
    %6904 = vmatpush1.msra.mxu0 %v6885
    %6905 = vmatprep.subr.mxu0 0.0
    %6906 = vmatpush1.msra.mxu0 %v6886
    %6907 = vmatprep.subr.mxu0 0.0
    %6908 = vmatpush1.msra.mxu0 %v6887
    %6909 = vmatprep.subr.mxu0 0.0
    %6910 = vmatpush1.msra.mxu0 %v6888
    %6911 = vmatprep.subr.mxu0 0.0
    %6912 = vmatpush1.msra.mxu0 %v6889
    %6913 = vmatprep.subr.mxu0 0.0
    %6914 = vmatpush1.msra.mxu0 %v6890
    %6915 = vmatprep.subr.mxu0 0.0
    %6916 = vmatpush1.msra.mxu0 %v6891
    %6917 = vmatprep.subr.mxu0 0.0
    %6918 = vmatpush1.msra.mxu0 %v6892
    %6919 = vmatprep.subr.mxu0 0.0
    %6920 = vmatpush1.msra.mxu0 %v6893
    %6921 = vmatprep.subr.mxu0 0.0
    %6922 = vmatpush1.msra.mxu0 %v6894
    %6923 = vmatprep.subr.mxu0 0.0
    %6924 = vmatpush1.msra.mxu0 %v6895
    %6925 = vmatprep.subr.mxu0 0.0
    %6926 = vmatpush1.msra.mxu0 %v6896
    %6927 = vmatprep.subr.mxu0 0.0
    %6928 = vmatpush1.msra.mxu0 %v6897
    %6929 = vmatprep.subr.mxu0 0.0
    %6930 = vmatpush1.msra.mxu0 %v6898
    %6931 = vmatprep.subr.mxu0 0.0
    %6932 = vmatpush1.msra.mxu0 0.0
    %6933 = vmatprep.subr.mxu0 0.0
    %6934 = vmatpush1.msra.mxu0 0.0
    %6935 = vmatprep.subr.mxu0 0.0
    %6936 = vmatpush1.msra.mxu0 0.0
    %6937 = vmatprep.subr.mxu0 0.0
    %6938 = vmatpush1.msra.mxu0 0.0
    %6939 = vmatprep.subr.mxu0 0.0
    %6940 = vmatpush1.msra.mxu0 0.0
    %6941 = vmatprep.subr.mxu0 0.0
    %6942 = vmatpush1.msra.mxu0 0.0
    %6943 = vmatprep.subr.mxu0 0.0
    %6944 = vmatpush1.msra.mxu0 0.0
    %6945 = vmatprep.subr.mxu0 0.0
    %6946 = vmatpush1.msra.mxu0 0.0
    %6947 = vmatprep.subr.mxu0 0.0
    %6948 = vmatpush1.msra.mxu0 0.0
    %6949 = vmatprep.subr.mxu0 0.0
    %6950 = vmatpush1.msra.mxu0 0.0
    %6951 = vmatprep.subr.mxu0 0.0
    %6952 = vmatpush1.msra.mxu0 0.0
    %6953 = vmatprep.subr.mxu0 0.0
    %6954 = vmatpush1.msra.mxu0 0.0
    %6955 = vmatprep.subr.mxu0 0.0
    %6956 = vmatpush1.msra.mxu0 0.0
    %6957 = vmatprep.subr.mxu0 0.0
    %6958 = vmatpush1.msra.mxu0 0.0
    %6959 = vmatprep.subr.mxu0 0.0
    %6960 = vmatpush1.msra.mxu0 0.0
    %6961 = vmatprep.subr.mxu0 0.0
    %6962 = vmatpush1.msra.mxu0 0.0
    %6963 = vmatprep.mubr.f32.mxu0 0.0
    %6964 = vmatmul.mubr.f32.gmra.mrb[0].mxu0 %v6832
    %v6965 = vpop.f32.mrb[0].mxu0
    %v6966 = vadd.f32 0.0, %v6965
    %v6967 = vpop.f32.mrb[0].mxu0
    %6968 = vdwg.mxu0
    %6969 = vmatprep.subr.mxu0 0.0
    %6970 = vmatpush1.msra.mxu0 %v6850
    %6971 = vmatprep.subr.mxu0 0.0
    %6972 = vmatpush1.msra.mxu0 %v6851
    %6973 = vmatprep.subr.mxu0 0.0
    %6974 = vmatpush1.msra.mxu0 %v6852
    %6975 = vmatprep.subr.mxu0 0.0
    %6976 = vmatpush1.msra.mxu0 %v6853
    %6977 = vmatprep.subr.mxu0 0.0
    %6978 = vmatpush1.msra.mxu0 %v6854
    %6979 = vmatprep.subr.mxu0 0.0
    %6980 = vmatpush1.msra.mxu0 %v6855
    %6981 = vmatprep.subr.mxu0 0.0
    %6982 = vmatpush1.msra.mxu0 %v6856
    %6983 = vmatprep.subr.mxu0 0.0
    %6984 = vmatpush1.msra.mxu0 %v6857
    %6985 = vmatprep.subr.mxu0 0.0
    %6986 = vmatpush1.msra.mxu0 %v6858
    %6987 = vmatprep.subr.mxu0 0.0
    %6988 = vmatpush1.msra.mxu0 %v6859
    %6989 = vmatprep.subr.mxu0 0.0
    %6990 = vmatpush1.msra.mxu0 %v6860
    %6991 = vmatprep.subr.mxu0 0.0
    %6992 = vmatpush1.msra.mxu0 %v6861
    %6993 = vmatprep.subr.mxu0 0.0
    %6994 = vmatpush1.msra.mxu0 %v6862
    %6995 = vmatprep.subr.mxu0 0.0
    %6996 = vmatpush1.msra.mxu0 %v6863
    %6997 = vmatprep.subr.mxu0 0.0
    %6998 = vmatpush1.msra.mxu0 %v6864
    %6999 = vmatprep.subr.mxu0 0.0
    %7000 = vmatpush1.msra.mxu0 %v6865
    %7001 = vmatprep.subr.mxu0 0.0
    %7002 = vmatpush1.msra.mxu0 0.0
    %7003 = vmatprep.subr.mxu0 0.0
    %7004 = vmatpush1.msra.mxu0 0.0
    %7005 = vmatprep.subr.mxu0 0.0
    %7006 = vmatpush1.msra.mxu0 0.0
    %7007 = vmatprep.subr.mxu0 0.0
    %7008 = vmatpush1.msra.mxu0 0.0
    %7009 = vmatprep.subr.mxu0 0.0
    %7010 = vmatpush1.msra.mxu0 0.0
    %7011 = vmatprep.subr.mxu0 0.0
    %7012 = vmatpush1.msra.mxu0 0.0
    %7013 = vmatprep.subr.mxu0 0.0
    %7014 = vmatpush1.msra.mxu0 0.0
    %7015 = vmatprep.subr.mxu0 0.0
    %7016 = vmatpush1.msra.mxu0 0.0
    %7017 = vmatprep.subr.mxu0 0.0
    %7018 = vmatpush1.msra.mxu0 0.0
    %7019 = vmatprep.subr.mxu0 0.0
    %7020 = vmatpush1.msra.mxu0 0.0
    %7021 = vmatprep.subr.mxu0 0.0
    %7022 = vmatpush1.msra.mxu0 0.0
    %7023 = vmatprep.subr.mxu0 0.0
    %7024 = vmatpush1.msra.mxu0 0.0
    %7025 = vmatprep.subr.mxu0 0.0
    %7026 = vmatpush1.msra.mxu0 0.0
    %7027 = vmatprep.subr.mxu0 0.0
    %7028 = vmatpush1.msra.mxu0 0.0
    %7029 = vmatprep.subr.mxu0 0.0
    %7030 = vmatpush1.msra.mxu0 0.0
    %7031 = vmatprep.subr.mxu0 0.0
    %7032 = vmatpush1.msra.mxu0 0.0
    %7033 = vmatprep.mubr.f32.mxu0 0.0
    %7034 = vmatmul.mubr.f32.gmra.mrb[0].mxu0 %v5840
    %v7035 = vpop.f32.mrb[0].mxu0
    %v7036 = vadd.f32 %v6966, %v7035
    %v7037 = vpop.f32.mrb[0].mxu0
    %7038 = vdwg.mxu0
    %s7039 = scalar_lea.vmem %s59, 5
    %v7040 = vld [vmem:[%s7039] sm:$0x1]
    %v7042 = vlaneseq
    %v7043 = vshrl.u32 %v7042, 7
    %v7044 = vsub.s32 0, %v7043
    %v7045 = vrot.slane %v7040, %v7044
    %v7047 = vadd.f32 %v7036, %v7045
    %v7048 = vmax.f32 %v7047, 0.0
    %s7049 = scalar_lea.vmem %s51, 704
    %v7050 = vld [vmem:[%s7049] sm:$0xf]
    %v7051 = vld [vmem:[%s7049 + $0x4] sm:$0xf]
    %v7052 = vld [vmem:[%s7049 + $0x8] sm:$0xf]
    %v7053 = vld [vmem:[%s7049 + $0xc] sm:$0xf]
    %v7054 = vld [vmem:[%s7049 + $0x10] sm:$0xf]
    %v7055 = vld [vmem:[%s7049 + $0x14] sm:$0xf]
    %v7056 = vld [vmem:[%s7049 + $0x18] sm:$0xf]
    %v7057 = vld [vmem:[%s7049 + $0x1c] sm:$0xf]
    %v7058 = vld [vmem:[%s7049 + $0x20] sm:$0xf]
    %v7059 = vld [vmem:[%s7049 + $0x24] sm:$0xf]
    %v7060 = vld [vmem:[%s7049 + $0x28] sm:$0xf]
    %v7061 = vld [vmem:[%s7049 + $0x2c] sm:$0xf]
    %v7062 = vld [vmem:[%s7049 + $0x30] sm:$0xf]
    %v7063 = vld [vmem:[%s7049 + $0x34] sm:$0xf]
    %v7064 = vld [vmem:[%s7049 + $0x38] sm:$0xf]
    %v7065 = vld [vmem:[%s7049 + $0x3c] sm:$0xf]
    %v7066 = vunpack.c.l.bf16 %v7050
    %v7067 = vunpack.c.l.bf16 %v7051
    %v7068 = vunpack.c.l.bf16 %v7052
    %v7069 = vunpack.c.l.bf16 %v7053
    %v7070 = vunpack.c.l.bf16 %v7054
    %v7071 = vunpack.c.l.bf16 %v7055
    %v7072 = vunpack.c.l.bf16 %v7056
    %v7073 = vunpack.c.l.bf16 %v7057
    %v7074 = vunpack.c.l.bf16 %v7058
    %v7075 = vunpack.c.l.bf16 %v7059
    %v7076 = vunpack.c.l.bf16 %v7060
    %v7077 = vunpack.c.l.bf16 %v7061
    %v7078 = vunpack.c.l.bf16 %v7062
    %v7079 = vunpack.c.l.bf16 %v7063
    %v7080 = vunpack.c.l.bf16 %v7064
    %v7081 = vunpack.c.l.bf16 %v7065
    %s7082 = scalar_lea.vmem %s53, 11
    %v7083 = vld [vmem:[%s7082] sm:$0x1]
    %v7085 = vlaneseq
    %v7086 = vshrl.u32 %v7085, 7
    %v7087 = vsub.s32 0, %v7086
    %v7088 = vrot.slane %v7083, %v7087
    %7090 = vmatprep.subr.mxu0 0.0
    %7091 = vmatpush1.msra.mxu0 %v7066
    %7092 = vmatprep.subr.mxu0 0.0
    %7093 = vmatpush1.msra.mxu0 %v7067
    %7094 = vmatprep.subr.mxu0 0.0
    %7095 = vmatpush1.msra.mxu0 %v7068
    %7096 = vmatprep.subr.mxu0 0.0
    %7097 = vmatpush1.msra.mxu0 %v7069
    %7098 = vmatprep.subr.mxu0 0.0
    %7099 = vmatpush1.msra.mxu0 %v7070
    %7100 = vmatprep.subr.mxu0 0.0
    %7101 = vmatpush1.msra.mxu0 %v7071
    %7102 = vmatprep.subr.mxu0 0.0
    %7103 = vmatpush1.msra.mxu0 %v7072
    %7104 = vmatprep.subr.mxu0 0.0
    %7105 = vmatpush1.msra.mxu0 %v7073
    %7106 = vmatprep.subr.mxu0 0.0
    %7107 = vmatpush1.msra.mxu0 %v7074
    %7108 = vmatprep.subr.mxu0 0.0
    %7109 = vmatpush1.msra.mxu0 %v7075
    %7110 = vmatprep.subr.mxu0 0.0
    %7111 = vmatpush1.msra.mxu0 %v7076
    %7112 = vmatprep.subr.mxu0 0.0
    %7113 = vmatpush1.msra.mxu0 %v7077
    %7114 = vmatprep.subr.mxu0 0.0
    %7115 = vmatpush1.msra.mxu0 %v7078
    %7116 = vmatprep.subr.mxu0 0.0
    %7117 = vmatpush1.msra.mxu0 %v7079
    %7118 = vmatprep.subr.mxu0 0.0
    %7119 = vmatpush1.msra.mxu0 %v7080
    %7120 = vmatprep.subr.mxu0 0.0
    %7121 = vmatpush1.msra.mxu0 %v7081
    %7122 = vmatprep.subr.mxu0 0.0
    %7123 = vmatpush1.msra.mxu0 0.0
    %7124 = vmatprep.subr.mxu0 0.0
    %7125 = vmatpush1.msra.mxu0 0.0
    %7126 = vmatprep.subr.mxu0 0.0
    %7127 = vmatpush1.msra.mxu0 0.0
    %7128 = vmatprep.subr.mxu0 0.0
    %7129 = vmatpush1.msra.mxu0 0.0
    %7130 = vmatprep.subr.mxu0 0.0
    %7131 = vmatpush1.msra.mxu0 0.0
    %7132 = vmatprep.subr.mxu0 0.0
    %7133 = vmatpush1.msra.mxu0 0.0
    %7134 = vmatprep.subr.mxu0 0.0
    %7135 = vmatpush1.msra.mxu0 0.0
    %7136 = vmatprep.subr.mxu0 0.0
    %7137 = vmatpush1.msra.mxu0 0.0
    %7138 = vmatprep.subr.mxu0 0.0
    %7139 = vmatpush1.msra.mxu0 0.0
    %7140 = vmatprep.subr.mxu0 0.0
    %7141 = vmatpush1.msra.mxu0 0.0
    %7142 = vmatprep.subr.mxu0 0.0
    %7143 = vmatpush1.msra.mxu0 0.0
    %7144 = vmatprep.subr.mxu0 0.0
    %7145 = vmatpush1.msra.mxu0 0.0
    %7146 = vmatprep.subr.mxu0 0.0
    %7147 = vmatpush1.msra.mxu0 0.0
    %7148 = vmatprep.subr.mxu0 0.0
    %7149 = vmatpush1.msra.mxu0 0.0
    %7150 = vmatprep.subr.mxu0 0.0
    %7151 = vmatpush1.msra.mxu0 0.0
    %7152 = vmatprep.subr.mxu0 0.0
    %7153 = vmatpush1.msra.mxu0 0.0
    %7154 = vmatprep.mubr.f32.mxu0 0.0
    %7155 = vmatmul.mubr.f32.gmra.mrb[0].mxu0 %v7048
    %v7156 = vpop.f32.mrb[0].mxu0
    %v7157 = vadd.f32 %v7088, %v7156
    %v7158 = vpop.f32.mrb[0].mxu0
    %7159 = vdwg.mxu0
    %v7160 = vmax.f32 %v7157, 0.0
    %s7161 = scalar_lea.vmem %s61, 64
    %v7162 = vld [vmem:[%s7161] sm:$0xf]
    %v7163 = vld [vmem:[%s7161 + $0x4] sm:$0xf]
    %v7164 = vld [vmem:[%s7161 + $0x8] sm:$0xf]
    %v7165 = vld [vmem:[%s7161 + $0xc] sm:$0xf]
    %v7166 = vld [vmem:[%s7161 + $0x10] sm:$0xf]
    %v7167 = vld [vmem:[%s7161 + $0x14] sm:$0xf]
    %v7168 = vld [vmem:[%s7161 + $0x18] sm:$0xf]
    %v7169 = vld [vmem:[%s7161 + $0x1c] sm:$0xf]
    %v7170 = vld [vmem:[%s7161 + $0x20] sm:$0xf]
    %v7171 = vld [vmem:[%s7161 + $0x24] sm:$0xf]
    %v7172 = vld [vmem:[%s7161 + $0x28] sm:$0xf]
    %v7173 = vld [vmem:[%s7161 + $0x2c] sm:$0xf]
    %v7174 = vld [vmem:[%s7161 + $0x30] sm:$0xf]
    %v7175 = vld [vmem:[%s7161 + $0x34] sm:$0xf]
    %v7176 = vld [vmem:[%s7161 + $0x38] sm:$0xf]
    %v7177 = vld [vmem:[%s7161 + $0x3c] sm:$0xf]
    %v7178 = vunpack.c.l.bf16 %v7162
    %v7179 = vunpack.c.l.bf16 %v7163
    %v7180 = vunpack.c.l.bf16 %v7164
    %v7181 = vunpack.c.l.bf16 %v7165
    %v7182 = vunpack.c.l.bf16 %v7166
    %v7183 = vunpack.c.l.bf16 %v7167
    %v7184 = vunpack.c.l.bf16 %v7168
    %v7185 = vunpack.c.l.bf16 %v7169
    %v7186 = vunpack.c.l.bf16 %v7170
    %v7187 = vunpack.c.l.bf16 %v7171
    %v7188 = vunpack.c.l.bf16 %v7172
    %v7189 = vunpack.c.l.bf16 %v7173
    %v7190 = vunpack.c.l.bf16 %v7174
    %v7191 = vunpack.c.l.bf16 %v7175
    %v7192 = vunpack.c.l.bf16 %v7176
    %v7193 = vunpack.c.l.bf16 %v7177
    %s7194 = scalar_lea.vmem %s63, 1
    %v7195 = vld [vmem:[%s7194] sm:$0x1]
    %v7197 = vlaneseq
    %v7198 = vshrl.u32 %v7197, 7
    %v7199 = vsub.s32 0, %v7198
    %v7200 = vrot.slane %v7195, %v7199
    %7202 = vmatprep.subr.mxu0 0.0
    %7203 = vmatpush1.msra.mxu0 %v7178
    %7204 = vmatprep.subr.mxu0 0.0
    %7205 = vmatpush1.msra.mxu0 %v7179
    %7206 = vmatprep.subr.mxu0 0.0
    %7207 = vmatpush1.msra.mxu0 %v7180
    %7208 = vmatprep.subr.mxu0 0.0
    %7209 = vmatpush1.msra.mxu0 %v7181
    %7210 = vmatprep.subr.mxu0 0.0
    %7211 = vmatpush1.msra.mxu0 %v7182
    %7212 = vmatprep.subr.mxu0 0.0
    %7213 = vmatpush1.msra.mxu0 %v7183
    %7214 = vmatprep.subr.mxu0 0.0
    %7215 = vmatpush1.msra.mxu0 %v7184
    %7216 = vmatprep.subr.mxu0 0.0
    %7217 = vmatpush1.msra.mxu0 %v7185
    %7218 = vmatprep.subr.mxu0 0.0
    %7219 = vmatpush1.msra.mxu0 %v7186
    %7220 = vmatprep.subr.mxu0 0.0
    %7221 = vmatpush1.msra.mxu0 %v7187
    %7222 = vmatprep.subr.mxu0 0.0
    %7223 = vmatpush1.msra.mxu0 %v7188
    %7224 = vmatprep.subr.mxu0 0.0
    %7225 = vmatpush1.msra.mxu0 %v7189
    %7226 = vmatprep.subr.mxu0 0.0
    %7227 = vmatpush1.msra.mxu0 %v7190
    %7228 = vmatprep.subr.mxu0 0.0
    %7229 = vmatpush1.msra.mxu0 %v7191
    %7230 = vmatprep.subr.mxu0 0.0
    %7231 = vmatpush1.msra.mxu0 %v7192
    %7232 = vmatprep.subr.mxu0 0.0
    %7233 = vmatpush1.msra.mxu0 %v7193
    %7234 = vmatprep.subr.mxu0 0.0
    %7235 = vmatpush1.msra.mxu0 0.0
    %7236 = vmatprep.subr.mxu0 0.0
    %7237 = vmatpush1.msra.mxu0 0.0
    %7238 = vmatprep.subr.mxu0 0.0
    %7239 = vmatpush1.msra.mxu0 0.0
    %7240 = vmatprep.subr.mxu0 0.0
    %7241 = vmatpush1.msra.mxu0 0.0
    %7242 = vmatprep.subr.mxu0 0.0
    %7243 = vmatpush1.msra.mxu0 0.0
    %7244 = vmatprep.subr.mxu0 0.0
    %7245 = vmatpush1.msra.mxu0 0.0
    %7246 = vmatprep.subr.mxu0 0.0
    %7247 = vmatpush1.msra.mxu0 0.0
    %7248 = vmatprep.subr.mxu0 0.0
    %7249 = vmatpush1.msra.mxu0 0.0
    %7250 = vmatprep.subr.mxu0 0.0
    %7251 = vmatpush1.msra.mxu0 0.0
    %7252 = vmatprep.subr.mxu0 0.0
    %7253 = vmatpush1.msra.mxu0 0.0
    %7254 = vmatprep.subr.mxu0 0.0
    %7255 = vmatpush1.msra.mxu0 0.0
    %7256 = vmatprep.subr.mxu0 0.0
    %7257 = vmatpush1.msra.mxu0 0.0
    %7258 = vmatprep.subr.mxu0 0.0
    %7259 = vmatpush1.msra.mxu0 0.0
    %7260 = vmatprep.subr.mxu0 0.0
    %7261 = vmatpush1.msra.mxu0 0.0
    %7262 = vmatprep.subr.mxu0 0.0
    %7263 = vmatpush1.msra.mxu0 0.0
    %7264 = vmatprep.subr.mxu0 0.0
    %7265 = vmatpush1.msra.mxu0 0.0
    %7266 = vmatprep.mubr.f32.mxu0 0.0
    %7267 = vmatmul.mubr.f32.gmra.mrb[0].mxu0 %v7160
    %v7268 = vpop.f32.mrb[0].mxu0
    %v7269 = vadd.f32 %v7200, %v7268
    %v7270 = vpop.f32.mrb[0].mxu0
    %7271 = vdwg.mxu0
    %7272 = vst.msk [vmem:[%s65 + $0x8] sm:$0xff] %vm3410, %v7269
    %v7273 = vld [vmem:[%s7 + $0x10] sm:$0xff]
    %s7274 = scalar_lea.vmem %s37, 16
    %v7275 = vld [vmem:[%s7274] sm:$0xf]
    %v7276 = vld [vmem:[%s7274 + $0x4] sm:$0xf]
    %v7277 = vunpack.c.l.bf16 %v7275
    %v7278 = vunpack.c.l.bf16 %v7276
    %s7279 = scalar_lea.vmem %s39, 2
    %v7280 = vld [vmem:[%s7279] sm:$0x1]
    %v7282 = vlaneseq
    %v7283 = vshrl.u32 %v7282, 7
    %v7284 = vsub.s32 0, %v7283
    %v7285 = vrot.slane %v7280, %v7284
    %v7288 = vsel %vm3410, %v7273, 0
    %7290 = vmatprep.subr.mxu0 0.0
    %7291 = vmatpush1.msra.mxu0 %v7277
    %7292 = vmatprep.subr.mxu0 0.0
    %7293 = vmatpush1.msra.mxu0 %v7278
    %7294 = vmatprep.subr.mxu0 0.0
    %7295 = vmatpush1.msra.mxu0 0.0
    %7296 = vmatprep.subr.mxu0 0.0
    %7297 = vmatpush1.msra.mxu0 0.0
    %7298 = vmatprep.subr.mxu0 0.0
    %7299 = vmatpush1.msra.mxu0 0.0
    %7300 = vmatprep.subr.mxu0 0.0
    %7301 = vmatpush1.msra.mxu0 0.0
    %7302 = vmatprep.subr.mxu0 0.0
    %7303 = vmatpush1.msra.mxu0 0.0
    %7304 = vmatprep.subr.mxu0 0.0
    %7305 = vmatpush1.msra.mxu0 0.0
    %7306 = vmatprep.subr.mxu0 0.0
    %7307 = vmatpush1.msra.mxu0 0.0
    %7308 = vmatprep.subr.mxu0 0.0
    %7309 = vmatpush1.msra.mxu0 0.0
    %7310 = vmatprep.subr.mxu0 0.0
    %7311 = vmatpush1.msra.mxu0 0.0
    %7312 = vmatprep.subr.mxu0 0.0
    %7313 = vmatpush1.msra.mxu0 0.0
    %7314 = vmatprep.subr.mxu0 0.0
    %7315 = vmatpush1.msra.mxu0 0.0
    %7316 = vmatprep.subr.mxu0 0.0
    %7317 = vmatpush1.msra.mxu0 0.0
    %7318 = vmatprep.subr.mxu0 0.0
    %7319 = vmatpush1.msra.mxu0 0.0
    %7320 = vmatprep.subr.mxu0 0.0
    %7321 = vmatpush1.msra.mxu0 0.0
    %7322 = vmatprep.subr.mxu0 0.0
    %7323 = vmatpush1.msra.mxu0 0.0
    %7324 = vmatprep.subr.mxu0 0.0
    %7325 = vmatpush1.msra.mxu0 0.0
    %7326 = vmatprep.subr.mxu0 0.0
    %7327 = vmatpush1.msra.mxu0 0.0
    %7328 = vmatprep.subr.mxu0 0.0
    %7329 = vmatpush1.msra.mxu0 0.0
    %7330 = vmatprep.subr.mxu0 0.0
    %7331 = vmatpush1.msra.mxu0 0.0
    %7332 = vmatprep.subr.mxu0 0.0
    %7333 = vmatpush1.msra.mxu0 0.0
    %7334 = vmatprep.subr.mxu0 0.0
    %7335 = vmatpush1.msra.mxu0 0.0
    %7336 = vmatprep.subr.mxu0 0.0
    %7337 = vmatpush1.msra.mxu0 0.0
    %7338 = vmatprep.subr.mxu0 0.0
    %7339 = vmatpush1.msra.mxu0 0.0
    %7340 = vmatprep.subr.mxu0 0.0
    %7341 = vmatpush1.msra.mxu0 0.0
    %7342 = vmatprep.subr.mxu0 0.0
    %7343 = vmatpush1.msra.mxu0 0.0
    %7344 = vmatprep.subr.mxu0 0.0
    %7345 = vmatpush1.msra.mxu0 0.0
    %7346 = vmatprep.subr.mxu0 0.0
    %7347 = vmatpush1.msra.mxu0 0.0
    %7348 = vmatprep.subr.mxu0 0.0
    %7349 = vmatpush1.msra.mxu0 0.0
    %7350 = vmatprep.subr.mxu0 0.0
    %7351 = vmatpush1.msra.mxu0 0.0
    %7352 = vmatprep.subr.mxu0 0.0
    %7353 = vmatpush1.msra.mxu0 0.0
    %7354 = vmatprep.mubr.f32.mxu0 0.0
    %7355 = vmatmul.mubr.f32.gmra.mrb[0].mxu0 %v7288
    %v7356 = vpop.f32.mrb[0].mxu0
    %v7357 = vadd.f32 %v7285, %v7356
    %v7358 = vpop.f32.mrb[0].mxu0
    %7359 = vdwg.mxu0
    %v7360 = vmax.f32 %v7357, 0.0
    %s7361 = scalar_lea.vmem %s41, 128
    %v7362 = vld [vmem:[%s7361] sm:$0xf]
    %v7363 = vld [vmem:[%s7361 + $0x4] sm:$0xf]
    %v7364 = vld [vmem:[%s7361 + $0x8] sm:$0xf]
    %v7365 = vld [vmem:[%s7361 + $0xc] sm:$0xf]
    %v7366 = vld [vmem:[%s7361 + $0x10] sm:$0xf]
    %v7367 = vld [vmem:[%s7361 + $0x14] sm:$0xf]
    %v7368 = vld [vmem:[%s7361 + $0x18] sm:$0xf]
    %v7369 = vld [vmem:[%s7361 + $0x1c] sm:$0xf]
    %v7370 = vld [vmem:[%s7361 + $0x20] sm:$0xf]
    %v7371 = vld [vmem:[%s7361 + $0x24] sm:$0xf]
    %v7372 = vld [vmem:[%s7361 + $0x28] sm:$0xf]
    %v7373 = vld [vmem:[%s7361 + $0x2c] sm:$0xf]
    %v7374 = vld [vmem:[%s7361 + $0x30] sm:$0xf]
    %v7375 = vld [vmem:[%s7361 + $0x34] sm:$0xf]
    %v7376 = vld [vmem:[%s7361 + $0x38] sm:$0xf]
    %v7377 = vld [vmem:[%s7361 + $0x3c] sm:$0xf]
    %v7378 = vunpack.c.l.bf16 %v7362
    %v7379 = vunpack.c.l.bf16 %v7363
    %v7380 = vunpack.c.l.bf16 %v7364
    %v7381 = vunpack.c.l.bf16 %v7365
    %v7382 = vunpack.c.l.bf16 %v7366
    %v7383 = vunpack.c.l.bf16 %v7367
    %v7384 = vunpack.c.l.bf16 %v7368
    %v7385 = vunpack.c.l.bf16 %v7369
    %v7386 = vunpack.c.l.bf16 %v7370
    %v7387 = vunpack.c.l.bf16 %v7371
    %v7388 = vunpack.c.l.bf16 %v7372
    %v7389 = vunpack.c.l.bf16 %v7373
    %v7390 = vunpack.c.l.bf16 %v7374
    %v7391 = vunpack.c.l.bf16 %v7375
    %v7392 = vunpack.c.l.bf16 %v7376
    %v7393 = vunpack.c.l.bf16 %v7377
    %s7394 = scalar_lea.vmem %s43, 128
    %v7395 = vld [vmem:[%s7394] sm:$0xf]
    %v7396 = vld [vmem:[%s7394 + $0x4] sm:$0xf]
    %v7397 = vld [vmem:[%s7394 + $0x8] sm:$0xf]
    %v7398 = vld [vmem:[%s7394 + $0xc] sm:$0xf]
    %v7399 = vld [vmem:[%s7394 + $0x10] sm:$0xf]
    %v7400 = vld [vmem:[%s7394 + $0x14] sm:$0xf]
    %v7401 = vld [vmem:[%s7394 + $0x18] sm:$0xf]
    %v7402 = vld [vmem:[%s7394 + $0x1c] sm:$0xf]
    %v7403 = vld [vmem:[%s7394 + $0x20] sm:$0xf]
    %v7404 = vld [vmem:[%s7394 + $0x24] sm:$0xf]
    %v7405 = vld [vmem:[%s7394 + $0x28] sm:$0xf]
    %v7406 = vld [vmem:[%s7394 + $0x2c] sm:$0xf]
    %v7407 = vld [vmem:[%s7394 + $0x30] sm:$0xf]
    %v7408 = vld [vmem:[%s7394 + $0x34] sm:$0xf]
    %v7409 = vld [vmem:[%s7394 + $0x38] sm:$0xf]
    %v7410 = vld [vmem:[%s7394 + $0x3c] sm:$0xf]
    %v7411 = vunpack.c.l.bf16 %v7395
    %v7412 = vunpack.c.l.bf16 %v7396
    %v7413 = vunpack.c.l.bf16 %v7397
    %v7414 = vunpack.c.l.bf16 %v7398
    %v7415 = vunpack.c.l.bf16 %v7399
    %v7416 = vunpack.c.l.bf16 %v7400
    %v7417 = vunpack.c.l.bf16 %v7401
    %v7418 = vunpack.c.l.bf16 %v7402
    %v7419 = vunpack.c.l.bf16 %v7403
    %v7420 = vunpack.c.l.bf16 %v7404
    %v7421 = vunpack.c.l.bf16 %v7405
    %v7422 = vunpack.c.l.bf16 %v7406
    %v7423 = vunpack.c.l.bf16 %v7407
    %v7424 = vunpack.c.l.bf16 %v7408
    %v7425 = vunpack.c.l.bf16 %v7409
    %v7426 = vunpack.c.l.bf16 %v7410
    %7427 = vmatprep.subr.mxu0 0.0
    %7428 = vmatpush1.msra.mxu0 %v7411
    %7429 = vmatprep.subr.mxu0 0.0
    %7430 = vmatpush1.msra.mxu0 %v7412
    %7431 = vmatprep.subr.mxu0 0.0
    %7432 = vmatpush1.msra.mxu0 %v7413
    %7433 = vmatprep.subr.mxu0 0.0
    %7434 = vmatpush1.msra.mxu0 %v7414
    %7435 = vmatprep.subr.mxu0 0.0
    %7436 = vmatpush1.msra.mxu0 %v7415
    %7437 = vmatprep.subr.mxu0 0.0
    %7438 = vmatpush1.msra.mxu0 %v7416
    %7439 = vmatprep.subr.mxu0 0.0
    %7440 = vmatpush1.msra.mxu0 %v7417
    %7441 = vmatprep.subr.mxu0 0.0
    %7442 = vmatpush1.msra.mxu0 %v7418
    %7443 = vmatprep.subr.mxu0 0.0
    %7444 = vmatpush1.msra.mxu0 %v7419
    %7445 = vmatprep.subr.mxu0 0.0
    %7446 = vmatpush1.msra.mxu0 %v7420
    %7447 = vmatprep.subr.mxu0 0.0
    %7448 = vmatpush1.msra.mxu0 %v7421
    %7449 = vmatprep.subr.mxu0 0.0
    %7450 = vmatpush1.msra.mxu0 %v7422
    %7451 = vmatprep.subr.mxu0 0.0
    %7452 = vmatpush1.msra.mxu0 %v7423
    %7453 = vmatprep.subr.mxu0 0.0
    %7454 = vmatpush1.msra.mxu0 %v7424
    %7455 = vmatprep.subr.mxu0 0.0
    %7456 = vmatpush1.msra.mxu0 %v7425
    %7457 = vmatprep.subr.mxu0 0.0
    %7458 = vmatpush1.msra.mxu0 %v7426
    %7459 = vmatprep.subr.mxu0 0.0
    %7460 = vmatpush1.msra.mxu0 0.0
    %7461 = vmatprep.subr.mxu0 0.0
    %7462 = vmatpush1.msra.mxu0 0.0
    %7463 = vmatprep.subr.mxu0 0.0
    %7464 = vmatpush1.msra.mxu0 0.0
    %7465 = vmatprep.subr.mxu0 0.0
    %7466 = vmatpush1.msra.mxu0 0.0
    %7467 = vmatprep.subr.mxu0 0.0
    %7468 = vmatpush1.msra.mxu0 0.0
    %7469 = vmatprep.subr.mxu0 0.0
    %7470 = vmatpush1.msra.mxu0 0.0
    %7471 = vmatprep.subr.mxu0 0.0
    %7472 = vmatpush1.msra.mxu0 0.0
    %7473 = vmatprep.subr.mxu0 0.0
    %7474 = vmatpush1.msra.mxu0 0.0
    %7475 = vmatprep.subr.mxu0 0.0
    %7476 = vmatpush1.msra.mxu0 0.0
    %7477 = vmatprep.subr.mxu0 0.0
    %7478 = vmatpush1.msra.mxu0 0.0
    %7479 = vmatprep.subr.mxu0 0.0
    %7480 = vmatpush1.msra.mxu0 0.0
    %7481 = vmatprep.subr.mxu0 0.0
    %7482 = vmatpush1.msra.mxu0 0.0
    %7483 = vmatprep.subr.mxu0 0.0
    %7484 = vmatpush1.msra.mxu0 0.0
    %7485 = vmatprep.subr.mxu0 0.0
    %7486 = vmatpush1.msra.mxu0 0.0
    %7487 = vmatprep.subr.mxu0 0.0
    %7488 = vmatpush1.msra.mxu0 0.0
    %7489 = vmatprep.subr.mxu0 0.0
    %7490 = vmatpush1.msra.mxu0 0.0
    %7491 = vmatprep.mubr.f32.mxu0 0.0
    %7492 = vmatmul.mubr.f32.gmra.mrb[0].mxu0 %v3063
    %v7493 = vpop.f32.mrb[0].mxu0
    %v7494 = vadd.f32 0.0, %v7493
    %v7495 = vpop.f32.mrb[0].mxu0
    %7496 = vdwg.mxu0
    %7497 = vmatprep.subr.mxu0 0.0
    %7498 = vmatpush1.msra.mxu0 %v7378
    %7499 = vmatprep.subr.mxu0 0.0
    %7500 = vmatpush1.msra.mxu0 %v7379
    %7501 = vmatprep.subr.mxu0 0.0
    %7502 = vmatpush1.msra.mxu0 %v7380
    %7503 = vmatprep.subr.mxu0 0.0
    %7504 = vmatpush1.msra.mxu0 %v7381
    %7505 = vmatprep.subr.mxu0 0.0
    %7506 = vmatpush1.msra.mxu0 %v7382
    %7507 = vmatprep.subr.mxu0 0.0
    %7508 = vmatpush1.msra.mxu0 %v7383
    %7509 = vmatprep.subr.mxu0 0.0
    %7510 = vmatpush1.msra.mxu0 %v7384
    %7511 = vmatprep.subr.mxu0 0.0
    %7512 = vmatpush1.msra.mxu0 %v7385
    %7513 = vmatprep.subr.mxu0 0.0
    %7514 = vmatpush1.msra.mxu0 %v7386
    %7515 = vmatprep.subr.mxu0 0.0
    %7516 = vmatpush1.msra.mxu0 %v7387
    %7517 = vmatprep.subr.mxu0 0.0
    %7518 = vmatpush1.msra.mxu0 %v7388
    %7519 = vmatprep.subr.mxu0 0.0
    %7520 = vmatpush1.msra.mxu0 %v7389
    %7521 = vmatprep.subr.mxu0 0.0
    %7522 = vmatpush1.msra.mxu0 %v7390
    %7523 = vmatprep.subr.mxu0 0.0
    %7524 = vmatpush1.msra.mxu0 %v7391
    %7525 = vmatprep.subr.mxu0 0.0
    %7526 = vmatpush1.msra.mxu0 %v7392
    %7527 = vmatprep.subr.mxu0 0.0
    %7528 = vmatpush1.msra.mxu0 %v7393
    %7529 = vmatprep.subr.mxu0 0.0
    %7530 = vmatpush1.msra.mxu0 0.0
    %7531 = vmatprep.subr.mxu0 0.0
    %7532 = vmatpush1.msra.mxu0 0.0
    %7533 = vmatprep.subr.mxu0 0.0
    %7534 = vmatpush1.msra.mxu0 0.0
    %7535 = vmatprep.subr.mxu0 0.0
    %7536 = vmatpush1.msra.mxu0 0.0
    %7537 = vmatprep.subr.mxu0 0.0
    %7538 = vmatpush1.msra.mxu0 0.0
    %7539 = vmatprep.subr.mxu0 0.0
    %7540 = vmatpush1.msra.mxu0 0.0
    %7541 = vmatprep.subr.mxu0 0.0
    %7542 = vmatpush1.msra.mxu0 0.0
    %7543 = vmatprep.subr.mxu0 0.0
    %7544 = vmatpush1.msra.mxu0 0.0
    %7545 = vmatprep.subr.mxu0 0.0
    %7546 = vmatpush1.msra.mxu0 0.0
    %7547 = vmatprep.subr.mxu0 0.0
    %7548 = vmatpush1.msra.mxu0 0.0
    %7549 = vmatprep.subr.mxu0 0.0
    %7550 = vmatpush1.msra.mxu0 0.0
    %7551 = vmatprep.subr.mxu0 0.0
    %7552 = vmatpush1.msra.mxu0 0.0
    %7553 = vmatprep.subr.mxu0 0.0
    %7554 = vmatpush1.msra.mxu0 0.0
    %7555 = vmatprep.subr.mxu0 0.0
    %7556 = vmatpush1.msra.mxu0 0.0
    %7557 = vmatprep.subr.mxu0 0.0
    %7558 = vmatpush1.msra.mxu0 0.0
    %7559 = vmatprep.subr.mxu0 0.0
    %7560 = vmatpush1.msra.mxu0 0.0
    %7561 = vmatprep.mubr.f32.mxu0 0.0
    %7562 = vmatmul.mubr.f32.gmra.mrb[0].mxu0 %v3397
    %v7563 = vpop.f32.mrb[0].mxu0
    %v7564 = vadd.f32 %v7494, %v7563
    %v7565 = vpop.f32.mrb[0].mxu0
    %7566 = vdwg.mxu0
    %s7567 = scalar_lea.vmem %s45, 128
    %v7568 = vld [vmem:[%s7567] sm:$0xf]
    %v7569 = vld [vmem:[%s7567 + $0x4] sm:$0xf]
    %v7570 = vld [vmem:[%s7567 + $0x8] sm:$0xf]
    %v7571 = vld [vmem:[%s7567 + $0xc] sm:$0xf]
    %v7572 = vld [vmem:[%s7567 + $0x10] sm:$0xf]
    %v7573 = vld [vmem:[%s7567 + $0x14] sm:$0xf]
    %v7574 = vld [vmem:[%s7567 + $0x18] sm:$0xf]
    %v7575 = vld [vmem:[%s7567 + $0x1c] sm:$0xf]
    %v7576 = vld [vmem:[%s7567 + $0x20] sm:$0xf]
    %v7577 = vld [vmem:[%s7567 + $0x24] sm:$0xf]
    %v7578 = vld [vmem:[%s7567 + $0x28] sm:$0xf]
    %v7579 = vld [vmem:[%s7567 + $0x2c] sm:$0xf]
    %v7580 = vld [vmem:[%s7567 + $0x30] sm:$0xf]
    %v7581 = vld [vmem:[%s7567 + $0x34] sm:$0xf]
    %v7582 = vld [vmem:[%s7567 + $0x38] sm:$0xf]
    %v7583 = vld [vmem:[%s7567 + $0x3c] sm:$0xf]
    %v7584 = vunpack.c.l.bf16 %v7568
    %v7585 = vunpack.c.l.bf16 %v7569
    %v7586 = vunpack.c.l.bf16 %v7570
    %v7587 = vunpack.c.l.bf16 %v7571
    %v7588 = vunpack.c.l.bf16 %v7572
    %v7589 = vunpack.c.l.bf16 %v7573
    %v7590 = vunpack.c.l.bf16 %v7574
    %v7591 = vunpack.c.l.bf16 %v7575
    %v7592 = vunpack.c.l.bf16 %v7576
    %v7593 = vunpack.c.l.bf16 %v7577
    %v7594 = vunpack.c.l.bf16 %v7578
    %v7595 = vunpack.c.l.bf16 %v7579
    %v7596 = vunpack.c.l.bf16 %v7580
    %v7597 = vunpack.c.l.bf16 %v7581
    %v7598 = vunpack.c.l.bf16 %v7582
    %v7599 = vunpack.c.l.bf16 %v7583
    %7600 = vmatprep.subr.mxu0 0.0
    %7601 = vmatpush1.msra.mxu0 %v7584
    %7602 = vmatprep.subr.mxu0 0.0
    %7603 = vmatpush1.msra.mxu0 %v7585
    %7604 = vmatprep.subr.mxu0 0.0
    %7605 = vmatpush1.msra.mxu0 %v7586
    %7606 = vmatprep.subr.mxu0 0.0
    %7607 = vmatpush1.msra.mxu0 %v7587
    %7608 = vmatprep.subr.mxu0 0.0
    %7609 = vmatpush1.msra.mxu0 %v7588
    %7610 = vmatprep.subr.mxu0 0.0
    %7611 = vmatpush1.msra.mxu0 %v7589
    %7612 = vmatprep.subr.mxu0 0.0
    %7613 = vmatpush1.msra.mxu0 %v7590
    %7614 = vmatprep.subr.mxu0 0.0
    %7615 = vmatpush1.msra.mxu0 %v7591
    %7616 = vmatprep.subr.mxu0 0.0
    %7617 = vmatpush1.msra.mxu0 %v7592
    %7618 = vmatprep.subr.mxu0 0.0
    %7619 = vmatpush1.msra.mxu0 %v7593
    %7620 = vmatprep.subr.mxu0 0.0
    %7621 = vmatpush1.msra.mxu0 %v7594
    %7622 = vmatprep.subr.mxu0 0.0
    %7623 = vmatpush1.msra.mxu0 %v7595
    %7624 = vmatprep.subr.mxu0 0.0
    %7625 = vmatpush1.msra.mxu0 %v7596
    %7626 = vmatprep.subr.mxu0 0.0
    %7627 = vmatpush1.msra.mxu0 %v7597
    %7628 = vmatprep.subr.mxu0 0.0
    %7629 = vmatpush1.msra.mxu0 %v7598
    %7630 = vmatprep.subr.mxu0 0.0
    %7631 = vmatpush1.msra.mxu0 %v7599
    %7632 = vmatprep.subr.mxu0 0.0
    %7633 = vmatpush1.msra.mxu0 0.0
    %7634 = vmatprep.subr.mxu0 0.0
    %7635 = vmatpush1.msra.mxu0 0.0
    %7636 = vmatprep.subr.mxu0 0.0
    %7637 = vmatpush1.msra.mxu0 0.0
    %7638 = vmatprep.subr.mxu0 0.0
    %7639 = vmatpush1.msra.mxu0 0.0
    %7640 = vmatprep.subr.mxu0 0.0
    %7641 = vmatpush1.msra.mxu0 0.0
    %7642 = vmatprep.subr.mxu0 0.0
    %7643 = vmatpush1.msra.mxu0 0.0
    %7644 = vmatprep.subr.mxu0 0.0
    %7645 = vmatpush1.msra.mxu0 0.0
    %7646 = vmatprep.subr.mxu0 0.0
    %7647 = vmatpush1.msra.mxu0 0.0
    %7648 = vmatprep.subr.mxu0 0.0
    %7649 = vmatpush1.msra.mxu0 0.0
    %7650 = vmatprep.subr.mxu0 0.0
    %7651 = vmatpush1.msra.mxu0 0.0
    %7652 = vmatprep.subr.mxu0 0.0
    %7653 = vmatpush1.msra.mxu0 0.0
    %7654 = vmatprep.subr.mxu0 0.0
    %7655 = vmatpush1.msra.mxu0 0.0
    %7656 = vmatprep.subr.mxu0 0.0
    %7657 = vmatpush1.msra.mxu0 0.0
    %7658 = vmatprep.subr.mxu0 0.0
    %7659 = vmatpush1.msra.mxu0 0.0
    %7660 = vmatprep.subr.mxu0 0.0
    %7661 = vmatpush1.msra.mxu0 0.0
    %7662 = vmatprep.subr.mxu0 0.0
    %7663 = vmatpush1.msra.mxu0 0.0
    %7664 = vmatprep.mubr.f32.mxu0 0.0
    %7665 = vmatmul.mubr.f32.gmra.mrb[0].mxu0 %v3286
    %v7666 = vpop.f32.mrb[0].mxu0
    %v7667 = vadd.f32 0.0, %v7666
    %v7668 = vpop.f32.mrb[0].mxu0
    %7669 = vdwg.mxu0
    %v7670 = vadd.f32 %v7564, %v7667
    %s7671 = scalar_lea.vmem %s47, 128
    %v7672 = vld [vmem:[%s7671] sm:$0xf]
    %v7673 = vld [vmem:[%s7671 + $0x4] sm:$0xf]
    %v7674 = vld [vmem:[%s7671 + $0x8] sm:$0xf]
    %v7675 = vld [vmem:[%s7671 + $0xc] sm:$0xf]
    %v7676 = vld [vmem:[%s7671 + $0x10] sm:$0xf]
    %v7677 = vld [vmem:[%s7671 + $0x14] sm:$0xf]
    %v7678 = vld [vmem:[%s7671 + $0x18] sm:$0xf]
    %v7679 = vld [vmem:[%s7671 + $0x1c] sm:$0xf]
    %v7680 = vld [vmem:[%s7671 + $0x20] sm:$0xf]
    %v7681 = vld [vmem:[%s7671 + $0x24] sm:$0xf]
    %v7682 = vld [vmem:[%s7671 + $0x28] sm:$0xf]
    %v7683 = vld [vmem:[%s7671 + $0x2c] sm:$0xf]
    %v7684 = vld [vmem:[%s7671 + $0x30] sm:$0xf]
    %v7685 = vld [vmem:[%s7671 + $0x34] sm:$0xf]
    %v7686 = vld [vmem:[%s7671 + $0x38] sm:$0xf]
    %v7687 = vld [vmem:[%s7671 + $0x3c] sm:$0xf]
    %v7688 = vunpack.c.l.bf16 %v7672
    %v7689 = vunpack.c.l.bf16 %v7673
    %v7690 = vunpack.c.l.bf16 %v7674
    %v7691 = vunpack.c.l.bf16 %v7675
    %v7692 = vunpack.c.l.bf16 %v7676
    %v7693 = vunpack.c.l.bf16 %v7677
    %v7694 = vunpack.c.l.bf16 %v7678
    %v7695 = vunpack.c.l.bf16 %v7679
    %v7696 = vunpack.c.l.bf16 %v7680
    %v7697 = vunpack.c.l.bf16 %v7681
    %v7698 = vunpack.c.l.bf16 %v7682
    %v7699 = vunpack.c.l.bf16 %v7683
    %v7700 = vunpack.c.l.bf16 %v7684
    %v7701 = vunpack.c.l.bf16 %v7685
    %v7702 = vunpack.c.l.bf16 %v7686
    %v7703 = vunpack.c.l.bf16 %v7687
    %7704 = vmatprep.subr.mxu0 0.0
    %7705 = vmatpush1.msra.mxu0 %v7688
    %7706 = vmatprep.subr.mxu0 0.0
    %7707 = vmatpush1.msra.mxu0 %v7689
    %7708 = vmatprep.subr.mxu0 0.0
    %7709 = vmatpush1.msra.mxu0 %v7690
    %7710 = vmatprep.subr.mxu0 0.0
    %7711 = vmatpush1.msra.mxu0 %v7691
    %7712 = vmatprep.subr.mxu0 0.0
    %7713 = vmatpush1.msra.mxu0 %v7692
    %7714 = vmatprep.subr.mxu0 0.0
    %7715 = vmatpush1.msra.mxu0 %v7693
    %7716 = vmatprep.subr.mxu0 0.0
    %7717 = vmatpush1.msra.mxu0 %v7694
    %7718 = vmatprep.subr.mxu0 0.0
    %7719 = vmatpush1.msra.mxu0 %v7695
    %7720 = vmatprep.subr.mxu0 0.0
    %7721 = vmatpush1.msra.mxu0 %v7696
    %7722 = vmatprep.subr.mxu0 0.0
    %7723 = vmatpush1.msra.mxu0 %v7697
    %7724 = vmatprep.subr.mxu0 0.0
    %7725 = vmatpush1.msra.mxu0 %v7698
    %7726 = vmatprep.subr.mxu0 0.0
    %7727 = vmatpush1.msra.mxu0 %v7699
    %7728 = vmatprep.subr.mxu0 0.0
    %7729 = vmatpush1.msra.mxu0 %v7700
    %7730 = vmatprep.subr.mxu0 0.0
    %7731 = vmatpush1.msra.mxu0 %v7701
    %7732 = vmatprep.subr.mxu0 0.0
    %7733 = vmatpush1.msra.mxu0 %v7702
    %7734 = vmatprep.subr.mxu0 0.0
    %7735 = vmatpush1.msra.mxu0 %v7703
    %7736 = vmatprep.subr.mxu0 0.0
    %7737 = vmatpush1.msra.mxu0 0.0
    %7738 = vmatprep.subr.mxu0 0.0
    %7739 = vmatpush1.msra.mxu0 0.0
    %7740 = vmatprep.subr.mxu0 0.0
    %7741 = vmatpush1.msra.mxu0 0.0
    %7742 = vmatprep.subr.mxu0 0.0
    %7743 = vmatpush1.msra.mxu0 0.0
    %7744 = vmatprep.subr.mxu0 0.0
    %7745 = vmatpush1.msra.mxu0 0.0
    %7746 = vmatprep.subr.mxu0 0.0
    %7747 = vmatpush1.msra.mxu0 0.0
    %7748 = vmatprep.subr.mxu0 0.0
    %7749 = vmatpush1.msra.mxu0 0.0
    %7750 = vmatprep.subr.mxu0 0.0
    %7751 = vmatpush1.msra.mxu0 0.0
    %7752 = vmatprep.subr.mxu0 0.0
    %7753 = vmatpush1.msra.mxu0 0.0
    %7754 = vmatprep.subr.mxu0 0.0
    %7755 = vmatpush1.msra.mxu0 0.0
    %7756 = vmatprep.subr.mxu0 0.0
    %7757 = vmatpush1.msra.mxu0 0.0
    %7758 = vmatprep.subr.mxu0 0.0
    %7759 = vmatpush1.msra.mxu0 0.0
    %7760 = vmatprep.subr.mxu0 0.0
    %7761 = vmatpush1.msra.mxu0 0.0
    %7762 = vmatprep.subr.mxu0 0.0
    %7763 = vmatpush1.msra.mxu0 0.0
    %7764 = vmatprep.subr.mxu0 0.0
    %7765 = vmatpush1.msra.mxu0 0.0
    %7766 = vmatprep.subr.mxu0 0.0
    %7767 = vmatpush1.msra.mxu0 0.0
    %7768 = vmatprep.mubr.f32.mxu0 0.0
    %7769 = vmatmul.mubr.f32.gmra.mrb[0].mxu0 %v7360
    %v7770 = vpop.f32.mrb[0].mxu0
    %v7771 = vadd.f32 0.0, %v7770
    %v7772 = vpop.f32.mrb[0].mxu0
    %7773 = vdwg.mxu0
    %v7774 = vadd.f32 %v7670, %v7771
    %s7775 = scalar_lea.vmem %s49, 2
    %v7776 = vld [vmem:[%s7775] sm:$0x1]
    %v7778 = vlaneseq
    %v7779 = vshrl.u32 %v7778, 7
    %v7780 = vsub.s32 0, %v7779
    %v7781 = vrot.slane %v7776, %v7780
    %v7783 = vadd.f32 %v7774, %v7781
    %v7784 = vmax.f32 %v7783, 0.0
    %s7785 = scalar_lea.vmem %s51, 768
    %v7786 = vld [vmem:[%s7785] sm:$0xf]
    %v7787 = vld [vmem:[%s7785 + $0x4] sm:$0xf]
    %v7788 = vld [vmem:[%s7785 + $0x8] sm:$0xf]
    %v7789 = vld [vmem:[%s7785 + $0xc] sm:$0xf]
    %v7790 = vld [vmem:[%s7785 + $0x10] sm:$0xf]
    %v7791 = vld [vmem:[%s7785 + $0x14] sm:$0xf]
    %v7792 = vld [vmem:[%s7785 + $0x18] sm:$0xf]
    %v7793 = vld [vmem:[%s7785 + $0x1c] sm:$0xf]
    %v7794 = vld [vmem:[%s7785 + $0x20] sm:$0xf]
    %v7795 = vld [vmem:[%s7785 + $0x24] sm:$0xf]
    %v7796 = vld [vmem:[%s7785 + $0x28] sm:$0xf]
    %v7797 = vld [vmem:[%s7785 + $0x2c] sm:$0xf]
    %v7798 = vld [vmem:[%s7785 + $0x30] sm:$0xf]
    %v7799 = vld [vmem:[%s7785 + $0x34] sm:$0xf]
    %v7800 = vld [vmem:[%s7785 + $0x38] sm:$0xf]
    %v7801 = vld [vmem:[%s7785 + $0x3c] sm:$0xf]
    %v7802 = vunpack.c.l.bf16 %v7786
    %v7803 = vunpack.c.l.bf16 %v7787
    %v7804 = vunpack.c.l.bf16 %v7788
    %v7805 = vunpack.c.l.bf16 %v7789
    %v7806 = vunpack.c.l.bf16 %v7790
    %v7807 = vunpack.c.l.bf16 %v7791
    %v7808 = vunpack.c.l.bf16 %v7792
    %v7809 = vunpack.c.l.bf16 %v7793
    %v7810 = vunpack.c.l.bf16 %v7794
    %v7811 = vunpack.c.l.bf16 %v7795
    %v7812 = vunpack.c.l.bf16 %v7796
    %v7813 = vunpack.c.l.bf16 %v7797
    %v7814 = vunpack.c.l.bf16 %v7798
    %v7815 = vunpack.c.l.bf16 %v7799
    %v7816 = vunpack.c.l.bf16 %v7800
    %v7817 = vunpack.c.l.bf16 %v7801
    %s7818 = scalar_lea.vmem %s53, 12
    %v7819 = vld [vmem:[%s7818] sm:$0x1]
    %v7821 = vlaneseq
    %v7822 = vshrl.u32 %v7821, 7
    %v7823 = vsub.s32 0, %v7822
    %v7824 = vrot.slane %v7819, %v7823
    %7826 = vmatprep.subr.mxu0 0.0
    %7827 = vmatpush1.msra.mxu0 %v7802
    %7828 = vmatprep.subr.mxu0 0.0
    %7829 = vmatpush1.msra.mxu0 %v7803
    %7830 = vmatprep.subr.mxu0 0.0
    %7831 = vmatpush1.msra.mxu0 %v7804
    %7832 = vmatprep.subr.mxu0 0.0
    %7833 = vmatpush1.msra.mxu0 %v7805
    %7834 = vmatprep.subr.mxu0 0.0
    %7835 = vmatpush1.msra.mxu0 %v7806
    %7836 = vmatprep.subr.mxu0 0.0
    %7837 = vmatpush1.msra.mxu0 %v7807
    %7838 = vmatprep.subr.mxu0 0.0
    %7839 = vmatpush1.msra.mxu0 %v7808
    %7840 = vmatprep.subr.mxu0 0.0
    %7841 = vmatpush1.msra.mxu0 %v7809
    %7842 = vmatprep.subr.mxu0 0.0
    %7843 = vmatpush1.msra.mxu0 %v7810
    %7844 = vmatprep.subr.mxu0 0.0
    %7845 = vmatpush1.msra.mxu0 %v7811
    %7846 = vmatprep.subr.mxu0 0.0
    %7847 = vmatpush1.msra.mxu0 %v7812
    %7848 = vmatprep.subr.mxu0 0.0
    %7849 = vmatpush1.msra.mxu0 %v7813
    %7850 = vmatprep.subr.mxu0 0.0
    %7851 = vmatpush1.msra.mxu0 %v7814
    %7852 = vmatprep.subr.mxu0 0.0
    %7853 = vmatpush1.msra.mxu0 %v7815
    %7854 = vmatprep.subr.mxu0 0.0
    %7855 = vmatpush1.msra.mxu0 %v7816
    %7856 = vmatprep.subr.mxu0 0.0
    %7857 = vmatpush1.msra.mxu0 %v7817
    %7858 = vmatprep.subr.mxu0 0.0
    %7859 = vmatpush1.msra.mxu0 0.0
    %7860 = vmatprep.subr.mxu0 0.0
    %7861 = vmatpush1.msra.mxu0 0.0
    %7862 = vmatprep.subr.mxu0 0.0
    %7863 = vmatpush1.msra.mxu0 0.0
    %7864 = vmatprep.subr.mxu0 0.0
    %7865 = vmatpush1.msra.mxu0 0.0
    %7866 = vmatprep.subr.mxu0 0.0
    %7867 = vmatpush1.msra.mxu0 0.0
    %7868 = vmatprep.subr.mxu0 0.0
    %7869 = vmatpush1.msra.mxu0 0.0
    %7870 = vmatprep.subr.mxu0 0.0
    %7871 = vmatpush1.msra.mxu0 0.0
    %7872 = vmatprep.subr.mxu0 0.0
    %7873 = vmatpush1.msra.mxu0 0.0
    %7874 = vmatprep.subr.mxu0 0.0
    %7875 = vmatpush1.msra.mxu0 0.0
    %7876 = vmatprep.subr.mxu0 0.0
    %7877 = vmatpush1.msra.mxu0 0.0
    %7878 = vmatprep.subr.mxu0 0.0
    %7879 = vmatpush1.msra.mxu0 0.0
    %7880 = vmatprep.subr.mxu0 0.0
    %7881 = vmatpush1.msra.mxu0 0.0
    %7882 = vmatprep.subr.mxu0 0.0
    %7883 = vmatpush1.msra.mxu0 0.0
    %7884 = vmatprep.subr.mxu0 0.0
    %7885 = vmatpush1.msra.mxu0 0.0
    %7886 = vmatprep.subr.mxu0 0.0
    %7887 = vmatpush1.msra.mxu0 0.0
    %7888 = vmatprep.subr.mxu0 0.0
    %7889 = vmatpush1.msra.mxu0 0.0
    %7890 = vmatprep.mubr.f32.mxu0 0.0
    %7891 = vmatmul.mubr.f32.gmra.mrb[0].mxu0 %v7784
    %v7892 = vpop.f32.mrb[0].mxu0
    %v7893 = vadd.f32 %v7824, %v7892
    %v7894 = vpop.f32.mrb[0].mxu0
    %7895 = vdwg.mxu0
    %v7896 = vmax.f32 %v7893, 0.0
    %s7897 = scalar_lea.vmem %s51, 832
    %v7898 = vld [vmem:[%s7897] sm:$0xf]
    %v7899 = vld [vmem:[%s7897 + $0x4] sm:$0xf]
    %v7900 = vld [vmem:[%s7897 + $0x8] sm:$0xf]
    %v7901 = vld [vmem:[%s7897 + $0xc] sm:$0xf]
    %v7902 = vld [vmem:[%s7897 + $0x10] sm:$0xf]
    %v7903 = vld [vmem:[%s7897 + $0x14] sm:$0xf]
    %v7904 = vld [vmem:[%s7897 + $0x18] sm:$0xf]
    %v7905 = vld [vmem:[%s7897 + $0x1c] sm:$0xf]
    %v7906 = vld [vmem:[%s7897 + $0x20] sm:$0xf]
    %v7907 = vld [vmem:[%s7897 + $0x24] sm:$0xf]
    %v7908 = vld [vmem:[%s7897 + $0x28] sm:$0xf]
    %v7909 = vld [vmem:[%s7897 + $0x2c] sm:$0xf]
    %v7910 = vld [vmem:[%s7897 + $0x30] sm:$0xf]
    %v7911 = vld [vmem:[%s7897 + $0x34] sm:$0xf]
    %v7912 = vld [vmem:[%s7897 + $0x38] sm:$0xf]
    %v7913 = vld [vmem:[%s7897 + $0x3c] sm:$0xf]
    %v7914 = vunpack.c.l.bf16 %v7898
    %v7915 = vunpack.c.l.bf16 %v7899
    %v7916 = vunpack.c.l.bf16 %v7900
    %v7917 = vunpack.c.l.bf16 %v7901
    %v7918 = vunpack.c.l.bf16 %v7902
    %v7919 = vunpack.c.l.bf16 %v7903
    %v7920 = vunpack.c.l.bf16 %v7904
    %v7921 = vunpack.c.l.bf16 %v7905
    %v7922 = vunpack.c.l.bf16 %v7906
    %v7923 = vunpack.c.l.bf16 %v7907
    %v7924 = vunpack.c.l.bf16 %v7908
    %v7925 = vunpack.c.l.bf16 %v7909
    %v7926 = vunpack.c.l.bf16 %v7910
    %v7927 = vunpack.c.l.bf16 %v7911
    %v7928 = vunpack.c.l.bf16 %v7912
    %v7929 = vunpack.c.l.bf16 %v7913
    %s7930 = scalar_lea.vmem %s53, 13
    %v7931 = vld [vmem:[%s7930] sm:$0x1]
    %v7933 = vlaneseq
    %v7934 = vshrl.u32 %v7933, 7
    %v7935 = vsub.s32 0, %v7934
    %v7936 = vrot.slane %v7931, %v7935
    %7938 = vmatprep.subr.mxu0 0.0
    %7939 = vmatpush1.msra.mxu0 %v7914
    %7940 = vmatprep.subr.mxu0 0.0
    %7941 = vmatpush1.msra.mxu0 %v7915
    %7942 = vmatprep.subr.mxu0 0.0
    %7943 = vmatpush1.msra.mxu0 %v7916
    %7944 = vmatprep.subr.mxu0 0.0
    %7945 = vmatpush1.msra.mxu0 %v7917
    %7946 = vmatprep.subr.mxu0 0.0
    %7947 = vmatpush1.msra.mxu0 %v7918
    %7948 = vmatprep.subr.mxu0 0.0
    %7949 = vmatpush1.msra.mxu0 %v7919
    %7950 = vmatprep.subr.mxu0 0.0
    %7951 = vmatpush1.msra.mxu0 %v7920
    %7952 = vmatprep.subr.mxu0 0.0
    %7953 = vmatpush1.msra.mxu0 %v7921
    %7954 = vmatprep.subr.mxu0 0.0
    %7955 = vmatpush1.msra.mxu0 %v7922
    %7956 = vmatprep.subr.mxu0 0.0
    %7957 = vmatpush1.msra.mxu0 %v7923
    %7958 = vmatprep.subr.mxu0 0.0
    %7959 = vmatpush1.msra.mxu0 %v7924
    %7960 = vmatprep.subr.mxu0 0.0
    %7961 = vmatpush1.msra.mxu0 %v7925
    %7962 = vmatprep.subr.mxu0 0.0
    %7963 = vmatpush1.msra.mxu0 %v7926
    %7964 = vmatprep.subr.mxu0 0.0
    %7965 = vmatpush1.msra.mxu0 %v7927
    %7966 = vmatprep.subr.mxu0 0.0
    %7967 = vmatpush1.msra.mxu0 %v7928
    %7968 = vmatprep.subr.mxu0 0.0
    %7969 = vmatpush1.msra.mxu0 %v7929
    %7970 = vmatprep.subr.mxu0 0.0
    %7971 = vmatpush1.msra.mxu0 0.0
    %7972 = vmatprep.subr.mxu0 0.0
    %7973 = vmatpush1.msra.mxu0 0.0
    %7974 = vmatprep.subr.mxu0 0.0
    %7975 = vmatpush1.msra.mxu0 0.0
    %7976 = vmatprep.subr.mxu0 0.0
    %7977 = vmatpush1.msra.mxu0 0.0
    %7978 = vmatprep.subr.mxu0 0.0
    %7979 = vmatpush1.msra.mxu0 0.0
    %7980 = vmatprep.subr.mxu0 0.0
    %7981 = vmatpush1.msra.mxu0 0.0
    %7982 = vmatprep.subr.mxu0 0.0
    %7983 = vmatpush1.msra.mxu0 0.0
    %7984 = vmatprep.subr.mxu0 0.0
    %7985 = vmatpush1.msra.mxu0 0.0
    %7986 = vmatprep.subr.mxu0 0.0
    %7987 = vmatpush1.msra.mxu0 0.0
    %7988 = vmatprep.subr.mxu0 0.0
    %7989 = vmatpush1.msra.mxu0 0.0
    %7990 = vmatprep.subr.mxu0 0.0
    %7991 = vmatpush1.msra.mxu0 0.0
    %7992 = vmatprep.subr.mxu0 0.0
    %7993 = vmatpush1.msra.mxu0 0.0
    %7994 = vmatprep.subr.mxu0 0.0
    %7995 = vmatpush1.msra.mxu0 0.0
    %7996 = vmatprep.subr.mxu0 0.0
    %7997 = vmatpush1.msra.mxu0 0.0
    %7998 = vmatprep.subr.mxu0 0.0
    %7999 = vmatpush1.msra.mxu0 0.0
    %8000 = vmatprep.subr.mxu0 0.0
    %8001 = vmatpush1.msra.mxu0 0.0
    %8002 = vmatprep.mubr.f32.mxu0 0.0
    %8003 = vmatmul.mubr.f32.gmra.mrb[0].mxu0 %v7896
    %v8004 = vpop.f32.mrb[0].mxu0
    %v8005 = vadd.f32 %v7936, %v8004
    %v8006 = vpop.f32.mrb[0].mxu0
    %8007 = vdwg.mxu0
    %v8008 = vmax.f32 %v8005, 0.0
    %s8009 = scalar_lea.vmem %s51, 896
    %v8010 = vld [vmem:[%s8009] sm:$0xf]
    %v8011 = vld [vmem:[%s8009 + $0x4] sm:$0xf]
    %v8012 = vld [vmem:[%s8009 + $0x8] sm:$0xf]
    %v8013 = vld [vmem:[%s8009 + $0xc] sm:$0xf]
    %v8014 = vld [vmem:[%s8009 + $0x10] sm:$0xf]
    %v8015 = vld [vmem:[%s8009 + $0x14] sm:$0xf]
    %v8016 = vld [vmem:[%s8009 + $0x18] sm:$0xf]
    %v8017 = vld [vmem:[%s8009 + $0x1c] sm:$0xf]
    %v8018 = vld [vmem:[%s8009 + $0x20] sm:$0xf]
    %v8019 = vld [vmem:[%s8009 + $0x24] sm:$0xf]
    %v8020 = vld [vmem:[%s8009 + $0x28] sm:$0xf]
    %v8021 = vld [vmem:[%s8009 + $0x2c] sm:$0xf]
    %v8022 = vld [vmem:[%s8009 + $0x30] sm:$0xf]
    %v8023 = vld [vmem:[%s8009 + $0x34] sm:$0xf]
    %v8024 = vld [vmem:[%s8009 + $0x38] sm:$0xf]
    %v8025 = vld [vmem:[%s8009 + $0x3c] sm:$0xf]
    %v8026 = vunpack.c.l.bf16 %v8010
    %v8027 = vunpack.c.l.bf16 %v8011
    %v8028 = vunpack.c.l.bf16 %v8012
    %v8029 = vunpack.c.l.bf16 %v8013
    %v8030 = vunpack.c.l.bf16 %v8014
    %v8031 = vunpack.c.l.bf16 %v8015
    %v8032 = vunpack.c.l.bf16 %v8016
    %v8033 = vunpack.c.l.bf16 %v8017
    %v8034 = vunpack.c.l.bf16 %v8018
    %v8035 = vunpack.c.l.bf16 %v8019
    %v8036 = vunpack.c.l.bf16 %v8020
    %v8037 = vunpack.c.l.bf16 %v8021
    %v8038 = vunpack.c.l.bf16 %v8022
    %v8039 = vunpack.c.l.bf16 %v8023
    %v8040 = vunpack.c.l.bf16 %v8024
    %v8041 = vunpack.c.l.bf16 %v8025
    %s8042 = scalar_lea.vmem %s53, 14
    %v8043 = vld [vmem:[%s8042] sm:$0x1]
    %v8045 = vlaneseq
    %v8046 = vshrl.u32 %v8045, 7
    %v8047 = vsub.s32 0, %v8046
    %v8048 = vrot.slane %v8043, %v8047
    %8050 = vmatprep.subr.mxu0 0.0
    %8051 = vmatpush1.msra.mxu0 %v8026
    %8052 = vmatprep.subr.mxu0 0.0
    %8053 = vmatpush1.msra.mxu0 %v8027
    %8054 = vmatprep.subr.mxu0 0.0
    %8055 = vmatpush1.msra.mxu0 %v8028
    %8056 = vmatprep.subr.mxu0 0.0
    %8057 = vmatpush1.msra.mxu0 %v8029
    %8058 = vmatprep.subr.mxu0 0.0
    %8059 = vmatpush1.msra.mxu0 %v8030
    %8060 = vmatprep.subr.mxu0 0.0
    %8061 = vmatpush1.msra.mxu0 %v8031
    %8062 = vmatprep.subr.mxu0 0.0
    %8063 = vmatpush1.msra.mxu0 %v8032
    %8064 = vmatprep.subr.mxu0 0.0
    %8065 = vmatpush1.msra.mxu0 %v8033
    %8066 = vmatprep.subr.mxu0 0.0
    %8067 = vmatpush1.msra.mxu0 %v8034
    %8068 = vmatprep.subr.mxu0 0.0
    %8069 = vmatpush1.msra.mxu0 %v8035
    %8070 = vmatprep.subr.mxu0 0.0
    %8071 = vmatpush1.msra.mxu0 %v8036
    %8072 = vmatprep.subr.mxu0 0.0
    %8073 = vmatpush1.msra.mxu0 %v8037
    %8074 = vmatprep.subr.mxu0 0.0
    %8075 = vmatpush1.msra.mxu0 %v8038
    %8076 = vmatprep.subr.mxu0 0.0
    %8077 = vmatpush1.msra.mxu0 %v8039
    %8078 = vmatprep.subr.mxu0 0.0
    %8079 = vmatpush1.msra.mxu0 %v8040
    %8080 = vmatprep.subr.mxu0 0.0
    %8081 = vmatpush1.msra.mxu0 %v8041
    %8082 = vmatprep.subr.mxu0 0.0
    %8083 = vmatpush1.msra.mxu0 0.0
    %8084 = vmatprep.subr.mxu0 0.0
    %8085 = vmatpush1.msra.mxu0 0.0
    %8086 = vmatprep.subr.mxu0 0.0
    %8087 = vmatpush1.msra.mxu0 0.0
    %8088 = vmatprep.subr.mxu0 0.0
    %8089 = vmatpush1.msra.mxu0 0.0
    %8090 = vmatprep.subr.mxu0 0.0
    %8091 = vmatpush1.msra.mxu0 0.0
    %8092 = vmatprep.subr.mxu0 0.0
    %8093 = vmatpush1.msra.mxu0 0.0
    %8094 = vmatprep.subr.mxu0 0.0
    %8095 = vmatpush1.msra.mxu0 0.0
    %8096 = vmatprep.subr.mxu0 0.0
    %8097 = vmatpush1.msra.mxu0 0.0
    %8098 = vmatprep.subr.mxu0 0.0
    %8099 = vmatpush1.msra.mxu0 0.0
    %8100 = vmatprep.subr.mxu0 0.0
    %8101 = vmatpush1.msra.mxu0 0.0
    %8102 = vmatprep.subr.mxu0 0.0
    %8103 = vmatpush1.msra.mxu0 0.0
    %8104 = vmatprep.subr.mxu0 0.0
    %8105 = vmatpush1.msra.mxu0 0.0
    %8106 = vmatprep.subr.mxu0 0.0
    %8107 = vmatpush1.msra.mxu0 0.0
    %8108 = vmatprep.subr.mxu0 0.0
    %8109 = vmatpush1.msra.mxu0 0.0
    %8110 = vmatprep.subr.mxu0 0.0
    %8111 = vmatpush1.msra.mxu0 0.0
    %8112 = vmatprep.subr.mxu0 0.0
    %8113 = vmatpush1.msra.mxu0 0.0
    %8114 = vmatprep.mubr.f32.mxu0 0.0
    %8115 = vmatmul.mubr.f32.gmra.mrb[0].mxu0 %v8008
    %v8116 = vpop.f32.mrb[0].mxu0
    %v8117 = vadd.f32 %v8048, %v8116
    %v8118 = vpop.f32.mrb[0].mxu0
    %8119 = vdwg.mxu0
    %v8120 = vmax.f32 %v8117, 0.0
    %s8121 = scalar_lea.vmem %s55, 384
    %v8122 = vld [vmem:[%s8121] sm:$0xf]
    %v8123 = vld [vmem:[%s8121 + $0x4] sm:$0xf]
    %v8124 = vld [vmem:[%s8121 + $0x8] sm:$0xf]
    %v8125 = vld [vmem:[%s8121 + $0xc] sm:$0xf]
    %v8126 = vld [vmem:[%s8121 + $0x10] sm:$0xf]
    %v8127 = vld [vmem:[%s8121 + $0x14] sm:$0xf]
    %v8128 = vld [vmem:[%s8121 + $0x18] sm:$0xf]
    %v8129 = vld [vmem:[%s8121 + $0x1c] sm:$0xf]
    %v8130 = vld [vmem:[%s8121 + $0x20] sm:$0xf]
    %v8131 = vld [vmem:[%s8121 + $0x24] sm:$0xf]
    %v8132 = vld [vmem:[%s8121 + $0x28] sm:$0xf]
    %v8133 = vld [vmem:[%s8121 + $0x2c] sm:$0xf]
    %v8134 = vld [vmem:[%s8121 + $0x30] sm:$0xf]
    %v8135 = vld [vmem:[%s8121 + $0x34] sm:$0xf]
    %v8136 = vld [vmem:[%s8121 + $0x38] sm:$0xf]
    %v8137 = vld [vmem:[%s8121 + $0x3c] sm:$0xf]
    %v8138 = vunpack.c.l.bf16 %v8122
    %v8139 = vunpack.c.l.bf16 %v8123
    %v8140 = vunpack.c.l.bf16 %v8124
    %v8141 = vunpack.c.l.bf16 %v8125
    %v8142 = vunpack.c.l.bf16 %v8126
    %v8143 = vunpack.c.l.bf16 %v8127
    %v8144 = vunpack.c.l.bf16 %v8128
    %v8145 = vunpack.c.l.bf16 %v8129
    %v8146 = vunpack.c.l.bf16 %v8130
    %v8147 = vunpack.c.l.bf16 %v8131
    %v8148 = vunpack.c.l.bf16 %v8132
    %v8149 = vunpack.c.l.bf16 %v8133
    %v8150 = vunpack.c.l.bf16 %v8134
    %v8151 = vunpack.c.l.bf16 %v8135
    %v8152 = vunpack.c.l.bf16 %v8136
    %v8153 = vunpack.c.l.bf16 %v8137
    %s8154 = scalar_lea.vmem %s57, 384
    %v8155 = vld [vmem:[%s8154] sm:$0xf]
    %v8156 = vld [vmem:[%s8154 + $0x4] sm:$0xf]
    %v8157 = vld [vmem:[%s8154 + $0x8] sm:$0xf]
    %v8158 = vld [vmem:[%s8154 + $0xc] sm:$0xf]
    %v8159 = vld [vmem:[%s8154 + $0x10] sm:$0xf]
    %v8160 = vld [vmem:[%s8154 + $0x14] sm:$0xf]
    %v8161 = vld [vmem:[%s8154 + $0x18] sm:$0xf]
    %v8162 = vld [vmem:[%s8154 + $0x1c] sm:$0xf]
    %v8163 = vld [vmem:[%s8154 + $0x20] sm:$0xf]
    %v8164 = vld [vmem:[%s8154 + $0x24] sm:$0xf]
    %v8165 = vld [vmem:[%s8154 + $0x28] sm:$0xf]
    %v8166 = vld [vmem:[%s8154 + $0x2c] sm:$0xf]
    %v8167 = vld [vmem:[%s8154 + $0x30] sm:$0xf]
    %v8168 = vld [vmem:[%s8154 + $0x34] sm:$0xf]
    %v8169 = vld [vmem:[%s8154 + $0x38] sm:$0xf]
    %v8170 = vld [vmem:[%s8154 + $0x3c] sm:$0xf]
    %v8171 = vunpack.c.l.bf16 %v8155
    %v8172 = vunpack.c.l.bf16 %v8156
    %v8173 = vunpack.c.l.bf16 %v8157
    %v8174 = vunpack.c.l.bf16 %v8158
    %v8175 = vunpack.c.l.bf16 %v8159
    %v8176 = vunpack.c.l.bf16 %v8160
    %v8177 = vunpack.c.l.bf16 %v8161
    %v8178 = vunpack.c.l.bf16 %v8162
    %v8179 = vunpack.c.l.bf16 %v8163
    %v8180 = vunpack.c.l.bf16 %v8164
    %v8181 = vunpack.c.l.bf16 %v8165
    %v8182 = vunpack.c.l.bf16 %v8166
    %v8183 = vunpack.c.l.bf16 %v8167
    %v8184 = vunpack.c.l.bf16 %v8168
    %v8185 = vunpack.c.l.bf16 %v8169
    %v8186 = vunpack.c.l.bf16 %v8170
    %8187 = vmatprep.subr.mxu0 0.0
    %8188 = vmatpush1.msra.mxu0 %v8171
    %8189 = vmatprep.subr.mxu0 0.0
    %8190 = vmatpush1.msra.mxu0 %v8172
    %8191 = vmatprep.subr.mxu0 0.0
    %8192 = vmatpush1.msra.mxu0 %v8173
    %8193 = vmatprep.subr.mxu0 0.0
    %8194 = vmatpush1.msra.mxu0 %v8174
    %8195 = vmatprep.subr.mxu0 0.0
    %8196 = vmatpush1.msra.mxu0 %v8175
    %8197 = vmatprep.subr.mxu0 0.0
    %8198 = vmatpush1.msra.mxu0 %v8176
    %8199 = vmatprep.subr.mxu0 0.0
    %8200 = vmatpush1.msra.mxu0 %v8177
    %8201 = vmatprep.subr.mxu0 0.0
    %8202 = vmatpush1.msra.mxu0 %v8178
    %8203 = vmatprep.subr.mxu0 0.0
    %8204 = vmatpush1.msra.mxu0 %v8179
    %8205 = vmatprep.subr.mxu0 0.0
    %8206 = vmatpush1.msra.mxu0 %v8180
    %8207 = vmatprep.subr.mxu0 0.0
    %8208 = vmatpush1.msra.mxu0 %v8181
    %8209 = vmatprep.subr.mxu0 0.0
    %8210 = vmatpush1.msra.mxu0 %v8182
    %8211 = vmatprep.subr.mxu0 0.0
    %8212 = vmatpush1.msra.mxu0 %v8183
    %8213 = vmatprep.subr.mxu0 0.0
    %8214 = vmatpush1.msra.mxu0 %v8184
    %8215 = vmatprep.subr.mxu0 0.0
    %8216 = vmatpush1.msra.mxu0 %v8185
    %8217 = vmatprep.subr.mxu0 0.0
    %8218 = vmatpush1.msra.mxu0 %v8186
    %8219 = vmatprep.subr.mxu0 0.0
    %8220 = vmatpush1.msra.mxu0 0.0
    %8221 = vmatprep.subr.mxu0 0.0
    %8222 = vmatpush1.msra.mxu0 0.0
    %8223 = vmatprep.subr.mxu0 0.0
    %8224 = vmatpush1.msra.mxu0 0.0
    %8225 = vmatprep.subr.mxu0 0.0
    %8226 = vmatpush1.msra.mxu0 0.0
    %8227 = vmatprep.subr.mxu0 0.0
    %8228 = vmatpush1.msra.mxu0 0.0
    %8229 = vmatprep.subr.mxu0 0.0
    %8230 = vmatpush1.msra.mxu0 0.0
    %8231 = vmatprep.subr.mxu0 0.0
    %8232 = vmatpush1.msra.mxu0 0.0
    %8233 = vmatprep.subr.mxu0 0.0
    %8234 = vmatpush1.msra.mxu0 0.0
    %8235 = vmatprep.subr.mxu0 0.0
    %8236 = vmatpush1.msra.mxu0 0.0
    %8237 = vmatprep.subr.mxu0 0.0
    %8238 = vmatpush1.msra.mxu0 0.0
    %8239 = vmatprep.subr.mxu0 0.0
    %8240 = vmatpush1.msra.mxu0 0.0
    %8241 = vmatprep.subr.mxu0 0.0
    %8242 = vmatpush1.msra.mxu0 0.0
    %8243 = vmatprep.subr.mxu0 0.0
    %8244 = vmatpush1.msra.mxu0 0.0
    %8245 = vmatprep.subr.mxu0 0.0
    %8246 = vmatpush1.msra.mxu0 0.0
    %8247 = vmatprep.subr.mxu0 0.0
    %8248 = vmatpush1.msra.mxu0 0.0
    %8249 = vmatprep.subr.mxu0 0.0
    %8250 = vmatpush1.msra.mxu0 0.0
    %8251 = vmatprep.mubr.f32.mxu0 0.0
    %8252 = vmatmul.mubr.f32.gmra.mrb[0].mxu0 %v8120
    %v8253 = vpop.f32.mrb[0].mxu0
    %v8254 = vadd.f32 0.0, %v8253
    %v8255 = vpop.f32.mrb[0].mxu0
    %8256 = vdwg.mxu0
    %8257 = vmatprep.subr.mxu0 0.0
    %8258 = vmatpush1.msra.mxu0 %v8138
    %8259 = vmatprep.subr.mxu0 0.0
    %8260 = vmatpush1.msra.mxu0 %v8139
    %8261 = vmatprep.subr.mxu0 0.0
    %8262 = vmatpush1.msra.mxu0 %v8140
    %8263 = vmatprep.subr.mxu0 0.0
    %8264 = vmatpush1.msra.mxu0 %v8141
    %8265 = vmatprep.subr.mxu0 0.0
    %8266 = vmatpush1.msra.mxu0 %v8142
    %8267 = vmatprep.subr.mxu0 0.0
    %8268 = vmatpush1.msra.mxu0 %v8143
    %8269 = vmatprep.subr.mxu0 0.0
    %8270 = vmatpush1.msra.mxu0 %v8144
    %8271 = vmatprep.subr.mxu0 0.0
    %8272 = vmatpush1.msra.mxu0 %v8145
    %8273 = vmatprep.subr.mxu0 0.0
    %8274 = vmatpush1.msra.mxu0 %v8146
    %8275 = vmatprep.subr.mxu0 0.0
    %8276 = vmatpush1.msra.mxu0 %v8147
    %8277 = vmatprep.subr.mxu0 0.0
    %8278 = vmatpush1.msra.mxu0 %v8148
    %8279 = vmatprep.subr.mxu0 0.0
    %8280 = vmatpush1.msra.mxu0 %v8149
    %8281 = vmatprep.subr.mxu0 0.0
    %8282 = vmatpush1.msra.mxu0 %v8150
    %8283 = vmatprep.subr.mxu0 0.0
    %8284 = vmatpush1.msra.mxu0 %v8151
    %8285 = vmatprep.subr.mxu0 0.0
    %8286 = vmatpush1.msra.mxu0 %v8152
    %8287 = vmatprep.subr.mxu0 0.0
    %8288 = vmatpush1.msra.mxu0 %v8153
    %8289 = vmatprep.subr.mxu0 0.0
    %8290 = vmatpush1.msra.mxu0 0.0
    %8291 = vmatprep.subr.mxu0 0.0
    %8292 = vmatpush1.msra.mxu0 0.0
    %8293 = vmatprep.subr.mxu0 0.0
    %8294 = vmatpush1.msra.mxu0 0.0
    %8295 = vmatprep.subr.mxu0 0.0
    %8296 = vmatpush1.msra.mxu0 0.0
    %8297 = vmatprep.subr.mxu0 0.0
    %8298 = vmatpush1.msra.mxu0 0.0
    %8299 = vmatprep.subr.mxu0 0.0
    %8300 = vmatpush1.msra.mxu0 0.0
    %8301 = vmatprep.subr.mxu0 0.0
    %8302 = vmatpush1.msra.mxu0 0.0
    %8303 = vmatprep.subr.mxu0 0.0
    %8304 = vmatpush1.msra.mxu0 0.0
    %8305 = vmatprep.subr.mxu0 0.0
    %8306 = vmatpush1.msra.mxu0 0.0
    %8307 = vmatprep.subr.mxu0 0.0
    %8308 = vmatpush1.msra.mxu0 0.0
    %8309 = vmatprep.subr.mxu0 0.0
    %8310 = vmatpush1.msra.mxu0 0.0
    %8311 = vmatprep.subr.mxu0 0.0
    %8312 = vmatpush1.msra.mxu0 0.0
    %8313 = vmatprep.subr.mxu0 0.0
    %8314 = vmatpush1.msra.mxu0 0.0
    %8315 = vmatprep.subr.mxu0 0.0
    %8316 = vmatpush1.msra.mxu0 0.0
    %8317 = vmatprep.subr.mxu0 0.0
    %8318 = vmatpush1.msra.mxu0 0.0
    %8319 = vmatprep.subr.mxu0 0.0
    %8320 = vmatpush1.msra.mxu0 0.0
    %8321 = vmatprep.mubr.f32.mxu0 0.0
    %8322 = vmatmul.mubr.f32.gmra.mrb[0].mxu0 %v8008
    %v8323 = vpop.f32.mrb[0].mxu0
    %v8324 = vadd.f32 %v8254, %v8323
    %v8325 = vpop.f32.mrb[0].mxu0
    %8326 = vdwg.mxu0
    %s8327 = scalar_lea.vmem %s59, 6
    %v8328 = vld [vmem:[%s8327] sm:$0x1]
    %v8330 = vlaneseq
    %v8331 = vshrl.u32 %v8330, 7
    %v8332 = vsub.s32 0, %v8331
    %v8333 = vrot.slane %v8328, %v8332
    %v8335 = vadd.f32 %v8324, %v8333
    %v8336 = vmax.f32 %v8335, 0.0
    %s8337 = scalar_lea.vmem %s51, 960
    %v8338 = vld [vmem:[%s8337] sm:$0xf]
    %v8339 = vld [vmem:[%s8337 + $0x4] sm:$0xf]
    %v8340 = vld [vmem:[%s8337 + $0x8] sm:$0xf]
    %v8341 = vld [vmem:[%s8337 + $0xc] sm:$0xf]
    %v8342 = vld [vmem:[%s8337 + $0x10] sm:$0xf]
    %v8343 = vld [vmem:[%s8337 + $0x14] sm:$0xf]
    %v8344 = vld [vmem:[%s8337 + $0x18] sm:$0xf]
    %v8345 = vld [vmem:[%s8337 + $0x1c] sm:$0xf]
    %v8346 = vld [vmem:[%s8337 + $0x20] sm:$0xf]
    %v8347 = vld [vmem:[%s8337 + $0x24] sm:$0xf]
    %v8348 = vld [vmem:[%s8337 + $0x28] sm:$0xf]
    %v8349 = vld [vmem:[%s8337 + $0x2c] sm:$0xf]
    %v8350 = vld [vmem:[%s8337 + $0x30] sm:$0xf]
    %v8351 = vld [vmem:[%s8337 + $0x34] sm:$0xf]
    %v8352 = vld [vmem:[%s8337 + $0x38] sm:$0xf]
    %v8353 = vld [vmem:[%s8337 + $0x3c] sm:$0xf]
    %v8354 = vunpack.c.l.bf16 %v8338
    %v8355 = vunpack.c.l.bf16 %v8339
    %v8356 = vunpack.c.l.bf16 %v8340
    %v8357 = vunpack.c.l.bf16 %v8341
    %v8358 = vunpack.c.l.bf16 %v8342
    %v8359 = vunpack.c.l.bf16 %v8343
    %v8360 = vunpack.c.l.bf16 %v8344
    %v8361 = vunpack.c.l.bf16 %v8345
    %v8362 = vunpack.c.l.bf16 %v8346
    %v8363 = vunpack.c.l.bf16 %v8347
    %v8364 = vunpack.c.l.bf16 %v8348
    %v8365 = vunpack.c.l.bf16 %v8349
    %v8366 = vunpack.c.l.bf16 %v8350
    %v8367 = vunpack.c.l.bf16 %v8351
    %v8368 = vunpack.c.l.bf16 %v8352
    %v8369 = vunpack.c.l.bf16 %v8353
    %s8370 = scalar_lea.vmem %s53, 15
    %v8371 = vld [vmem:[%s8370] sm:$0x1]
    %v8373 = vlaneseq
    %v8374 = vshrl.u32 %v8373, 7
    %v8375 = vsub.s32 0, %v8374
    %v8376 = vrot.slane %v8371, %v8375
    %8378 = vmatprep.subr.mxu0 0.0
    %8379 = vmatpush1.msra.mxu0 %v8354
    %8380 = vmatprep.subr.mxu0 0.0
    %8381 = vmatpush1.msra.mxu0 %v8355
    %8382 = vmatprep.subr.mxu0 0.0
    %8383 = vmatpush1.msra.mxu0 %v8356
    %8384 = vmatprep.subr.mxu0 0.0
    %8385 = vmatpush1.msra.mxu0 %v8357
    %8386 = vmatprep.subr.mxu0 0.0
    %8387 = vmatpush1.msra.mxu0 %v8358
    %8388 = vmatprep.subr.mxu0 0.0
    %8389 = vmatpush1.msra.mxu0 %v8359
    %8390 = vmatprep.subr.mxu0 0.0
    %8391 = vmatpush1.msra.mxu0 %v8360
    %8392 = vmatprep.subr.mxu0 0.0
    %8393 = vmatpush1.msra.mxu0 %v8361
    %8394 = vmatprep.subr.mxu0 0.0
    %8395 = vmatpush1.msra.mxu0 %v8362
    %8396 = vmatprep.subr.mxu0 0.0
    %8397 = vmatpush1.msra.mxu0 %v8363
    %8398 = vmatprep.subr.mxu0 0.0
    %8399 = vmatpush1.msra.mxu0 %v8364
    %8400 = vmatprep.subr.mxu0 0.0
    %8401 = vmatpush1.msra.mxu0 %v8365
    %8402 = vmatprep.subr.mxu0 0.0
    %8403 = vmatpush1.msra.mxu0 %v8366
    %8404 = vmatprep.subr.mxu0 0.0
    %8405 = vmatpush1.msra.mxu0 %v8367
    %8406 = vmatprep.subr.mxu0 0.0
    %8407 = vmatpush1.msra.mxu0 %v8368
    %8408 = vmatprep.subr.mxu0 0.0
    %8409 = vmatpush1.msra.mxu0 %v8369
    %8410 = vmatprep.subr.mxu0 0.0
    %8411 = vmatpush1.msra.mxu0 0.0
    %8412 = vmatprep.subr.mxu0 0.0
    %8413 = vmatpush1.msra.mxu0 0.0
    %8414 = vmatprep.subr.mxu0 0.0
    %8415 = vmatpush1.msra.mxu0 0.0
    %8416 = vmatprep.subr.mxu0 0.0
    %8417 = vmatpush1.msra.mxu0 0.0
    %8418 = vmatprep.subr.mxu0 0.0
    %8419 = vmatpush1.msra.mxu0 0.0
    %8420 = vmatprep.subr.mxu0 0.0
    %8421 = vmatpush1.msra.mxu0 0.0
    %8422 = vmatprep.subr.mxu0 0.0
    %8423 = vmatpush1.msra.mxu0 0.0
    %8424 = vmatprep.subr.mxu0 0.0
    %8425 = vmatpush1.msra.mxu0 0.0
    %8426 = vmatprep.subr.mxu0 0.0
    %8427 = vmatpush1.msra.mxu0 0.0
    %8428 = vmatprep.subr.mxu0 0.0
    %8429 = vmatpush1.msra.mxu0 0.0
    %8430 = vmatprep.subr.mxu0 0.0
    %8431 = vmatpush1.msra.mxu0 0.0
    %8432 = vmatprep.subr.mxu0 0.0
    %8433 = vmatpush1.msra.mxu0 0.0
    %8434 = vmatprep.subr.mxu0 0.0
    %8435 = vmatpush1.msra.mxu0 0.0
    %8436 = vmatprep.subr.mxu0 0.0
    %8437 = vmatpush1.msra.mxu0 0.0
    %8438 = vmatprep.subr.mxu0 0.0
    %8439 = vmatpush1.msra.mxu0 0.0
    %8440 = vmatprep.subr.mxu0 0.0
    %8441 = vmatpush1.msra.mxu0 0.0
    %8442 = vmatprep.mubr.f32.mxu0 0.0
    %8443 = vmatmul.mubr.f32.gmra.mrb[0].mxu0 %v8336
    %v8444 = vpop.f32.mrb[0].mxu0
    %v8445 = vadd.f32 %v8376, %v8444
    %v8446 = vpop.f32.mrb[0].mxu0
    %8447 = vdwg.mxu0
    %v8448 = vmax.f32 %v8445, 0.0
    %s8449 = scalar_lea.vmem %s55, 448
    %v8450 = vld [vmem:[%s8449] sm:$0xf]
    %v8451 = vld [vmem:[%s8449 + $0x4] sm:$0xf]
    %v8452 = vld [vmem:[%s8449 + $0x8] sm:$0xf]
    %v8453 = vld [vmem:[%s8449 + $0xc] sm:$0xf]
    %v8454 = vld [vmem:[%s8449 + $0x10] sm:$0xf]
    %v8455 = vld [vmem:[%s8449 + $0x14] sm:$0xf]
    %v8456 = vld [vmem:[%s8449 + $0x18] sm:$0xf]
    %v8457 = vld [vmem:[%s8449 + $0x1c] sm:$0xf]
    %v8458 = vld [vmem:[%s8449 + $0x20] sm:$0xf]
    %v8459 = vld [vmem:[%s8449 + $0x24] sm:$0xf]
    %v8460 = vld [vmem:[%s8449 + $0x28] sm:$0xf]
    %v8461 = vld [vmem:[%s8449 + $0x2c] sm:$0xf]
    %v8462 = vld [vmem:[%s8449 + $0x30] sm:$0xf]
    %v8463 = vld [vmem:[%s8449 + $0x34] sm:$0xf]
    %v8464 = vld [vmem:[%s8449 + $0x38] sm:$0xf]
    %v8465 = vld [vmem:[%s8449 + $0x3c] sm:$0xf]
    %v8466 = vunpack.c.l.bf16 %v8450
    %v8467 = vunpack.c.l.bf16 %v8451
    %v8468 = vunpack.c.l.bf16 %v8452
    %v8469 = vunpack.c.l.bf16 %v8453
    %v8470 = vunpack.c.l.bf16 %v8454
    %v8471 = vunpack.c.l.bf16 %v8455
    %v8472 = vunpack.c.l.bf16 %v8456
    %v8473 = vunpack.c.l.bf16 %v8457
    %v8474 = vunpack.c.l.bf16 %v8458
    %v8475 = vunpack.c.l.bf16 %v8459
    %v8476 = vunpack.c.l.bf16 %v8460
    %v8477 = vunpack.c.l.bf16 %v8461
    %v8478 = vunpack.c.l.bf16 %v8462
    %v8479 = vunpack.c.l.bf16 %v8463
    %v8480 = vunpack.c.l.bf16 %v8464
    %v8481 = vunpack.c.l.bf16 %v8465
    %s8482 = scalar_lea.vmem %s57, 448
    %v8483 = vld [vmem:[%s8482] sm:$0xf]
    %v8484 = vld [vmem:[%s8482 + $0x4] sm:$0xf]
    %v8485 = vld [vmem:[%s8482 + $0x8] sm:$0xf]
    %v8486 = vld [vmem:[%s8482 + $0xc] sm:$0xf]
    %v8487 = vld [vmem:[%s8482 + $0x10] sm:$0xf]
    %v8488 = vld [vmem:[%s8482 + $0x14] sm:$0xf]
    %v8489 = vld [vmem:[%s8482 + $0x18] sm:$0xf]
    %v8490 = vld [vmem:[%s8482 + $0x1c] sm:$0xf]
    %v8491 = vld [vmem:[%s8482 + $0x20] sm:$0xf]
    %v8492 = vld [vmem:[%s8482 + $0x24] sm:$0xf]
    %v8493 = vld [vmem:[%s8482 + $0x28] sm:$0xf]
    %v8494 = vld [vmem:[%s8482 + $0x2c] sm:$0xf]
    %v8495 = vld [vmem:[%s8482 + $0x30] sm:$0xf]
    %v8496 = vld [vmem:[%s8482 + $0x34] sm:$0xf]
    %v8497 = vld [vmem:[%s8482 + $0x38] sm:$0xf]
    %v8498 = vld [vmem:[%s8482 + $0x3c] sm:$0xf]
    %v8499 = vunpack.c.l.bf16 %v8483
    %v8500 = vunpack.c.l.bf16 %v8484
    %v8501 = vunpack.c.l.bf16 %v8485
    %v8502 = vunpack.c.l.bf16 %v8486
    %v8503 = vunpack.c.l.bf16 %v8487
    %v8504 = vunpack.c.l.bf16 %v8488
    %v8505 = vunpack.c.l.bf16 %v8489
    %v8506 = vunpack.c.l.bf16 %v8490
    %v8507 = vunpack.c.l.bf16 %v8491
    %v8508 = vunpack.c.l.bf16 %v8492
    %v8509 = vunpack.c.l.bf16 %v8493
    %v8510 = vunpack.c.l.bf16 %v8494
    %v8511 = vunpack.c.l.bf16 %v8495
    %v8512 = vunpack.c.l.bf16 %v8496
    %v8513 = vunpack.c.l.bf16 %v8497
    %v8514 = vunpack.c.l.bf16 %v8498
    %8515 = vmatprep.subr.mxu0 0.0
    %8516 = vmatpush1.msra.mxu0 %v8499
    %8517 = vmatprep.subr.mxu0 0.0
    %8518 = vmatpush1.msra.mxu0 %v8500
    %8519 = vmatprep.subr.mxu0 0.0
    %8520 = vmatpush1.msra.mxu0 %v8501
    %8521 = vmatprep.subr.mxu0 0.0
    %8522 = vmatpush1.msra.mxu0 %v8502
    %8523 = vmatprep.subr.mxu0 0.0
    %8524 = vmatpush1.msra.mxu0 %v8503
    %8525 = vmatprep.subr.mxu0 0.0
    %8526 = vmatpush1.msra.mxu0 %v8504
    %8527 = vmatprep.subr.mxu0 0.0
    %8528 = vmatpush1.msra.mxu0 %v8505
    %8529 = vmatprep.subr.mxu0 0.0
    %8530 = vmatpush1.msra.mxu0 %v8506
    %8531 = vmatprep.subr.mxu0 0.0
    %8532 = vmatpush1.msra.mxu0 %v8507
    %8533 = vmatprep.subr.mxu0 0.0
    %8534 = vmatpush1.msra.mxu0 %v8508
    %8535 = vmatprep.subr.mxu0 0.0
    %8536 = vmatpush1.msra.mxu0 %v8509
    %8537 = vmatprep.subr.mxu0 0.0
    %8538 = vmatpush1.msra.mxu0 %v8510
    %8539 = vmatprep.subr.mxu0 0.0
    %8540 = vmatpush1.msra.mxu0 %v8511
    %8541 = vmatprep.subr.mxu0 0.0
    %8542 = vmatpush1.msra.mxu0 %v8512
    %8543 = vmatprep.subr.mxu0 0.0
    %8544 = vmatpush1.msra.mxu0 %v8513
    %8545 = vmatprep.subr.mxu0 0.0
    %8546 = vmatpush1.msra.mxu0 %v8514
    %8547 = vmatprep.subr.mxu0 0.0
    %8548 = vmatpush1.msra.mxu0 0.0
    %8549 = vmatprep.subr.mxu0 0.0
    %8550 = vmatpush1.msra.mxu0 0.0
    %8551 = vmatprep.subr.mxu0 0.0
    %8552 = vmatpush1.msra.mxu0 0.0
    %8553 = vmatprep.subr.mxu0 0.0
    %8554 = vmatpush1.msra.mxu0 0.0
    %8555 = vmatprep.subr.mxu0 0.0
    %8556 = vmatpush1.msra.mxu0 0.0
    %8557 = vmatprep.subr.mxu0 0.0
    %8558 = vmatpush1.msra.mxu0 0.0
    %8559 = vmatprep.subr.mxu0 0.0
    %8560 = vmatpush1.msra.mxu0 0.0
    %8561 = vmatprep.subr.mxu0 0.0
    %8562 = vmatpush1.msra.mxu0 0.0
    %8563 = vmatprep.subr.mxu0 0.0
    %8564 = vmatpush1.msra.mxu0 0.0
    %8565 = vmatprep.subr.mxu0 0.0
    %8566 = vmatpush1.msra.mxu0 0.0
    %8567 = vmatprep.subr.mxu0 0.0
    %8568 = vmatpush1.msra.mxu0 0.0
    %8569 = vmatprep.subr.mxu0 0.0
    %8570 = vmatpush1.msra.mxu0 0.0
    %8571 = vmatprep.subr.mxu0 0.0
    %8572 = vmatpush1.msra.mxu0 0.0
    %8573 = vmatprep.subr.mxu0 0.0
    %8574 = vmatpush1.msra.mxu0 0.0
    %8575 = vmatprep.subr.mxu0 0.0
    %8576 = vmatpush1.msra.mxu0 0.0
    %8577 = vmatprep.subr.mxu0 0.0
    %8578 = vmatpush1.msra.mxu0 0.0
    %8579 = vmatprep.mubr.f32.mxu0 0.0
    %8580 = vmatmul.mubr.f32.gmra.mrb[0].mxu0 %v8448
    %v8581 = vpop.f32.mrb[0].mxu0
    %v8582 = vadd.f32 0.0, %v8581
    %v8583 = vpop.f32.mrb[0].mxu0
    %8584 = vdwg.mxu0
    %8585 = vmatprep.subr.mxu0 0.0
    %8586 = vmatpush1.msra.mxu0 %v8466
    %8587 = vmatprep.subr.mxu0 0.0
    %8588 = vmatpush1.msra.mxu0 %v8467
    %8589 = vmatprep.subr.mxu0 0.0
    %8590 = vmatpush1.msra.mxu0 %v8468
    %8591 = vmatprep.subr.mxu0 0.0
    %8592 = vmatpush1.msra.mxu0 %v8469
    %8593 = vmatprep.subr.mxu0 0.0
    %8594 = vmatpush1.msra.mxu0 %v8470
    %8595 = vmatprep.subr.mxu0 0.0
    %8596 = vmatpush1.msra.mxu0 %v8471
    %8597 = vmatprep.subr.mxu0 0.0
    %8598 = vmatpush1.msra.mxu0 %v8472
    %8599 = vmatprep.subr.mxu0 0.0
    %8600 = vmatpush1.msra.mxu0 %v8473
    %8601 = vmatprep.subr.mxu0 0.0
    %8602 = vmatpush1.msra.mxu0 %v8474
    %8603 = vmatprep.subr.mxu0 0.0
    %8604 = vmatpush1.msra.mxu0 %v8475
    %8605 = vmatprep.subr.mxu0 0.0
    %8606 = vmatpush1.msra.mxu0 %v8476
    %8607 = vmatprep.subr.mxu0 0.0
    %8608 = vmatpush1.msra.mxu0 %v8477
    %8609 = vmatprep.subr.mxu0 0.0
    %8610 = vmatpush1.msra.mxu0 %v8478
    %8611 = vmatprep.subr.mxu0 0.0
    %8612 = vmatpush1.msra.mxu0 %v8479
    %8613 = vmatprep.subr.mxu0 0.0
    %8614 = vmatpush1.msra.mxu0 %v8480
    %8615 = vmatprep.subr.mxu0 0.0
    %8616 = vmatpush1.msra.mxu0 %v8481
    %8617 = vmatprep.subr.mxu0 0.0
    %8618 = vmatpush1.msra.mxu0 0.0
    %8619 = vmatprep.subr.mxu0 0.0
    %8620 = vmatpush1.msra.mxu0 0.0
    %8621 = vmatprep.subr.mxu0 0.0
    %8622 = vmatpush1.msra.mxu0 0.0
    %8623 = vmatprep.subr.mxu0 0.0
    %8624 = vmatpush1.msra.mxu0 0.0
    %8625 = vmatprep.subr.mxu0 0.0
    %8626 = vmatpush1.msra.mxu0 0.0
    %8627 = vmatprep.subr.mxu0 0.0
    %8628 = vmatpush1.msra.mxu0 0.0
    %8629 = vmatprep.subr.mxu0 0.0
    %8630 = vmatpush1.msra.mxu0 0.0
    %8631 = vmatprep.subr.mxu0 0.0
    %8632 = vmatpush1.msra.mxu0 0.0
    %8633 = vmatprep.subr.mxu0 0.0
    %8634 = vmatpush1.msra.mxu0 0.0
    %8635 = vmatprep.subr.mxu0 0.0
    %8636 = vmatpush1.msra.mxu0 0.0
    %8637 = vmatprep.subr.mxu0 0.0
    %8638 = vmatpush1.msra.mxu0 0.0
    %8639 = vmatprep.subr.mxu0 0.0
    %8640 = vmatpush1.msra.mxu0 0.0
    %8641 = vmatprep.subr.mxu0 0.0
    %8642 = vmatpush1.msra.mxu0 0.0
    %8643 = vmatprep.subr.mxu0 0.0
    %8644 = vmatpush1.msra.mxu0 0.0
    %8645 = vmatprep.subr.mxu0 0.0
    %8646 = vmatpush1.msra.mxu0 0.0
    %8647 = vmatprep.subr.mxu0 0.0
    %8648 = vmatpush1.msra.mxu0 0.0
    %8649 = vmatprep.mubr.f32.mxu0 0.0
    %8650 = vmatmul.mubr.f32.gmra.mrb[0].mxu0 %v7896
    %v8651 = vpop.f32.mrb[0].mxu0
    %v8652 = vadd.f32 %v8582, %v8651
    %v8653 = vpop.f32.mrb[0].mxu0
    %8654 = vdwg.mxu0
    %s8655 = scalar_lea.vmem %s59, 7
    %v8656 = vld [vmem:[%s8655] sm:$0x1]
    %v8658 = vlaneseq
    %v8659 = vshrl.u32 %v8658, 7
    %v8660 = vsub.s32 0, %v8659
    %v8661 = vrot.slane %v8656, %v8660
    %v8663 = vadd.f32 %v8652, %v8661
    %v8664 = vmax.f32 %v8663, 0.0
    %s8665 = scalar_lea.vmem %s51, 1024
    %v8666 = vld [vmem:[%s8665] sm:$0xf]
    %v8667 = vld [vmem:[%s8665 + $0x4] sm:$0xf]
    %v8668 = vld [vmem:[%s8665 + $0x8] sm:$0xf]
    %v8669 = vld [vmem:[%s8665 + $0xc] sm:$0xf]
    %v8670 = vld [vmem:[%s8665 + $0x10] sm:$0xf]
    %v8671 = vld [vmem:[%s8665 + $0x14] sm:$0xf]
    %v8672 = vld [vmem:[%s8665 + $0x18] sm:$0xf]
    %v8673 = vld [vmem:[%s8665 + $0x1c] sm:$0xf]
    %v8674 = vld [vmem:[%s8665 + $0x20] sm:$0xf]
    %v8675 = vld [vmem:[%s8665 + $0x24] sm:$0xf]
    %v8676 = vld [vmem:[%s8665 + $0x28] sm:$0xf]
    %v8677 = vld [vmem:[%s8665 + $0x2c] sm:$0xf]
    %v8678 = vld [vmem:[%s8665 + $0x30] sm:$0xf]
    %v8679 = vld [vmem:[%s8665 + $0x34] sm:$0xf]
    %v8680 = vld [vmem:[%s8665 + $0x38] sm:$0xf]
    %v8681 = vld [vmem:[%s8665 + $0x3c] sm:$0xf]
    %v8682 = vunpack.c.l.bf16 %v8666
    %v8683 = vunpack.c.l.bf16 %v8667
    %v8684 = vunpack.c.l.bf16 %v8668
    %v8685 = vunpack.c.l.bf16 %v8669
    %v8686 = vunpack.c.l.bf16 %v8670
    %v8687 = vunpack.c.l.bf16 %v8671
    %v8688 = vunpack.c.l.bf16 %v8672
    %v8689 = vunpack.c.l.bf16 %v8673
    %v8690 = vunpack.c.l.bf16 %v8674
    %v8691 = vunpack.c.l.bf16 %v8675
    %v8692 = vunpack.c.l.bf16 %v8676
    %v8693 = vunpack.c.l.bf16 %v8677
    %v8694 = vunpack.c.l.bf16 %v8678
    %v8695 = vunpack.c.l.bf16 %v8679
    %v8696 = vunpack.c.l.bf16 %v8680
    %v8697 = vunpack.c.l.bf16 %v8681
    %s8698 = scalar_lea.vmem %s53, 16
    %v8699 = vld [vmem:[%s8698] sm:$0x1]
    %v8701 = vlaneseq
    %v8702 = vshrl.u32 %v8701, 7
    %v8703 = vsub.s32 0, %v8702
    %v8704 = vrot.slane %v8699, %v8703
    %8706 = vmatprep.subr.mxu0 0.0
    %8707 = vmatpush1.msra.mxu0 %v8682
    %8708 = vmatprep.subr.mxu0 0.0
    %8709 = vmatpush1.msra.mxu0 %v8683
    %8710 = vmatprep.subr.mxu0 0.0
    %8711 = vmatpush1.msra.mxu0 %v8684
    %8712 = vmatprep.subr.mxu0 0.0
    %8713 = vmatpush1.msra.mxu0 %v8685
    %8714 = vmatprep.subr.mxu0 0.0
    %8715 = vmatpush1.msra.mxu0 %v8686
    %8716 = vmatprep.subr.mxu0 0.0
    %8717 = vmatpush1.msra.mxu0 %v8687
    %8718 = vmatprep.subr.mxu0 0.0
    %8719 = vmatpush1.msra.mxu0 %v8688
    %8720 = vmatprep.subr.mxu0 0.0
    %8721 = vmatpush1.msra.mxu0 %v8689
    %8722 = vmatprep.subr.mxu0 0.0
    %8723 = vmatpush1.msra.mxu0 %v8690
    %8724 = vmatprep.subr.mxu0 0.0
    %8725 = vmatpush1.msra.mxu0 %v8691
    %8726 = vmatprep.subr.mxu0 0.0
    %8727 = vmatpush1.msra.mxu0 %v8692
    %8728 = vmatprep.subr.mxu0 0.0
    %8729 = vmatpush1.msra.mxu0 %v8693
    %8730 = vmatprep.subr.mxu0 0.0
    %8731 = vmatpush1.msra.mxu0 %v8694
    %8732 = vmatprep.subr.mxu0 0.0
    %8733 = vmatpush1.msra.mxu0 %v8695
    %8734 = vmatprep.subr.mxu0 0.0
    %8735 = vmatpush1.msra.mxu0 %v8696
    %8736 = vmatprep.subr.mxu0 0.0
    %8737 = vmatpush1.msra.mxu0 %v8697
    %8738 = vmatprep.subr.mxu0 0.0
    %8739 = vmatpush1.msra.mxu0 0.0
    %8740 = vmatprep.subr.mxu0 0.0
    %8741 = vmatpush1.msra.mxu0 0.0
    %8742 = vmatprep.subr.mxu0 0.0
    %8743 = vmatpush1.msra.mxu0 0.0
    %8744 = vmatprep.subr.mxu0 0.0
    %8745 = vmatpush1.msra.mxu0 0.0
    %8746 = vmatprep.subr.mxu0 0.0
    %8747 = vmatpush1.msra.mxu0 0.0
    %8748 = vmatprep.subr.mxu0 0.0
    %8749 = vmatpush1.msra.mxu0 0.0
    %8750 = vmatprep.subr.mxu0 0.0
    %8751 = vmatpush1.msra.mxu0 0.0
    %8752 = vmatprep.subr.mxu0 0.0
    %8753 = vmatpush1.msra.mxu0 0.0
    %8754 = vmatprep.subr.mxu0 0.0
    %8755 = vmatpush1.msra.mxu0 0.0
    %8756 = vmatprep.subr.mxu0 0.0
    %8757 = vmatpush1.msra.mxu0 0.0
    %8758 = vmatprep.subr.mxu0 0.0
    %8759 = vmatpush1.msra.mxu0 0.0
    %8760 = vmatprep.subr.mxu0 0.0
    %8761 = vmatpush1.msra.mxu0 0.0
    %8762 = vmatprep.subr.mxu0 0.0
    %8763 = vmatpush1.msra.mxu0 0.0
    %8764 = vmatprep.subr.mxu0 0.0
    %8765 = vmatpush1.msra.mxu0 0.0
    %8766 = vmatprep.subr.mxu0 0.0
    %8767 = vmatpush1.msra.mxu0 0.0
    %8768 = vmatprep.subr.mxu0 0.0
    %8769 = vmatpush1.msra.mxu0 0.0
    %8770 = vmatprep.mubr.f32.mxu0 0.0
    %8771 = vmatmul.mubr.f32.gmra.mrb[0].mxu0 %v8664
    %v8772 = vpop.f32.mrb[0].mxu0
    %v8773 = vadd.f32 %v8704, %v8772
    %v8774 = vpop.f32.mrb[0].mxu0
    %8775 = vdwg.mxu0
    %v8776 = vmax.f32 %v8773, 0.0
    %s8777 = scalar_lea.vmem %s55, 512
    %v8778 = vld [vmem:[%s8777] sm:$0xf]
    %v8779 = vld [vmem:[%s8777 + $0x4] sm:$0xf]
    %v8780 = vld [vmem:[%s8777 + $0x8] sm:$0xf]
    %v8781 = vld [vmem:[%s8777 + $0xc] sm:$0xf]
    %v8782 = vld [vmem:[%s8777 + $0x10] sm:$0xf]
    %v8783 = vld [vmem:[%s8777 + $0x14] sm:$0xf]
    %v8784 = vld [vmem:[%s8777 + $0x18] sm:$0xf]
    %v8785 = vld [vmem:[%s8777 + $0x1c] sm:$0xf]
    %v8786 = vld [vmem:[%s8777 + $0x20] sm:$0xf]
    %v8787 = vld [vmem:[%s8777 + $0x24] sm:$0xf]
    %v8788 = vld [vmem:[%s8777 + $0x28] sm:$0xf]
    %v8789 = vld [vmem:[%s8777 + $0x2c] sm:$0xf]
    %v8790 = vld [vmem:[%s8777 + $0x30] sm:$0xf]
    %v8791 = vld [vmem:[%s8777 + $0x34] sm:$0xf]
    %v8792 = vld [vmem:[%s8777 + $0x38] sm:$0xf]
    %v8793 = vld [vmem:[%s8777 + $0x3c] sm:$0xf]
    %v8794 = vunpack.c.l.bf16 %v8778
    %v8795 = vunpack.c.l.bf16 %v8779
    %v8796 = vunpack.c.l.bf16 %v8780
    %v8797 = vunpack.c.l.bf16 %v8781
    %v8798 = vunpack.c.l.bf16 %v8782
    %v8799 = vunpack.c.l.bf16 %v8783
    %v8800 = vunpack.c.l.bf16 %v8784
    %v8801 = vunpack.c.l.bf16 %v8785
    %v8802 = vunpack.c.l.bf16 %v8786
    %v8803 = vunpack.c.l.bf16 %v8787
    %v8804 = vunpack.c.l.bf16 %v8788
    %v8805 = vunpack.c.l.bf16 %v8789
    %v8806 = vunpack.c.l.bf16 %v8790
    %v8807 = vunpack.c.l.bf16 %v8791
    %v8808 = vunpack.c.l.bf16 %v8792
    %v8809 = vunpack.c.l.bf16 %v8793
    %s8810 = scalar_lea.vmem %s57, 512
    %v8811 = vld [vmem:[%s8810] sm:$0xf]
    %v8812 = vld [vmem:[%s8810 + $0x4] sm:$0xf]
    %v8813 = vld [vmem:[%s8810 + $0x8] sm:$0xf]
    %v8814 = vld [vmem:[%s8810 + $0xc] sm:$0xf]
    %v8815 = vld [vmem:[%s8810 + $0x10] sm:$0xf]
    %v8816 = vld [vmem:[%s8810 + $0x14] sm:$0xf]
    %v8817 = vld [vmem:[%s8810 + $0x18] sm:$0xf]
    %v8818 = vld [vmem:[%s8810 + $0x1c] sm:$0xf]
    %v8819 = vld [vmem:[%s8810 + $0x20] sm:$0xf]
    %v8820 = vld [vmem:[%s8810 + $0x24] sm:$0xf]
    %v8821 = vld [vmem:[%s8810 + $0x28] sm:$0xf]
    %v8822 = vld [vmem:[%s8810 + $0x2c] sm:$0xf]
    %v8823 = vld [vmem:[%s8810 + $0x30] sm:$0xf]
    %v8824 = vld [vmem:[%s8810 + $0x34] sm:$0xf]
    %v8825 = vld [vmem:[%s8810 + $0x38] sm:$0xf]
    %v8826 = vld [vmem:[%s8810 + $0x3c] sm:$0xf]
    %v8827 = vunpack.c.l.bf16 %v8811
    %v8828 = vunpack.c.l.bf16 %v8812
    %v8829 = vunpack.c.l.bf16 %v8813
    %v8830 = vunpack.c.l.bf16 %v8814
    %v8831 = vunpack.c.l.bf16 %v8815
    %v8832 = vunpack.c.l.bf16 %v8816
    %v8833 = vunpack.c.l.bf16 %v8817
    %v8834 = vunpack.c.l.bf16 %v8818
    %v8835 = vunpack.c.l.bf16 %v8819
    %v8836 = vunpack.c.l.bf16 %v8820
    %v8837 = vunpack.c.l.bf16 %v8821
    %v8838 = vunpack.c.l.bf16 %v8822
    %v8839 = vunpack.c.l.bf16 %v8823
    %v8840 = vunpack.c.l.bf16 %v8824
    %v8841 = vunpack.c.l.bf16 %v8825
    %v8842 = vunpack.c.l.bf16 %v8826
    %8843 = vmatprep.subr.mxu0 0.0
    %8844 = vmatpush1.msra.mxu0 %v8827
    %8845 = vmatprep.subr.mxu0 0.0
    %8846 = vmatpush1.msra.mxu0 %v8828
    %8847 = vmatprep.subr.mxu0 0.0
    %8848 = vmatpush1.msra.mxu0 %v8829
    %8849 = vmatprep.subr.mxu0 0.0
    %8850 = vmatpush1.msra.mxu0 %v8830
    %8851 = vmatprep.subr.mxu0 0.0
    %8852 = vmatpush1.msra.mxu0 %v8831
    %8853 = vmatprep.subr.mxu0 0.0
    %8854 = vmatpush1.msra.mxu0 %v8832
    %8855 = vmatprep.subr.mxu0 0.0
    %8856 = vmatpush1.msra.mxu0 %v8833
    %8857 = vmatprep.subr.mxu0 0.0
    %8858 = vmatpush1.msra.mxu0 %v8834
    %8859 = vmatprep.subr.mxu0 0.0
    %8860 = vmatpush1.msra.mxu0 %v8835
    %8861 = vmatprep.subr.mxu0 0.0
    %8862 = vmatpush1.msra.mxu0 %v8836
    %8863 = vmatprep.subr.mxu0 0.0
    %8864 = vmatpush1.msra.mxu0 %v8837
    %8865 = vmatprep.subr.mxu0 0.0
    %8866 = vmatpush1.msra.mxu0 %v8838
    %8867 = vmatprep.subr.mxu0 0.0
    %8868 = vmatpush1.msra.mxu0 %v8839
    %8869 = vmatprep.subr.mxu0 0.0
    %8870 = vmatpush1.msra.mxu0 %v8840
    %8871 = vmatprep.subr.mxu0 0.0
    %8872 = vmatpush1.msra.mxu0 %v8841
    %8873 = vmatprep.subr.mxu0 0.0
    %8874 = vmatpush1.msra.mxu0 %v8842
    %8875 = vmatprep.subr.mxu0 0.0
    %8876 = vmatpush1.msra.mxu0 0.0
    %8877 = vmatprep.subr.mxu0 0.0
    %8878 = vmatpush1.msra.mxu0 0.0
    %8879 = vmatprep.subr.mxu0 0.0
    %8880 = vmatpush1.msra.mxu0 0.0
    %8881 = vmatprep.subr.mxu0 0.0
    %8882 = vmatpush1.msra.mxu0 0.0
    %8883 = vmatprep.subr.mxu0 0.0
    %8884 = vmatpush1.msra.mxu0 0.0
    %8885 = vmatprep.subr.mxu0 0.0
    %8886 = vmatpush1.msra.mxu0 0.0
    %8887 = vmatprep.subr.mxu0 0.0
    %8888 = vmatpush1.msra.mxu0 0.0
    %8889 = vmatprep.subr.mxu0 0.0
    %8890 = vmatpush1.msra.mxu0 0.0
    %8891 = vmatprep.subr.mxu0 0.0
    %8892 = vmatpush1.msra.mxu0 0.0
    %8893 = vmatprep.subr.mxu0 0.0
    %8894 = vmatpush1.msra.mxu0 0.0
    %8895 = vmatprep.subr.mxu0 0.0
    %8896 = vmatpush1.msra.mxu0 0.0
    %8897 = vmatprep.subr.mxu0 0.0
    %8898 = vmatpush1.msra.mxu0 0.0
    %8899 = vmatprep.subr.mxu0 0.0
    %8900 = vmatpush1.msra.mxu0 0.0
    %8901 = vmatprep.subr.mxu0 0.0
    %8902 = vmatpush1.msra.mxu0 0.0
    %8903 = vmatprep.subr.mxu0 0.0
    %8904 = vmatpush1.msra.mxu0 0.0
    %8905 = vmatprep.subr.mxu0 0.0
    %8906 = vmatpush1.msra.mxu0 0.0
    %8907 = vmatprep.mubr.f32.mxu0 0.0
    %8908 = vmatmul.mubr.f32.gmra.mrb[0].mxu0 %v8776
    %v8909 = vpop.f32.mrb[0].mxu0
    %v8910 = vadd.f32 0.0, %v8909
    %v8911 = vpop.f32.mrb[0].mxu0
    %8912 = vdwg.mxu0
    %8913 = vmatprep.subr.mxu0 0.0
    %8914 = vmatpush1.msra.mxu0 %v8794
    %8915 = vmatprep.subr.mxu0 0.0
    %8916 = vmatpush1.msra.mxu0 %v8795
    %8917 = vmatprep.subr.mxu0 0.0
    %8918 = vmatpush1.msra.mxu0 %v8796
    %8919 = vmatprep.subr.mxu0 0.0
    %8920 = vmatpush1.msra.mxu0 %v8797
    %8921 = vmatprep.subr.mxu0 0.0
    %8922 = vmatpush1.msra.mxu0 %v8798
    %8923 = vmatprep.subr.mxu0 0.0
    %8924 = vmatpush1.msra.mxu0 %v8799
    %8925 = vmatprep.subr.mxu0 0.0
    %8926 = vmatpush1.msra.mxu0 %v8800
    %8927 = vmatprep.subr.mxu0 0.0
    %8928 = vmatpush1.msra.mxu0 %v8801
    %8929 = vmatprep.subr.mxu0 0.0
    %8930 = vmatpush1.msra.mxu0 %v8802
    %8931 = vmatprep.subr.mxu0 0.0
    %8932 = vmatpush1.msra.mxu0 %v8803
    %8933 = vmatprep.subr.mxu0 0.0
    %8934 = vmatpush1.msra.mxu0 %v8804
    %8935 = vmatprep.subr.mxu0 0.0
    %8936 = vmatpush1.msra.mxu0 %v8805
    %8937 = vmatprep.subr.mxu0 0.0
    %8938 = vmatpush1.msra.mxu0 %v8806
    %8939 = vmatprep.subr.mxu0 0.0
    %8940 = vmatpush1.msra.mxu0 %v8807
    %8941 = vmatprep.subr.mxu0 0.0
    %8942 = vmatpush1.msra.mxu0 %v8808
    %8943 = vmatprep.subr.mxu0 0.0
    %8944 = vmatpush1.msra.mxu0 %v8809
    %8945 = vmatprep.subr.mxu0 0.0
    %8946 = vmatpush1.msra.mxu0 0.0
    %8947 = vmatprep.subr.mxu0 0.0
    %8948 = vmatpush1.msra.mxu0 0.0
    %8949 = vmatprep.subr.mxu0 0.0
    %8950 = vmatpush1.msra.mxu0 0.0
    %8951 = vmatprep.subr.mxu0 0.0
    %8952 = vmatpush1.msra.mxu0 0.0
    %8953 = vmatprep.subr.mxu0 0.0
    %8954 = vmatpush1.msra.mxu0 0.0
    %8955 = vmatprep.subr.mxu0 0.0
    %8956 = vmatpush1.msra.mxu0 0.0
    %8957 = vmatprep.subr.mxu0 0.0
    %8958 = vmatpush1.msra.mxu0 0.0
    %8959 = vmatprep.subr.mxu0 0.0
    %8960 = vmatpush1.msra.mxu0 0.0
    %8961 = vmatprep.subr.mxu0 0.0
    %8962 = vmatpush1.msra.mxu0 0.0
    %8963 = vmatprep.subr.mxu0 0.0
    %8964 = vmatpush1.msra.mxu0 0.0
    %8965 = vmatprep.subr.mxu0 0.0
    %8966 = vmatpush1.msra.mxu0 0.0
    %8967 = vmatprep.subr.mxu0 0.0
    %8968 = vmatpush1.msra.mxu0 0.0
    %8969 = vmatprep.subr.mxu0 0.0
    %8970 = vmatpush1.msra.mxu0 0.0
    %8971 = vmatprep.subr.mxu0 0.0
    %8972 = vmatpush1.msra.mxu0 0.0
    %8973 = vmatprep.subr.mxu0 0.0
    %8974 = vmatpush1.msra.mxu0 0.0
    %8975 = vmatprep.subr.mxu0 0.0
    %8976 = vmatpush1.msra.mxu0 0.0
    %8977 = vmatprep.mubr.f32.mxu0 0.0
    %8978 = vmatmul.mubr.f32.gmra.mrb[0].mxu0 %v7784
    %v8979 = vpop.f32.mrb[0].mxu0
    %v8980 = vadd.f32 %v8910, %v8979
    %v8981 = vpop.f32.mrb[0].mxu0
    %8982 = vdwg.mxu0
    %s8983 = scalar_lea.vmem %s59, 8
    %v8984 = vld [vmem:[%s8983] sm:$0x1]
    %v8986 = vlaneseq
    %v8987 = vshrl.u32 %v8986, 7
    %v8988 = vsub.s32 0, %v8987
    %v8989 = vrot.slane %v8984, %v8988
    %v8991 = vadd.f32 %v8980, %v8989
    %v8992 = vmax.f32 %v8991, 0.0
    %s8993 = scalar_lea.vmem %s51, 1088
    %v8994 = vld [vmem:[%s8993] sm:$0xf]
    %v8995 = vld [vmem:[%s8993 + $0x4] sm:$0xf]
    %v8996 = vld [vmem:[%s8993 + $0x8] sm:$0xf]
    %v8997 = vld [vmem:[%s8993 + $0xc] sm:$0xf]
    %v8998 = vld [vmem:[%s8993 + $0x10] sm:$0xf]
    %v8999 = vld [vmem:[%s8993 + $0x14] sm:$0xf]
    %v9000 = vld [vmem:[%s8993 + $0x18] sm:$0xf]
    %v9001 = vld [vmem:[%s8993 + $0x1c] sm:$0xf]
    %v9002 = vld [vmem:[%s8993 + $0x20] sm:$0xf]
    %v9003 = vld [vmem:[%s8993 + $0x24] sm:$0xf]
    %v9004 = vld [vmem:[%s8993 + $0x28] sm:$0xf]
    %v9005 = vld [vmem:[%s8993 + $0x2c] sm:$0xf]
    %v9006 = vld [vmem:[%s8993 + $0x30] sm:$0xf]
    %v9007 = vld [vmem:[%s8993 + $0x34] sm:$0xf]
    %v9008 = vld [vmem:[%s8993 + $0x38] sm:$0xf]
    %v9009 = vld [vmem:[%s8993 + $0x3c] sm:$0xf]
    %v9010 = vunpack.c.l.bf16 %v8994
    %v9011 = vunpack.c.l.bf16 %v8995
    %v9012 = vunpack.c.l.bf16 %v8996
    %v9013 = vunpack.c.l.bf16 %v8997
    %v9014 = vunpack.c.l.bf16 %v8998
    %v9015 = vunpack.c.l.bf16 %v8999
    %v9016 = vunpack.c.l.bf16 %v9000
    %v9017 = vunpack.c.l.bf16 %v9001
    %v9018 = vunpack.c.l.bf16 %v9002
    %v9019 = vunpack.c.l.bf16 %v9003
    %v9020 = vunpack.c.l.bf16 %v9004
    %v9021 = vunpack.c.l.bf16 %v9005
    %v9022 = vunpack.c.l.bf16 %v9006
    %v9023 = vunpack.c.l.bf16 %v9007
    %v9024 = vunpack.c.l.bf16 %v9008
    %v9025 = vunpack.c.l.bf16 %v9009
    %s9026 = scalar_lea.vmem %s53, 17
    %v9027 = vld [vmem:[%s9026] sm:$0x1]
    %v9029 = vlaneseq
    %v9030 = vshrl.u32 %v9029, 7
    %v9031 = vsub.s32 0, %v9030
    %v9032 = vrot.slane %v9027, %v9031
    %9034 = vmatprep.subr.mxu0 0.0
    %9035 = vmatpush1.msra.mxu0 %v9010
    %9036 = vmatprep.subr.mxu0 0.0
    %9037 = vmatpush1.msra.mxu0 %v9011
    %9038 = vmatprep.subr.mxu0 0.0
    %9039 = vmatpush1.msra.mxu0 %v9012
    %9040 = vmatprep.subr.mxu0 0.0
    %9041 = vmatpush1.msra.mxu0 %v9013
    %9042 = vmatprep.subr.mxu0 0.0
    %9043 = vmatpush1.msra.mxu0 %v9014
    %9044 = vmatprep.subr.mxu0 0.0
    %9045 = vmatpush1.msra.mxu0 %v9015
    %9046 = vmatprep.subr.mxu0 0.0
    %9047 = vmatpush1.msra.mxu0 %v9016
    %9048 = vmatprep.subr.mxu0 0.0
    %9049 = vmatpush1.msra.mxu0 %v9017
    %9050 = vmatprep.subr.mxu0 0.0
    %9051 = vmatpush1.msra.mxu0 %v9018
    %9052 = vmatprep.subr.mxu0 0.0
    %9053 = vmatpush1.msra.mxu0 %v9019
    %9054 = vmatprep.subr.mxu0 0.0
    %9055 = vmatpush1.msra.mxu0 %v9020
    %9056 = vmatprep.subr.mxu0 0.0
    %9057 = vmatpush1.msra.mxu0 %v9021
    %9058 = vmatprep.subr.mxu0 0.0
    %9059 = vmatpush1.msra.mxu0 %v9022
    %9060 = vmatprep.subr.mxu0 0.0
    %9061 = vmatpush1.msra.mxu0 %v9023
    %9062 = vmatprep.subr.mxu0 0.0
    %9063 = vmatpush1.msra.mxu0 %v9024
    %9064 = vmatprep.subr.mxu0 0.0
    %9065 = vmatpush1.msra.mxu0 %v9025
    %9066 = vmatprep.subr.mxu0 0.0
    %9067 = vmatpush1.msra.mxu0 0.0
    %9068 = vmatprep.subr.mxu0 0.0
    %9069 = vmatpush1.msra.mxu0 0.0
    %9070 = vmatprep.subr.mxu0 0.0
    %9071 = vmatpush1.msra.mxu0 0.0
    %9072 = vmatprep.subr.mxu0 0.0
    %9073 = vmatpush1.msra.mxu0 0.0
    %9074 = vmatprep.subr.mxu0 0.0
    %9075 = vmatpush1.msra.mxu0 0.0
    %9076 = vmatprep.subr.mxu0 0.0
    %9077 = vmatpush1.msra.mxu0 0.0
    %9078 = vmatprep.subr.mxu0 0.0
    %9079 = vmatpush1.msra.mxu0 0.0
    %9080 = vmatprep.subr.mxu0 0.0
    %9081 = vmatpush1.msra.mxu0 0.0
    %9082 = vmatprep.subr.mxu0 0.0
    %9083 = vmatpush1.msra.mxu0 0.0
    %9084 = vmatprep.subr.mxu0 0.0
    %9085 = vmatpush1.msra.mxu0 0.0
    %9086 = vmatprep.subr.mxu0 0.0
    %9087 = vmatpush1.msra.mxu0 0.0
    %9088 = vmatprep.subr.mxu0 0.0
    %9089 = vmatpush1.msra.mxu0 0.0
    %9090 = vmatprep.subr.mxu0 0.0
    %9091 = vmatpush1.msra.mxu0 0.0
    %9092 = vmatprep.subr.mxu0 0.0
    %9093 = vmatpush1.msra.mxu0 0.0
    %9094 = vmatprep.subr.mxu0 0.0
    %9095 = vmatpush1.msra.mxu0 0.0
    %9096 = vmatprep.subr.mxu0 0.0
    %9097 = vmatpush1.msra.mxu0 0.0
    %9098 = vmatprep.mubr.f32.mxu0 0.0
    %9099 = vmatmul.mubr.f32.gmra.mrb[0].mxu0 %v8992
    %v9100 = vpop.f32.mrb[0].mxu0
    %v9101 = vadd.f32 %v9032, %v9100
    %v9102 = vpop.f32.mrb[0].mxu0
    %9103 = vdwg.mxu0
    %v9104 = vmax.f32 %v9101, 0.0
    %s9105 = scalar_lea.vmem %s61, 128
    %v9106 = vld [vmem:[%s9105] sm:$0xf]
    %v9107 = vld [vmem:[%s9105 + $0x4] sm:$0xf]
    %v9108 = vld [vmem:[%s9105 + $0x8] sm:$0xf]
    %v9109 = vld [vmem:[%s9105 + $0xc] sm:$0xf]
    %v9110 = vld [vmem:[%s9105 + $0x10] sm:$0xf]
    %v9111 = vld [vmem:[%s9105 + $0x14] sm:$0xf]
    %v9112 = vld [vmem:[%s9105 + $0x18] sm:$0xf]
    %v9113 = vld [vmem:[%s9105 + $0x1c] sm:$0xf]
    %v9114 = vld [vmem:[%s9105 + $0x20] sm:$0xf]
    %v9115 = vld [vmem:[%s9105 + $0x24] sm:$0xf]
    %v9116 = vld [vmem:[%s9105 + $0x28] sm:$0xf]
    %v9117 = vld [vmem:[%s9105 + $0x2c] sm:$0xf]
    %v9118 = vld [vmem:[%s9105 + $0x30] sm:$0xf]
    %v9119 = vld [vmem:[%s9105 + $0x34] sm:$0xf]
    %v9120 = vld [vmem:[%s9105 + $0x38] sm:$0xf]
    %v9121 = vld [vmem:[%s9105 + $0x3c] sm:$0xf]
    %v9122 = vunpack.c.l.bf16 %v9106
    %v9123 = vunpack.c.l.bf16 %v9107
    %v9124 = vunpack.c.l.bf16 %v9108
    %v9125 = vunpack.c.l.bf16 %v9109
    %v9126 = vunpack.c.l.bf16 %v9110
    %v9127 = vunpack.c.l.bf16 %v9111
    %v9128 = vunpack.c.l.bf16 %v9112
    %v9129 = vunpack.c.l.bf16 %v9113
    %v9130 = vunpack.c.l.bf16 %v9114
    %v9131 = vunpack.c.l.bf16 %v9115
    %v9132 = vunpack.c.l.bf16 %v9116
    %v9133 = vunpack.c.l.bf16 %v9117
    %v9134 = vunpack.c.l.bf16 %v9118
    %v9135 = vunpack.c.l.bf16 %v9119
    %v9136 = vunpack.c.l.bf16 %v9120
    %v9137 = vunpack.c.l.bf16 %v9121
    %s9138 = scalar_lea.vmem %s63, 2
    %v9139 = vld [vmem:[%s9138] sm:$0x1]
    %v9141 = vlaneseq
    %v9142 = vshrl.u32 %v9141, 7
    %v9143 = vsub.s32 0, %v9142
    %v9144 = vrot.slane %v9139, %v9143
    %9146 = vmatprep.subr.mxu0 0.0
    %9147 = vmatpush1.msra.mxu0 %v9122
    %9148 = vmatprep.subr.mxu0 0.0
    %9149 = vmatpush1.msra.mxu0 %v9123
    %9150 = vmatprep.subr.mxu0 0.0
    %9151 = vmatpush1.msra.mxu0 %v9124
    %9152 = vmatprep.subr.mxu0 0.0
    %9153 = vmatpush1.msra.mxu0 %v9125
    %9154 = vmatprep.subr.mxu0 0.0
    %9155 = vmatpush1.msra.mxu0 %v9126
    %9156 = vmatprep.subr.mxu0 0.0
    %9157 = vmatpush1.msra.mxu0 %v9127
    %9158 = vmatprep.subr.mxu0 0.0
    %9159 = vmatpush1.msra.mxu0 %v9128
    %9160 = vmatprep.subr.mxu0 0.0
    %9161 = vmatpush1.msra.mxu0 %v9129
    %9162 = vmatprep.subr.mxu0 0.0
    %9163 = vmatpush1.msra.mxu0 %v9130
    %9164 = vmatprep.subr.mxu0 0.0
    %9165 = vmatpush1.msra.mxu0 %v9131
    %9166 = vmatprep.subr.mxu0 0.0
    %9167 = vmatpush1.msra.mxu0 %v9132
    %9168 = vmatprep.subr.mxu0 0.0
    %9169 = vmatpush1.msra.mxu0 %v9133
    %9170 = vmatprep.subr.mxu0 0.0
    %9171 = vmatpush1.msra.mxu0 %v9134
    %9172 = vmatprep.subr.mxu0 0.0
    %9173 = vmatpush1.msra.mxu0 %v9135
    %9174 = vmatprep.subr.mxu0 0.0
    %9175 = vmatpush1.msra.mxu0 %v9136
    %9176 = vmatprep.subr.mxu0 0.0
    %9177 = vmatpush1.msra.mxu0 %v9137
    %9178 = vmatprep.subr.mxu0 0.0
    %9179 = vmatpush1.msra.mxu0 0.0
    %9180 = vmatprep.subr.mxu0 0.0
    %9181 = vmatpush1.msra.mxu0 0.0
    %9182 = vmatprep.subr.mxu0 0.0
    %9183 = vmatpush1.msra.mxu0 0.0
    %9184 = vmatprep.subr.mxu0 0.0
    %9185 = vmatpush1.msra.mxu0 0.0
    %9186 = vmatprep.subr.mxu0 0.0
    %9187 = vmatpush1.msra.mxu0 0.0
    %9188 = vmatprep.subr.mxu0 0.0
    %9189 = vmatpush1.msra.mxu0 0.0
    %9190 = vmatprep.subr.mxu0 0.0
    %9191 = vmatpush1.msra.mxu0 0.0
    %9192 = vmatprep.subr.mxu0 0.0
    %9193 = vmatpush1.msra.mxu0 0.0
    %9194 = vmatprep.subr.mxu0 0.0
    %9195 = vmatpush1.msra.mxu0 0.0
    %9196 = vmatprep.subr.mxu0 0.0
    %9197 = vmatpush1.msra.mxu0 0.0
    %9198 = vmatprep.subr.mxu0 0.0
    %9199 = vmatpush1.msra.mxu0 0.0
    %9200 = vmatprep.subr.mxu0 0.0
    %9201 = vmatpush1.msra.mxu0 0.0
    %9202 = vmatprep.subr.mxu0 0.0
    %9203 = vmatpush1.msra.mxu0 0.0
    %9204 = vmatprep.subr.mxu0 0.0
    %9205 = vmatpush1.msra.mxu0 0.0
    %9206 = vmatprep.subr.mxu0 0.0
    %9207 = vmatpush1.msra.mxu0 0.0
    %9208 = vmatprep.subr.mxu0 0.0
    %9209 = vmatpush1.msra.mxu0 0.0
    %9210 = vmatprep.mubr.f32.mxu0 0.0
    %9211 = vmatmul.mubr.f32.gmra.mrb[0].mxu0 %v9104
    %v9212 = vpop.f32.mrb[0].mxu0
    %v9213 = vadd.f32 %v9144, %v9212
    %v9214 = vpop.f32.mrb[0].mxu0
    %9215 = vdwg.mxu0
    %9216 = vst.msk [vmem:[%s65 + $0x10] sm:$0xff] %vm3410, %v9213
    // Predicated region
    $region174: #{diffusion_forward.3} parent=1 // pred_check
      _
    $region175: #{diffusion_forward.3} parent=1 // pred_check_branch
      %9218 = sbr.rel (0) target = $region177
    $region176: #{diffusion_forward.3} parent=1 // pred_region
      _
    $region177: #{diffusion_forward.3} parent=1 // pred_fallthru
      _
    // Predicated region
    $region178: #{diffusion_forward.3} parent=1 // pred_check
      _
    $region179: #{diffusion_forward.3} parent=1 // pred_check_branch
      %9220 = sbr.rel (0) target = $region181
    $region180: #{diffusion_forward.3} parent=1 // pred_region
      _
    $region181: #{diffusion_forward.3} parent=1 // pred_fallthru
      _
    %9221 = vsyncpa [#allocation5], 1
    %9222 = vsyncpa [#allocation7], 1
    %9223 = vsyncpa [#allocation10], 1
    %9224 = vsyncpa [#allocation13], 1
    %9225 = vsyncpa [#allocation16], 1
    %9226 = vsyncpa [#allocation19], 1

</llo_original>
